<compile_context>
chip_gen: v7x
topology: tpu7x:2x2x1
jax: 0.10.0
libtpu: 0.0.40
codegen_flags: <defaults>
</compile_context>

<pallas_src>
import functools

import jax
import jax.numpy as jnp
from jax.experimental import pallas as pl
from jax.experimental.pallas import tpu as pltpu

_VMEM_LIMIT = 32 << 20  # fits every generation (v7x physical VMEM is 64 MiB)
_EPS = 1e-5


# ------------------------- Pallas kernels -------------------------

def _gemm_act_kernel(p_ref, w_ref, o_ref, *, act):
    """One M-tile of the im2col conv GEMM: bf16 x bf16 -> f32 acc, optional act."""
    y = jnp.dot(p_ref[...], w_ref[...], preferred_element_type=jnp.float32)
    if act == "leaky":
        y = jnp.where(y > 0, y, 0.2 * y)
    o_ref[...] = y.astype(o_ref.dtype)


def conv_gemm(patches, w_mat, *, act, out_dtype, tm=512):
    """patches: (M, K) bf16, w_mat: (K, OC) bf16 -> (M, OC) out_dtype."""
    M, K = patches.shape
    _, OC = w_mat.shape
    tm = min(tm, M)
    grid = (pl.cdiv(M, tm),)
    kern = functools.partial(_gemm_act_kernel, act=act)
    return pl.pallas_call(
        kern,
        out_shape=jax.ShapeDtypeStruct((M, OC), out_dtype),
        grid=grid,
        in_specs=[
            pl.BlockSpec((tm, K), lambda i: (i, 0)),   # streamed patch tiles
            pl.BlockSpec((K, OC), lambda i: (0, 0)),   # resident weights
        ],
        out_specs=pl.BlockSpec((tm, OC), lambda i: (i, 0)),
        compiler_params=pltpu.CompilerParams(
            dimension_semantics=("parallel",),
            vmem_limit_bytes=_VMEM_LIMIT,
        ),
    )(patches, w_mat)


def _bn_act_kernel(y_ref, scale_ref, shift_ref, o_ref):
    y = y_ref[...] * scale_ref[...] + shift_ref[...]
    o_ref[...] = jnp.where(y > 0, y, 0.2 * y).astype(o_ref.dtype)


def bn_leaky(y, scale, shift, *, out_dtype, tm=1024):
    """Apply folded BatchNorm (scale/shift from global batch stats) + LeakyReLU."""
    M, OC = y.shape
    tm = min(tm, M)
    grid = (pl.cdiv(M, tm),)
    return pl.pallas_call(
        _bn_act_kernel,
        out_shape=jax.ShapeDtypeStruct((M, OC), out_dtype),
        grid=grid,
        in_specs=[
            pl.BlockSpec((tm, OC), lambda i: (i, 0)),
            pl.BlockSpec((1, OC), lambda i: (0, 0)),
            pl.BlockSpec((1, OC), lambda i: (0, 0)),
        ],
        out_specs=pl.BlockSpec((tm, OC), lambda i: (i, 0)),
        compiler_params=pltpu.CompilerParams(
            dimension_semantics=("parallel",),
            vmem_limit_bytes=_VMEM_LIMIT,
        ),
    )(y, scale, shift)


def _head_kernel(p_ref, w_ref, o_ref):
    # conv5: OC=1, M=N -> VPU dot + sigmoid instead of a lane-padded MXU GEMM.
    p = p_ref[...].astype(jnp.float32)
    w = w_ref[...].astype(jnp.float32)
    y = jnp.sum(p * w, axis=-1, keepdims=True)
    o_ref[...] = 1.0 / (1.0 + jnp.exp(-y))


def head_sigmoid(patches, w_row):
    M, _ = patches.shape
    return pl.pallas_call(
        _head_kernel,
        out_shape=jax.ShapeDtypeStruct((M, 1), jnp.float32),
        in_specs=[pl.BlockSpec(memory_space=pltpu.MemorySpace.VMEM)] * 2,
        out_specs=pl.BlockSpec(memory_space=pltpu.MemorySpace.VMEM),
        compiler_params=pltpu.CompilerParams(vmem_limit_bytes=_VMEM_LIMIT),
    )(patches, w_row)


# ------------------------- XLA-side glue -------------------------

def im2col(x, kh, kw, stride, pad):
    """x: (N, H, W, C) -> patches (N*OH*OW, KH*KW*C), column ordering (kh, kw, c)."""
    if pad:
        x = jnp.pad(x, ((0, 0), (pad, pad), (pad, pad), (0, 0)))
    N, H, W, C = x.shape
    oh = (H - kh) // stride + 1
    ow = (W - kw) // stride + 1
    cols = []
    for i in range(kh):
        for j in range(kw):
            cols.append(x[:, i:i + stride * oh:stride, j:j + stride * ow:stride, :])
    p = jnp.stack(cols, axis=3)  # (N, oh, ow, kh*kw, C)
    return p.reshape(N * oh * ow, kh * kw * C), oh, ow


# (name, kernel, stride, pad, has_bn, activation) — mirrors nn.Sequential in __init__
_LAYERS = [
    ("conv1", 4, 2, 1, False, "leaky"),
    ("conv2", 4, 2, 1, True, "leaky"),
    ("conv3", 4, 2, 1, True, "leaky"),
    ("conv4", 8, 2, 1, True, "leaky"),
    ("conv5", 4, 1, 0, False, "sigmoid"),
]


def discriminator_forward(x_nchw, params):
    x = jnp.transpose(x_nchw, (0, 2, 3, 1))  # NCHW -> NHWC
    N, _, _, nc = x.shape

    # Zero-pad input channels to a multiple of 8 so conv1's K (= KH*KW*IC) is a
    # lane-friendly multiple of 128 — avoids ever materializing a padded copy of
    # the (large) patch matrix. Exact: padded channels meet zero weights.
    nc_pad = -(-nc // 8) * 8
    x = x.astype(jnp.bfloat16)
    if nc_pad != nc:
        x = jnp.pad(x, ((0, 0), (0, 0), (0, 0), (0, nc_pad - nc)))

    for name, k, s, p, bn, act in _LAYERS:
        w = params[name]                                   # (k, k, ic, oc) f32
        oc = w.shape[-1]
        if name == "conv1" and nc_pad != nc:
            w = jnp.pad(w, ((0, 0), (0, 0), (0, nc_pad - nc), (0, 0)))
        w_mat = w.reshape(-1, oc).astype(jnp.bfloat16)     # (K, OC), (kh,kw,ic) order

        patches, oh, ow = im2col(x, k, k, s, p)

        if name == "conv5":
            y = head_sigmoid(patches, w_mat.reshape(1, -1))
            x = y.reshape(N, oh, ow, oc)
            break

        if bn:
            # Tiled GEMM emits raw conv output (f32); global batch statistics
            # (biased variance, matching nn.BatchNorm2d training mode) are reduced
            # outside the kernel on the small (M, OC) array and folded into a
            # per-channel scale/shift for the second tiled kernel.
            y_raw = conv_gemm(patches, w_mat, act="none", out_dtype=jnp.float32)
            mean = jnp.mean(y_raw, axis=0, keepdims=True)
            var = jnp.mean(jnp.square(y_raw - mean), axis=0, keepdims=True)
            scale = params[name + "_gamma"] * jax.lax.rsqrt(var + _EPS)
            shift = params[name + "_beta"] - mean * scale
            y = bn_leaky(y_raw, scale, shift, out_dtype=jnp.bfloat16)
        else:
            y = conv_gemm(patches, w_mat, act="leaky", out_dtype=jnp.bfloat16)
        x = y.reshape(N, oh, ow, oc)

    # PyTorch: output.view(-1, 1).squeeze(1)
    return x.reshape(-1).astype(jnp.float32)


def init_params(key, nc, ndf):
    shapes = {
        "conv1": (4, 4, nc, ndf),
        "conv2": (4, 4, ndf, ndf * 2),
        "conv3": (4, 4, ndf * 2, ndf * 4),
        "conv4": (8, 8, ndf * 4, ndf * 8),
        "conv5": (4, 4, ndf * 8, 1),
    }
    params = {}
    for i, (name, shp) in enumerate(shapes.items()):
        params[name] = 0.02 * jax.random.normal(
            jax.random.fold_in(key, i), shp, jnp.float32)
    # BatchNorm affine params — PyTorch default init: weight=1, bias=0
    for name, oc in [("conv2", ndf * 2), ("conv3", ndf * 4), ("conv4", ndf * 8)]:
        params[name + "_gamma"] = jnp.ones((1, oc), jnp.float32)
        params[name + "_beta"] = jnp.zeros((1, oc), jnp.float32)
    return params


if __name__ == "__main__":
    nc, ndf = 3, 8
    N, H, W = 2, 96, 96  # 96x96 -> 48 -> 24 -> 12 -> 4 -> 1 (minimal valid spatial)
    key = jax.random.PRNGKey(0)
    kx, kp = jax.random.split(key)
    x = jax.random.normal(kx, (N, nc, H, W), jnp.float32)
    params = init_params(kp, nc, ndf)

    out = jax.jit(discriminator_forward)(x, params)
    out = jax.block_until_ready(out)
    assert out.shape == (N,), out.shape
    assert bool(jnp.all(jnp.isfinite(out))) and bool(jnp.all((out >= 0) & (out <= 1)))
    print("KERNEL_OK")
</pallas_src>

<mosaic_0001>
module attributes {stable_mosaic.version = 11 : i64} {
  func.func @_gemm_act_kernel(%arg0: i32, %arg1: memref<512x128xbf16, #tpu.memory_space<vmem>>, %arg2: memref<128x8xbf16, #tpu.memory_space<vmem>>, %arg3: memref<512x8xbf16, #tpu.memory_space<vmem>>) attributes {dimension_semantics = [#tpu.dimension_semantics<parallel>], iteration_bounds = array<i64: 9>, scalar_prefetch = 0 : i64, scratch_operands = 0 : i64, tpu.core_type = #tpu.core_type<tc>, window_params = [{transform_indices = @transform_0, window_bounds = array<i64: 512, 128>}, {pipeline_mode = #tpu.pipeline_mode<synchronous>, transform_indices = @transform_1, window_bounds = array<i64: 128, 8>}, {transform_indices = @transform_2, window_bounds = array<i64: 512, 8>}]} {
    %c0 = arith.constant 0 : index
    %c0_0 = arith.constant 0 : index
    %0 = vector.load %arg1[%c0, %c0_0] : memref<512x128xbf16, #tpu.memory_space<vmem>>, vector<512x128xbf16>
    %c0_1 = arith.constant 0 : index
    %c0_2 = arith.constant 0 : index
    %1 = vector.load %arg2[%c0_1, %c0_2] : memref<128x8xbf16, #tpu.memory_space<vmem>>, vector<128x8xbf16>
    %cst = arith.constant dense<0.000000e+00> : vector<512x8xf32>
    %2 = tpu.matmul %0, %1, %cst {dimension_numbers = #tpu.dot_dimension_numbers<[1], [0], [0], [1], [0, 0, 1, 1], [], []>} : vector<512x128xbf16>, vector<128x8xbf16>, vector<512x8xf32> -> vector<512x8xf32>
    %cst_3 = arith.constant 0.000000e+00 : f32
    %3 = vector.broadcast %cst_3 : f32 to vector<512x8xf32>
    %4 = arith.cmpf ogt, %2, %3 : vector<512x8xf32>
    %cst_4 = arith.constant 2.000000e-01 : f32
    %5 = vector.broadcast %cst_4 : f32 to vector<512x8xf32>
    %6 = arith.mulf %5, %2 : vector<512x8xf32>
    %7 = arith.select %4, %2, %6 : vector<512x8xi1>, vector<512x8xf32>
    %8 = arith.truncf %7 : vector<512x8xf32> to vector<512x8xbf16>
    %c0_5 = arith.constant 0 : index
    %c0_6 = arith.constant 0 : index
    %9 = vector.load %arg3[%c0_5, %c0_6] : memref<512x8xbf16, #tpu.memory_space<vmem>>, vector<512x8xbf16>
    tpu.vector_store %arg3[%c0_5, %c0_6], %8 {strides = array<i32>} : memref<512x8xbf16, #tpu.memory_space<vmem>>, vector<512x8xbf16>,
    return
  }
  func.func @transform_0(%arg0: i32) -> (i32, i32) {
    %c0_i32 = arith.constant 0 : i32
    %c0_i32_0 = arith.constant 0 : i32
    return %arg0, %c0_i32 : i32, i32
  }
  func.func @transform_1(%arg0: i32) -> (i32, i32) {
    %c0_i32 = arith.constant 0 : i32
    %c0_i32_0 = arith.constant 0 : i32
    %c0_i32_1 = arith.constant 0 : i32
    return %c0_i32, %c0_i32_0 : i32, i32
  }
  func.func @transform_2(%arg0: i32) -> (i32, i32) {
    %c0_i32 = arith.constant 0 : i32
    %c0_i32_0 = arith.constant 0 : i32
    return %arg0, %c0_i32 : i32, i32
  }
}

module attributes {stable_mosaic.version = 11 : i64} {
  func.func @_gemm_act_kernel(%arg0: i32, %arg1: memref<512x128xbf16, #tpu.memory_space<vmem>>, %arg2: memref<128x16xbf16, #tpu.memory_space<vmem>>, %arg3: memref<512x16xf32, #tpu.memory_space<vmem>>) attributes {dimension_semantics = [#tpu.dimension_semantics<parallel>], iteration_bounds = array<i64: 3>, scalar_prefetch = 0 : i64, scratch_operands = 0 : i64, tpu.core_type = #tpu.core_type<tc>, window_params = [{transform_indices = @transform_0, window_bounds = array<i64: 512, 128>}, {pipeline_mode = #tpu.pipeline_mode<synchronous>, transform_indices = @transform_1, window_bounds = array<i64: 128, 16>}, {transform_indices = @transform_2, window_bounds = array<i64: 512, 16>}]} {
    %c0 = arith.constant 0 : index
    %c0_0 = arith.constant 0 : index
    %0 = vector.load %arg1[%c0, %c0_0] : memref<512x128xbf16, #tpu.memory_space<vmem>>, vector<512x128xbf16>
    %c0_1 = arith.constant 0 : index
    %c0_2 = arith.constant 0 : index
    %1 = vector.load %arg2[%c0_1, %c0_2] : memref<128x16xbf16, #tpu.memory_space<vmem>>, vector<128x16xbf16>
    %cst = arith.constant dense<0.000000e+00> : vector<512x16xf32>
    %2 = tpu.matmul %0, %1, %cst {dimension_numbers = #tpu.dot_dimension_numbers<[1], [0], [0], [1], [0, 0, 1, 1], [], []>} : vector<512x128xbf16>, vector<128x16xbf16>, vector<512x16xf32> -> vector<512x16xf32>
    %c0_3 = arith.constant 0 : index
    %c0_4 = arith.constant 0 : index
    %3 = vector.load %arg3[%c0_3, %c0_4] : memref<512x16xf32, #tpu.memory_space<vmem>>, vector<512x16xf32>
    tpu.vector_store %arg3[%c0_3, %c0_4], %2 {strides = array<i32>} : memref<512x16xf32, #tpu.memory_space<vmem>>, vector<512x16xf32>,
    return
  }
  func.func @transform_0(%arg0: i32) -> (i32, i32) {
    %c0_i32 = arith.constant 0 : i32
    %c0_i32_0 = arith.constant 0 : i32
    return %arg0, %c0_i32 : i32, i32
  }
  func.func @transform_1(%arg0: i32) -> (i32, i32) {
    %c0_i32 = arith.constant 0 : i32
    %c0_i32_0 = arith.constant 0 : i32
    %c0_i32_1 = arith.constant 0 : i32
    return %c0_i32, %c0_i32_0 : i32, i32
  }
  func.func @transform_2(%arg0: i32) -> (i32, i32) {
    %c0_i32 = arith.constant 0 : i32
    %c0_i32_0 = arith.constant 0 : i32
    return %arg0, %c0_i32 : i32, i32
  }
}

module attributes {stable_mosaic.version = 11 : i64} {
  func.func @_bn_act_kernel(%arg0: i32, %arg1: memref<1024x16xf32, #tpu.memory_space<vmem>>, %arg2: memref<1x16xf32, #tpu.memory_space<vmem>>, %arg3: memref<1x16xf32, #tpu.memory_space<vmem>>, %arg4: memref<1024x16xbf16, #tpu.memory_space<vmem>>) attributes {dimension_semantics = [#tpu.dimension_semantics<parallel>], iteration_bounds = array<i64: 2>, scalar_prefetch = 0 : i64, scratch_operands = 0 : i64, tpu.core_type = #tpu.core_type<tc>, window_params = [{transform_indices = @transform_0, window_bounds = array<i64: 1024, 16>}, {pipeline_mode = #tpu.pipeline_mode<synchronous>, transform_indices = @transform_1, window_bounds = array<i64: 1, 16>}, {pipeline_mode = #tpu.pipeline_mode<synchronous>, transform_indices = @transform_2, window_bounds = array<i64: 1, 16>}, {transform_indices = @transform_3, window_bounds = array<i64: 1024, 16>}]} {
    %c0 = arith.constant 0 : index
    %c0_0 = arith.constant 0 : index
    %0 = vector.load %arg1[%c0, %c0_0] : memref<1024x16xf32, #tpu.memory_space<vmem>>, vector<1024x16xf32>
    %c0_1 = arith.constant 0 : index
    %c0_2 = arith.constant 0 : index
    %1 = vector.load %arg2[%c0_1, %c0_2] : memref<1x16xf32, #tpu.memory_space<vmem>>, vector<1x16xf32>
    %2 = vector.broadcast %1 : vector<1x16xf32> to vector<1024x16xf32>
    %3 = arith.mulf %0, %2 : vector<1024x16xf32>
    %c0_3 = arith.constant 0 : index
    %c0_4 = arith.constant 0 : index
    %4 = vector.load %arg3[%c0_3, %c0_4] : memref<1x16xf32, #tpu.memory_space<vmem>>, vector<1x16xf32>
    %5 = vector.broadcast %4 : vector<1x16xf32> to vector<1024x16xf32>
    %6 = arith.addf %3, %5 : vector<1024x16xf32>
    %cst = arith.constant 0.000000e+00 : f32
    %7 = vector.broadcast %cst : f32 to vector<1024x16xf32>
    %8 = arith.cmpf ogt, %6, %7 : vector<1024x16xf32>
    %cst_5 = arith.constant 2.000000e-01 : f32
    %9 = vector.broadcast %cst_5 : f32 to vector<1024x16xf32>
    %10 = arith.mulf %9, %6 : vector<1024x16xf32>
    %11 = arith.select %8, %6, %10 : vector<1024x16xi1>, vector<1024x16xf32>
    %12 = arith.truncf %11 : vector<1024x16xf32> to vector<1024x16xbf16>
    %c0_6 = arith.constant 0 : index
    %c0_7 = arith.constant 0 : index
    %13 = vector.load %arg4[%c0_6, %c0_7] : memref<1024x16xbf16, #tpu.memory_space<vmem>>, vector<1024x16xbf16>
    tpu.vector_store %arg4[%c0_6, %c0_7], %12 {strides = array<i32>} : memref<1024x16xbf16, #tpu.memory_space<vmem>>, vector<1024x16xbf16>,
    return
  }
  func.func @transform_0(%arg0: i32) -> (i32, i32) {
    %c0_i32 = arith.constant 0 : i32
    %c0_i32_0 = arith.constant 0 : i32
    return %arg0, %c0_i32 : i32, i32
  }
  func.func @transform_1(%arg0: i32) -> (i32, i32) {
    %c0_i32 = arith.constant 0 : i32
    %c0_i32_0 = arith.constant 0 : i32
    %c0_i32_1 = arith.constant 0 : i32
    return %c0_i32, %c0_i32_0 : i32, i32
  }
  func.func @transform_2(%arg0: i32) -> (i32, i32) {
    %c0_i32 = arith.constant 0 : i32
    %c0_i32_0 = arith.constant 0 : i32
    %c0_i32_1 = arith.constant 0 : i32
    return %c0_i32, %c0_i32_0 : i32, i32
  }
  func.func @transform_3(%arg0: i32) -> (i32, i32) {
    %c0_i32 = arith.constant 0 : i32
    %c0_i32_0 = arith.constant 0 : i32
    return %arg0, %c0_i32 : i32, i32
  }
}

module attributes {stable_mosaic.version = 11 : i64} {
  func.func @_gemm_act_kernel(%arg0: i32, %arg1: memref<288x256xbf16, #tpu.memory_space<vmem>>, %arg2: memref<256x32xbf16, #tpu.memory_space<vmem>>, %arg3: memref<288x32xf32, #tpu.memory_space<vmem>>) attributes {dimension_semantics = [#tpu.dimension_semantics<parallel>], iteration_bounds = array<i64: 1>, scalar_prefetch = 0 : i64, scratch_operands = 0 : i64, tpu.core_type = #tpu.core_type<tc>, window_params = [{transform_indices = @transform_0, window_bounds = array<i64: 288, 256>}, {pipeline_mode = #tpu.pipeline_mode<synchronous>, transform_indices = @transform_1, window_bounds = array<i64: 256, 32>}, {transform_indices = @transform_2, window_bounds = array<i64: 288, 32>}]} {
    %c0 = arith.constant 0 : index
    %c0_0 = arith.constant 0 : index
    %0 = vector.load %arg1[%c0, %c0_0] : memref<288x256xbf16, #tpu.memory_space<vmem>>, vector<288x256xbf16>
    %c0_1 = arith.constant 0 : index
    %c0_2 = arith.constant 0 : index
    %1 = vector.load %arg2[%c0_1, %c0_2] : memref<256x32xbf16, #tpu.memory_space<vmem>>, vector<256x32xbf16>
    %cst = arith.constant dense<0.000000e+00> : vector<288x32xf32>
    %2 = tpu.matmul %0, %1, %cst {dimension_numbers = #tpu.dot_dimension_numbers<[1], [0], [0], [1], [0, 0, 1, 1], [], []>} : vector<288x256xbf16>, vector<256x32xbf16>, vector<288x32xf32> -> vector<288x32xf32>
    %c0_3 = arith.constant 0 : index
    %c0_4 = arith.constant 0 : index
    %3 = vector.load %arg3[%c0_3, %c0_4] : memref<288x32xf32, #tpu.memory_space<vmem>>, vector<288x32xf32>
    tpu.vector_store %arg3[%c0_3, %c0_4], %2 {strides = array<i32>} : memref<288x32xf32, #tpu.memory_space<vmem>>, vector<288x32xf32>,
    return
  }
  func.func @transform_0(%arg0: i32) -> (i32, i32) {
    %c0_i32 = arith.constant 0 : i32
    %c0_i32_0 = arith.constant 0 : i32
    return %arg0, %c0_i32 : i32, i32
  }
  func.func @transform_1(%arg0: i32) -> (i32, i32) {
    %c0_i32 = arith.constant 0 : i32
    %c0_i32_0 = arith.constant 0 : i32
    %c0_i32_1 = arith.constant 0 : i32
    return %c0_i32, %c0_i32_0 : i32, i32
  }
  func.func @transform_2(%arg0: i32) -> (i32, i32) {
    %c0_i32 = arith.constant 0 : i32
    %c0_i32_0 = arith.constant 0 : i32
    return %arg0, %c0_i32 : i32, i32
  }
}

module attributes {stable_mosaic.version = 11 : i64} {
  func.func @_bn_act_kernel(%arg0: i32, %arg1: memref<288x32xf32, #tpu.memory_space<vmem>>, %arg2: memref<1x32xf32, #tpu.memory_space<vmem>>, %arg3: memref<1x32xf32, #tpu.memory_space<vmem>>, %arg4: memref<288x32xbf16, #tpu.memory_space<vmem>>) attributes {dimension_semantics = [#tpu.dimension_semantics<parallel>], iteration_bounds = array<i64: 1>, scalar_prefetch = 0 : i64, scratch_operands = 0 : i64, tpu.core_type = #tpu.core_type<tc>, window_params = [{transform_indices = @transform_0, window_bounds = array<i64: 288, 32>}, {pipeline_mode = #tpu.pipeline_mode<synchronous>, transform_indices = @transform_1, window_bounds = array<i64: 1, 32>}, {pipeline_mode = #tpu.pipeline_mode<synchronous>, transform_indices = @transform_2, window_bounds = array<i64: 1, 32>}, {transform_indices = @transform_3, window_bounds = array<i64: 288, 32>}]} {
    %c0 = arith.constant 0 : index
    %c0_0 = arith.constant 0 : index
    %0 = vector.load %arg1[%c0, %c0_0] : memref<288x32xf32, #tpu.memory_space<vmem>>, vector<288x32xf32>
    %c0_1 = arith.constant 0 : index
    %c0_2 = arith.constant 0 : index
    %1 = vector.load %arg2[%c0_1, %c0_2] : memref<1x32xf32, #tpu.memory_space<vmem>>, vector<1x32xf32>
    %2 = vector.broadcast %1 : vector<1x32xf32> to vector<288x32xf32>
    %3 = arith.mulf %0, %2 : vector<288x32xf32>
    %c0_3 = arith.constant 0 : index
    %c0_4 = arith.constant 0 : index
    %4 = vector.load %arg3[%c0_3, %c0_4] : memref<1x32xf32, #tpu.memory_space<vmem>>, vector<1x32xf32>
    %5 = vector.broadcast %4 : vector<1x32xf32> to vector<288x32xf32>
    %6 = arith.addf %3, %5 : vector<288x32xf32>
    %cst = arith.constant 0.000000e+00 : f32
    %7 = vector.broadcast %cst : f32 to vector<288x32xf32>
    %8 = arith.cmpf ogt, %6, %7 : vector<288x32xf32>
    %cst_5 = arith.constant 2.000000e-01 : f32
    %9 = vector.broadcast %cst_5 : f32 to vector<288x32xf32>
    %10 = arith.mulf %9, %6 : vector<288x32xf32>
    %11 = arith.select %8, %6, %10 : vector<288x32xi1>, vector<288x32xf32>
    %12 = arith.truncf %11 : vector<288x32xf32> to vector<288x32xbf16>
    %c0_6 = arith.constant 0 : index
    %c0_7 = arith.constant 0 : index
    %13 = vector.load %arg4[%c0_6, %c0_7] : memref<288x32xbf16, #tpu.memory_space<vmem>>, vector<288x32xbf16>
    tpu.vector_store %arg4[%c0_6, %c0_7], %12 {strides = array<i32>} : memref<288x32xbf16, #tpu.memory_space<vmem>>, vector<288x32xbf16>,
    return
  }
  func.func @transform_0(%arg0: i32) -> (i32, i32) {
    %c0_i32 = arith.constant 0 : i32
    %c0_i32_0 = arith.constant 0 : i32
    return %arg0, %c0_i32 : i32, i32
  }
  func.func @transform_1(%arg0: i32) -> (i32, i32) {
    %c0_i32 = arith.constant 0 : i32
    %c0_i32_0 = arith.constant 0 : i32
    %c0_i32_1 = arith.constant 0 : i32
    return %c0_i32, %c0_i32_0 : i32, i32
  }
  func.func @transform_2(%arg0: i32) -> (i32, i32) {
    %c0_i32 = arith.constant 0 : i32
    %c0_i32_0 = arith.constant 0 : i32
    %c0_i32_1 = arith.constant 0 : i32
    return %c0_i32, %c0_i32_0 : i32, i32
  }
  func.func @transform_3(%arg0: i32) -> (i32, i32) {
    %c0_i32 = arith.constant 0 : i32
    %c0_i32_0 = arith.constant 0 : i32
    return %arg0, %c0_i32 : i32, i32
  }
}

module attributes {stable_mosaic.version = 11 : i64} {
  func.func @_gemm_act_kernel(%arg0: i32, %arg1: memref<32x2048xbf16, #tpu.memory_space<vmem>>, %arg2: memref<2048x64xbf16, #tpu.memory_space<vmem>>, %arg3: memref<32x64xf32, #tpu.memory_space<vmem>>) attributes {dimension_semantics = [#tpu.dimension_semantics<parallel>], iteration_bounds = array<i64: 1>, scalar_prefetch = 0 : i64, scratch_operands = 0 : i64, tpu.core_type = #tpu.core_type<tc>, window_params = [{transform_indices = @transform_0, window_bounds = array<i64: 32, 2048>}, {pipeline_mode = #tpu.pipeline_mode<synchronous>, transform_indices = @transform_1, window_bounds = array<i64: 2048, 64>}, {transform_indices = @transform_2, window_bounds = array<i64: 32, 64>}]} {
    %c0 = arith.constant 0 : index
    %c0_0 = arith.constant 0 : index
    %0 = vector.load %arg1[%c0, %c0_0] : memref<32x2048xbf16, #tpu.memory_space<vmem>>, vector<32x2048xbf16>
    %c0_1 = arith.constant 0 : index
    %c0_2 = arith.constant 0 : index
    %1 = vector.load %arg2[%c0_1, %c0_2] : memref<2048x64xbf16, #tpu.memory_space<vmem>>, vector<2048x64xbf16>
    %cst = arith.constant dense<0.000000e+00> : vector<32x64xf32>
    %2 = tpu.matmul %0, %1, %cst {dimension_numbers = #tpu.dot_dimension_numbers<[1], [0], [0], [1], [0, 0, 1, 1], [], []>} : vector<32x2048xbf16>, vector<2048x64xbf16>, vector<32x64xf32> -> vector<32x64xf32>
    %c0_3 = arith.constant 0 : index
    %c0_4 = arith.constant 0 : index
    %3 = vector.load %arg3[%c0_3, %c0_4] : memref<32x64xf32, #tpu.memory_space<vmem>>, vector<32x64xf32>
    tpu.vector_store %arg3[%c0_3, %c0_4], %2 {strides = array<i32>} : memref<32x64xf32, #tpu.memory_space<vmem>>, vector<32x64xf32>,
    return
  }
  func.func @transform_0(%arg0: i32) -> (i32, i32) {
    %c0_i32 = arith.constant 0 : i32
    %c0_i32_0 = arith.constant 0 : i32
    return %arg0, %c0_i32 : i32, i32
  }
  func.func @transform_1(%arg0: i32) -> (i32, i32) {
    %c0_i32 = arith.constant 0 : i32
    %c0_i32_0 = arith.constant 0 : i32
    %c0_i32_1 = arith.constant 0 : i32
    return %c0_i32, %c0_i32_0 : i32, i32
  }
  func.func @transform_2(%arg0: i32) -> (i32, i32) {
    %c0_i32 = arith.constant 0 : i32
    %c0_i32_0 = arith.constant 0 : i32
    return %arg0, %c0_i32 : i32, i32
  }
}

module attributes {stable_mosaic.version = 11 : i64} {
  func.func @_bn_act_kernel(%arg0: i32, %arg1: memref<32x64xf32, #tpu.memory_space<vmem>>, %arg2: memref<1x64xf32, #tpu.memory_space<vmem>>, %arg3: memref<1x64xf32, #tpu.memory_space<vmem>>, %arg4: memref<32x64xbf16, #tpu.memory_space<vmem>>) attributes {dimension_semantics = [#tpu.dimension_semantics<parallel>], iteration_bounds = array<i64: 1>, scalar_prefetch = 0 : i64, scratch_operands = 0 : i64, tpu.core_type = #tpu.core_type<tc>, window_params = [{transform_indices = @transform_0, window_bounds = array<i64: 32, 64>}, {pipeline_mode = #tpu.pipeline_mode<synchronous>, transform_indices = @transform_1, window_bounds = array<i64: 1, 64>}, {pipeline_mode = #tpu.pipeline_mode<synchronous>, transform_indices = @transform_2, window_bounds = array<i64: 1, 64>}, {transform_indices = @transform_3, window_bounds = array<i64: 32, 64>}]} {
    %c0 = arith.constant 0 : index
    %c0_0 = arith.constant 0 : index
    %0 = vector.load %arg1[%c0, %c0_0] : memref<32x64xf32, #tpu.memory_space<vmem>>, vector<32x64xf32>
    %c0_1 = arith.constant 0 : index
    %c0_2 = arith.constant 0 : index
    %1 = vector.load %arg2[%c0_1, %c0_2] : memref<1x64xf32, #tpu.memory_space<vmem>>, vector<1x64xf32>
    %2 = vector.broadcast %1 : vector<1x64xf32> to vector<32x64xf32>
    %3 = arith.mulf %0, %2 : vector<32x64xf32>
    %c0_3 = arith.constant 0 : index
    %c0_4 = arith.constant 0 : index
    %4 = vector.load %arg3[%c0_3, %c0_4] : memref<1x64xf32, #tpu.memory_space<vmem>>, vector<1x64xf32>
    %5 = vector.broadcast %4 : vector<1x64xf32> to vector<32x64xf32>
    %6 = arith.addf %3, %5 : vector<32x64xf32>
    %cst = arith.constant 0.000000e+00 : f32
    %7 = vector.broadcast %cst : f32 to vector<32x64xf32>
    %8 = arith.cmpf ogt, %6, %7 : vector<32x64xf32>
    %cst_5 = arith.constant 2.000000e-01 : f32
    %9 = vector.broadcast %cst_5 : f32 to vector<32x64xf32>
    %10 = arith.mulf %9, %6 : vector<32x64xf32>
    %11 = arith.select %8, %6, %10 : vector<32x64xi1>, vector<32x64xf32>
    %12 = arith.truncf %11 : vector<32x64xf32> to vector<32x64xbf16>
    %c0_6 = arith.constant 0 : index
    %c0_7 = arith.constant 0 : index
    %13 = vector.load %arg4[%c0_6, %c0_7] : memref<32x64xbf16, #tpu.memory_space<vmem>>, vector<32x64xbf16>
    tpu.vector_store %arg4[%c0_6, %c0_7], %12 {strides = array<i32>} : memref<32x64xbf16, #tpu.memory_space<vmem>>, vector<32x64xbf16>,
    return
  }
  func.func @transform_0(%arg0: i32) -> (i32, i32) {
    %c0_i32 = arith.constant 0 : i32
    %c0_i32_0 = arith.constant 0 : i32
    return %arg0, %c0_i32 : i32, i32
  }
  func.func @transform_1(%arg0: i32) -> (i32, i32) {
    %c0_i32 = arith.constant 0 : i32
    %c0_i32_0 = arith.constant 0 : i32
    %c0_i32_1 = arith.constant 0 : i32
    return %c0_i32, %c0_i32_0 : i32, i32
  }
  func.func @transform_2(%arg0: i32) -> (i32, i32) {
    %c0_i32 = arith.constant 0 : i32
    %c0_i32_0 = arith.constant 0 : i32
    %c0_i32_1 = arith.constant 0 : i32
    return %c0_i32, %c0_i32_0 : i32, i32
  }
  func.func @transform_3(%arg0: i32) -> (i32, i32) {
    %c0_i32 = arith.constant 0 : i32
    %c0_i32_0 = arith.constant 0 : i32
    return %arg0, %c0_i32 : i32, i32
  }
}

module attributes {stable_mosaic.version = 11 : i64} {
  func.func @_head_kernel(%arg0: memref<2x1024xbf16, #tpu.memory_space<vmem>>, %arg1: memref<1x1024xbf16, #tpu.memory_space<vmem>>, %arg2: memref<2x1xf32, #tpu.memory_space<vmem>>) attributes {dimension_semantics = [], scalar_prefetch = 0 : i64, scratch_operands = 0 : i64, tpu.core_type = #tpu.core_type<tc>} {
    %c0 = arith.constant 0 : index
    %c0_0 = arith.constant 0 : index
    %0 = vector.load %arg0[%c0, %c0_0] : memref<2x1024xbf16, #tpu.memory_space<vmem>>, vector<2x1024xbf16>
    %1 = arith.extf %0 : vector<2x1024xbf16> to vector<2x1024xf32>
    %c0_1 = arith.constant 0 : index
    %c0_2 = arith.constant 0 : index
    %2 = vector.load %arg1[%c0_1, %c0_2] : memref<1x1024xbf16, #tpu.memory_space<vmem>>, vector<1x1024xbf16>
    %3 = arith.extf %2 : vector<1x1024xbf16> to vector<1x1024xf32>
    %4 = vector.broadcast %3 : vector<1x1024xf32> to vector<2x1024xf32>
    %5 = arith.mulf %1, %4 : vector<2x1024xf32>
    %cst = arith.constant dense<0.000000e+00> : vector<2xf32>
    %6 = vector.multi_reduction <add>, %5, %cst [1] : vector<2x1024xf32> to vector<2xf32>
    %7 = vector.shape_cast %6 : vector<2xf32> to vector<2x1xf32>
    %cst_3 = arith.constant 0.000000e+00 : f32
    %8 = vector.broadcast %cst_3 : f32 to vector<2x1xf32>
    %9 = arith.subf %8, %7 : vector<2x1xf32>
    %10 = math.exp %9 : vector<2x1xf32>
    %cst_4 = arith.constant 1.000000e+00 : f32
    %11 = vector.broadcast %cst_4 : f32 to vector<2x1xf32>
    %12 = arith.addf %11, %10 : vector<2x1xf32>
    %cst_5 = arith.constant 1.000000e+00 : f32
    %13 = vector.broadcast %cst_5 : f32 to vector<2x1xf32>
    %14 = arith.divf %13, %12 : vector<2x1xf32>
    %c0_6 = arith.constant 0 : index
    %c0_7 = arith.constant 0 : index
    %15 = vector.load %arg2[%c0_6, %c0_7] : memref<2x1xf32, #tpu.memory_space<vmem>>, vector<2x1xf32>
    tpu.vector_store %arg2[%c0_6, %c0_7], %14 {strides = array<i32>} : memref<2x1xf32, #tpu.memory_space<vmem>>, vector<2x1xf32>,
    return
  }
}

</mosaic_0001>

<llo_original>
// kernel: discriminator_forward.8
$region0: #{discriminator_forward.8}
  #allocation0 [shape = 'u32[]', space=smem, size = 0x4, offset = 0x4, fixed_abs, tag = 'smem constant byte address 0x4 - core index']
  #allocation1 [shape = 'u32[144,128]{1,0:T(1,128)}', space=vmem, size = 0x12000, scoped, tag = 'internal scratch']
  %s0 = inlined_call_operand.vmem [shape: bf16[4608,128], index: 0, kind: input, shape index: {}]
  %s1 = inlined_call_operand.vmem [shape: bf16[128,8], index: 1, kind: input, shape index: {}]
  %s2 = inlined_call_operand.vmem [shape: bf16[4608,8], index: 2, kind: output, shape index: {}]
  %s3 = sld [smem:[#allocation0]]
  $region41: #{discriminator_forward.8} parent=0
    _
  %s5 = ssub.s32 1, %s3
  %s6 = scalar_select 0, %s5, %s3
  loop: start=0, step=1, limit=11
  $region2: #{discriminator_forward.8} parent=0 // loop_pre_header
    _
  $region3: #{discriminator_forward.8} parent=0 // loop_header
    %s8 = sphi 0, %s12
    %p9 = scmp.ge.s32.totalorder %s8, 11
    %s18 = sphi 0, %s20
    %s21 = sphi 0, %s18
    %s22 = sphi 0, %s21
    %s38 = sphi 0, %s22
    %s42 = sphi 0, %s42
    %s44 = sphi 0, %s42
    %s45 = sphi 0, %s44
    %s59 = sphi 0, %s45
    %s65 = sphi 0, %s67
    %s68 = sphi 0, %s65
    %s69 = sphi 0, %s68
    %s85 = sphi 0, %s69
  $region4: #{discriminator_forward.8} parent=0 // loop_header_branch
    %11 = sbr.rel (%p9) target = $region8
  $region5: #{discriminator_forward.8} parent=0 // loop_body
    %s13 = ssub.s32 %s8, 1
    %s14 = ssub.s32 %s8, 2
    %s15 = sadd.s32 %s8, 1
    %s16 = ssub.s32 %s8, %s15
    %p17 = scmp.eq.s32.totalorder %s16, 0
    %s19 = sadd.s32 %s18, 1
    %s20 = scalar_select %p17, %s18, %s19
    %p23 = pneg %p17
    %p24 = scmp.eq.s32.totalorder %s8, 8
    %p25 = por %p23, %p24
    %p26 = scmp.ne.s32.totalorder %s18, %s21
    %p27 = scmp.eq.s32.totalorder %s8, 0
    %p28 = por %p26, %p27
    %p29 = scmp.ne.s32.totalorder %s18, %s21
    %p30 = scmp.eq.s32.totalorder %s13, 8
    %p31 = por %p29, %p30
    %p32 = scmp.ne.s32.totalorder %s21, %s22
    %p33 = scmp.eq.s32.totalorder %s13, 0
    %p34 = por %p32, %p33
    %p35 = scmp.ne.s32.totalorder %s21, %s22
    %p36 = scmp.eq.s32.totalorder %s14, 8
    %p37 = por %p35, %p36
    %p39 = scmp.ne.s32.totalorder %s22, %s38
    %p40 = scmp.eq.s32.totalorder %s14, 0
    %p41 = por %p39, %p40
    %s43 = sadd.s32 %s42, 1
    %p46 = scmp.eq.s32.totalorder %s8, 8
    %p47 = scmp.ne.s32.totalorder %s42, %s44
    %p48 = scmp.eq.s32.totalorder %s8, 0
    %p49 = por %p47, %p48
    %p50 = scmp.ne.s32.totalorder %s42, %s44
    %p51 = scmp.eq.s32.totalorder %s13, 8
    %p52 = por %p50, %p51
    %p53 = scmp.ne.s32.totalorder %s44, %s45
    %p54 = scmp.eq.s32.totalorder %s13, 0
    %p55 = por %p53, %p54
    %p56 = scmp.ne.s32.totalorder %s44, %s45
    %p57 = scmp.eq.s32.totalorder %s14, 8
    %p58 = por %p56, %p57
    %p60 = scmp.ne.s32.totalorder %s45, %s59
    %p61 = scmp.eq.s32.totalorder %s14, 0
    %p62 = por %p60, %p61
    %s63 = ssub.s32 %s8, %s15
    %p64 = scmp.eq.s32.totalorder %s63, 0
    %s66 = sadd.s32 %s65, 1
    %s67 = scalar_select %p64, %s65, %s66
    %p70 = pneg %p64
    %p71 = scmp.eq.s32.totalorder %s8, 8
    %p72 = por %p70, %p71
    %p73 = scmp.ne.s32.totalorder %s65, %s68
    %p74 = scmp.eq.s32.totalorder %s8, 0
    %p75 = por %p73, %p74
    %p76 = scmp.ne.s32.totalorder %s65, %s68
    %p77 = scmp.eq.s32.totalorder %s13, 8
    %p78 = por %p76, %p77
    %p79 = scmp.ne.s32.totalorder %s68, %s69
    %p80 = scmp.eq.s32.totalorder %s13, 0
    %p81 = por %p79, %p80
    %p82 = scmp.ne.s32.totalorder %s68, %s69
    %p83 = scmp.eq.s32.totalorder %s14, 8
    %p84 = por %p82, %p83
    %p86 = scmp.ne.s32.totalorder %s69, %s85
    %p87 = scmp.eq.s32.totalorder %s14, 0
    %p88 = por %p86, %p87
    %p89 = scmp.le.s32.totalorder 1, %s8
    %p90 = scmp.lt.s32.totalorder %s8, 10
    %p91 = pnand %p89, %p90
    %p92 = pneg %p91
    // Predicated region
    $region9: #{discriminator_forward.8} parent=5 // pred_check
      _
    $region10: #{discriminator_forward.8} parent=5 // pred_check_branch
      %94 = sbr.rel (%p91) target = $region12
    $region11: #{discriminator_forward.8} parent=5 // pred_region
      %s95 = ssub.s32 %s8, 1
      // Predicated region
      $region13: #{discriminator_forward.8} parent=11 // pred_check
        %p96 = pneg %p55
      $region14: #{discriminator_forward.8} parent=11 // pred_check_branch
        %98 = sbr.rel (%p96) target = $region16
      $region15: #{discriminator_forward.8} parent=11 // pred_region
        _
      $region16: #{discriminator_forward.8} parent=11 // pred_fallthru
        _
    $region12: #{discriminator_forward.8} parent=5 // pred_fallthru
      _
    %p99 = scmp.lt.s32.totalorder %s8, 9
    // Predicated region
    $region17: #{discriminator_forward.8} parent=5 // pred_check
      %p100 = pneg %p99
    $region18: #{discriminator_forward.8} parent=5 // pred_check_branch
      %102 = sbr.rel (%p100) target = $region20
    $region19: #{discriminator_forward.8} parent=5 // pred_region
      // Predicated region
      $region21: #{discriminator_forward.8} parent=19 // pred_check
        %p103 = pneg %p28
      $region22: #{discriminator_forward.8} parent=19 // pred_check_branch
        %105 = sbr.rel (%p103) target = $region24
      $region23: #{discriminator_forward.8} parent=19 // pred_region
        %s106 = smul.u32 64, %s8
        %p107 = scmp.lt.s32.totalorder %s106, 575
        %s108 = scalar_select %p107, %s106, 575
        %s109 = smul.addr %s108, 4
        %s110 = scalar_lea.vmem %s0, %s109
        %s111 = smul.u32 64, %s8
      $region24: #{discriminator_forward.8} parent=19 // pred_fallthru
        _
    $region20: #{discriminator_forward.8} parent=5 // pred_fallthru
      _
    %p112 = scmp.le.s32.totalorder 1, %s8
    %p113 = scmp.lt.s32.totalorder %s8, 10
    %p114 = pnand %p112, %p113
    %p115 = pneg %p114
    // Predicated region
    $region25: #{discriminator_forward.8} parent=5 // pred_check
      _
    $region26: #{discriminator_forward.8} parent=5 // pred_check_branch
      %117 = sbr.rel (%p114) target = $region28
    $region27: #{discriminator_forward.8} parent=5 // pred_region
      %s118 = ssub.s32 %s8, 1
      %s119 = smul.u32 64, %s13
      %p120 = scmp.lt.s32.totalorder %s119, 575
      %s121 = scalar_select %p120, %s119, 575
      %s122 = smul.addr %s121, 4
      %s123 = scalar_lea.vmem %s0, %s122
      %p124 = pneg %p34
      %p125 = pneg %p31
      %p126 = pneg %p55
      %p127 = pneg %p52
      %p128 = pneg %p81
      %p129 = pneg %p78
      %s130 = smul.u32 64, %s13
      %p131 = scmp.lt.s32.totalorder %s130, 575
      %s132 = scalar_select %p131, %s130, 575
      %s133 = smul.addr %s132, 4
      %s134 = scalar_lea.vmem %s2, %s133
      %s135 = smul.u32 64, %s13
      %p136 = scmp.lt.s32.totalorder %s135, 575
      %s137 = scalar_select %p136, %s135, 575
      %s138 = smul.addr %s137, 4
      %s139 = scalar_lea.vmem %s0, %s138
      %s140 = smul.u32 64, %s13
      %s141 = smul.u32 64, %s13
      %p142 = scmp.lt.s32.totalorder %s141, 575
      %s143 = scalar_select %p142, %s141, 575
      %s144 = smul.addr %s143, 4
      %s145 = scalar_lea.vmem %s2, %s144
      %s146 = smul.u32 64, %s13
      %v148 = vld [vmem:[%s139] sm:$0xf]
      %v149 = vld [vmem:[%s139 + $0x4] sm:$0xf]
      %v150 = vld [vmem:[%s139 + $0x8] sm:$0xf]
      %v151 = vld [vmem:[%s139 + $0xc] sm:$0xf]
      %v152 = vld [vmem:[%s139 + $0x10] sm:$0xf]
      %v153 = vld [vmem:[%s139 + $0x14] sm:$0xf]
      %v154 = vld [vmem:[%s139 + $0x18] sm:$0xf]
      %v155 = vld [vmem:[%s139 + $0x1c] sm:$0xf]
      %v156 = vld [vmem:[%s139 + $0x20] sm:$0xf]
      %v157 = vld [vmem:[%s139 + $0x24] sm:$0xf]
      %v158 = vld [vmem:[%s139 + $0x28] sm:$0xf]
      %v159 = vld [vmem:[%s139 + $0x2c] sm:$0xf]
      %v160 = vld [vmem:[%s139 + $0x30] sm:$0xf]
      %v161 = vld [vmem:[%s139 + $0x34] sm:$0xf]
      %v162 = vld [vmem:[%s139 + $0x38] sm:$0xf]
      %v163 = vld [vmem:[%s139 + $0x3c] sm:$0xf]
      %v164 = vld [vmem:[%s139 + $0x40] sm:$0xf]
      %v165 = vld [vmem:[%s139 + $0x44] sm:$0xf]
      %v166 = vld [vmem:[%s139 + $0x48] sm:$0xf]
      %v167 = vld [vmem:[%s139 + $0x4c] sm:$0xf]
      %v168 = vld [vmem:[%s139 + $0x50] sm:$0xf]
      %v169 = vld [vmem:[%s139 + $0x54] sm:$0xf]
      %v170 = vld [vmem:[%s139 + $0x58] sm:$0xf]
      %v171 = vld [vmem:[%s139 + $0x5c] sm:$0xf]
      %v172 = vld [vmem:[%s139 + $0x60] sm:$0xf]
      %v173 = vld [vmem:[%s139 + $0x64] sm:$0xf]
      %v174 = vld [vmem:[%s139 + $0x68] sm:$0xf]
      %v175 = vld [vmem:[%s139 + $0x6c] sm:$0xf]
      %v176 = vld [vmem:[%s139 + $0x70] sm:$0xf]
      %v177 = vld [vmem:[%s139 + $0x74] sm:$0xf]
      %v178 = vld [vmem:[%s139 + $0x78] sm:$0xf]
      %v179 = vld [vmem:[%s139 + $0x7c] sm:$0xf]
      %v180 = vld [vmem:[%s139 + $0x80] sm:$0xf]
      %v181 = vld [vmem:[%s139 + $0x84] sm:$0xf]
      %v182 = vld [vmem:[%s139 + $0x88] sm:$0xf]
      %v183 = vld [vmem:[%s139 + $0x8c] sm:$0xf]
      %v184 = vld [vmem:[%s139 + $0x90] sm:$0xf]
      %v185 = vld [vmem:[%s139 + $0x94] sm:$0xf]
      %v186 = vld [vmem:[%s139 + $0x98] sm:$0xf]
      %v187 = vld [vmem:[%s139 + $0x9c] sm:$0xf]
      %v188 = vld [vmem:[%s139 + $0xa0] sm:$0xf]
      %v189 = vld [vmem:[%s139 + $0xa4] sm:$0xf]
      %v190 = vld [vmem:[%s139 + $0xa8] sm:$0xf]
      %v191 = vld [vmem:[%s139 + $0xac] sm:$0xf]
      %v192 = vld [vmem:[%s139 + $0xb0] sm:$0xf]
      %v193 = vld [vmem:[%s139 + $0xb4] sm:$0xf]
      %v194 = vld [vmem:[%s139 + $0xb8] sm:$0xf]
      %v195 = vld [vmem:[%s139 + $0xbc] sm:$0xf]
      %v196 = vld [vmem:[%s139 + $0xc0] sm:$0xf]
      %v197 = vld [vmem:[%s139 + $0xc4] sm:$0xf]
      %v198 = vld [vmem:[%s139 + $0xc8] sm:$0xf]
      %v199 = vld [vmem:[%s139 + $0xcc] sm:$0xf]
      %v200 = vld [vmem:[%s139 + $0xd0] sm:$0xf]
      %v201 = vld [vmem:[%s139 + $0xd4] sm:$0xf]
      %v202 = vld [vmem:[%s139 + $0xd8] sm:$0xf]
      %v203 = vld [vmem:[%s139 + $0xdc] sm:$0xf]
      %v204 = vld [vmem:[%s139 + $0xe0] sm:$0xf]
      %v205 = vld [vmem:[%s139 + $0xe4] sm:$0xf]
      %v206 = vld [vmem:[%s139 + $0xe8] sm:$0xf]
      %v207 = vld [vmem:[%s139 + $0xec] sm:$0xf]
      %v208 = vld [vmem:[%s139 + $0xf0] sm:$0xf]
      %v209 = vld [vmem:[%s139 + $0xf4] sm:$0xf]
      %v210 = vld [vmem:[%s139 + $0xf8] sm:$0xf]
      %v211 = vld [vmem:[%s139 + $0xfc] sm:$0xf]
      %v212 = vld [vmem:[%s1] sm:$0xf]
      %v213 = vld [vmem:[%s1 + $0x4] sm:$0xf]
      %v214 = vld [vmem:[%s1 + $0x8] sm:$0xf]
      %v215 = vld [vmem:[%s1 + $0xc] sm:$0xf]
      %v216 = vld [vmem:[%s1 + $0x10] sm:$0xf]
      %v217 = vld [vmem:[%s1 + $0x14] sm:$0xf]
      %v218 = vld [vmem:[%s1 + $0x18] sm:$0xf]
      %v219 = vld [vmem:[%s1 + $0x1c] sm:$0xf]
      %v220 = vld [vmem:[%s1 + $0x20] sm:$0xf]
      %v221 = vld [vmem:[%s1 + $0x24] sm:$0xf]
      %v222 = vld [vmem:[%s1 + $0x28] sm:$0xf]
      %v223 = vld [vmem:[%s1 + $0x2c] sm:$0xf]
      %v224 = vld [vmem:[%s1 + $0x30] sm:$0xf]
      %v225 = vld [vmem:[%s1 + $0x34] sm:$0xf]
      %v226 = vld [vmem:[%s1 + $0x38] sm:$0xf]
      %v227 = vld [vmem:[%s1 + $0x3c] sm:$0xf]
      %v292 = vunpack.c.l.b16 %v148
      %v293 = vunpack.c.l.b16 %v149
      %v294 = vunpack.c.l.b16 %v150
      %v295 = vunpack.c.l.b16 %v151
      %v296 = vunpack.c.l.b16 %v152
      %v297 = vunpack.c.l.b16 %v153
      %v298 = vunpack.c.l.b16 %v154
      %v299 = vunpack.c.l.b16 %v155
      %v300 = vunpack.c.l.b16 %v156
      %v301 = vunpack.c.l.b16 %v157
      %v302 = vunpack.c.l.b16 %v158
      %v303 = vunpack.c.l.b16 %v159
      %v304 = vunpack.c.l.b16 %v160
      %v305 = vunpack.c.l.b16 %v161
      %v306 = vunpack.c.l.b16 %v162
      %v307 = vunpack.c.l.b16 %v163
      %v308 = vunpack.c.l.b16 %v164
      %v309 = vunpack.c.l.b16 %v165
      %v310 = vunpack.c.l.b16 %v166
      %v311 = vunpack.c.l.b16 %v167
      %v312 = vunpack.c.l.b16 %v168
      %v313 = vunpack.c.l.b16 %v169
      %v314 = vunpack.c.l.b16 %v170
      %v315 = vunpack.c.l.b16 %v171
      %v316 = vunpack.c.l.b16 %v172
      %v317 = vunpack.c.l.b16 %v173
      %v318 = vunpack.c.l.b16 %v174
      %v319 = vunpack.c.l.b16 %v175
      %v320 = vunpack.c.l.b16 %v176
      %v321 = vunpack.c.l.b16 %v177
      %v322 = vunpack.c.l.b16 %v178
      %v323 = vunpack.c.l.b16 %v179
      %v324 = vunpack.c.l.b16 %v180
      %v325 = vunpack.c.l.b16 %v181
      %v326 = vunpack.c.l.b16 %v182
      %v327 = vunpack.c.l.b16 %v183
      %v328 = vunpack.c.l.b16 %v184
      %v329 = vunpack.c.l.b16 %v185
      %v330 = vunpack.c.l.b16 %v186
      %v331 = vunpack.c.l.b16 %v187
      %v332 = vunpack.c.l.b16 %v188
      %v333 = vunpack.c.l.b16 %v189
      %v334 = vunpack.c.l.b16 %v190
      %v335 = vunpack.c.l.b16 %v191
      %v336 = vunpack.c.l.b16 %v192
      %v337 = vunpack.c.l.b16 %v193
      %v338 = vunpack.c.l.b16 %v194
      %v339 = vunpack.c.l.b16 %v195
      %v340 = vunpack.c.l.b16 %v196
      %v341 = vunpack.c.l.b16 %v197
      %v342 = vunpack.c.l.b16 %v198
      %v343 = vunpack.c.l.b16 %v199
      %v344 = vunpack.c.l.b16 %v200
      %v345 = vunpack.c.l.b16 %v201
      %v346 = vunpack.c.l.b16 %v202
      %v347 = vunpack.c.l.b16 %v203
      %v348 = vunpack.c.l.b16 %v204
      %v349 = vunpack.c.l.b16 %v205
      %v350 = vunpack.c.l.b16 %v206
      %v351 = vunpack.c.l.b16 %v207
      %v352 = vunpack.c.l.b16 %v208
      %v353 = vunpack.c.l.b16 %v209
      %v354 = vunpack.c.l.b16 %v210
      %v355 = vunpack.c.l.b16 %v211
      %v356 = vpack.c.b16 %v293, %v292
      %v357 = vpack.c.b16 %v295, %v294
      %v358 = vpack.c.b16 %v297, %v296
      %v359 = vpack.c.b16 %v299, %v298
      %v360 = vpack.c.b16 %v301, %v300
      %v361 = vpack.c.b16 %v303, %v302
      %v362 = vpack.c.b16 %v305, %v304
      %v363 = vpack.c.b16 %v307, %v306
      %v364 = vpack.c.b16 %v309, %v308
      %v365 = vpack.c.b16 %v311, %v310
      %v366 = vpack.c.b16 %v313, %v312
      %v367 = vpack.c.b16 %v315, %v314
      %v368 = vpack.c.b16 %v317, %v316
      %v369 = vpack.c.b16 %v319, %v318
      %v370 = vpack.c.b16 %v321, %v320
      %v371 = vpack.c.b16 %v323, %v322
      %v372 = vpack.c.b16 %v325, %v324
      %v373 = vpack.c.b16 %v327, %v326
      %v374 = vpack.c.b16 %v329, %v328
      %v375 = vpack.c.b16 %v331, %v330
      %v376 = vpack.c.b16 %v333, %v332
      %v377 = vpack.c.b16 %v335, %v334
      %v378 = vpack.c.b16 %v337, %v336
      %v379 = vpack.c.b16 %v339, %v338
      %v380 = vpack.c.b16 %v341, %v340
      %v381 = vpack.c.b16 %v343, %v342
      %v382 = vpack.c.b16 %v345, %v344
      %v383 = vpack.c.b16 %v347, %v346
      %v384 = vpack.c.b16 %v349, %v348
      %v385 = vpack.c.b16 %v351, %v350
      %v386 = vpack.c.b16 %v353, %v352
      %v387 = vpack.c.b16 %v355, %v354
      %v436 = vunpack.c.l.b16 %v212
      %v437 = vunpack.c.l.b16 %v213
      %v438 = vunpack.c.l.b16 %v214
      %v439 = vunpack.c.l.b16 %v215
      %v440 = vunpack.c.l.b16 %v216
      %v441 = vunpack.c.l.b16 %v217
      %v442 = vunpack.c.l.b16 %v218
      %v443 = vunpack.c.l.b16 %v219
      %v444 = vunpack.c.l.b16 %v220
      %v445 = vunpack.c.l.b16 %v221
      %v446 = vunpack.c.l.b16 %v222
      %v447 = vunpack.c.l.b16 %v223
      %v448 = vunpack.c.l.b16 %v224
      %v449 = vunpack.c.l.b16 %v225
      %v450 = vunpack.c.l.b16 %v226
      %v451 = vunpack.c.l.b16 %v227
      %v452 = vpack.c.b16 %v437, %v436
      %v453 = vpack.c.b16 %v439, %v438
      %v454 = vpack.c.b16 %v441, %v440
      %v455 = vpack.c.b16 %v443, %v442
      %v456 = vpack.c.b16 %v445, %v444
      %v457 = vpack.c.b16 %v447, %v446
      %v458 = vpack.c.b16 %v449, %v448
      %v459 = vpack.c.b16 %v451, %v450
      %468 = vmatprep.subr.bf16.mxu0 0
      %469 = vmatpush1.bf16.msra.mxu0 %v452
      %470 = vmatprep.subr.bf16.mxu0 0
      %471 = vmatpush1.bf16.msra.mxu0 %v453
      %472 = vmatprep.subr.bf16.mxu0 0
      %473 = vmatpush1.bf16.msra.mxu0 %v454
      %474 = vmatprep.subr.bf16.mxu0 0
      %475 = vmatpush1.bf16.msra.mxu0 %v455
      %476 = vmatprep.subr.bf16.mxu0 0
      %477 = vmatpush1.bf16.msra.mxu0 %v456
      %478 = vmatprep.subr.bf16.mxu0 0
      %479 = vmatpush1.bf16.msra.mxu0 %v457
      %480 = vmatprep.subr.bf16.mxu0 0
      %481 = vmatpush1.bf16.msra.mxu0 %v458
      %482 = vmatprep.subr.bf16.mxu0 0
      %483 = vmatpush1.bf16.msra.mxu0 %v459
      %484 = vmatprep.subr.bf16.mxu0 0
      %485 = vmatpush1.bf16.msra.mxu0 0
      %486 = vmatprep.subr.bf16.mxu0 0
      %487 = vmatpush1.bf16.msra.mxu0 0
      %488 = vmatprep.subr.bf16.mxu0 0
      %489 = vmatpush1.bf16.msra.mxu0 0
      %490 = vmatprep.subr.bf16.mxu0 0
      %491 = vmatpush1.bf16.msra.mxu0 0
      %492 = vmatprep.subr.bf16.mxu0 0
      %493 = vmatpush1.bf16.msra.mxu0 0
      %494 = vmatprep.subr.bf16.mxu0 0
      %495 = vmatpush1.bf16.msra.mxu0 0
      %496 = vmatprep.subr.bf16.mxu0 0
      %497 = vmatpush1.bf16.msra.mxu0 0
      %498 = vmatprep.subr.bf16.mxu0 0
      %499 = vmatpush1.bf16.msra.mxu0 0
      %500 = vmatprep.mubr.bf16.mxu0 0
      %501 = vmatmul.mubr.bf16.gmra.mrb[0].mxu0 %v356
      %v502 = vpop.f32.mrb[0].mxu0
      %v503 = vadd.f32 0.0, %v502
      %v504 = vpop.f32.mrb[0].mxu0
      %v505 = vpop.f32.mrb[0].mxu0
      %v506 = vadd.f32 0.0, %v505
      %v507 = vpop.f32.mrb[0].mxu0
      %508 = vmatprep.mubr.bf16.mxu0 0
      %509 = vmatmul.mubr.bf16.gmra.mrb[0].mxu0 %v357
      %v510 = vpop.f32.mrb[0].mxu0
      %v511 = vadd.f32 0.0, %v510
      %v512 = vpop.f32.mrb[0].mxu0
      %v513 = vpop.f32.mrb[0].mxu0
      %v514 = vadd.f32 0.0, %v513
      %v515 = vpop.f32.mrb[0].mxu0
      %516 = vmatprep.mubr.bf16.mxu0 0
      %517 = vmatmul.mubr.bf16.gmra.mrb[0].mxu0 %v358
      %v518 = vpop.f32.mrb[0].mxu0
      %v519 = vadd.f32 0.0, %v518
      %v520 = vpop.f32.mrb[0].mxu0
      %v521 = vpop.f32.mrb[0].mxu0
      %v522 = vadd.f32 0.0, %v521
      %v523 = vpop.f32.mrb[0].mxu0
      %524 = vmatprep.mubr.bf16.mxu0 0
      %525 = vmatmul.mubr.bf16.gmra.mrb[0].mxu0 %v359
      %v526 = vpop.f32.mrb[0].mxu0
      %v527 = vadd.f32 0.0, %v526
      %v528 = vpop.f32.mrb[0].mxu0
      %v529 = vpop.f32.mrb[0].mxu0
      %v530 = vadd.f32 0.0, %v529
      %v531 = vpop.f32.mrb[0].mxu0
      %532 = vmatprep.mubr.bf16.mxu0 0
      %533 = vmatmul.mubr.bf16.gmra.mrb[0].mxu0 %v360
      %v534 = vpop.f32.mrb[0].mxu0
      %v535 = vadd.f32 0.0, %v534
      %v536 = vpop.f32.mrb[0].mxu0
      %v537 = vpop.f32.mrb[0].mxu0
      %v538 = vadd.f32 0.0, %v537
      %v539 = vpop.f32.mrb[0].mxu0
      %540 = vmatprep.mubr.bf16.mxu0 0
      %541 = vmatmul.mubr.bf16.gmra.mrb[0].mxu0 %v361
      %v542 = vpop.f32.mrb[0].mxu0
      %v543 = vadd.f32 0.0, %v542
      %v544 = vpop.f32.mrb[0].mxu0
      %v545 = vpop.f32.mrb[0].mxu0
      %v546 = vadd.f32 0.0, %v545
      %v547 = vpop.f32.mrb[0].mxu0
      %548 = vmatprep.mubr.bf16.mxu0 0
      %549 = vmatmul.mubr.bf16.gmra.mrb[0].mxu0 %v362
      %v550 = vpop.f32.mrb[0].mxu0
      %v551 = vadd.f32 0.0, %v550
      %v552 = vpop.f32.mrb[0].mxu0
      %v553 = vpop.f32.mrb[0].mxu0
      %v554 = vadd.f32 0.0, %v553
      %v555 = vpop.f32.mrb[0].mxu0
      %556 = vmatprep.mubr.bf16.mxu0 0
      %557 = vmatmul.mubr.bf16.gmra.mrb[0].mxu0 %v363
      %v558 = vpop.f32.mrb[0].mxu0
      %v559 = vadd.f32 0.0, %v558
      %v560 = vpop.f32.mrb[0].mxu0
      %v561 = vpop.f32.mrb[0].mxu0
      %v562 = vadd.f32 0.0, %v561
      %v563 = vpop.f32.mrb[0].mxu0
      %564 = vmatprep.mubr.bf16.mxu0 0
      %565 = vmatmul.mubr.bf16.gmra.mrb[0].mxu0 %v364
      %v566 = vpop.f32.mrb[0].mxu0
      %v567 = vadd.f32 0.0, %v566
      %v568 = vpop.f32.mrb[0].mxu0
      %v569 = vpop.f32.mrb[0].mxu0
      %v570 = vadd.f32 0.0, %v569
      %v571 = vpop.f32.mrb[0].mxu0
      %572 = vmatprep.mubr.bf16.mxu0 0
      %573 = vmatmul.mubr.bf16.gmra.mrb[0].mxu0 %v365
      %v574 = vpop.f32.mrb[0].mxu0
      %v575 = vadd.f32 0.0, %v574
      %v576 = vpop.f32.mrb[0].mxu0
      %v577 = vpop.f32.mrb[0].mxu0
      %v578 = vadd.f32 0.0, %v577
      %v579 = vpop.f32.mrb[0].mxu0
      %580 = vmatprep.mubr.bf16.mxu0 0
      %581 = vmatmul.mubr.bf16.gmra.mrb[0].mxu0 %v366
      %v582 = vpop.f32.mrb[0].mxu0
      %v583 = vadd.f32 0.0, %v582
      %v584 = vpop.f32.mrb[0].mxu0
      %v585 = vpop.f32.mrb[0].mxu0
      %v586 = vadd.f32 0.0, %v585
      %v587 = vpop.f32.mrb[0].mxu0
      %588 = vmatprep.mubr.bf16.mxu0 0
      %589 = vmatmul.mubr.bf16.gmra.mrb[0].mxu0 %v367
      %v590 = vpop.f32.mrb[0].mxu0
      %v591 = vadd.f32 0.0, %v590
      %v592 = vpop.f32.mrb[0].mxu0
      %v593 = vpop.f32.mrb[0].mxu0
      %v594 = vadd.f32 0.0, %v593
      %v595 = vpop.f32.mrb[0].mxu0
      %596 = vmatprep.mubr.bf16.mxu0 0
      %597 = vmatmul.mubr.bf16.gmra.mrb[0].mxu0 %v368
      %v598 = vpop.f32.mrb[0].mxu0
      %v599 = vadd.f32 0.0, %v598
      %v600 = vpop.f32.mrb[0].mxu0
      %v601 = vpop.f32.mrb[0].mxu0
      %v602 = vadd.f32 0.0, %v601
      %v603 = vpop.f32.mrb[0].mxu0
      %604 = vmatprep.mubr.bf16.mxu0 0
      %605 = vmatmul.mubr.bf16.gmra.mrb[0].mxu0 %v369
      %v606 = vpop.f32.mrb[0].mxu0
      %v607 = vadd.f32 0.0, %v606
      %v608 = vpop.f32.mrb[0].mxu0
      %v609 = vpop.f32.mrb[0].mxu0
      %v610 = vadd.f32 0.0, %v609
      %v611 = vpop.f32.mrb[0].mxu0
      %612 = vmatprep.mubr.bf16.mxu0 0
      %613 = vmatmul.mubr.bf16.gmra.mrb[0].mxu0 %v370
      %v614 = vpop.f32.mrb[0].mxu0
      %v615 = vadd.f32 0.0, %v614
      %v616 = vpop.f32.mrb[0].mxu0
      %v617 = vpop.f32.mrb[0].mxu0
      %v618 = vadd.f32 0.0, %v617
      %v619 = vpop.f32.mrb[0].mxu0
      %620 = vmatprep.mubr.bf16.mxu0 0
      %621 = vmatmul.mubr.bf16.gmra.mrb[0].mxu0 %v371
      %v622 = vpop.f32.mrb[0].mxu0
      %v623 = vadd.f32 0.0, %v622
      %v624 = vpop.f32.mrb[0].mxu0
      %v625 = vpop.f32.mrb[0].mxu0
      %v626 = vadd.f32 0.0, %v625
      %v627 = vpop.f32.mrb[0].mxu0
      %628 = vmatprep.mubr.bf16.mxu0 0
      %629 = vmatmul.mubr.bf16.gmra.mrb[0].mxu0 %v372
      %v630 = vpop.f32.mrb[0].mxu0
      %v631 = vadd.f32 0.0, %v630
      %v632 = vpop.f32.mrb[0].mxu0
      %v633 = vpop.f32.mrb[0].mxu0
      %v634 = vadd.f32 0.0, %v633
      %v635 = vpop.f32.mrb[0].mxu0
      %636 = vmatprep.mubr.bf16.mxu0 0
      %637 = vmatmul.mubr.bf16.gmra.mrb[0].mxu0 %v373
      %v638 = vpop.f32.mrb[0].mxu0
      %v639 = vadd.f32 0.0, %v638
      %v640 = vpop.f32.mrb[0].mxu0
      %v641 = vpop.f32.mrb[0].mxu0
      %v642 = vadd.f32 0.0, %v641
      %v643 = vpop.f32.mrb[0].mxu0
      %644 = vmatprep.mubr.bf16.mxu0 0
      %645 = vmatmul.mubr.bf16.gmra.mrb[0].mxu0 %v374
      %v646 = vpop.f32.mrb[0].mxu0
      %v647 = vadd.f32 0.0, %v646
      %v648 = vpop.f32.mrb[0].mxu0
      %v649 = vpop.f32.mrb[0].mxu0
      %v650 = vadd.f32 0.0, %v649
      %v651 = vpop.f32.mrb[0].mxu0
      %652 = vmatprep.mubr.bf16.mxu0 0
      %653 = vmatmul.mubr.bf16.gmra.mrb[0].mxu0 %v375
      %v654 = vpop.f32.mrb[0].mxu0
      %v655 = vadd.f32 0.0, %v654
      %v656 = vpop.f32.mrb[0].mxu0
      %v657 = vpop.f32.mrb[0].mxu0
      %v658 = vadd.f32 0.0, %v657
      %v659 = vpop.f32.mrb[0].mxu0
      %660 = vmatprep.mubr.bf16.mxu0 0
      %661 = vmatmul.mubr.bf16.gmra.mrb[0].mxu0 %v376
      %v662 = vpop.f32.mrb[0].mxu0
      %v663 = vadd.f32 0.0, %v662
      %v664 = vpop.f32.mrb[0].mxu0
      %v665 = vpop.f32.mrb[0].mxu0
      %v666 = vadd.f32 0.0, %v665
      %v667 = vpop.f32.mrb[0].mxu0
      %668 = vmatprep.mubr.bf16.mxu0 0
      %669 = vmatmul.mubr.bf16.gmra.mrb[0].mxu0 %v377
      %v670 = vpop.f32.mrb[0].mxu0
      %v671 = vadd.f32 0.0, %v670
      %v672 = vpop.f32.mrb[0].mxu0
      %v673 = vpop.f32.mrb[0].mxu0
      %v674 = vadd.f32 0.0, %v673
      %v675 = vpop.f32.mrb[0].mxu0
      %676 = vmatprep.mubr.bf16.mxu0 0
      %677 = vmatmul.mubr.bf16.gmra.mrb[0].mxu0 %v378
      %v678 = vpop.f32.mrb[0].mxu0
      %v679 = vadd.f32 0.0, %v678
      %v680 = vpop.f32.mrb[0].mxu0
      %v681 = vpop.f32.mrb[0].mxu0
      %v682 = vadd.f32 0.0, %v681
      %v683 = vpop.f32.mrb[0].mxu0
      %684 = vmatprep.mubr.bf16.mxu0 0
      %685 = vmatmul.mubr.bf16.gmra.mrb[0].mxu0 %v379
      %v686 = vpop.f32.mrb[0].mxu0
      %v687 = vadd.f32 0.0, %v686
      %v688 = vpop.f32.mrb[0].mxu0
      %v689 = vpop.f32.mrb[0].mxu0
      %v690 = vadd.f32 0.0, %v689
      %v691 = vpop.f32.mrb[0].mxu0
      %692 = vmatprep.mubr.bf16.mxu0 0
      %693 = vmatmul.mubr.bf16.gmra.mrb[0].mxu0 %v380
      %v694 = vpop.f32.mrb[0].mxu0
      %v695 = vadd.f32 0.0, %v694
      %v696 = vpop.f32.mrb[0].mxu0
      %v697 = vpop.f32.mrb[0].mxu0
      %v698 = vadd.f32 0.0, %v697
      %v699 = vpop.f32.mrb[0].mxu0
      %700 = vmatprep.mubr.bf16.mxu0 0
      %701 = vmatmul.mubr.bf16.gmra.mrb[0].mxu0 %v381
      %v702 = vpop.f32.mrb[0].mxu0
      %v703 = vadd.f32 0.0, %v702
      %v704 = vpop.f32.mrb[0].mxu0
      %v705 = vpop.f32.mrb[0].mxu0
      %v706 = vadd.f32 0.0, %v705
      %v707 = vpop.f32.mrb[0].mxu0
      %708 = vmatprep.mubr.bf16.mxu0 0
      %709 = vmatmul.mubr.bf16.gmra.mrb[0].mxu0 %v382
      %v710 = vpop.f32.mrb[0].mxu0
      %v711 = vadd.f32 0.0, %v710
      %v712 = vpop.f32.mrb[0].mxu0
      %v713 = vpop.f32.mrb[0].mxu0
      %v714 = vadd.f32 0.0, %v713
      %v715 = vpop.f32.mrb[0].mxu0
      %716 = vmatprep.mubr.bf16.mxu0 0
      %717 = vmatmul.mubr.bf16.gmra.mrb[0].mxu0 %v383
      %v718 = vpop.f32.mrb[0].mxu0
      %v719 = vadd.f32 0.0, %v718
      %v720 = vpop.f32.mrb[0].mxu0
      %v721 = vpop.f32.mrb[0].mxu0
      %v722 = vadd.f32 0.0, %v721
      %v723 = vpop.f32.mrb[0].mxu0
      %724 = vmatprep.mubr.bf16.mxu0 0
      %725 = vmatmul.mubr.bf16.gmra.mrb[0].mxu0 %v384
      %v726 = vpop.f32.mrb[0].mxu0
      %v727 = vadd.f32 0.0, %v726
      %v728 = vpop.f32.mrb[0].mxu0
      %v729 = vpop.f32.mrb[0].mxu0
      %v730 = vadd.f32 0.0, %v729
      %v731 = vpop.f32.mrb[0].mxu0
      %732 = vmatprep.mubr.bf16.mxu0 0
      %733 = vmatmul.mubr.bf16.gmra.mrb[0].mxu0 %v385
      %v734 = vpop.f32.mrb[0].mxu0
      %v735 = vadd.f32 0.0, %v734
      %v736 = vpop.f32.mrb[0].mxu0
      %v737 = vpop.f32.mrb[0].mxu0
      %v738 = vadd.f32 0.0, %v737
      %v739 = vpop.f32.mrb[0].mxu0
      %740 = vmatprep.mubr.bf16.mxu0 0
      %741 = vmatmul.mubr.bf16.gmra.mrb[0].mxu0 %v386
      %v742 = vpop.f32.mrb[0].mxu0
      %v743 = vadd.f32 0.0, %v742
      %v744 = vpop.f32.mrb[0].mxu0
      %v745 = vpop.f32.mrb[0].mxu0
      %v746 = vadd.f32 0.0, %v745
      %v747 = vpop.f32.mrb[0].mxu0
      %748 = vmatprep.mubr.bf16.mxu0 0
      %749 = vmatmul.mubr.bf16.gmra.mrb[0].mxu0 %v387
      %v750 = vpop.f32.mrb[0].mxu0
      %v751 = vadd.f32 0.0, %v750
      %v752 = vpop.f32.mrb[0].mxu0
      %v753 = vpop.f32.mrb[0].mxu0
      %v754 = vadd.f32 0.0, %v753
      %v755 = vpop.f32.mrb[0].mxu0
      %756 = vdwg.mxu0
      %vm757 = vcmp.gt.f32.partialorder %v503, 0.0
      %vm758 = vcmp.gt.f32.partialorder %v506, 0.0
      %vm759 = vcmp.gt.f32.partialorder %v511, 0.0
      %vm760 = vcmp.gt.f32.partialorder %v514, 0.0
      %vm761 = vcmp.gt.f32.partialorder %v519, 0.0
      %vm762 = vcmp.gt.f32.partialorder %v522, 0.0
      %vm763 = vcmp.gt.f32.partialorder %v527, 0.0
      %vm764 = vcmp.gt.f32.partialorder %v530, 0.0
      %vm765 = vcmp.gt.f32.partialorder %v535, 0.0
      %vm766 = vcmp.gt.f32.partialorder %v538, 0.0
      %vm767 = vcmp.gt.f32.partialorder %v543, 0.0
      %vm768 = vcmp.gt.f32.partialorder %v546, 0.0
      %vm769 = vcmp.gt.f32.partialorder %v551, 0.0
      %vm770 = vcmp.gt.f32.partialorder %v554, 0.0
      %vm771 = vcmp.gt.f32.partialorder %v559, 0.0
      %vm772 = vcmp.gt.f32.partialorder %v562, 0.0
      %vm773 = vcmp.gt.f32.partialorder %v567, 0.0
      %vm774 = vcmp.gt.f32.partialorder %v570, 0.0
      %vm775 = vcmp.gt.f32.partialorder %v575, 0.0
      %vm776 = vcmp.gt.f32.partialorder %v578, 0.0
      %vm777 = vcmp.gt.f32.partialorder %v583, 0.0
      %vm778 = vcmp.gt.f32.partialorder %v586, 0.0
      %vm779 = vcmp.gt.f32.partialorder %v591, 0.0
      %vm780 = vcmp.gt.f32.partialorder %v594, 0.0
      %vm781 = vcmp.gt.f32.partialorder %v599, 0.0
      %vm782 = vcmp.gt.f32.partialorder %v602, 0.0
      %vm783 = vcmp.gt.f32.partialorder %v607, 0.0
      %vm784 = vcmp.gt.f32.partialorder %v610, 0.0
      %vm785 = vcmp.gt.f32.partialorder %v615, 0.0
      %vm786 = vcmp.gt.f32.partialorder %v618, 0.0
      %vm787 = vcmp.gt.f32.partialorder %v623, 0.0
      %vm788 = vcmp.gt.f32.partialorder %v626, 0.0
      %vm789 = vcmp.gt.f32.partialorder %v631, 0.0
      %vm790 = vcmp.gt.f32.partialorder %v634, 0.0
      %vm791 = vcmp.gt.f32.partialorder %v639, 0.0
      %vm792 = vcmp.gt.f32.partialorder %v642, 0.0
      %vm793 = vcmp.gt.f32.partialorder %v647, 0.0
      %vm794 = vcmp.gt.f32.partialorder %v650, 0.0
      %vm795 = vcmp.gt.f32.partialorder %v655, 0.0
      %vm796 = vcmp.gt.f32.partialorder %v658, 0.0
      %vm797 = vcmp.gt.f32.partialorder %v663, 0.0
      %vm798 = vcmp.gt.f32.partialorder %v666, 0.0
      %vm799 = vcmp.gt.f32.partialorder %v671, 0.0
      %vm800 = vcmp.gt.f32.partialorder %v674, 0.0
      %vm801 = vcmp.gt.f32.partialorder %v679, 0.0
      %vm802 = vcmp.gt.f32.partialorder %v682, 0.0
      %vm803 = vcmp.gt.f32.partialorder %v687, 0.0
      %vm804 = vcmp.gt.f32.partialorder %v690, 0.0
      %vm805 = vcmp.gt.f32.partialorder %v695, 0.0
      %vm806 = vcmp.gt.f32.partialorder %v698, 0.0
      %vm807 = vcmp.gt.f32.partialorder %v703, 0.0
      %vm808 = vcmp.gt.f32.partialorder %v706, 0.0
      %vm809 = vcmp.gt.f32.partialorder %v711, 0.0
      %vm810 = vcmp.gt.f32.partialorder %v714, 0.0
      %vm811 = vcmp.gt.f32.partialorder %v719, 0.0
      %vm812 = vcmp.gt.f32.partialorder %v722, 0.0
      %vm813 = vcmp.gt.f32.partialorder %v727, 0.0
      %vm814 = vcmp.gt.f32.partialorder %v730, 0.0
      %vm815 = vcmp.gt.f32.partialorder %v735, 0.0
      %vm816 = vcmp.gt.f32.partialorder %v738, 0.0
      %vm817 = vcmp.gt.f32.partialorder %v743, 0.0
      %vm818 = vcmp.gt.f32.partialorder %v746, 0.0
      %vm819 = vcmp.gt.f32.partialorder %v751, 0.0
      %vm820 = vcmp.gt.f32.partialorder %v754, 0.0
      %v821 = vmul.f32 %v503, 0.2
      %v822 = vmul.f32 %v506, 0.2
      %v823 = vmul.f32 %v511, 0.2
      %v824 = vmul.f32 %v514, 0.2
      %v825 = vmul.f32 %v519, 0.2
      %v826 = vmul.f32 %v522, 0.2
      %v827 = vmul.f32 %v527, 0.2
      %v828 = vmul.f32 %v530, 0.2
      %v829 = vmul.f32 %v535, 0.2
      %v830 = vmul.f32 %v538, 0.2
      %v831 = vmul.f32 %v543, 0.2
      %v832 = vmul.f32 %v546, 0.2
      %v833 = vmul.f32 %v551, 0.2
      %v834 = vmul.f32 %v554, 0.2
      %v835 = vmul.f32 %v559, 0.2
      %v836 = vmul.f32 %v562, 0.2
      %v837 = vmul.f32 %v567, 0.2
      %v838 = vmul.f32 %v570, 0.2
      %v839 = vmul.f32 %v575, 0.2
      %v840 = vmul.f32 %v578, 0.2
      %v841 = vmul.f32 %v583, 0.2
      %v842 = vmul.f32 %v586, 0.2
      %v843 = vmul.f32 %v591, 0.2
      %v844 = vmul.f32 %v594, 0.2
      %v845 = vmul.f32 %v599, 0.2
      %v846 = vmul.f32 %v602, 0.2
      %v847 = vmul.f32 %v607, 0.2
      %v848 = vmul.f32 %v610, 0.2
      %v849 = vmul.f32 %v615, 0.2
      %v850 = vmul.f32 %v618, 0.2
      %v851 = vmul.f32 %v623, 0.2
      %v852 = vmul.f32 %v626, 0.2
      %v853 = vmul.f32 %v631, 0.2
      %v854 = vmul.f32 %v634, 0.2
      %v855 = vmul.f32 %v639, 0.2
      %v856 = vmul.f32 %v642, 0.2
      %v857 = vmul.f32 %v647, 0.2
      %v858 = vmul.f32 %v650, 0.2
      %v859 = vmul.f32 %v655, 0.2
      %v860 = vmul.f32 %v658, 0.2
      %v861 = vmul.f32 %v663, 0.2
      %v862 = vmul.f32 %v666, 0.2
      %v863 = vmul.f32 %v671, 0.2
      %v864 = vmul.f32 %v674, 0.2
      %v865 = vmul.f32 %v679, 0.2
      %v866 = vmul.f32 %v682, 0.2
      %v867 = vmul.f32 %v687, 0.2
      %v868 = vmul.f32 %v690, 0.2
      %v869 = vmul.f32 %v695, 0.2
      %v870 = vmul.f32 %v698, 0.2
      %v871 = vmul.f32 %v703, 0.2
      %v872 = vmul.f32 %v706, 0.2
      %v873 = vmul.f32 %v711, 0.2
      %v874 = vmul.f32 %v714, 0.2
      %v875 = vmul.f32 %v719, 0.2
      %v876 = vmul.f32 %v722, 0.2
      %v877 = vmul.f32 %v727, 0.2
      %v878 = vmul.f32 %v730, 0.2
      %v879 = vmul.f32 %v735, 0.2
      %v880 = vmul.f32 %v738, 0.2
      %v881 = vmul.f32 %v743, 0.2
      %v882 = vmul.f32 %v746, 0.2
      %v883 = vmul.f32 %v751, 0.2
      %v884 = vmul.f32 %v754, 0.2
      %v885 = vsel %vm757, %v503, %v821
      %v886 = vsel %vm758, %v506, %v822
      %v887 = vsel %vm759, %v511, %v823
      %v888 = vsel %vm760, %v514, %v824
      %v889 = vsel %vm761, %v519, %v825
      %v890 = vsel %vm762, %v522, %v826
      %v891 = vsel %vm763, %v527, %v827
      %v892 = vsel %vm764, %v530, %v828
      %v893 = vsel %vm765, %v535, %v829
      %v894 = vsel %vm766, %v538, %v830
      %v895 = vsel %vm767, %v543, %v831
      %v896 = vsel %vm768, %v546, %v832
      %v897 = vsel %vm769, %v551, %v833
      %v898 = vsel %vm770, %v554, %v834
      %v899 = vsel %vm771, %v559, %v835
      %v900 = vsel %vm772, %v562, %v836
      %v901 = vsel %vm773, %v567, %v837
      %v902 = vsel %vm774, %v570, %v838
      %v903 = vsel %vm775, %v575, %v839
      %v904 = vsel %vm776, %v578, %v840
      %v905 = vsel %vm777, %v583, %v841
      %v906 = vsel %vm778, %v586, %v842
      %v907 = vsel %vm779, %v591, %v843
      %v908 = vsel %vm780, %v594, %v844
      %v909 = vsel %vm781, %v599, %v845
      %v910 = vsel %vm782, %v602, %v846
      %v911 = vsel %vm783, %v607, %v847
      %v912 = vsel %vm784, %v610, %v848
      %v913 = vsel %vm785, %v615, %v849
      %v914 = vsel %vm786, %v618, %v850
      %v915 = vsel %vm787, %v623, %v851
      %v916 = vsel %vm788, %v626, %v852
      %v917 = vsel %vm789, %v631, %v853
      %v918 = vsel %vm790, %v634, %v854
      %v919 = vsel %vm791, %v639, %v855
      %v920 = vsel %vm792, %v642, %v856
      %v921 = vsel %vm793, %v647, %v857
      %v922 = vsel %vm794, %v650, %v858
      %v923 = vsel %vm795, %v655, %v859
      %v924 = vsel %vm796, %v658, %v860
      %v925 = vsel %vm797, %v663, %v861
      %v926 = vsel %vm798, %v666, %v862
      %v927 = vsel %vm799, %v671, %v863
      %v928 = vsel %vm800, %v674, %v864
      %v929 = vsel %vm801, %v679, %v865
      %v930 = vsel %vm802, %v682, %v866
      %v931 = vsel %vm803, %v687, %v867
      %v932 = vsel %vm804, %v690, %v868
      %v933 = vsel %vm805, %v695, %v869
      %v934 = vsel %vm806, %v698, %v870
      %v935 = vsel %vm807, %v703, %v871
      %v936 = vsel %vm808, %v706, %v872
      %v937 = vsel %vm809, %v711, %v873
      %v938 = vsel %vm810, %v714, %v874
      %v939 = vsel %vm811, %v719, %v875
      %v940 = vsel %vm812, %v722, %v876
      %v941 = vsel %vm813, %v727, %v877
      %v942 = vsel %vm814, %v730, %v878
      %v943 = vsel %vm815, %v735, %v879
      %v944 = vsel %vm816, %v738, %v880
      %v945 = vsel %vm817, %v743, %v881
      %v946 = vsel %vm818, %v746, %v882
      %v947 = vsel %vm819, %v751, %v883
      %v948 = vsel %vm820, %v754, %v884
      %v949 = vpack.c.bf16 %v886, %v885
      %v950 = vpack.c.bf16 %v888, %v887
      %v951 = vpack.c.bf16 %v890, %v889
      %v952 = vpack.c.bf16 %v892, %v891
      %v953 = vpack.c.bf16 %v894, %v893
      %v954 = vpack.c.bf16 %v896, %v895
      %v955 = vpack.c.bf16 %v898, %v897
      %v956 = vpack.c.bf16 %v900, %v899
      %v957 = vpack.c.bf16 %v902, %v901
      %v958 = vpack.c.bf16 %v904, %v903
      %v959 = vpack.c.bf16 %v906, %v905
      %v960 = vpack.c.bf16 %v908, %v907
      %v961 = vpack.c.bf16 %v910, %v909
      %v962 = vpack.c.bf16 %v912, %v911
      %v963 = vpack.c.bf16 %v914, %v913
      %v964 = vpack.c.bf16 %v916, %v915
      %v965 = vpack.c.bf16 %v918, %v917
      %v966 = vpack.c.bf16 %v920, %v919
      %v967 = vpack.c.bf16 %v922, %v921
      %v968 = vpack.c.bf16 %v924, %v923
      %v969 = vpack.c.bf16 %v926, %v925
      %v970 = vpack.c.bf16 %v928, %v927
      %v971 = vpack.c.bf16 %v930, %v929
      %v972 = vpack.c.bf16 %v932, %v931
      %v973 = vpack.c.bf16 %v934, %v933
      %v974 = vpack.c.bf16 %v936, %v935
      %v975 = vpack.c.bf16 %v938, %v937
      %v976 = vpack.c.bf16 %v940, %v939
      %v977 = vpack.c.bf16 %v942, %v941
      %v978 = vpack.c.bf16 %v944, %v943
      %v979 = vpack.c.bf16 %v946, %v945
      %v980 = vpack.c.bf16 %v948, %v947
      %v1013 = vunpack.c.l.b16 %v949
      %v1014 = vunpack.c.h.b16 %v949
      %v1015 = vunpack.c.l.b16 %v950
      %v1016 = vunpack.c.h.b16 %v950
      %v1017 = vunpack.c.l.b16 %v951
      %v1018 = vunpack.c.h.b16 %v951
      %v1019 = vunpack.c.l.b16 %v952
      %v1020 = vunpack.c.h.b16 %v952
      %v1021 = vunpack.c.l.b16 %v953
      %v1022 = vunpack.c.h.b16 %v953
      %v1023 = vunpack.c.l.b16 %v954
      %v1024 = vunpack.c.h.b16 %v954
      %v1025 = vunpack.c.l.b16 %v955
      %v1026 = vunpack.c.h.b16 %v955
      %v1027 = vunpack.c.l.b16 %v956
      %v1028 = vunpack.c.h.b16 %v956
      %v1029 = vunpack.c.l.b16 %v957
      %v1030 = vunpack.c.h.b16 %v957
      %v1031 = vunpack.c.l.b16 %v958
      %v1032 = vunpack.c.h.b16 %v958
      %v1033 = vunpack.c.l.b16 %v959
      %v1034 = vunpack.c.h.b16 %v959
      %v1035 = vunpack.c.l.b16 %v960
      %v1036 = vunpack.c.h.b16 %v960
      %v1037 = vunpack.c.l.b16 %v961
      %v1038 = vunpack.c.h.b16 %v961
      %v1039 = vunpack.c.l.b16 %v962
      %v1040 = vunpack.c.h.b16 %v962
      %v1041 = vunpack.c.l.b16 %v963
      %v1042 = vunpack.c.h.b16 %v963
      %v1043 = vunpack.c.l.b16 %v964
      %v1044 = vunpack.c.h.b16 %v964
      %v1045 = vunpack.c.l.b16 %v965
      %v1046 = vunpack.c.h.b16 %v965
      %v1047 = vunpack.c.l.b16 %v966
      %v1048 = vunpack.c.h.b16 %v966
      %v1049 = vunpack.c.l.b16 %v967
      %v1050 = vunpack.c.h.b16 %v967
      %v1051 = vunpack.c.l.b16 %v968
      %v1052 = vunpack.c.h.b16 %v968
      %v1053 = vunpack.c.l.b16 %v969
      %v1054 = vunpack.c.h.b16 %v969
      %v1055 = vunpack.c.l.b16 %v970
      %v1056 = vunpack.c.h.b16 %v970
      %v1057 = vunpack.c.l.b16 %v971
      %v1058 = vunpack.c.h.b16 %v971
      %v1059 = vunpack.c.l.b16 %v972
      %v1060 = vunpack.c.h.b16 %v972
      %v1061 = vunpack.c.l.b16 %v973
      %v1062 = vunpack.c.h.b16 %v973
      %v1063 = vunpack.c.l.b16 %v974
      %v1064 = vunpack.c.h.b16 %v974
      %v1065 = vunpack.c.l.b16 %v975
      %v1066 = vunpack.c.h.b16 %v975
      %v1067 = vunpack.c.l.b16 %v976
      %v1068 = vunpack.c.h.b16 %v976
      %v1069 = vunpack.c.l.b16 %v977
      %v1070 = vunpack.c.h.b16 %v977
      %v1071 = vunpack.c.l.b16 %v978
      %v1072 = vunpack.c.h.b16 %v978
      %v1073 = vunpack.c.l.b16 %v979
      %v1074 = vunpack.c.h.b16 %v979
      %v1075 = vunpack.c.l.b16 %v980
      %v1076 = vunpack.c.h.b16 %v980
      %v1077 = vpack.c.b16 %v1013, %v1013
      %v1078 = vpack.c.b16 %v1014, %v1014
      %v1079 = vpack.c.b16 %v1015, %v1015
      %v1080 = vpack.c.b16 %v1016, %v1016
      %v1081 = vpack.c.b16 %v1017, %v1017
      %v1082 = vpack.c.b16 %v1018, %v1018
      %v1083 = vpack.c.b16 %v1019, %v1019
      %v1084 = vpack.c.b16 %v1020, %v1020
      %v1085 = vpack.c.b16 %v1021, %v1021
      %v1086 = vpack.c.b16 %v1022, %v1022
      %v1087 = vpack.c.b16 %v1023, %v1023
      %v1088 = vpack.c.b16 %v1024, %v1024
      %v1089 = vpack.c.b16 %v1025, %v1025
      %v1090 = vpack.c.b16 %v1026, %v1026
      %v1091 = vpack.c.b16 %v1027, %v1027
      %v1092 = vpack.c.b16 %v1028, %v1028
      %v1093 = vpack.c.b16 %v1029, %v1029
      %v1094 = vpack.c.b16 %v1030, %v1030
      %v1095 = vpack.c.b16 %v1031, %v1031
      %v1096 = vpack.c.b16 %v1032, %v1032
      %v1097 = vpack.c.b16 %v1033, %v1033
      %v1098 = vpack.c.b16 %v1034, %v1034
      %v1099 = vpack.c.b16 %v1035, %v1035
      %v1100 = vpack.c.b16 %v1036, %v1036
      %v1101 = vpack.c.b16 %v1037, %v1037
      %v1102 = vpack.c.b16 %v1038, %v1038
      %v1103 = vpack.c.b16 %v1039, %v1039
      %v1104 = vpack.c.b16 %v1040, %v1040
      %v1105 = vpack.c.b16 %v1041, %v1041
      %v1106 = vpack.c.b16 %v1042, %v1042
      %v1107 = vpack.c.b16 %v1043, %v1043
      %v1108 = vpack.c.b16 %v1044, %v1044
      %v1109 = vpack.c.b16 %v1045, %v1045
      %v1110 = vpack.c.b16 %v1046, %v1046
      %v1111 = vpack.c.b16 %v1047, %v1047
      %v1112 = vpack.c.b16 %v1048, %v1048
      %v1113 = vpack.c.b16 %v1049, %v1049
      %v1114 = vpack.c.b16 %v1050, %v1050
      %v1115 = vpack.c.b16 %v1051, %v1051
      %v1116 = vpack.c.b16 %v1052, %v1052
      %v1117 = vpack.c.b16 %v1053, %v1053
      %v1118 = vpack.c.b16 %v1054, %v1054
      %v1119 = vpack.c.b16 %v1055, %v1055
      %v1120 = vpack.c.b16 %v1056, %v1056
      %v1121 = vpack.c.b16 %v1057, %v1057
      %v1122 = vpack.c.b16 %v1058, %v1058
      %v1123 = vpack.c.b16 %v1059, %v1059
      %v1124 = vpack.c.b16 %v1060, %v1060
      %v1125 = vpack.c.b16 %v1061, %v1061
      %v1126 = vpack.c.b16 %v1062, %v1062
      %v1127 = vpack.c.b16 %v1063, %v1063
      %v1128 = vpack.c.b16 %v1064, %v1064
      %v1129 = vpack.c.b16 %v1065, %v1065
      %v1130 = vpack.c.b16 %v1066, %v1066
      %v1131 = vpack.c.b16 %v1067, %v1067
      %v1132 = vpack.c.b16 %v1068, %v1068
      %v1133 = vpack.c.b16 %v1069, %v1069
      %v1134 = vpack.c.b16 %v1070, %v1070
      %v1135 = vpack.c.b16 %v1071, %v1071
      %v1136 = vpack.c.b16 %v1072, %v1072
      %v1137 = vpack.c.b16 %v1073, %v1073
      %v1138 = vpack.c.b16 %v1074, %v1074
      %v1139 = vpack.c.b16 %v1075, %v1075
      %v1140 = vpack.c.b16 %v1076, %v1076
      %vm1205 = vcmask 60416
      %1206 = vst.msk [vmem:[%s145] sm:$0xf] %vm1205, %v1077
      %1207 = vst.msk [vmem:[%s145 + $0x4] sm:$0xf] %vm1205, %v1078
      %1208 = vst.msk [vmem:[%s145 + $0x8] sm:$0xf] %vm1205, %v1079
      %1209 = vst.msk [vmem:[%s145 + $0xc] sm:$0xf] %vm1205, %v1080
      %1210 = vst.msk [vmem:[%s145 + $0x10] sm:$0xf] %vm1205, %v1081
      %1211 = vst.msk [vmem:[%s145 + $0x14] sm:$0xf] %vm1205, %v1082
      %1212 = vst.msk [vmem:[%s145 + $0x18] sm:$0xf] %vm1205, %v1083
      %1213 = vst.msk [vmem:[%s145 + $0x1c] sm:$0xf] %vm1205, %v1084
      %1214 = vst.msk [vmem:[%s145 + $0x20] sm:$0xf] %vm1205, %v1085
      %1215 = vst.msk [vmem:[%s145 + $0x24] sm:$0xf] %vm1205, %v1086
      %1216 = vst.msk [vmem:[%s145 + $0x28] sm:$0xf] %vm1205, %v1087
      %1217 = vst.msk [vmem:[%s145 + $0x2c] sm:$0xf] %vm1205, %v1088
      %1218 = vst.msk [vmem:[%s145 + $0x30] sm:$0xf] %vm1205, %v1089
      %1219 = vst.msk [vmem:[%s145 + $0x34] sm:$0xf] %vm1205, %v1090
      %1220 = vst.msk [vmem:[%s145 + $0x38] sm:$0xf] %vm1205, %v1091
      %1221 = vst.msk [vmem:[%s145 + $0x3c] sm:$0xf] %vm1205, %v1092
      %1222 = vst.msk [vmem:[%s145 + $0x40] sm:$0xf] %vm1205, %v1093
      %1223 = vst.msk [vmem:[%s145 + $0x44] sm:$0xf] %vm1205, %v1094
      %1224 = vst.msk [vmem:[%s145 + $0x48] sm:$0xf] %vm1205, %v1095
      %1225 = vst.msk [vmem:[%s145 + $0x4c] sm:$0xf] %vm1205, %v1096
      %1226 = vst.msk [vmem:[%s145 + $0x50] sm:$0xf] %vm1205, %v1097
      %1227 = vst.msk [vmem:[%s145 + $0x54] sm:$0xf] %vm1205, %v1098
      %1228 = vst.msk [vmem:[%s145 + $0x58] sm:$0xf] %vm1205, %v1099
      %1229 = vst.msk [vmem:[%s145 + $0x5c] sm:$0xf] %vm1205, %v1100
      %1230 = vst.msk [vmem:[%s145 + $0x60] sm:$0xf] %vm1205, %v1101
      %1231 = vst.msk [vmem:[%s145 + $0x64] sm:$0xf] %vm1205, %v1102
      %1232 = vst.msk [vmem:[%s145 + $0x68] sm:$0xf] %vm1205, %v1103
      %1233 = vst.msk [vmem:[%s145 + $0x6c] sm:$0xf] %vm1205, %v1104
      %1234 = vst.msk [vmem:[%s145 + $0x70] sm:$0xf] %vm1205, %v1105
      %1235 = vst.msk [vmem:[%s145 + $0x74] sm:$0xf] %vm1205, %v1106
      %1236 = vst.msk [vmem:[%s145 + $0x78] sm:$0xf] %vm1205, %v1107
      %1237 = vst.msk [vmem:[%s145 + $0x7c] sm:$0xf] %vm1205, %v1108
      %1238 = vst.msk [vmem:[%s145 + $0x80] sm:$0xf] %vm1205, %v1109
      %1239 = vst.msk [vmem:[%s145 + $0x84] sm:$0xf] %vm1205, %v1110
      %1240 = vst.msk [vmem:[%s145 + $0x88] sm:$0xf] %vm1205, %v1111
      %1241 = vst.msk [vmem:[%s145 + $0x8c] sm:$0xf] %vm1205, %v1112
      %1242 = vst.msk [vmem:[%s145 + $0x90] sm:$0xf] %vm1205, %v1113
      %1243 = vst.msk [vmem:[%s145 + $0x94] sm:$0xf] %vm1205, %v1114
      %1244 = vst.msk [vmem:[%s145 + $0x98] sm:$0xf] %vm1205, %v1115
      %1245 = vst.msk [vmem:[%s145 + $0x9c] sm:$0xf] %vm1205, %v1116
      %1246 = vst.msk [vmem:[%s145 + $0xa0] sm:$0xf] %vm1205, %v1117
      %1247 = vst.msk [vmem:[%s145 + $0xa4] sm:$0xf] %vm1205, %v1118
      %1248 = vst.msk [vmem:[%s145 + $0xa8] sm:$0xf] %vm1205, %v1119
      %1249 = vst.msk [vmem:[%s145 + $0xac] sm:$0xf] %vm1205, %v1120
      %1250 = vst.msk [vmem:[%s145 + $0xb0] sm:$0xf] %vm1205, %v1121
      %1251 = vst.msk [vmem:[%s145 + $0xb4] sm:$0xf] %vm1205, %v1122
      %1252 = vst.msk [vmem:[%s145 + $0xb8] sm:$0xf] %vm1205, %v1123
      %1253 = vst.msk [vmem:[%s145 + $0xbc] sm:$0xf] %vm1205, %v1124
      %1254 = vst.msk [vmem:[%s145 + $0xc0] sm:$0xf] %vm1205, %v1125
      %1255 = vst.msk [vmem:[%s145 + $0xc4] sm:$0xf] %vm1205, %v1126
      %1256 = vst.msk [vmem:[%s145 + $0xc8] sm:$0xf] %vm1205, %v1127
      %1257 = vst.msk [vmem:[%s145 + $0xcc] sm:$0xf] %vm1205, %v1128
      %1258 = vst.msk [vmem:[%s145 + $0xd0] sm:$0xf] %vm1205, %v1129
      %1259 = vst.msk [vmem:[%s145 + $0xd4] sm:$0xf] %vm1205, %v1130
      %1260 = vst.msk [vmem:[%s145 + $0xd8] sm:$0xf] %vm1205, %v1131
      %1261 = vst.msk [vmem:[%s145 + $0xdc] sm:$0xf] %vm1205, %v1132
      %1262 = vst.msk [vmem:[%s145 + $0xe0] sm:$0xf] %vm1205, %v1133
      %1263 = vst.msk [vmem:[%s145 + $0xe4] sm:$0xf] %vm1205, %v1134
      %1264 = vst.msk [vmem:[%s145 + $0xe8] sm:$0xf] %vm1205, %v1135
      %1265 = vst.msk [vmem:[%s145 + $0xec] sm:$0xf] %vm1205, %v1136
      %1266 = vst.msk [vmem:[%s145 + $0xf0] sm:$0xf] %vm1205, %v1137
      %1267 = vst.msk [vmem:[%s145 + $0xf4] sm:$0xf] %vm1205, %v1138
      %1268 = vst.msk [vmem:[%s145 + $0xf8] sm:$0xf] %vm1205, %v1139
      %1269 = vst.msk [vmem:[%s145 + $0xfc] sm:$0xf] %vm1205, %v1140
      %s1270 = smul.u32 64, %s13
      %p1271 = scmp.lt.s32.totalorder %s1270, 575
      %s1272 = scalar_select %p1271, %s1270, 575
      %s1273 = smul.addr %s1272, 4
      %s1274 = scalar_lea.vmem %s2, %s1273
      // Predicated region
      $region29: #{discriminator_forward.8} parent=27 // pred_check
        %p1275 = pneg %p78
      $region30: #{discriminator_forward.8} parent=27 // pred_check_branch
        %1277 = sbr.rel (%p1275) target = $region32
      $region31: #{discriminator_forward.8} parent=27 // pred_region
        %s1278 = smul.u32 64, %s13
      $region32: #{discriminator_forward.8} parent=27 // pred_fallthru
        _
    $region28: #{discriminator_forward.8} parent=5 // pred_fallthru
      _
    %p1279 = scmp.le.s32.totalorder 2, %s8
    // Predicated region
    $region33: #{discriminator_forward.8} parent=5 // pred_check
      %p1280 = pneg %p1279
    $region34: #{discriminator_forward.8} parent=5 // pred_check_branch
      %1282 = sbr.rel (%p1280) target = $region36
    $region35: #{discriminator_forward.8} parent=5 // pred_region
      %s1283 = ssub.s32 %s8, 2
      // Predicated region
      $region37: #{discriminator_forward.8} parent=35 // pred_check
        %p1284 = pneg %p84
      $region38: #{discriminator_forward.8} parent=35 // pred_check_branch
        %1286 = sbr.rel (%p1284) target = $region40
      $region39: #{discriminator_forward.8} parent=35 // pred_region
        %s1287 = smul.u32 64, %s14
        %p1288 = scmp.lt.s32.totalorder %s1287, 575
        %s1289 = scalar_select %p1288, %s1287, 575
        %s1290 = smul.addr %s1289, 4
        %s1291 = scalar_lea.vmem %s2, %s1290
      $region40: #{discriminator_forward.8} parent=35 // pred_fallthru
        _
    $region36: #{discriminator_forward.8} parent=5 // pred_fallthru
      _
  $region6: #{discriminator_forward.8} parent=0 // loop_footer
    %s12 = sadd.s32 1, %s8
  $region7: #{discriminator_forward.8} parent=0 // loop_footer_branch
    %7 = sbr.rel target = $region3
  $region8: #{discriminator_forward.8} parent=0 // loop_exit
    _

// kernel: discriminator_forward.9
$region0: #{discriminator_forward.9}
  #allocation0 [shape = 'u32[]', space=smem, size = 0x4, offset = 0x4, fixed_abs, tag = 'smem constant byte address 0x4 - core index']
  #allocation1 [shape = 'u32[144,128]{1,0:T(1,128)}', space=vmem, size = 0x12000, scoped, tag = 'internal scratch']
  %s0 = inlined_call_operand.vmem [shape: bf16[1152,128], index: 0, kind: input, shape index: {}]
  %s1 = inlined_call_operand.vmem [shape: bf16[128,16], index: 1, kind: input, shape index: {}]
  %s2 = inlined_call_operand.vmem [shape: f32[1152,16], index: 2, kind: output, shape index: {}]
  %s3 = sld [smem:[#allocation0]]
  $region89: #{discriminator_forward.9} parent=0
    _
  %s5 = ssub.s32 1, %s3
  %s6 = scalar_select 0, %s5, %s3
  $region1: #{discriminator_forward.9} parent=0
    #allocation2 [shape = 'u8[524288]{0}', space=vmem, size = 0x80000, scoped, tag = 'output window, operand 0']
    loop: start=0, step=1, limit=5
    $region2: #{discriminator_forward.9} parent=1 // loop_pre_header
      _
    $region3: #{discriminator_forward.9} parent=1 // loop_header
      %s8 = sphi 0, %s12
      %p9 = scmp.ge.s32.totalorder %s8, 5
      %s18 = sphi 0, %s20
      %s21 = sphi 0, %s18
      %s22 = sphi 0, %s21
      %s38 = sphi 0, %s22
      %s42 = sphi 0, %s42
      %s44 = sphi 0, %s42
      %s45 = sphi 0, %s44
      %s59 = sphi 0, %s45
      %s65 = sphi 0, %s67
      %s68 = sphi 0, %s65
      %s69 = sphi 0, %s68
      %s85 = sphi 0, %s69
    $region4: #{discriminator_forward.9} parent=1 // loop_header_branch
      %11 = sbr.rel (%p9) target = $region8
    $region5: #{discriminator_forward.9} parent=1 // loop_body
      %s13 = ssub.s32 %s8, 1
      %s14 = ssub.s32 %s8, 2
      %s15 = sadd.s32 %s8, 1
      %s16 = ssub.s32 %s8, %s15
      %p17 = scmp.eq.s32.totalorder %s16, 0
      %s19 = sadd.s32 %s18, 1
      %s20 = scalar_select %p17, %s18, %s19
      %p23 = pneg %p17
      %p24 = scmp.eq.s32.totalorder %s8, 2
      %p25 = por %p23, %p24
      %p26 = scmp.ne.s32.totalorder %s18, %s21
      %p27 = scmp.eq.s32.totalorder %s8, 0
      %p28 = por %p26, %p27
      %p29 = scmp.ne.s32.totalorder %s18, %s21
      %p30 = scmp.eq.s32.totalorder %s13, 2
      %p31 = por %p29, %p30
      %p32 = scmp.ne.s32.totalorder %s21, %s22
      %p33 = scmp.eq.s32.totalorder %s13, 0
      %p34 = por %p32, %p33
      %p35 = scmp.ne.s32.totalorder %s21, %s22
      %p36 = scmp.eq.s32.totalorder %s14, 2
      %p37 = por %p35, %p36
      %p39 = scmp.ne.s32.totalorder %s22, %s38
      %p40 = scmp.eq.s32.totalorder %s14, 0
      %p41 = por %p39, %p40
      %s43 = sadd.s32 %s42, 1
      %p46 = scmp.eq.s32.totalorder %s8, 2
      %p47 = scmp.ne.s32.totalorder %s42, %s44
      %p48 = scmp.eq.s32.totalorder %s8, 0
      %p49 = por %p47, %p48
      %p50 = scmp.ne.s32.totalorder %s42, %s44
      %p51 = scmp.eq.s32.totalorder %s13, 2
      %p52 = por %p50, %p51
      %p53 = scmp.ne.s32.totalorder %s44, %s45
      %p54 = scmp.eq.s32.totalorder %s13, 0
      %p55 = por %p53, %p54
      %p56 = scmp.ne.s32.totalorder %s44, %s45
      %p57 = scmp.eq.s32.totalorder %s14, 2
      %p58 = por %p56, %p57
      %p60 = scmp.ne.s32.totalorder %s45, %s59
      %p61 = scmp.eq.s32.totalorder %s14, 0
      %p62 = por %p60, %p61
      %s63 = ssub.s32 %s8, %s15
      %p64 = scmp.eq.s32.totalorder %s63, 0
      %s66 = sadd.s32 %s65, 1
      %s67 = scalar_select %p64, %s65, %s66
      %p70 = pneg %p64
      %p71 = scmp.eq.s32.totalorder %s8, 2
      %p72 = por %p70, %p71
      %p73 = scmp.ne.s32.totalorder %s65, %s68
      %p74 = scmp.eq.s32.totalorder %s8, 0
      %p75 = por %p73, %p74
      %p76 = scmp.ne.s32.totalorder %s65, %s68
      %p77 = scmp.eq.s32.totalorder %s13, 2
      %p78 = por %p76, %p77
      %p79 = scmp.ne.s32.totalorder %s68, %s69
      %p80 = scmp.eq.s32.totalorder %s13, 0
      %p81 = por %p79, %p80
      %p82 = scmp.ne.s32.totalorder %s68, %s69
      %p83 = scmp.eq.s32.totalorder %s14, 2
      %p84 = por %p82, %p83
      %p86 = scmp.ne.s32.totalorder %s69, %s85
      %p87 = scmp.eq.s32.totalorder %s14, 0
      %p88 = por %p86, %p87
      %p89 = scmp.le.s32.totalorder 1, %s8
      %p90 = scmp.lt.s32.totalorder %s8, 4
      %p91 = pnand %p89, %p90
      %p92 = pneg %p91
      // Predicated region
      $region9: #{discriminator_forward.9} parent=5 // pred_check
        _
      $region10: #{discriminator_forward.9} parent=5 // pred_check_branch
        %94 = sbr.rel (%p91) target = $region12
      $region11: #{discriminator_forward.9} parent=5 // pred_region
        %s95 = ssub.s32 %s8, 1
        // Predicated region
        $region13: #{discriminator_forward.9} parent=11 // pred_check
          %p96 = pneg %p55
        $region14: #{discriminator_forward.9} parent=11 // pred_check_branch
          %98 = sbr.rel (%p96) target = $region16
        $region15: #{discriminator_forward.9} parent=11 // pred_region
          _
        $region16: #{discriminator_forward.9} parent=11 // pred_fallthru
          _
      $region12: #{discriminator_forward.9} parent=5 // pred_fallthru
        _
      %p99 = scmp.lt.s32.totalorder %s8, 3
      // Predicated region
      $region17: #{discriminator_forward.9} parent=5 // pred_check
        %p100 = pneg %p99
      $region18: #{discriminator_forward.9} parent=5 // pred_check_branch
        %102 = sbr.rel (%p100) target = $region20
      $region19: #{discriminator_forward.9} parent=5 // pred_region
        // Predicated region
        $region21: #{discriminator_forward.9} parent=19 // pred_check
          %p103 = pneg %p28
        $region22: #{discriminator_forward.9} parent=19 // pred_check_branch
          %105 = sbr.rel (%p103) target = $region24
        $region23: #{discriminator_forward.9} parent=19 // pred_region
          %s106 = smul.u32 64, %s8
          %s107 = ssub.s32 144, %s106
          %p108 = scmp.lt.s32.totalorder %s107, 64
          %s109 = scalar_select %p108, %s107, 64
          %s110 = smul.u32 64, %s109
          %p111 = scmp.lt.s32.totalorder %s106, 143
          %s112 = scalar_select %p111, %s106, 143
          %s113 = smul.addr %s112, 4
          %s114 = scalar_lea.vmem %s0, %s113
          %s115 = smul.u32 64, %s8
          %s116 = ssub.s32 144, %s115
          %p117 = scmp.lt.s32.totalorder %s116, 64
          %s118 = scalar_select %p117, %s116, 64
          %s119 = smul.u32 64, %s118
        $region24: #{discriminator_forward.9} parent=19 // pred_fallthru
          _
      $region20: #{discriminator_forward.9} parent=5 // pred_fallthru
        _
      %p120 = scmp.le.s32.totalorder 1, %s8
      %p121 = scmp.lt.s32.totalorder %s8, 4
      %p122 = pnand %p120, %p121
      %p123 = pneg %p122
      // Predicated region
      $region25: #{discriminator_forward.9} parent=5 // pred_check
        _
      $region26: #{discriminator_forward.9} parent=5 // pred_check_branch
        %125 = sbr.rel (%p122) target = $region28
      $region27: #{discriminator_forward.9} parent=5 // pred_region
        %s126 = ssub.s32 %s8, 1
        %s127 = smul.u32 64, %s13
        %s128 = ssub.s32 144, %s127
        %p129 = scmp.lt.s32.totalorder %s128, 64
        %s130 = scalar_select %p129, %s128, 64
        %s131 = smul.u32 64, %s130
        %p132 = scmp.lt.s32.totalorder %s127, 143
        %s133 = scalar_select %p132, %s127, 143
        %s134 = smul.addr %s133, 4
        %s135 = scalar_lea.vmem %s0, %s134
        %p136 = pneg %p34
        %p137 = pneg %p31
        %p138 = pneg %p55
        %p139 = pneg %p52
        %p140 = pneg %p81
        %p141 = pneg %p78
        %s142 = sand.u32 %s68, 1
        %s143 = sand.u32 %s68, 1
        %s144 = smul.addr %s143, 512
        %s145 = scalar_lea.vmem [#allocation2], %s144
        %s146 = smul.u32 64, %s13
        %s147 = ssub.s32 144, %s146
        %p148 = scmp.lt.s32.totalorder %s147, 64
        %s149 = scalar_select %p148, %s147, 64
        %s150 = smul.u32 64, %s149
        %p151 = scmp.lt.s32.totalorder %s146, 143
        %s152 = scalar_select %p151, %s146, 143
        %s153 = smul.addr %s152, 4
        %s154 = scalar_lea.vmem %s0, %s153
        %s155 = smul.u32 64, %s13
        %s156 = ssub.s32 144, %s155
        %p157 = scmp.lt.s32.totalorder %s156, 64
        %s158 = scalar_select %p157, %s156, 64
        %s159 = smul.u32 64, %s158
        %s160 = smul.u32 64, %s13
        %s161 = ssub.s32 144, %s160
        %p162 = scmp.lt.s32.totalorder %s161, 64
        %s163 = scalar_select %p162, %s161, 64
        %s164 = smul.u32 128, %s163
        %v166 = vld [vmem:[%s154] sm:$0xf]
        %v167 = vld [vmem:[%s154 + $0x4] sm:$0xf]
        %v168 = vld [vmem:[%s154 + $0x8] sm:$0xf]
        %v169 = vld [vmem:[%s154 + $0xc] sm:$0xf]
        %v170 = vld [vmem:[%s154 + $0x10] sm:$0xf]
        %v171 = vld [vmem:[%s154 + $0x14] sm:$0xf]
        %v172 = vld [vmem:[%s154 + $0x18] sm:$0xf]
        %v173 = vld [vmem:[%s154 + $0x1c] sm:$0xf]
        %v174 = vld [vmem:[%s154 + $0x20] sm:$0xf]
        %v175 = vld [vmem:[%s154 + $0x24] sm:$0xf]
        %v176 = vld [vmem:[%s154 + $0x28] sm:$0xf]
        %v177 = vld [vmem:[%s154 + $0x2c] sm:$0xf]
        %v178 = vld [vmem:[%s154 + $0x30] sm:$0xf]
        %v179 = vld [vmem:[%s154 + $0x34] sm:$0xf]
        %v180 = vld [vmem:[%s154 + $0x38] sm:$0xf]
        %v181 = vld [vmem:[%s154 + $0x3c] sm:$0xf]
        %v182 = vld [vmem:[%s154 + $0x40] sm:$0xf]
        %v183 = vld [vmem:[%s154 + $0x44] sm:$0xf]
        %v184 = vld [vmem:[%s154 + $0x48] sm:$0xf]
        %v185 = vld [vmem:[%s154 + $0x4c] sm:$0xf]
        %v186 = vld [vmem:[%s154 + $0x50] sm:$0xf]
        %v187 = vld [vmem:[%s154 + $0x54] sm:$0xf]
        %v188 = vld [vmem:[%s154 + $0x58] sm:$0xf]
        %v189 = vld [vmem:[%s154 + $0x5c] sm:$0xf]
        %v190 = vld [vmem:[%s154 + $0x60] sm:$0xf]
        %v191 = vld [vmem:[%s154 + $0x64] sm:$0xf]
        %v192 = vld [vmem:[%s154 + $0x68] sm:$0xf]
        %v193 = vld [vmem:[%s154 + $0x6c] sm:$0xf]
        %v194 = vld [vmem:[%s154 + $0x70] sm:$0xf]
        %v195 = vld [vmem:[%s154 + $0x74] sm:$0xf]
        %v196 = vld [vmem:[%s154 + $0x78] sm:$0xf]
        %v197 = vld [vmem:[%s154 + $0x7c] sm:$0xf]
        %v198 = vld [vmem:[%s154 + $0x80] sm:$0xf]
        %v199 = vld [vmem:[%s154 + $0x84] sm:$0xf]
        %v200 = vld [vmem:[%s154 + $0x88] sm:$0xf]
        %v201 = vld [vmem:[%s154 + $0x8c] sm:$0xf]
        %v202 = vld [vmem:[%s154 + $0x90] sm:$0xf]
        %v203 = vld [vmem:[%s154 + $0x94] sm:$0xf]
        %v204 = vld [vmem:[%s154 + $0x98] sm:$0xf]
        %v205 = vld [vmem:[%s154 + $0x9c] sm:$0xf]
        %v206 = vld [vmem:[%s154 + $0xa0] sm:$0xf]
        %v207 = vld [vmem:[%s154 + $0xa4] sm:$0xf]
        %v208 = vld [vmem:[%s154 + $0xa8] sm:$0xf]
        %v209 = vld [vmem:[%s154 + $0xac] sm:$0xf]
        %v210 = vld [vmem:[%s154 + $0xb0] sm:$0xf]
        %v211 = vld [vmem:[%s154 + $0xb4] sm:$0xf]
        %v212 = vld [vmem:[%s154 + $0xb8] sm:$0xf]
        %v213 = vld [vmem:[%s154 + $0xbc] sm:$0xf]
        %v214 = vld [vmem:[%s154 + $0xc0] sm:$0xf]
        %v215 = vld [vmem:[%s154 + $0xc4] sm:$0xf]
        %v216 = vld [vmem:[%s154 + $0xc8] sm:$0xf]
        %v217 = vld [vmem:[%s154 + $0xcc] sm:$0xf]
        %v218 = vld [vmem:[%s154 + $0xd0] sm:$0xf]
        %v219 = vld [vmem:[%s154 + $0xd4] sm:$0xf]
        %v220 = vld [vmem:[%s154 + $0xd8] sm:$0xf]
        %v221 = vld [vmem:[%s154 + $0xdc] sm:$0xf]
        %v222 = vld [vmem:[%s154 + $0xe0] sm:$0xf]
        %v223 = vld [vmem:[%s154 + $0xe4] sm:$0xf]
        %v224 = vld [vmem:[%s154 + $0xe8] sm:$0xf]
        %v225 = vld [vmem:[%s154 + $0xec] sm:$0xf]
        %v226 = vld [vmem:[%s154 + $0xf0] sm:$0xf]
        %v227 = vld [vmem:[%s154 + $0xf4] sm:$0xf]
        %v228 = vld [vmem:[%s154 + $0xf8] sm:$0xf]
        %v229 = vld [vmem:[%s154 + $0xfc] sm:$0xf]
        %v230 = vld [vmem:[%s1] sm:$0xf]
        %v231 = vld [vmem:[%s1 + $0x4] sm:$0xf]
        %v232 = vld [vmem:[%s1 + $0x8] sm:$0xf]
        %v233 = vld [vmem:[%s1 + $0xc] sm:$0xf]
        %v234 = vld [vmem:[%s1 + $0x10] sm:$0xf]
        %v235 = vld [vmem:[%s1 + $0x14] sm:$0xf]
        %v236 = vld [vmem:[%s1 + $0x18] sm:$0xf]
        %v237 = vld [vmem:[%s1 + $0x1c] sm:$0xf]
        %v238 = vld [vmem:[%s1 + $0x20] sm:$0xf]
        %v239 = vld [vmem:[%s1 + $0x24] sm:$0xf]
        %v240 = vld [vmem:[%s1 + $0x28] sm:$0xf]
        %v241 = vld [vmem:[%s1 + $0x2c] sm:$0xf]
        %v242 = vld [vmem:[%s1 + $0x30] sm:$0xf]
        %v243 = vld [vmem:[%s1 + $0x34] sm:$0xf]
        %v244 = vld [vmem:[%s1 + $0x38] sm:$0xf]
        %v245 = vld [vmem:[%s1 + $0x3c] sm:$0xf]
        %v310 = vunpack.c.l.b16 %v166
        %v311 = vunpack.c.l.b16 %v167
        %v312 = vunpack.c.l.b16 %v168
        %v313 = vunpack.c.l.b16 %v169
        %v314 = vunpack.c.l.b16 %v170
        %v315 = vunpack.c.l.b16 %v171
        %v316 = vunpack.c.l.b16 %v172
        %v317 = vunpack.c.l.b16 %v173
        %v318 = vunpack.c.l.b16 %v174
        %v319 = vunpack.c.l.b16 %v175
        %v320 = vunpack.c.l.b16 %v176
        %v321 = vunpack.c.l.b16 %v177
        %v322 = vunpack.c.l.b16 %v178
        %v323 = vunpack.c.l.b16 %v179
        %v324 = vunpack.c.l.b16 %v180
        %v325 = vunpack.c.l.b16 %v181
        %v326 = vunpack.c.l.b16 %v182
        %v327 = vunpack.c.l.b16 %v183
        %v328 = vunpack.c.l.b16 %v184
        %v329 = vunpack.c.l.b16 %v185
        %v330 = vunpack.c.l.b16 %v186
        %v331 = vunpack.c.l.b16 %v187
        %v332 = vunpack.c.l.b16 %v188
        %v333 = vunpack.c.l.b16 %v189
        %v334 = vunpack.c.l.b16 %v190
        %v335 = vunpack.c.l.b16 %v191
        %v336 = vunpack.c.l.b16 %v192
        %v337 = vunpack.c.l.b16 %v193
        %v338 = vunpack.c.l.b16 %v194
        %v339 = vunpack.c.l.b16 %v195
        %v340 = vunpack.c.l.b16 %v196
        %v341 = vunpack.c.l.b16 %v197
        %v342 = vunpack.c.l.b16 %v198
        %v343 = vunpack.c.l.b16 %v199
        %v344 = vunpack.c.l.b16 %v200
        %v345 = vunpack.c.l.b16 %v201
        %v346 = vunpack.c.l.b16 %v202
        %v347 = vunpack.c.l.b16 %v203
        %v348 = vunpack.c.l.b16 %v204
        %v349 = vunpack.c.l.b16 %v205
        %v350 = vunpack.c.l.b16 %v206
        %v351 = vunpack.c.l.b16 %v207
        %v352 = vunpack.c.l.b16 %v208
        %v353 = vunpack.c.l.b16 %v209
        %v354 = vunpack.c.l.b16 %v210
        %v355 = vunpack.c.l.b16 %v211
        %v356 = vunpack.c.l.b16 %v212
        %v357 = vunpack.c.l.b16 %v213
        %v358 = vunpack.c.l.b16 %v214
        %v359 = vunpack.c.l.b16 %v215
        %v360 = vunpack.c.l.b16 %v216
        %v361 = vunpack.c.l.b16 %v217
        %v362 = vunpack.c.l.b16 %v218
        %v363 = vunpack.c.l.b16 %v219
        %v364 = vunpack.c.l.b16 %v220
        %v365 = vunpack.c.l.b16 %v221
        %v366 = vunpack.c.l.b16 %v222
        %v367 = vunpack.c.l.b16 %v223
        %v368 = vunpack.c.l.b16 %v224
        %v369 = vunpack.c.l.b16 %v225
        %v370 = vunpack.c.l.b16 %v226
        %v371 = vunpack.c.l.b16 %v227
        %v372 = vunpack.c.l.b16 %v228
        %v373 = vunpack.c.l.b16 %v229
        %v374 = vpack.c.b16 %v311, %v310
        %v375 = vpack.c.b16 %v313, %v312
        %v376 = vpack.c.b16 %v315, %v314
        %v377 = vpack.c.b16 %v317, %v316
        %v378 = vpack.c.b16 %v319, %v318
        %v379 = vpack.c.b16 %v321, %v320
        %v380 = vpack.c.b16 %v323, %v322
        %v381 = vpack.c.b16 %v325, %v324
        %v382 = vpack.c.b16 %v327, %v326
        %v383 = vpack.c.b16 %v329, %v328
        %v384 = vpack.c.b16 %v331, %v330
        %v385 = vpack.c.b16 %v333, %v332
        %v386 = vpack.c.b16 %v335, %v334
        %v387 = vpack.c.b16 %v337, %v336
        %v388 = vpack.c.b16 %v339, %v338
        %v389 = vpack.c.b16 %v341, %v340
        %v390 = vpack.c.b16 %v343, %v342
        %v391 = vpack.c.b16 %v345, %v344
        %v392 = vpack.c.b16 %v347, %v346
        %v393 = vpack.c.b16 %v349, %v348
        %v394 = vpack.c.b16 %v351, %v350
        %v395 = vpack.c.b16 %v353, %v352
        %v396 = vpack.c.b16 %v355, %v354
        %v397 = vpack.c.b16 %v357, %v356
        %v398 = vpack.c.b16 %v359, %v358
        %v399 = vpack.c.b16 %v361, %v360
        %v400 = vpack.c.b16 %v363, %v362
        %v401 = vpack.c.b16 %v365, %v364
        %v402 = vpack.c.b16 %v367, %v366
        %v403 = vpack.c.b16 %v369, %v368
        %v404 = vpack.c.b16 %v371, %v370
        %v405 = vpack.c.b16 %v373, %v372
        %v454 = vunpack.c.l.b16 %v230
        %v455 = vunpack.c.l.b16 %v231
        %v456 = vunpack.c.l.b16 %v232
        %v457 = vunpack.c.l.b16 %v233
        %v458 = vunpack.c.l.b16 %v234
        %v459 = vunpack.c.l.b16 %v235
        %v460 = vunpack.c.l.b16 %v236
        %v461 = vunpack.c.l.b16 %v237
        %v462 = vunpack.c.l.b16 %v238
        %v463 = vunpack.c.l.b16 %v239
        %v464 = vunpack.c.l.b16 %v240
        %v465 = vunpack.c.l.b16 %v241
        %v466 = vunpack.c.l.b16 %v242
        %v467 = vunpack.c.l.b16 %v243
        %v468 = vunpack.c.l.b16 %v244
        %v469 = vunpack.c.l.b16 %v245
        %v470 = vpack.c.b16 %v455, %v454
        %v471 = vpack.c.b16 %v457, %v456
        %v472 = vpack.c.b16 %v459, %v458
        %v473 = vpack.c.b16 %v461, %v460
        %v474 = vpack.c.b16 %v463, %v462
        %v475 = vpack.c.b16 %v465, %v464
        %v476 = vpack.c.b16 %v467, %v466
        %v477 = vpack.c.b16 %v469, %v468
        %486 = vmatprep.subr.bf16.mxu0 0
        %487 = vmatpush1.bf16.msra.mxu0 %v470
        %488 = vmatprep.subr.bf16.mxu0 0
        %489 = vmatpush1.bf16.msra.mxu0 %v471
        %490 = vmatprep.subr.bf16.mxu0 0
        %491 = vmatpush1.bf16.msra.mxu0 %v472
        %492 = vmatprep.subr.bf16.mxu0 0
        %493 = vmatpush1.bf16.msra.mxu0 %v473
        %494 = vmatprep.subr.bf16.mxu0 0
        %495 = vmatpush1.bf16.msra.mxu0 %v474
        %496 = vmatprep.subr.bf16.mxu0 0
        %497 = vmatpush1.bf16.msra.mxu0 %v475
        %498 = vmatprep.subr.bf16.mxu0 0
        %499 = vmatpush1.bf16.msra.mxu0 %v476
        %500 = vmatprep.subr.bf16.mxu0 0
        %501 = vmatpush1.bf16.msra.mxu0 %v477
        %502 = vmatprep.subr.bf16.mxu0 0
        %503 = vmatpush1.bf16.msra.mxu0 0
        %504 = vmatprep.subr.bf16.mxu0 0
        %505 = vmatpush1.bf16.msra.mxu0 0
        %506 = vmatprep.subr.bf16.mxu0 0
        %507 = vmatpush1.bf16.msra.mxu0 0
        %508 = vmatprep.subr.bf16.mxu0 0
        %509 = vmatpush1.bf16.msra.mxu0 0
        %510 = vmatprep.subr.bf16.mxu0 0
        %511 = vmatpush1.bf16.msra.mxu0 0
        %512 = vmatprep.subr.bf16.mxu0 0
        %513 = vmatpush1.bf16.msra.mxu0 0
        %514 = vmatprep.subr.bf16.mxu0 0
        %515 = vmatpush1.bf16.msra.mxu0 0
        %516 = vmatprep.subr.bf16.mxu0 0
        %517 = vmatpush1.bf16.msra.mxu0 0
        %518 = vmatprep.mubr.bf16.mxu0 0
        %519 = vmatmul.mubr.bf16.gmra.mrb[0].mxu0 %v374
        %v520 = vpop.f32.mrb[0].mxu0
        %v521 = vadd.f32 0.0, %v520
        %v522 = vpop.f32.mrb[0].mxu0
        %v523 = vpop.f32.mrb[0].mxu0
        %v524 = vadd.f32 0.0, %v523
        %v525 = vpop.f32.mrb[0].mxu0
        %526 = vmatprep.mubr.bf16.mxu0 0
        %527 = vmatmul.mubr.bf16.gmra.mrb[0].mxu0 %v375
        %v528 = vpop.f32.mrb[0].mxu0
        %v529 = vadd.f32 0.0, %v528
        %v530 = vpop.f32.mrb[0].mxu0
        %v531 = vpop.f32.mrb[0].mxu0
        %v532 = vadd.f32 0.0, %v531
        %v533 = vpop.f32.mrb[0].mxu0
        %534 = vmatprep.mubr.bf16.mxu0 0
        %535 = vmatmul.mubr.bf16.gmra.mrb[0].mxu0 %v376
        %v536 = vpop.f32.mrb[0].mxu0
        %v537 = vadd.f32 0.0, %v536
        %v538 = vpop.f32.mrb[0].mxu0
        %v539 = vpop.f32.mrb[0].mxu0
        %v540 = vadd.f32 0.0, %v539
        %v541 = vpop.f32.mrb[0].mxu0
        %542 = vmatprep.mubr.bf16.mxu0 0
        %543 = vmatmul.mubr.bf16.gmra.mrb[0].mxu0 %v377
        %v544 = vpop.f32.mrb[0].mxu0
        %v545 = vadd.f32 0.0, %v544
        %v546 = vpop.f32.mrb[0].mxu0
        %v547 = vpop.f32.mrb[0].mxu0
        %v548 = vadd.f32 0.0, %v547
        %v549 = vpop.f32.mrb[0].mxu0
        %550 = vmatprep.mubr.bf16.mxu0 0
        %551 = vmatmul.mubr.bf16.gmra.mrb[0].mxu0 %v378
        %v552 = vpop.f32.mrb[0].mxu0
        %v553 = vadd.f32 0.0, %v552
        %v554 = vpop.f32.mrb[0].mxu0
        %v555 = vpop.f32.mrb[0].mxu0
        %v556 = vadd.f32 0.0, %v555
        %v557 = vpop.f32.mrb[0].mxu0
        %558 = vmatprep.mubr.bf16.mxu0 0
        %559 = vmatmul.mubr.bf16.gmra.mrb[0].mxu0 %v379
        %v560 = vpop.f32.mrb[0].mxu0
        %v561 = vadd.f32 0.0, %v560
        %v562 = vpop.f32.mrb[0].mxu0
        %v563 = vpop.f32.mrb[0].mxu0
        %v564 = vadd.f32 0.0, %v563
        %v565 = vpop.f32.mrb[0].mxu0
        %566 = vmatprep.mubr.bf16.mxu0 0
        %567 = vmatmul.mubr.bf16.gmra.mrb[0].mxu0 %v380
        %v568 = vpop.f32.mrb[0].mxu0
        %v569 = vadd.f32 0.0, %v568
        %v570 = vpop.f32.mrb[0].mxu0
        %v571 = vpop.f32.mrb[0].mxu0
        %v572 = vadd.f32 0.0, %v571
        %v573 = vpop.f32.mrb[0].mxu0
        %574 = vmatprep.mubr.bf16.mxu0 0
        %575 = vmatmul.mubr.bf16.gmra.mrb[0].mxu0 %v381
        %v576 = vpop.f32.mrb[0].mxu0
        %v577 = vadd.f32 0.0, %v576
        %v578 = vpop.f32.mrb[0].mxu0
        %v579 = vpop.f32.mrb[0].mxu0
        %v580 = vadd.f32 0.0, %v579
        %v581 = vpop.f32.mrb[0].mxu0
        %582 = vmatprep.mubr.bf16.mxu0 0
        %583 = vmatmul.mubr.bf16.gmra.mrb[0].mxu0 %v382
        %v584 = vpop.f32.mrb[0].mxu0
        %v585 = vadd.f32 0.0, %v584
        %v586 = vpop.f32.mrb[0].mxu0
        %v587 = vpop.f32.mrb[0].mxu0
        %v588 = vadd.f32 0.0, %v587
        %v589 = vpop.f32.mrb[0].mxu0
        %590 = vmatprep.mubr.bf16.mxu0 0
        %591 = vmatmul.mubr.bf16.gmra.mrb[0].mxu0 %v383
        %v592 = vpop.f32.mrb[0].mxu0
        %v593 = vadd.f32 0.0, %v592
        %v594 = vpop.f32.mrb[0].mxu0
        %v595 = vpop.f32.mrb[0].mxu0
        %v596 = vadd.f32 0.0, %v595
        %v597 = vpop.f32.mrb[0].mxu0
        %598 = vmatprep.mubr.bf16.mxu0 0
        %599 = vmatmul.mubr.bf16.gmra.mrb[0].mxu0 %v384
        %v600 = vpop.f32.mrb[0].mxu0
        %v601 = vadd.f32 0.0, %v600
        %v602 = vpop.f32.mrb[0].mxu0
        %v603 = vpop.f32.mrb[0].mxu0
        %v604 = vadd.f32 0.0, %v603
        %v605 = vpop.f32.mrb[0].mxu0
        %606 = vmatprep.mubr.bf16.mxu0 0
        %607 = vmatmul.mubr.bf16.gmra.mrb[0].mxu0 %v385
        %v608 = vpop.f32.mrb[0].mxu0
        %v609 = vadd.f32 0.0, %v608
        %v610 = vpop.f32.mrb[0].mxu0
        %v611 = vpop.f32.mrb[0].mxu0
        %v612 = vadd.f32 0.0, %v611
        %v613 = vpop.f32.mrb[0].mxu0
        %614 = vmatprep.mubr.bf16.mxu0 0
        %615 = vmatmul.mubr.bf16.gmra.mrb[0].mxu0 %v386
        %v616 = vpop.f32.mrb[0].mxu0
        %v617 = vadd.f32 0.0, %v616
        %v618 = vpop.f32.mrb[0].mxu0
        %v619 = vpop.f32.mrb[0].mxu0
        %v620 = vadd.f32 0.0, %v619
        %v621 = vpop.f32.mrb[0].mxu0
        %622 = vmatprep.mubr.bf16.mxu0 0
        %623 = vmatmul.mubr.bf16.gmra.mrb[0].mxu0 %v387
        %v624 = vpop.f32.mrb[0].mxu0
        %v625 = vadd.f32 0.0, %v624
        %v626 = vpop.f32.mrb[0].mxu0
        %v627 = vpop.f32.mrb[0].mxu0
        %v628 = vadd.f32 0.0, %v627
        %v629 = vpop.f32.mrb[0].mxu0
        %630 = vmatprep.mubr.bf16.mxu0 0
        %631 = vmatmul.mubr.bf16.gmra.mrb[0].mxu0 %v388
        %v632 = vpop.f32.mrb[0].mxu0
        %v633 = vadd.f32 0.0, %v632
        %v634 = vpop.f32.mrb[0].mxu0
        %v635 = vpop.f32.mrb[0].mxu0
        %v636 = vadd.f32 0.0, %v635
        %v637 = vpop.f32.mrb[0].mxu0
        %638 = vmatprep.mubr.bf16.mxu0 0
        %639 = vmatmul.mubr.bf16.gmra.mrb[0].mxu0 %v389
        %v640 = vpop.f32.mrb[0].mxu0
        %v641 = vadd.f32 0.0, %v640
        %v642 = vpop.f32.mrb[0].mxu0
        %v643 = vpop.f32.mrb[0].mxu0
        %v644 = vadd.f32 0.0, %v643
        %v645 = vpop.f32.mrb[0].mxu0
        %646 = vmatprep.mubr.bf16.mxu0 0
        %647 = vmatmul.mubr.bf16.gmra.mrb[0].mxu0 %v390
        %v648 = vpop.f32.mrb[0].mxu0
        %v649 = vadd.f32 0.0, %v648
        %v650 = vpop.f32.mrb[0].mxu0
        %v651 = vpop.f32.mrb[0].mxu0
        %v652 = vadd.f32 0.0, %v651
        %v653 = vpop.f32.mrb[0].mxu0
        %654 = vmatprep.mubr.bf16.mxu0 0
        %655 = vmatmul.mubr.bf16.gmra.mrb[0].mxu0 %v391
        %v656 = vpop.f32.mrb[0].mxu0
        %v657 = vadd.f32 0.0, %v656
        %v658 = vpop.f32.mrb[0].mxu0
        %v659 = vpop.f32.mrb[0].mxu0
        %v660 = vadd.f32 0.0, %v659
        %v661 = vpop.f32.mrb[0].mxu0
        %662 = vmatprep.mubr.bf16.mxu0 0
        %663 = vmatmul.mubr.bf16.gmra.mrb[0].mxu0 %v392
        %v664 = vpop.f32.mrb[0].mxu0
        %v665 = vadd.f32 0.0, %v664
        %v666 = vpop.f32.mrb[0].mxu0
        %v667 = vpop.f32.mrb[0].mxu0
        %v668 = vadd.f32 0.0, %v667
        %v669 = vpop.f32.mrb[0].mxu0
        %670 = vmatprep.mubr.bf16.mxu0 0
        %671 = vmatmul.mubr.bf16.gmra.mrb[0].mxu0 %v393
        %v672 = vpop.f32.mrb[0].mxu0
        %v673 = vadd.f32 0.0, %v672
        %v674 = vpop.f32.mrb[0].mxu0
        %v675 = vpop.f32.mrb[0].mxu0
        %v676 = vadd.f32 0.0, %v675
        %v677 = vpop.f32.mrb[0].mxu0
        %678 = vmatprep.mubr.bf16.mxu0 0
        %679 = vmatmul.mubr.bf16.gmra.mrb[0].mxu0 %v394
        %v680 = vpop.f32.mrb[0].mxu0
        %v681 = vadd.f32 0.0, %v680
        %v682 = vpop.f32.mrb[0].mxu0
        %v683 = vpop.f32.mrb[0].mxu0
        %v684 = vadd.f32 0.0, %v683
        %v685 = vpop.f32.mrb[0].mxu0
        %686 = vmatprep.mubr.bf16.mxu0 0
        %687 = vmatmul.mubr.bf16.gmra.mrb[0].mxu0 %v395
        %v688 = vpop.f32.mrb[0].mxu0
        %v689 = vadd.f32 0.0, %v688
        %v690 = vpop.f32.mrb[0].mxu0
        %v691 = vpop.f32.mrb[0].mxu0
        %v692 = vadd.f32 0.0, %v691
        %v693 = vpop.f32.mrb[0].mxu0
        %694 = vmatprep.mubr.bf16.mxu0 0
        %695 = vmatmul.mubr.bf16.gmra.mrb[0].mxu0 %v396
        %v696 = vpop.f32.mrb[0].mxu0
        %v697 = vadd.f32 0.0, %v696
        %v698 = vpop.f32.mrb[0].mxu0
        %v699 = vpop.f32.mrb[0].mxu0
        %v700 = vadd.f32 0.0, %v699
        %v701 = vpop.f32.mrb[0].mxu0
        %702 = vmatprep.mubr.bf16.mxu0 0
        %703 = vmatmul.mubr.bf16.gmra.mrb[0].mxu0 %v397
        %v704 = vpop.f32.mrb[0].mxu0
        %v705 = vadd.f32 0.0, %v704
        %v706 = vpop.f32.mrb[0].mxu0
        %v707 = vpop.f32.mrb[0].mxu0
        %v708 = vadd.f32 0.0, %v707
        %v709 = vpop.f32.mrb[0].mxu0
        %710 = vmatprep.mubr.bf16.mxu0 0
        %711 = vmatmul.mubr.bf16.gmra.mrb[0].mxu0 %v398
        %v712 = vpop.f32.mrb[0].mxu0
        %v713 = vadd.f32 0.0, %v712
        %v714 = vpop.f32.mrb[0].mxu0
        %v715 = vpop.f32.mrb[0].mxu0
        %v716 = vadd.f32 0.0, %v715
        %v717 = vpop.f32.mrb[0].mxu0
        %718 = vmatprep.mubr.bf16.mxu0 0
        %719 = vmatmul.mubr.bf16.gmra.mrb[0].mxu0 %v399
        %v720 = vpop.f32.mrb[0].mxu0
        %v721 = vadd.f32 0.0, %v720
        %v722 = vpop.f32.mrb[0].mxu0
        %v723 = vpop.f32.mrb[0].mxu0
        %v724 = vadd.f32 0.0, %v723
        %v725 = vpop.f32.mrb[0].mxu0
        %726 = vmatprep.mubr.bf16.mxu0 0
        %727 = vmatmul.mubr.bf16.gmra.mrb[0].mxu0 %v400
        %v728 = vpop.f32.mrb[0].mxu0
        %v729 = vadd.f32 0.0, %v728
        %v730 = vpop.f32.mrb[0].mxu0
        %v731 = vpop.f32.mrb[0].mxu0
        %v732 = vadd.f32 0.0, %v731
        %v733 = vpop.f32.mrb[0].mxu0
        %734 = vmatprep.mubr.bf16.mxu0 0
        %735 = vmatmul.mubr.bf16.gmra.mrb[0].mxu0 %v401
        %v736 = vpop.f32.mrb[0].mxu0
        %v737 = vadd.f32 0.0, %v736
        %v738 = vpop.f32.mrb[0].mxu0
        %v739 = vpop.f32.mrb[0].mxu0
        %v740 = vadd.f32 0.0, %v739
        %v741 = vpop.f32.mrb[0].mxu0
        %742 = vmatprep.mubr.bf16.mxu0 0
        %743 = vmatmul.mubr.bf16.gmra.mrb[0].mxu0 %v402
        %v744 = vpop.f32.mrb[0].mxu0
        %v745 = vadd.f32 0.0, %v744
        %v746 = vpop.f32.mrb[0].mxu0
        %v747 = vpop.f32.mrb[0].mxu0
        %v748 = vadd.f32 0.0, %v747
        %v749 = vpop.f32.mrb[0].mxu0
        %750 = vmatprep.mubr.bf16.mxu0 0
        %751 = vmatmul.mubr.bf16.gmra.mrb[0].mxu0 %v403
        %v752 = vpop.f32.mrb[0].mxu0
        %v753 = vadd.f32 0.0, %v752
        %v754 = vpop.f32.mrb[0].mxu0
        %v755 = vpop.f32.mrb[0].mxu0
        %v756 = vadd.f32 0.0, %v755
        %v757 = vpop.f32.mrb[0].mxu0
        %758 = vmatprep.mubr.bf16.mxu0 0
        %759 = vmatmul.mubr.bf16.gmra.mrb[0].mxu0 %v404
        %v760 = vpop.f32.mrb[0].mxu0
        %v761 = vadd.f32 0.0, %v760
        %v762 = vpop.f32.mrb[0].mxu0
        %v763 = vpop.f32.mrb[0].mxu0
        %v764 = vadd.f32 0.0, %v763
        %v765 = vpop.f32.mrb[0].mxu0
        %766 = vmatprep.mubr.bf16.mxu0 0
        %767 = vmatmul.mubr.bf16.gmra.mrb[0].mxu0 %v405
        %v768 = vpop.f32.mrb[0].mxu0
        %v769 = vadd.f32 0.0, %v768
        %v770 = vpop.f32.mrb[0].mxu0
        %v771 = vpop.f32.mrb[0].mxu0
        %v772 = vadd.f32 0.0, %v771
        %v773 = vpop.f32.mrb[0].mxu0
        %774 = vdwg.mxu0
        %vm775 = vcmask 130048
        %776 = vst.msk [vmem:[%s145] sm:$0xff] %vm775, %v521
        %777 = vst.msk [vmem:[%s145 + $0x8] sm:$0xff] %vm775, %v524
        %778 = vst.msk [vmem:[%s145 + $0x10] sm:$0xff] %vm775, %v529
        %779 = vst.msk [vmem:[%s145 + $0x18] sm:$0xff] %vm775, %v532
        %780 = vst.msk [vmem:[%s145 + $0x20] sm:$0xff] %vm775, %v537
        %781 = vst.msk [vmem:[%s145 + $0x28] sm:$0xff] %vm775, %v540
        %782 = vst.msk [vmem:[%s145 + $0x30] sm:$0xff] %vm775, %v545
        %783 = vst.msk [vmem:[%s145 + $0x38] sm:$0xff] %vm775, %v548
        %784 = vst.msk [vmem:[%s145 + $0x40] sm:$0xff] %vm775, %v553
        %785 = vst.msk [vmem:[%s145 + $0x48] sm:$0xff] %vm775, %v556
        %786 = vst.msk [vmem:[%s145 + $0x50] sm:$0xff] %vm775, %v561
        %787 = vst.msk [vmem:[%s145 + $0x58] sm:$0xff] %vm775, %v564
        %788 = vst.msk [vmem:[%s145 + $0x60] sm:$0xff] %vm775, %v569
        %789 = vst.msk [vmem:[%s145 + $0x68] sm:$0xff] %vm775, %v572
        %790 = vst.msk [vmem:[%s145 + $0x70] sm:$0xff] %vm775, %v577
        %791 = vst.msk [vmem:[%s145 + $0x78] sm:$0xff] %vm775, %v580
        %792 = vst.msk [vmem:[%s145 + $0x80] sm:$0xff] %vm775, %v585
        %793 = vst.msk [vmem:[%s145 + $0x88] sm:$0xff] %vm775, %v588
        %794 = vst.msk [vmem:[%s145 + $0x90] sm:$0xff] %vm775, %v593
        %795 = vst.msk [vmem:[%s145 + $0x98] sm:$0xff] %vm775, %v596
        %796 = vst.msk [vmem:[%s145 + $0xa0] sm:$0xff] %vm775, %v601
        %797 = vst.msk [vmem:[%s145 + $0xa8] sm:$0xff] %vm775, %v604
        %798 = vst.msk [vmem:[%s145 + $0xb0] sm:$0xff] %vm775, %v609
        %799 = vst.msk [vmem:[%s145 + $0xb8] sm:$0xff] %vm775, %v612
        %800 = vst.msk [vmem:[%s145 + $0xc0] sm:$0xff] %vm775, %v617
        %801 = vst.msk [vmem:[%s145 + $0xc8] sm:$0xff] %vm775, %v620
        %802 = vst.msk [vmem:[%s145 + $0xd0] sm:$0xff] %vm775, %v625
        %803 = vst.msk [vmem:[%s145 + $0xd8] sm:$0xff] %vm775, %v628
        %804 = vst.msk [vmem:[%s145 + $0xe0] sm:$0xff] %vm775, %v633
        %805 = vst.msk [vmem:[%s145 + $0xe8] sm:$0xff] %vm775, %v636
        %806 = vst.msk [vmem:[%s145 + $0xf0] sm:$0xff] %vm775, %v641
        %807 = vst.msk [vmem:[%s145 + $0xf8] sm:$0xff] %vm775, %v644
        %808 = vst.msk [vmem:[%s145 + $0x100] sm:$0xff] %vm775, %v649
        %809 = vst.msk [vmem:[%s145 + $0x108] sm:$0xff] %vm775, %v652
        %810 = vst.msk [vmem:[%s145 + $0x110] sm:$0xff] %vm775, %v657
        %811 = vst.msk [vmem:[%s145 + $0x118] sm:$0xff] %vm775, %v660
        %812 = vst.msk [vmem:[%s145 + $0x120] sm:$0xff] %vm775, %v665
        %813 = vst.msk [vmem:[%s145 + $0x128] sm:$0xff] %vm775, %v668
        %814 = vst.msk [vmem:[%s145 + $0x130] sm:$0xff] %vm775, %v673
        %815 = vst.msk [vmem:[%s145 + $0x138] sm:$0xff] %vm775, %v676
        %816 = vst.msk [vmem:[%s145 + $0x140] sm:$0xff] %vm775, %v681
        %817 = vst.msk [vmem:[%s145 + $0x148] sm:$0xff] %vm775, %v684
        %818 = vst.msk [vmem:[%s145 + $0x150] sm:$0xff] %vm775, %v689
        %819 = vst.msk [vmem:[%s145 + $0x158] sm:$0xff] %vm775, %v692
        %820 = vst.msk [vmem:[%s145 + $0x160] sm:$0xff] %vm775, %v697
        %821 = vst.msk [vmem:[%s145 + $0x168] sm:$0xff] %vm775, %v700
        %822 = vst.msk [vmem:[%s145 + $0x170] sm:$0xff] %vm775, %v705
        %823 = vst.msk [vmem:[%s145 + $0x178] sm:$0xff] %vm775, %v708
        %824 = vst.msk [vmem:[%s145 + $0x180] sm:$0xff] %vm775, %v713
        %825 = vst.msk [vmem:[%s145 + $0x188] sm:$0xff] %vm775, %v716
        %826 = vst.msk [vmem:[%s145 + $0x190] sm:$0xff] %vm775, %v721
        %827 = vst.msk [vmem:[%s145 + $0x198] sm:$0xff] %vm775, %v724
        %828 = vst.msk [vmem:[%s145 + $0x1a0] sm:$0xff] %vm775, %v729
        %829 = vst.msk [vmem:[%s145 + $0x1a8] sm:$0xff] %vm775, %v732
        %830 = vst.msk [vmem:[%s145 + $0x1b0] sm:$0xff] %vm775, %v737
        %831 = vst.msk [vmem:[%s145 + $0x1b8] sm:$0xff] %vm775, %v740
        %832 = vst.msk [vmem:[%s145 + $0x1c0] sm:$0xff] %vm775, %v745
        %833 = vst.msk [vmem:[%s145 + $0x1c8] sm:$0xff] %vm775, %v748
        %834 = vst.msk [vmem:[%s145 + $0x1d0] sm:$0xff] %vm775, %v753
        %835 = vst.msk [vmem:[%s145 + $0x1d8] sm:$0xff] %vm775, %v756
        %836 = vst.msk [vmem:[%s145 + $0x1e0] sm:$0xff] %vm775, %v761
        %837 = vst.msk [vmem:[%s145 + $0x1e8] sm:$0xff] %vm775, %v764
        %838 = vst.msk [vmem:[%s145 + $0x1f0] sm:$0xff] %vm775, %v769
        %839 = vst.msk [vmem:[%s145 + $0x1f8] sm:$0xff] %vm775, %v772
        %s840 = sand.u32 %s68, 1
        %s841 = sand.u32 %s68, 1
        %s842 = smul.addr %s841, 512
        %s843 = scalar_lea.vmem [#allocation2], %s842
        // Predicated region
        $region29: #{discriminator_forward.9} parent=27 // pred_check
          %p844 = pneg %p78
        $region30: #{discriminator_forward.9} parent=27 // pred_check_branch
          %846 = sbr.rel (%p844) target = $region32
        $region31: #{discriminator_forward.9} parent=27 // pred_region
          %s847 = smul.u32 64, %s13
          %s848 = ssub.s32 144, %s847
          %p849 = scmp.lt.s32.totalorder %s848, 64
          %s850 = scalar_select %p849, %s848, 64
          %s851 = smul.u32 128, %s850
          %p852 = scmp.ne.s32.totalorder 0, %s851
          %s853 = smul.addr %s847, 8
          %s854 = scalar_lea.vmem %s2, %s853
          // Predicated region
          $region33: #{discriminator_forward.9} parent=31 // pred_check
            %p855 = pneg %p852
          $region34: #{discriminator_forward.9} parent=31 // pred_check_branch
            %857 = sbr.rel (%p855) target = $region36
          $region35: #{discriminator_forward.9} parent=31 // pred_region
            // Predicated region
            $region37: #{discriminator_forward.9} parent=35 // pred_check
              _
            $region38: #{discriminator_forward.9} parent=35 // pred_check_branch
              %859 = sbr.rel (0) target = $region40
            $region39: #{discriminator_forward.9} parent=35 // pred_region
              // Predicated region
              $region59: #{discriminator_forward.9} parent=39 // pred_check
                _
              $region60: #{discriminator_forward.9} parent=39 // pred_check_branch
                %1034 = sbr.rel (0) target = $region62
              $region61: #{discriminator_forward.9} parent=39 // pred_region
                %s1035 = sshrl.u32 %s850, 6
                // While loop
                $region63: #{discriminator_forward.9} parent=61 // loop_pre_header
                  _
                $region64: #{discriminator_forward.9} parent=61 // loop_header
                  %s1037 = sphi 0, %s1039
                  %p1038 = scmp.ge.s32.totalorder %s1037, %s1035
                  %s1042 = sphi 0, %s1175
                  %s1043 = sphi %s843, %s1178
                  %s1044 = sphi %s854, %s1179
                $region65: #{discriminator_forward.9} parent=61 // loop_header_branch
                  %1041 = sbr.rel (%p1038) target = $region69
                $region66: #{discriminator_forward.9} parent=61 // loop_body
                  %v1045 = vld [vmem:[%s1043] sm:$0xff]
                  %1046 = vst [vmem:[%s1044] sm:$0xff] %v1045
                  %v1047 = vld [vmem:[%s1043 + $0x8] sm:$0xff]
                  %1048 = vst [vmem:[%s1044 + $0x8] sm:$0xff] %v1047
                  %v1049 = vld [vmem:[%s1043 + $0x10] sm:$0xff]
                  %1050 = vst [vmem:[%s1044 + $0x10] sm:$0xff] %v1049
                  %v1051 = vld [vmem:[%s1043 + $0x18] sm:$0xff]
                  %1052 = vst [vmem:[%s1044 + $0x18] sm:$0xff] %v1051
                  %v1053 = vld [vmem:[%s1043 + $0x20] sm:$0xff]
                  %1054 = vst [vmem:[%s1044 + $0x20] sm:$0xff] %v1053
                  %v1055 = vld [vmem:[%s1043 + $0x28] sm:$0xff]
                  %1056 = vst [vmem:[%s1044 + $0x28] sm:$0xff] %v1055
                  %v1057 = vld [vmem:[%s1043 + $0x30] sm:$0xff]
                  %1058 = vst [vmem:[%s1044 + $0x30] sm:$0xff] %v1057
                  %v1059 = vld [vmem:[%s1043 + $0x38] sm:$0xff]
                  %1060 = vst [vmem:[%s1044 + $0x38] sm:$0xff] %v1059
                  %v1061 = vld [vmem:[%s1043 + $0x40] sm:$0xff]
                  %1062 = vst [vmem:[%s1044 + $0x40] sm:$0xff] %v1061
                  %v1063 = vld [vmem:[%s1043 + $0x48] sm:$0xff]
                  %1064 = vst [vmem:[%s1044 + $0x48] sm:$0xff] %v1063
                  %v1065 = vld [vmem:[%s1043 + $0x50] sm:$0xff]
                  %1066 = vst [vmem:[%s1044 + $0x50] sm:$0xff] %v1065
                  %v1067 = vld [vmem:[%s1043 + $0x58] sm:$0xff]
                  %1068 = vst [vmem:[%s1044 + $0x58] sm:$0xff] %v1067
                  %v1069 = vld [vmem:[%s1043 + $0x60] sm:$0xff]
                  %1070 = vst [vmem:[%s1044 + $0x60] sm:$0xff] %v1069
                  %v1071 = vld [vmem:[%s1043 + $0x68] sm:$0xff]
                  %1072 = vst [vmem:[%s1044 + $0x68] sm:$0xff] %v1071
                  %v1073 = vld [vmem:[%s1043 + $0x70] sm:$0xff]
                  %1074 = vst [vmem:[%s1044 + $0x70] sm:$0xff] %v1073
                  %v1075 = vld [vmem:[%s1043 + $0x78] sm:$0xff]
                  %1076 = vst [vmem:[%s1044 + $0x78] sm:$0xff] %v1075
                  %v1077 = vld [vmem:[%s1043 + $0x80] sm:$0xff]
                  %1078 = vst [vmem:[%s1044 + $0x80] sm:$0xff] %v1077
                  %v1079 = vld [vmem:[%s1043 + $0x88] sm:$0xff]
                  %1080 = vst [vmem:[%s1044 + $0x88] sm:$0xff] %v1079
                  %v1081 = vld [vmem:[%s1043 + $0x90] sm:$0xff]
                  %1082 = vst [vmem:[%s1044 + $0x90] sm:$0xff] %v1081
                  %v1083 = vld [vmem:[%s1043 + $0x98] sm:$0xff]
                  %1084 = vst [vmem:[%s1044 + $0x98] sm:$0xff] %v1083
                  %v1085 = vld [vmem:[%s1043 + $0xa0] sm:$0xff]
                  %1086 = vst [vmem:[%s1044 + $0xa0] sm:$0xff] %v1085
                  %v1087 = vld [vmem:[%s1043 + $0xa8] sm:$0xff]
                  %1088 = vst [vmem:[%s1044 + $0xa8] sm:$0xff] %v1087
                  %v1089 = vld [vmem:[%s1043 + $0xb0] sm:$0xff]
                  %1090 = vst [vmem:[%s1044 + $0xb0] sm:$0xff] %v1089
                  %v1091 = vld [vmem:[%s1043 + $0xb8] sm:$0xff]
                  %1092 = vst [vmem:[%s1044 + $0xb8] sm:$0xff] %v1091
                  %v1093 = vld [vmem:[%s1043 + $0xc0] sm:$0xff]
                  %1094 = vst [vmem:[%s1044 + $0xc0] sm:$0xff] %v1093
                  %v1095 = vld [vmem:[%s1043 + $0xc8] sm:$0xff]
                  %1096 = vst [vmem:[%s1044 + $0xc8] sm:$0xff] %v1095
                  %v1097 = vld [vmem:[%s1043 + $0xd0] sm:$0xff]
                  %1098 = vst [vmem:[%s1044 + $0xd0] sm:$0xff] %v1097
                  %v1099 = vld [vmem:[%s1043 + $0xd8] sm:$0xff]
                  %1100 = vst [vmem:[%s1044 + $0xd8] sm:$0xff] %v1099
                  %v1101 = vld [vmem:[%s1043 + $0xe0] sm:$0xff]
                  %1102 = vst [vmem:[%s1044 + $0xe0] sm:$0xff] %v1101
                  %v1103 = vld [vmem:[%s1043 + $0xe8] sm:$0xff]
                  %1104 = vst [vmem:[%s1044 + $0xe8] sm:$0xff] %v1103
                  %v1105 = vld [vmem:[%s1043 + $0xf0] sm:$0xff]
                  %1106 = vst [vmem:[%s1044 + $0xf0] sm:$0xff] %v1105
                  %v1107 = vld [vmem:[%s1043 + $0xf8] sm:$0xff]
                  %1108 = vst [vmem:[%s1044 + $0xf8] sm:$0xff] %v1107
                  %v1109 = vld [vmem:[%s1043 + $0x100] sm:$0xff]
                  %1110 = vst [vmem:[%s1044 + $0x100] sm:$0xff] %v1109
                  %v1111 = vld [vmem:[%s1043 + $0x108] sm:$0xff]
                  %1112 = vst [vmem:[%s1044 + $0x108] sm:$0xff] %v1111
                  %v1113 = vld [vmem:[%s1043 + $0x110] sm:$0xff]
                  %1114 = vst [vmem:[%s1044 + $0x110] sm:$0xff] %v1113
                  %v1115 = vld [vmem:[%s1043 + $0x118] sm:$0xff]
                  %1116 = vst [vmem:[%s1044 + $0x118] sm:$0xff] %v1115
                  %v1117 = vld [vmem:[%s1043 + $0x120] sm:$0xff]
                  %1118 = vst [vmem:[%s1044 + $0x120] sm:$0xff] %v1117
                  %v1119 = vld [vmem:[%s1043 + $0x128] sm:$0xff]
                  %1120 = vst [vmem:[%s1044 + $0x128] sm:$0xff] %v1119
                  %v1121 = vld [vmem:[%s1043 + $0x130] sm:$0xff]
                  %1122 = vst [vmem:[%s1044 + $0x130] sm:$0xff] %v1121
                  %v1123 = vld [vmem:[%s1043 + $0x138] sm:$0xff]
                  %1124 = vst [vmem:[%s1044 + $0x138] sm:$0xff] %v1123
                  %v1125 = vld [vmem:[%s1043 + $0x140] sm:$0xff]
                  %1126 = vst [vmem:[%s1044 + $0x140] sm:$0xff] %v1125
                  %v1127 = vld [vmem:[%s1043 + $0x148] sm:$0xff]
                  %1128 = vst [vmem:[%s1044 + $0x148] sm:$0xff] %v1127
                  %v1129 = vld [vmem:[%s1043 + $0x150] sm:$0xff]
                  %1130 = vst [vmem:[%s1044 + $0x150] sm:$0xff] %v1129
                  %v1131 = vld [vmem:[%s1043 + $0x158] sm:$0xff]
                  %1132 = vst [vmem:[%s1044 + $0x158] sm:$0xff] %v1131
                  %v1133 = vld [vmem:[%s1043 + $0x160] sm:$0xff]
                  %1134 = vst [vmem:[%s1044 + $0x160] sm:$0xff] %v1133
                  %v1135 = vld [vmem:[%s1043 + $0x168] sm:$0xff]
                  %1136 = vst [vmem:[%s1044 + $0x168] sm:$0xff] %v1135
                  %v1137 = vld [vmem:[%s1043 + $0x170] sm:$0xff]
                  %1138 = vst [vmem:[%s1044 + $0x170] sm:$0xff] %v1137
                  %v1139 = vld [vmem:[%s1043 + $0x178] sm:$0xff]
                  %1140 = vst [vmem:[%s1044 + $0x178] sm:$0xff] %v1139
                  %v1141 = vld [vmem:[%s1043 + $0x180] sm:$0xff]
                  %1142 = vst [vmem:[%s1044 + $0x180] sm:$0xff] %v1141
                  %v1143 = vld [vmem:[%s1043 + $0x188] sm:$0xff]
                  %1144 = vst [vmem:[%s1044 + $0x188] sm:$0xff] %v1143
                  %v1145 = vld [vmem:[%s1043 + $0x190] sm:$0xff]
                  %1146 = vst [vmem:[%s1044 + $0x190] sm:$0xff] %v1145
                  %v1147 = vld [vmem:[%s1043 + $0x198] sm:$0xff]
                  %1148 = vst [vmem:[%s1044 + $0x198] sm:$0xff] %v1147
                  %v1149 = vld [vmem:[%s1043 + $0x1a0] sm:$0xff]
                  %1150 = vst [vmem:[%s1044 + $0x1a0] sm:$0xff] %v1149
                  %v1151 = vld [vmem:[%s1043 + $0x1a8] sm:$0xff]
                  %1152 = vst [vmem:[%s1044 + $0x1a8] sm:$0xff] %v1151
                  %v1153 = vld [vmem:[%s1043 + $0x1b0] sm:$0xff]
                  %1154 = vst [vmem:[%s1044 + $0x1b0] sm:$0xff] %v1153
                  %v1155 = vld [vmem:[%s1043 + $0x1b8] sm:$0xff]
                  %1156 = vst [vmem:[%s1044 + $0x1b8] sm:$0xff] %v1155
                  %v1157 = vld [vmem:[%s1043 + $0x1c0] sm:$0xff]
                  %1158 = vst [vmem:[%s1044 + $0x1c0] sm:$0xff] %v1157
                  %v1159 = vld [vmem:[%s1043 + $0x1c8] sm:$0xff]
                  %1160 = vst [vmem:[%s1044 + $0x1c8] sm:$0xff] %v1159
                  %v1161 = vld [vmem:[%s1043 + $0x1d0] sm:$0xff]
                  %1162 = vst [vmem:[%s1044 + $0x1d0] sm:$0xff] %v1161
                  %v1163 = vld [vmem:[%s1043 + $0x1d8] sm:$0xff]
                  %1164 = vst [vmem:[%s1044 + $0x1d8] sm:$0xff] %v1163
                  %v1165 = vld [vmem:[%s1043 + $0x1e0] sm:$0xff]
                  %1166 = vst [vmem:[%s1044 + $0x1e0] sm:$0xff] %v1165
                  %v1167 = vld [vmem:[%s1043 + $0x1e8] sm:$0xff]
                  %1168 = vst [vmem:[%s1044 + $0x1e8] sm:$0xff] %v1167
                  %v1169 = vld [vmem:[%s1043 + $0x1f0] sm:$0xff]
                  %1170 = vst [vmem:[%s1044 + $0x1f0] sm:$0xff] %v1169
                  %v1171 = vld [vmem:[%s1043 + $0x1f8] sm:$0xff]
                  %1172 = vst [vmem:[%s1044 + $0x1f8] sm:$0xff] %v1171
                  %s1173 = sadd.s32 1, %s1042
                  %p1174 = scmp.ge.s32.totalorder %s1173, %s1035
                  %s1175 = scalar_select %p1174, 0, %s1173
                  %s1176 = smul.u32 %s1175, 512
                  %s1177 = smul.u32 %s1175, 512
                  %s1178 = scalar_lea.vmem %s843, %s1176 [#allocation2]
                  %s1179 = scalar_lea.vmem %s854, %s1177
                $region67: #{discriminator_forward.9} parent=61 // loop_footer
                  %s1039 = sadd.s32 %s1037, 1
                $region68: #{discriminator_forward.9} parent=61 // loop_footer_branch
                  %1036 = sbr.rel target = $region64
                $region69: #{discriminator_forward.9} parent=61 // loop_exit
                  _
                %s1180 = sshrl.u32 %s850, 6
                %s1181 = sand.u32 %s850, 63
                %s1182 = smul.u32 %s1180, 64
                %s1183 = smul.u32 8, %s1182
                %s1184 = scalar_lea.vmem %s843, %s1183 [#allocation2]
                %s1185 = smul.u32 8, %s1182
                %s1186 = scalar_lea.vmem %s854, %s1185
                // While loop
                $region70: #{discriminator_forward.9} parent=61 // loop_pre_header
                  _
                $region71: #{discriminator_forward.9} parent=61 // loop_header
                  %s1188 = sphi 0, %s1190
                  %p1189 = scmp.ge.s32.totalorder %s1188, %s1181
                  %s1193 = sphi 0, %s1200
                  %s1194 = sphi %s1184, %s1203
                  %s1195 = sphi %s1186, %s1204
                $region72: #{discriminator_forward.9} parent=61 // loop_header_branch
                  %1192 = sbr.rel (%p1189) target = $region76
                $region73: #{discriminator_forward.9} parent=61 // loop_body
                  %v1196 = vld [vmem:[%s1194] sm:$0xff]
                  %1197 = vst [vmem:[%s1195] sm:$0xff] %v1196
                  %s1198 = sadd.s32 1, %s1193
                  %p1199 = scmp.ge.s32.totalorder %s1198, %s1181
                  %s1200 = scalar_select %p1199, 0, %s1198
                  %s1201 = smul.u32 %s1200, 8
                  %s1202 = smul.u32 %s1200, 8
                  %s1203 = scalar_lea.vmem %s1184, %s1201 [#allocation2]
                  %s1204 = scalar_lea.vmem %s1186, %s1202
                $region74: #{discriminator_forward.9} parent=61 // loop_footer
                  %s1190 = sadd.s32 %s1188, 1
                $region75: #{discriminator_forward.9} parent=61 // loop_footer_branch
                  %1187 = sbr.rel target = $region71
                $region76: #{discriminator_forward.9} parent=61 // loop_exit
                  _
              $region62: #{discriminator_forward.9} parent=39 // pred_fallthru
                _
              // Predicated region
              $region77: #{discriminator_forward.9} parent=39 // pred_check
                _
              $region78: #{discriminator_forward.9} parent=39 // pred_check_branch
                %1206 = sbr.rel target = $region80
              $region79: #{discriminator_forward.9} parent=39 // pred_region
                _
              $region80: #{discriminator_forward.9} parent=39 // pred_fallthru
                _
            $region40: #{discriminator_forward.9} parent=35 // pred_fallthru
              _
            // Predicated region
            $region41: #{discriminator_forward.9} parent=35 // pred_check
              _
            $region42: #{discriminator_forward.9} parent=35 // pred_check_branch
              %861 = sbr.rel target = $region44
            $region43: #{discriminator_forward.9} parent=35 // pred_region
              %s863 = sshrl.u32 %s850, 6
              // While loop
              $region45: #{discriminator_forward.9} parent=43 // loop_pre_header
                _
              $region46: #{discriminator_forward.9} parent=43 // loop_header
                %s865 = sphi 0, %s867
                %p866 = scmp.ge.s32.totalorder %s865, %s863
                %s870 = sphi 0, %s1003
                %s871 = sphi %s843, %s1006
                %s872 = sphi %s854, %s1007
              $region47: #{discriminator_forward.9} parent=43 // loop_header_branch
                %869 = sbr.rel (%p866) target = $region51
              $region48: #{discriminator_forward.9} parent=43 // loop_body
                %v873 = vld [vmem:[%s871] sm:$0xff]
                %874 = vst [vmem:[%s872] sm:$0xff] %v873
                %v875 = vld [vmem:[%s871 + $0x8] sm:$0xff]
                %876 = vst [vmem:[%s872 + $0x8] sm:$0xff] %v875
                %v877 = vld [vmem:[%s871 + $0x10] sm:$0xff]
                %878 = vst [vmem:[%s872 + $0x10] sm:$0xff] %v877
                %v879 = vld [vmem:[%s871 + $0x18] sm:$0xff]
                %880 = vst [vmem:[%s872 + $0x18] sm:$0xff] %v879
                %v881 = vld [vmem:[%s871 + $0x20] sm:$0xff]
                %882 = vst [vmem:[%s872 + $0x20] sm:$0xff] %v881
                %v883 = vld [vmem:[%s871 + $0x28] sm:$0xff]
                %884 = vst [vmem:[%s872 + $0x28] sm:$0xff] %v883
                %v885 = vld [vmem:[%s871 + $0x30] sm:$0xff]
                %886 = vst [vmem:[%s872 + $0x30] sm:$0xff] %v885
                %v887 = vld [vmem:[%s871 + $0x38] sm:$0xff]
                %888 = vst [vmem:[%s872 + $0x38] sm:$0xff] %v887
                %v889 = vld [vmem:[%s871 + $0x40] sm:$0xff]
                %890 = vst [vmem:[%s872 + $0x40] sm:$0xff] %v889
                %v891 = vld [vmem:[%s871 + $0x48] sm:$0xff]
                %892 = vst [vmem:[%s872 + $0x48] sm:$0xff] %v891
                %v893 = vld [vmem:[%s871 + $0x50] sm:$0xff]
                %894 = vst [vmem:[%s872 + $0x50] sm:$0xff] %v893
                %v895 = vld [vmem:[%s871 + $0x58] sm:$0xff]
                %896 = vst [vmem:[%s872 + $0x58] sm:$0xff] %v895
                %v897 = vld [vmem:[%s871 + $0x60] sm:$0xff]
                %898 = vst [vmem:[%s872 + $0x60] sm:$0xff] %v897
                %v899 = vld [vmem:[%s871 + $0x68] sm:$0xff]
                %900 = vst [vmem:[%s872 + $0x68] sm:$0xff] %v899
                %v901 = vld [vmem:[%s871 + $0x70] sm:$0xff]
                %902 = vst [vmem:[%s872 + $0x70] sm:$0xff] %v901
                %v903 = vld [vmem:[%s871 + $0x78] sm:$0xff]
                %904 = vst [vmem:[%s872 + $0x78] sm:$0xff] %v903
                %v905 = vld [vmem:[%s871 + $0x80] sm:$0xff]
                %906 = vst [vmem:[%s872 + $0x80] sm:$0xff] %v905
                %v907 = vld [vmem:[%s871 + $0x88] sm:$0xff]
                %908 = vst [vmem:[%s872 + $0x88] sm:$0xff] %v907
                %v909 = vld [vmem:[%s871 + $0x90] sm:$0xff]
                %910 = vst [vmem:[%s872 + $0x90] sm:$0xff] %v909
                %v911 = vld [vmem:[%s871 + $0x98] sm:$0xff]
                %912 = vst [vmem:[%s872 + $0x98] sm:$0xff] %v911
                %v913 = vld [vmem:[%s871 + $0xa0] sm:$0xff]
                %914 = vst [vmem:[%s872 + $0xa0] sm:$0xff] %v913
                %v915 = vld [vmem:[%s871 + $0xa8] sm:$0xff]
                %916 = vst [vmem:[%s872 + $0xa8] sm:$0xff] %v915
                %v917 = vld [vmem:[%s871 + $0xb0] sm:$0xff]
                %918 = vst [vmem:[%s872 + $0xb0] sm:$0xff] %v917
                %v919 = vld [vmem:[%s871 + $0xb8] sm:$0xff]
                %920 = vst [vmem:[%s872 + $0xb8] sm:$0xff] %v919
                %v921 = vld [vmem:[%s871 + $0xc0] sm:$0xff]
                %922 = vst [vmem:[%s872 + $0xc0] sm:$0xff] %v921
                %v923 = vld [vmem:[%s871 + $0xc8] sm:$0xff]
                %924 = vst [vmem:[%s872 + $0xc8] sm:$0xff] %v923
                %v925 = vld [vmem:[%s871 + $0xd0] sm:$0xff]
                %926 = vst [vmem:[%s872 + $0xd0] sm:$0xff] %v925
                %v927 = vld [vmem:[%s871 + $0xd8] sm:$0xff]
                %928 = vst [vmem:[%s872 + $0xd8] sm:$0xff] %v927
                %v929 = vld [vmem:[%s871 + $0xe0] sm:$0xff]
                %930 = vst [vmem:[%s872 + $0xe0] sm:$0xff] %v929
                %v931 = vld [vmem:[%s871 + $0xe8] sm:$0xff]
                %932 = vst [vmem:[%s872 + $0xe8] sm:$0xff] %v931
                %v933 = vld [vmem:[%s871 + $0xf0] sm:$0xff]
                %934 = vst [vmem:[%s872 + $0xf0] sm:$0xff] %v933
                %v935 = vld [vmem:[%s871 + $0xf8] sm:$0xff]
                %936 = vst [vmem:[%s872 + $0xf8] sm:$0xff] %v935
                %v937 = vld [vmem:[%s871 + $0x100] sm:$0xff]
                %938 = vst [vmem:[%s872 + $0x100] sm:$0xff] %v937
                %v939 = vld [vmem:[%s871 + $0x108] sm:$0xff]
                %940 = vst [vmem:[%s872 + $0x108] sm:$0xff] %v939
                %v941 = vld [vmem:[%s871 + $0x110] sm:$0xff]
                %942 = vst [vmem:[%s872 + $0x110] sm:$0xff] %v941
                %v943 = vld [vmem:[%s871 + $0x118] sm:$0xff]
                %944 = vst [vmem:[%s872 + $0x118] sm:$0xff] %v943
                %v945 = vld [vmem:[%s871 + $0x120] sm:$0xff]
                %946 = vst [vmem:[%s872 + $0x120] sm:$0xff] %v945
                %v947 = vld [vmem:[%s871 + $0x128] sm:$0xff]
                %948 = vst [vmem:[%s872 + $0x128] sm:$0xff] %v947
                %v949 = vld [vmem:[%s871 + $0x130] sm:$0xff]
                %950 = vst [vmem:[%s872 + $0x130] sm:$0xff] %v949
                %v951 = vld [vmem:[%s871 + $0x138] sm:$0xff]
                %952 = vst [vmem:[%s872 + $0x138] sm:$0xff] %v951
                %v953 = vld [vmem:[%s871 + $0x140] sm:$0xff]
                %954 = vst [vmem:[%s872 + $0x140] sm:$0xff] %v953
                %v955 = vld [vmem:[%s871 + $0x148] sm:$0xff]
                %956 = vst [vmem:[%s872 + $0x148] sm:$0xff] %v955
                %v957 = vld [vmem:[%s871 + $0x150] sm:$0xff]
                %958 = vst [vmem:[%s872 + $0x150] sm:$0xff] %v957
                %v959 = vld [vmem:[%s871 + $0x158] sm:$0xff]
                %960 = vst [vmem:[%s872 + $0x158] sm:$0xff] %v959
                %v961 = vld [vmem:[%s871 + $0x160] sm:$0xff]
                %962 = vst [vmem:[%s872 + $0x160] sm:$0xff] %v961
                %v963 = vld [vmem:[%s871 + $0x168] sm:$0xff]
                %964 = vst [vmem:[%s872 + $0x168] sm:$0xff] %v963
                %v965 = vld [vmem:[%s871 + $0x170] sm:$0xff]
                %966 = vst [vmem:[%s872 + $0x170] sm:$0xff] %v965
                %v967 = vld [vmem:[%s871 + $0x178] sm:$0xff]
                %968 = vst [vmem:[%s872 + $0x178] sm:$0xff] %v967
                %v969 = vld [vmem:[%s871 + $0x180] sm:$0xff]
                %970 = vst [vmem:[%s872 + $0x180] sm:$0xff] %v969
                %v971 = vld [vmem:[%s871 + $0x188] sm:$0xff]
                %972 = vst [vmem:[%s872 + $0x188] sm:$0xff] %v971
                %v973 = vld [vmem:[%s871 + $0x190] sm:$0xff]
                %974 = vst [vmem:[%s872 + $0x190] sm:$0xff] %v973
                %v975 = vld [vmem:[%s871 + $0x198] sm:$0xff]
                %976 = vst [vmem:[%s872 + $0x198] sm:$0xff] %v975
                %v977 = vld [vmem:[%s871 + $0x1a0] sm:$0xff]
                %978 = vst [vmem:[%s872 + $0x1a0] sm:$0xff] %v977
                %v979 = vld [vmem:[%s871 + $0x1a8] sm:$0xff]
                %980 = vst [vmem:[%s872 + $0x1a8] sm:$0xff] %v979
                %v981 = vld [vmem:[%s871 + $0x1b0] sm:$0xff]
                %982 = vst [vmem:[%s872 + $0x1b0] sm:$0xff] %v981
                %v983 = vld [vmem:[%s871 + $0x1b8] sm:$0xff]
                %984 = vst [vmem:[%s872 + $0x1b8] sm:$0xff] %v983
                %v985 = vld [vmem:[%s871 + $0x1c0] sm:$0xff]
                %986 = vst [vmem:[%s872 + $0x1c0] sm:$0xff] %v985
                %v987 = vld [vmem:[%s871 + $0x1c8] sm:$0xff]
                %988 = vst [vmem:[%s872 + $0x1c8] sm:$0xff] %v987
                %v989 = vld [vmem:[%s871 + $0x1d0] sm:$0xff]
                %990 = vst [vmem:[%s872 + $0x1d0] sm:$0xff] %v989
                %v991 = vld [vmem:[%s871 + $0x1d8] sm:$0xff]
                %992 = vst [vmem:[%s872 + $0x1d8] sm:$0xff] %v991
                %v993 = vld [vmem:[%s871 + $0x1e0] sm:$0xff]
                %994 = vst [vmem:[%s872 + $0x1e0] sm:$0xff] %v993
                %v995 = vld [vmem:[%s871 + $0x1e8] sm:$0xff]
                %996 = vst [vmem:[%s872 + $0x1e8] sm:$0xff] %v995
                %v997 = vld [vmem:[%s871 + $0x1f0] sm:$0xff]
                %998 = vst [vmem:[%s872 + $0x1f0] sm:$0xff] %v997
                %v999 = vld [vmem:[%s871 + $0x1f8] sm:$0xff]
                %1000 = vst [vmem:[%s872 + $0x1f8] sm:$0xff] %v999
                %s1001 = sadd.s32 1, %s870
                %p1002 = scmp.ge.s32.totalorder %s1001, %s863
                %s1003 = scalar_select %p1002, 0, %s1001
                %s1004 = smul.u32 %s1003, 512
                %s1005 = smul.u32 %s1003, 512
                %s1006 = scalar_lea.vmem %s843, %s1004 [#allocation2]
                %s1007 = scalar_lea.vmem %s854, %s1005
              $region49: #{discriminator_forward.9} parent=43 // loop_footer
                %s867 = sadd.s32 %s865, 1
              $region50: #{discriminator_forward.9} parent=43 // loop_footer_branch
                %864 = sbr.rel target = $region46
              $region51: #{discriminator_forward.9} parent=43 // loop_exit
                _
              %s1008 = sshrl.u32 %s850, 6
              %s1009 = sand.u32 %s850, 63
              %s1010 = smul.u32 %s1008, 64
              %s1011 = smul.u32 8, %s1010
              %s1012 = scalar_lea.vmem %s843, %s1011 [#allocation2]
              %s1013 = smul.u32 8, %s1010
              %s1014 = scalar_lea.vmem %s854, %s1013
              // While loop
              $region52: #{discriminator_forward.9} parent=43 // loop_pre_header
                _
              $region53: #{discriminator_forward.9} parent=43 // loop_header
                %s1016 = sphi 0, %s1018
                %p1017 = scmp.ge.s32.totalorder %s1016, %s1009
                %s1021 = sphi 0, %s1028
                %s1022 = sphi %s1012, %s1031
                %s1023 = sphi %s1014, %s1032
              $region54: #{discriminator_forward.9} parent=43 // loop_header_branch
                %1020 = sbr.rel (%p1017) target = $region58
              $region55: #{discriminator_forward.9} parent=43 // loop_body
                %v1024 = vld [vmem:[%s1022] sm:$0xff]
                %1025 = vst [vmem:[%s1023] sm:$0xff] %v1024
                %s1026 = sadd.s32 1, %s1021
                %p1027 = scmp.ge.s32.totalorder %s1026, %s1009
                %s1028 = scalar_select %p1027, 0, %s1026
                %s1029 = smul.u32 %s1028, 8
                %s1030 = smul.u32 %s1028, 8
                %s1031 = scalar_lea.vmem %s1012, %s1029 [#allocation2]
                %s1032 = scalar_lea.vmem %s1014, %s1030
              $region56: #{discriminator_forward.9} parent=43 // loop_footer
                %s1018 = sadd.s32 %s1016, 1
              $region57: #{discriminator_forward.9} parent=43 // loop_footer_branch
                %1015 = sbr.rel target = $region53
              $region58: #{discriminator_forward.9} parent=43 // loop_exit
                _
            $region44: #{discriminator_forward.9} parent=35 // pred_fallthru
              _
          $region36: #{discriminator_forward.9} parent=31 // pred_fallthru
            _
          %1207 = vnop
        $region32: #{discriminator_forward.9} parent=27 // pred_fallthru
          _
      $region28: #{discriminator_forward.9} parent=5 // pred_fallthru
        _
      %p1208 = scmp.le.s32.totalorder 2, %s8
      // Predicated region
      $region81: #{discriminator_forward.9} parent=5 // pred_check
        %p1209 = pneg %p1208
      $region82: #{discriminator_forward.9} parent=5 // pred_check_branch
        %1211 = sbr.rel (%p1209) target = $region84
      $region83: #{discriminator_forward.9} parent=5 // pred_region
        %s1212 = ssub.s32 %s8, 2
        // Predicated region
        $region85: #{discriminator_forward.9} parent=83 // pred_check
          %p1213 = pneg %p84
        $region86: #{discriminator_forward.9} parent=83 // pred_check_branch
          %1215 = sbr.rel (%p1213) target = $region88
        $region87: #{discriminator_forward.9} parent=83 // pred_region
          %s1216 = sand.u32 %s69, 1
          %s1217 = sand.u32 %s69, 1
          %s1218 = smul.addr %s1217, 512
          %s1219 = scalar_lea.vmem [#allocation2], %s1218
        $region88: #{discriminator_forward.9} parent=83 // pred_fallthru
          _
      $region84: #{discriminator_forward.9} parent=5 // pred_fallthru
        _
    $region6: #{discriminator_forward.9} parent=1 // loop_footer
      %s12 = sadd.s32 1, %s8
    $region7: #{discriminator_forward.9} parent=1 // loop_footer_branch
      %7 = sbr.rel target = $region3
    $region8: #{discriminator_forward.9} parent=1 // loop_exit
      _

// kernel: discriminator_forward.10
$region0: #{discriminator_forward.10}
  #allocation0 [shape = 'u32[]', space=smem, size = 0x4, offset = 0x4, fixed_abs, tag = 'smem constant byte address 0x4 - core index']
  #allocation1 [shape = 'u32[144,128]{1,0:T(1,128)}', space=vmem, size = 0x12000, scoped, tag = 'internal scratch']
  %s0 = inlined_call_operand.vmem [shape: f32[1152,16], index: 0, kind: input, shape index: {}]
  %s1 = inlined_call_operand.vmem [shape: f32[1,16], index: 1, kind: input, shape index: {}]
  %s2 = inlined_call_operand.vmem [shape: f32[1,16], index: 2, kind: input, shape index: {}]
  %s3 = inlined_call_operand.vmem [shape: bf16[1152,16], index: 3, kind: output, shape index: {}]
  %s4 = sld [smem:[#allocation0]]
  $region89: #{discriminator_forward.10} parent=0
    _
  %s6 = ssub.s32 1, %s4
  %s7 = scalar_select 0, %s6, %s4
  $region1: #{discriminator_forward.10} parent=0
    #allocation2 [shape = 'u8[524288]{0}', space=vmem, size = 0x80000, scoped, tag = 'output window, operand 0']
    loop: start=0, step=1, limit=4
    $region2: #{discriminator_forward.10} parent=1 // loop_pre_header
      _
    $region3: #{discriminator_forward.10} parent=1 // loop_header
      %s9 = sphi 0, %s13
      %p10 = scmp.ge.s32.totalorder %s9, 4
      %s19 = sphi 0, %s21
      %s22 = sphi 0, %s19
      %s23 = sphi 0, %s22
      %s39 = sphi 0, %s23
      %s43 = sphi 0, %s43
      %s45 = sphi 0, %s43
      %s46 = sphi 0, %s45
      %s60 = sphi 0, %s46
      %s64 = sphi 0, %s64
      %s66 = sphi 0, %s64
      %s67 = sphi 0, %s66
      %s81 = sphi 0, %s67
      %s87 = sphi 0, %s89
      %s90 = sphi 0, %s87
      %s91 = sphi 0, %s90
      %s107 = sphi 0, %s91
    $region4: #{discriminator_forward.10} parent=1 // loop_header_branch
      %12 = sbr.rel (%p10) target = $region8
    $region5: #{discriminator_forward.10} parent=1 // loop_body
      %s14 = ssub.s32 %s9, 1
      %s15 = ssub.s32 %s9, 2
      %s16 = sadd.s32 %s9, 1
      %s17 = ssub.s32 %s9, %s16
      %p18 = scmp.eq.s32.totalorder %s17, 0
      %s20 = sadd.s32 %s19, 1
      %s21 = scalar_select %p18, %s19, %s20
      %p24 = pneg %p18
      %p25 = scmp.eq.s32.totalorder %s9, 1
      %p26 = por %p24, %p25
      %p27 = scmp.ne.s32.totalorder %s19, %s22
      %p28 = scmp.eq.s32.totalorder %s9, 0
      %p29 = por %p27, %p28
      %p30 = scmp.ne.s32.totalorder %s19, %s22
      %p31 = scmp.eq.s32.totalorder %s14, 1
      %p32 = por %p30, %p31
      %p33 = scmp.ne.s32.totalorder %s22, %s23
      %p34 = scmp.eq.s32.totalorder %s14, 0
      %p35 = por %p33, %p34
      %p36 = scmp.ne.s32.totalorder %s22, %s23
      %p37 = scmp.eq.s32.totalorder %s15, 1
      %p38 = por %p36, %p37
      %p40 = scmp.ne.s32.totalorder %s23, %s39
      %p41 = scmp.eq.s32.totalorder %s15, 0
      %p42 = por %p40, %p41
      %s44 = sadd.s32 %s43, 1
      %p47 = scmp.eq.s32.totalorder %s9, 1
      %p48 = scmp.ne.s32.totalorder %s43, %s45
      %p49 = scmp.eq.s32.totalorder %s9, 0
      %p50 = por %p48, %p49
      %p51 = scmp.ne.s32.totalorder %s43, %s45
      %p52 = scmp.eq.s32.totalorder %s14, 1
      %p53 = por %p51, %p52
      %p54 = scmp.ne.s32.totalorder %s45, %s46
      %p55 = scmp.eq.s32.totalorder %s14, 0
      %p56 = por %p54, %p55
      %p57 = scmp.ne.s32.totalorder %s45, %s46
      %p58 = scmp.eq.s32.totalorder %s15, 1
      %p59 = por %p57, %p58
      %p61 = scmp.ne.s32.totalorder %s46, %s60
      %p62 = scmp.eq.s32.totalorder %s15, 0
      %p63 = por %p61, %p62
      %s65 = sadd.s32 %s64, 1
      %p68 = scmp.eq.s32.totalorder %s9, 1
      %p69 = scmp.ne.s32.totalorder %s64, %s66
      %p70 = scmp.eq.s32.totalorder %s9, 0
      %p71 = por %p69, %p70
      %p72 = scmp.ne.s32.totalorder %s64, %s66
      %p73 = scmp.eq.s32.totalorder %s14, 1
      %p74 = por %p72, %p73
      %p75 = scmp.ne.s32.totalorder %s66, %s67
      %p76 = scmp.eq.s32.totalorder %s14, 0
      %p77 = por %p75, %p76
      %p78 = scmp.ne.s32.totalorder %s66, %s67
      %p79 = scmp.eq.s32.totalorder %s15, 1
      %p80 = por %p78, %p79
      %p82 = scmp.ne.s32.totalorder %s67, %s81
      %p83 = scmp.eq.s32.totalorder %s15, 0
      %p84 = por %p82, %p83
      %s85 = ssub.s32 %s9, %s16
      %p86 = scmp.eq.s32.totalorder %s85, 0
      %s88 = sadd.s32 %s87, 1
      %s89 = scalar_select %p86, %s87, %s88
      %p92 = pneg %p86
      %p93 = scmp.eq.s32.totalorder %s9, 1
      %p94 = por %p92, %p93
      %p95 = scmp.ne.s32.totalorder %s87, %s90
      %p96 = scmp.eq.s32.totalorder %s9, 0
      %p97 = por %p95, %p96
      %p98 = scmp.ne.s32.totalorder %s87, %s90
      %p99 = scmp.eq.s32.totalorder %s14, 1
      %p100 = por %p98, %p99
      %p101 = scmp.ne.s32.totalorder %s90, %s91
      %p102 = scmp.eq.s32.totalorder %s14, 0
      %p103 = por %p101, %p102
      %p104 = scmp.ne.s32.totalorder %s90, %s91
      %p105 = scmp.eq.s32.totalorder %s15, 1
      %p106 = por %p104, %p105
      %p108 = scmp.ne.s32.totalorder %s91, %s107
      %p109 = scmp.eq.s32.totalorder %s15, 0
      %p110 = por %p108, %p109
      %p111 = scmp.le.s32.totalorder 1, %s9
      %p112 = scmp.lt.s32.totalorder %s9, 3
      %p113 = pnand %p111, %p112
      %p114 = pneg %p113
      // Predicated region
      $region9: #{discriminator_forward.10} parent=5 // pred_check
        _
      $region10: #{discriminator_forward.10} parent=5 // pred_check_branch
        %116 = sbr.rel (%p113) target = $region12
      $region11: #{discriminator_forward.10} parent=5 // pred_region
        %s117 = ssub.s32 %s9, 1
        // Predicated region
        $region13: #{discriminator_forward.10} parent=11 // pred_check
          %p118 = pneg %p56
        $region14: #{discriminator_forward.10} parent=11 // pred_check_branch
          %120 = sbr.rel (%p118) target = $region16
        $region15: #{discriminator_forward.10} parent=11 // pred_region
          _
        $region16: #{discriminator_forward.10} parent=11 // pred_fallthru
          _
        // Predicated region
        $region17: #{discriminator_forward.10} parent=11 // pred_check
          %p121 = pneg %p77
        $region18: #{discriminator_forward.10} parent=11 // pred_check_branch
          %123 = sbr.rel (%p121) target = $region20
        $region19: #{discriminator_forward.10} parent=11 // pred_region
          _
        $region20: #{discriminator_forward.10} parent=11 // pred_fallthru
          _
      $region12: #{discriminator_forward.10} parent=5 // pred_fallthru
        _
      %p124 = scmp.lt.s32.totalorder %s9, 2
      // Predicated region
      $region21: #{discriminator_forward.10} parent=5 // pred_check
        %p125 = pneg %p124
      $region22: #{discriminator_forward.10} parent=5 // pred_check_branch
        %127 = sbr.rel (%p125) target = $region24
      $region23: #{discriminator_forward.10} parent=5 // pred_region
        // Predicated region
        $region25: #{discriminator_forward.10} parent=23 // pred_check
          %p128 = pneg %p29
        $region26: #{discriminator_forward.10} parent=23 // pred_check_branch
          %130 = sbr.rel (%p128) target = $region28
        $region27: #{discriminator_forward.10} parent=23 // pred_region
          %s131 = smul.u32 128, %s9
          %s132 = ssub.s32 144, %s131
          %p133 = scmp.lt.s32.totalorder %s132, 128
          %s134 = scalar_select %p133, %s132, 128
          %s135 = smul.u32 128, %s134
          %p136 = scmp.lt.s32.totalorder %s131, 143
          %s137 = scalar_select %p136, %s131, 143
          %s138 = smul.addr %s137, 8
          %s139 = scalar_lea.vmem %s0, %s138
          %s140 = smul.u32 128, %s9
          %s141 = ssub.s32 144, %s140
          %p142 = scmp.lt.s32.totalorder %s141, 128
          %s143 = scalar_select %p142, %s141, 128
          %s144 = smul.u32 128, %s143
        $region28: #{discriminator_forward.10} parent=23 // pred_fallthru
          _
      $region24: #{discriminator_forward.10} parent=5 // pred_fallthru
        _
      %p145 = scmp.le.s32.totalorder 1, %s9
      %p146 = scmp.lt.s32.totalorder %s9, 3
      %p147 = pnand %p145, %p146
      %p148 = pneg %p147
      // Predicated region
      $region29: #{discriminator_forward.10} parent=5 // pred_check
        _
      $region30: #{discriminator_forward.10} parent=5 // pred_check_branch
        %150 = sbr.rel (%p147) target = $region32
      $region31: #{discriminator_forward.10} parent=5 // pred_region
        %s151 = ssub.s32 %s9, 1
        %s152 = smul.u32 128, %s14
        %s153 = ssub.s32 144, %s152
        %p154 = scmp.lt.s32.totalorder %s153, 128
        %s155 = scalar_select %p154, %s153, 128
        %s156 = smul.u32 128, %s155
        %p157 = scmp.lt.s32.totalorder %s152, 143
        %s158 = scalar_select %p157, %s152, 143
        %s159 = smul.addr %s158, 8
        %s160 = scalar_lea.vmem %s0, %s159
        %p161 = pneg %p35
        %p162 = pneg %p32
        %p163 = pneg %p56
        %p164 = pneg %p53
        %p165 = pneg %p77
        %p166 = pneg %p74
        %p167 = pneg %p103
        %p168 = pneg %p100
        %s169 = sand.u32 %s90, 1
        %s170 = sand.u32 %s90, 1
        %s171 = smul.addr %s170, 512
        %s172 = scalar_lea.vmem [#allocation2], %s171
        %s173 = smul.u32 128, %s14
        %s174 = ssub.s32 144, %s173
        %p175 = scmp.lt.s32.totalorder %s174, 128
        %s176 = scalar_select %p175, %s174, 128
        %s177 = smul.u32 128, %s176
        %p178 = scmp.lt.s32.totalorder %s173, 143
        %s179 = scalar_select %p178, %s173, 143
        %s180 = smul.addr %s179, 8
        %s181 = scalar_lea.vmem %s0, %s180
        %s182 = smul.u32 128, %s14
        %s183 = ssub.s32 144, %s182
        %p184 = scmp.lt.s32.totalorder %s183, 128
        %s185 = scalar_select %p184, %s183, 128
        %s186 = smul.u32 128, %s185
        %s187 = smul.u32 128, %s14
        %s188 = ssub.s32 144, %s187
        %p189 = scmp.lt.s32.totalorder %s188, 128
        %s190 = scalar_select %p189, %s188, 128
        %s191 = smul.u32 64, %s190
        %v192 = vld [vmem:[%s181] sm:$0xff]
        %v193 = vld [vmem:[%s181 + $0x8] sm:$0xff]
        %v194 = vld [vmem:[%s181 + $0x10] sm:$0xff]
        %v195 = vld [vmem:[%s181 + $0x18] sm:$0xff]
        %v196 = vld [vmem:[%s181 + $0x20] sm:$0xff]
        %v197 = vld [vmem:[%s181 + $0x28] sm:$0xff]
        %v198 = vld [vmem:[%s181 + $0x30] sm:$0xff]
        %v199 = vld [vmem:[%s181 + $0x38] sm:$0xff]
        %v200 = vld [vmem:[%s181 + $0x40] sm:$0xff]
        %v201 = vld [vmem:[%s181 + $0x48] sm:$0xff]
        %v202 = vld [vmem:[%s181 + $0x50] sm:$0xff]
        %v203 = vld [vmem:[%s181 + $0x58] sm:$0xff]
        %v204 = vld [vmem:[%s181 + $0x60] sm:$0xff]
        %v205 = vld [vmem:[%s181 + $0x68] sm:$0xff]
        %v206 = vld [vmem:[%s181 + $0x70] sm:$0xff]
        %v207 = vld [vmem:[%s181 + $0x78] sm:$0xff]
        %v208 = vld [vmem:[%s181 + $0x80] sm:$0xff]
        %v209 = vld [vmem:[%s181 + $0x88] sm:$0xff]
        %v210 = vld [vmem:[%s181 + $0x90] sm:$0xff]
        %v211 = vld [vmem:[%s181 + $0x98] sm:$0xff]
        %v212 = vld [vmem:[%s181 + $0xa0] sm:$0xff]
        %v213 = vld [vmem:[%s181 + $0xa8] sm:$0xff]
        %v214 = vld [vmem:[%s181 + $0xb0] sm:$0xff]
        %v215 = vld [vmem:[%s181 + $0xb8] sm:$0xff]
        %v216 = vld [vmem:[%s181 + $0xc0] sm:$0xff]
        %v217 = vld [vmem:[%s181 + $0xc8] sm:$0xff]
        %v218 = vld [vmem:[%s181 + $0xd0] sm:$0xff]
        %v219 = vld [vmem:[%s181 + $0xd8] sm:$0xff]
        %v220 = vld [vmem:[%s181 + $0xe0] sm:$0xff]
        %v221 = vld [vmem:[%s181 + $0xe8] sm:$0xff]
        %v222 = vld [vmem:[%s181 + $0xf0] sm:$0xff]
        %v223 = vld [vmem:[%s181 + $0xf8] sm:$0xff]
        %v224 = vld [vmem:[%s181 + $0x100] sm:$0xff]
        %v225 = vld [vmem:[%s181 + $0x108] sm:$0xff]
        %v226 = vld [vmem:[%s181 + $0x110] sm:$0xff]
        %v227 = vld [vmem:[%s181 + $0x118] sm:$0xff]
        %v228 = vld [vmem:[%s181 + $0x120] sm:$0xff]
        %v229 = vld [vmem:[%s181 + $0x128] sm:$0xff]
        %v230 = vld [vmem:[%s181 + $0x130] sm:$0xff]
        %v231 = vld [vmem:[%s181 + $0x138] sm:$0xff]
        %v232 = vld [vmem:[%s181 + $0x140] sm:$0xff]
        %v233 = vld [vmem:[%s181 + $0x148] sm:$0xff]
        %v234 = vld [vmem:[%s181 + $0x150] sm:$0xff]
        %v235 = vld [vmem:[%s181 + $0x158] sm:$0xff]
        %v236 = vld [vmem:[%s181 + $0x160] sm:$0xff]
        %v237 = vld [vmem:[%s181 + $0x168] sm:$0xff]
        %v238 = vld [vmem:[%s181 + $0x170] sm:$0xff]
        %v239 = vld [vmem:[%s181 + $0x178] sm:$0xff]
        %v240 = vld [vmem:[%s181 + $0x180] sm:$0xff]
        %v241 = vld [vmem:[%s181 + $0x188] sm:$0xff]
        %v242 = vld [vmem:[%s181 + $0x190] sm:$0xff]
        %v243 = vld [vmem:[%s181 + $0x198] sm:$0xff]
        %v244 = vld [vmem:[%s181 + $0x1a0] sm:$0xff]
        %v245 = vld [vmem:[%s181 + $0x1a8] sm:$0xff]
        %v246 = vld [vmem:[%s181 + $0x1b0] sm:$0xff]
        %v247 = vld [vmem:[%s181 + $0x1b8] sm:$0xff]
        %v248 = vld [vmem:[%s181 + $0x1c0] sm:$0xff]
        %v249 = vld [vmem:[%s181 + $0x1c8] sm:$0xff]
        %v250 = vld [vmem:[%s181 + $0x1d0] sm:$0xff]
        %v251 = vld [vmem:[%s181 + $0x1d8] sm:$0xff]
        %v252 = vld [vmem:[%s181 + $0x1e0] sm:$0xff]
        %v253 = vld [vmem:[%s181 + $0x1e8] sm:$0xff]
        %v254 = vld [vmem:[%s181 + $0x1f0] sm:$0xff]
        %v255 = vld [vmem:[%s181 + $0x1f8] sm:$0xff]
        %v256 = vld [vmem:[%s181 + $0x200] sm:$0xff]
        %v257 = vld [vmem:[%s181 + $0x208] sm:$0xff]
        %v258 = vld [vmem:[%s181 + $0x210] sm:$0xff]
        %v259 = vld [vmem:[%s181 + $0x218] sm:$0xff]
        %v260 = vld [vmem:[%s181 + $0x220] sm:$0xff]
        %v261 = vld [vmem:[%s181 + $0x228] sm:$0xff]
        %v262 = vld [vmem:[%s181 + $0x230] sm:$0xff]
        %v263 = vld [vmem:[%s181 + $0x238] sm:$0xff]
        %v264 = vld [vmem:[%s181 + $0x240] sm:$0xff]
        %v265 = vld [vmem:[%s181 + $0x248] sm:$0xff]
        %v266 = vld [vmem:[%s181 + $0x250] sm:$0xff]
        %v267 = vld [vmem:[%s181 + $0x258] sm:$0xff]
        %v268 = vld [vmem:[%s181 + $0x260] sm:$0xff]
        %v269 = vld [vmem:[%s181 + $0x268] sm:$0xff]
        %v270 = vld [vmem:[%s181 + $0x270] sm:$0xff]
        %v271 = vld [vmem:[%s181 + $0x278] sm:$0xff]
        %v272 = vld [vmem:[%s181 + $0x280] sm:$0xff]
        %v273 = vld [vmem:[%s181 + $0x288] sm:$0xff]
        %v274 = vld [vmem:[%s181 + $0x290] sm:$0xff]
        %v275 = vld [vmem:[%s181 + $0x298] sm:$0xff]
        %v276 = vld [vmem:[%s181 + $0x2a0] sm:$0xff]
        %v277 = vld [vmem:[%s181 + $0x2a8] sm:$0xff]
        %v278 = vld [vmem:[%s181 + $0x2b0] sm:$0xff]
        %v279 = vld [vmem:[%s181 + $0x2b8] sm:$0xff]
        %v280 = vld [vmem:[%s181 + $0x2c0] sm:$0xff]
        %v281 = vld [vmem:[%s181 + $0x2c8] sm:$0xff]
        %v282 = vld [vmem:[%s181 + $0x2d0] sm:$0xff]
        %v283 = vld [vmem:[%s181 + $0x2d8] sm:$0xff]
        %v284 = vld [vmem:[%s181 + $0x2e0] sm:$0xff]
        %v285 = vld [vmem:[%s181 + $0x2e8] sm:$0xff]
        %v286 = vld [vmem:[%s181 + $0x2f0] sm:$0xff]
        %v287 = vld [vmem:[%s181 + $0x2f8] sm:$0xff]
        %v288 = vld [vmem:[%s181 + $0x300] sm:$0xff]
        %v289 = vld [vmem:[%s181 + $0x308] sm:$0xff]
        %v290 = vld [vmem:[%s181 + $0x310] sm:$0xff]
        %v291 = vld [vmem:[%s181 + $0x318] sm:$0xff]
        %v292 = vld [vmem:[%s181 + $0x320] sm:$0xff]
        %v293 = vld [vmem:[%s181 + $0x328] sm:$0xff]
        %v294 = vld [vmem:[%s181 + $0x330] sm:$0xff]
        %v295 = vld [vmem:[%s181 + $0x338] sm:$0xff]
        %v296 = vld [vmem:[%s181 + $0x340] sm:$0xff]
        %v297 = vld [vmem:[%s181 + $0x348] sm:$0xff]
        %v298 = vld [vmem:[%s181 + $0x350] sm:$0xff]
        %v299 = vld [vmem:[%s181 + $0x358] sm:$0xff]
        %v300 = vld [vmem:[%s181 + $0x360] sm:$0xff]
        %v301 = vld [vmem:[%s181 + $0x368] sm:$0xff]
        %v302 = vld [vmem:[%s181 + $0x370] sm:$0xff]
        %v303 = vld [vmem:[%s181 + $0x378] sm:$0xff]
        %v304 = vld [vmem:[%s181 + $0x380] sm:$0xff]
        %v305 = vld [vmem:[%s181 + $0x388] sm:$0xff]
        %v306 = vld [vmem:[%s181 + $0x390] sm:$0xff]
        %v307 = vld [vmem:[%s181 + $0x398] sm:$0xff]
        %v308 = vld [vmem:[%s181 + $0x3a0] sm:$0xff]
        %v309 = vld [vmem:[%s181 + $0x3a8] sm:$0xff]
        %v310 = vld [vmem:[%s181 + $0x3b0] sm:$0xff]
        %v311 = vld [vmem:[%s181 + $0x3b8] sm:$0xff]
        %v312 = vld [vmem:[%s181 + $0x3c0] sm:$0xff]
        %v313 = vld [vmem:[%s181 + $0x3c8] sm:$0xff]
        %v314 = vld [vmem:[%s181 + $0x3d0] sm:$0xff]
        %v315 = vld [vmem:[%s181 + $0x3d8] sm:$0xff]
        %v316 = vld [vmem:[%s181 + $0x3e0] sm:$0xff]
        %v317 = vld [vmem:[%s181 + $0x3e8] sm:$0xff]
        %v318 = vld [vmem:[%s181 + $0x3f0] sm:$0xff]
        %v319 = vld [vmem:[%s181 + $0x3f8] sm:$0xff]
        %v320 = vld [vmem:[%s1] sm:$0x1]
        %v322 = vlaneseq
        %v323 = vshrl.u32 %v322, 7
        %v324 = vsub.s32 0, %v323
        %v325 = vrot.slane %v320, %v324
        %v327 = vmul.f32 %v192, %v325
        %v328 = vmul.f32 %v193, %v325
        %v329 = vmul.f32 %v194, %v325
        %v330 = vmul.f32 %v195, %v325
        %v331 = vmul.f32 %v196, %v325
        %v332 = vmul.f32 %v197, %v325
        %v333 = vmul.f32 %v198, %v325
        %v334 = vmul.f32 %v199, %v325
        %v335 = vmul.f32 %v200, %v325
        %v336 = vmul.f32 %v201, %v325
        %v337 = vmul.f32 %v202, %v325
        %v338 = vmul.f32 %v203, %v325
        %v339 = vmul.f32 %v204, %v325
        %v340 = vmul.f32 %v205, %v325
        %v341 = vmul.f32 %v206, %v325
        %v342 = vmul.f32 %v207, %v325
        %v343 = vmul.f32 %v208, %v325
        %v344 = vmul.f32 %v209, %v325
        %v345 = vmul.f32 %v210, %v325
        %v346 = vmul.f32 %v211, %v325
        %v347 = vmul.f32 %v212, %v325
        %v348 = vmul.f32 %v213, %v325
        %v349 = vmul.f32 %v214, %v325
        %v350 = vmul.f32 %v215, %v325
        %v351 = vmul.f32 %v216, %v325
        %v352 = vmul.f32 %v217, %v325
        %v353 = vmul.f32 %v218, %v325
        %v354 = vmul.f32 %v219, %v325
        %v355 = vmul.f32 %v220, %v325
        %v356 = vmul.f32 %v221, %v325
        %v357 = vmul.f32 %v222, %v325
        %v358 = vmul.f32 %v223, %v325
        %v359 = vmul.f32 %v224, %v325
        %v360 = vmul.f32 %v225, %v325
        %v361 = vmul.f32 %v226, %v325
        %v362 = vmul.f32 %v227, %v325
        %v363 = vmul.f32 %v228, %v325
        %v364 = vmul.f32 %v229, %v325
        %v365 = vmul.f32 %v230, %v325
        %v366 = vmul.f32 %v231, %v325
        %v367 = vmul.f32 %v232, %v325
        %v368 = vmul.f32 %v233, %v325
        %v369 = vmul.f32 %v234, %v325
        %v370 = vmul.f32 %v235, %v325
        %v371 = vmul.f32 %v236, %v325
        %v372 = vmul.f32 %v237, %v325
        %v373 = vmul.f32 %v238, %v325
        %v374 = vmul.f32 %v239, %v325
        %v375 = vmul.f32 %v240, %v325
        %v376 = vmul.f32 %v241, %v325
        %v377 = vmul.f32 %v242, %v325
        %v378 = vmul.f32 %v243, %v325
        %v379 = vmul.f32 %v244, %v325
        %v380 = vmul.f32 %v245, %v325
        %v381 = vmul.f32 %v246, %v325
        %v382 = vmul.f32 %v247, %v325
        %v383 = vmul.f32 %v248, %v325
        %v384 = vmul.f32 %v249, %v325
        %v385 = vmul.f32 %v250, %v325
        %v386 = vmul.f32 %v251, %v325
        %v387 = vmul.f32 %v252, %v325
        %v388 = vmul.f32 %v253, %v325
        %v389 = vmul.f32 %v254, %v325
        %v390 = vmul.f32 %v255, %v325
        %v391 = vmul.f32 %v256, %v325
        %v392 = vmul.f32 %v257, %v325
        %v393 = vmul.f32 %v258, %v325
        %v394 = vmul.f32 %v259, %v325
        %v395 = vmul.f32 %v260, %v325
        %v396 = vmul.f32 %v261, %v325
        %v397 = vmul.f32 %v262, %v325
        %v398 = vmul.f32 %v263, %v325
        %v399 = vmul.f32 %v264, %v325
        %v400 = vmul.f32 %v265, %v325
        %v401 = vmul.f32 %v266, %v325
        %v402 = vmul.f32 %v267, %v325
        %v403 = vmul.f32 %v268, %v325
        %v404 = vmul.f32 %v269, %v325
        %v405 = vmul.f32 %v270, %v325
        %v406 = vmul.f32 %v271, %v325
        %v407 = vmul.f32 %v272, %v325
        %v408 = vmul.f32 %v273, %v325
        %v409 = vmul.f32 %v274, %v325
        %v410 = vmul.f32 %v275, %v325
        %v411 = vmul.f32 %v276, %v325
        %v412 = vmul.f32 %v277, %v325
        %v413 = vmul.f32 %v278, %v325
        %v414 = vmul.f32 %v279, %v325
        %v415 = vmul.f32 %v280, %v325
        %v416 = vmul.f32 %v281, %v325
        %v417 = vmul.f32 %v282, %v325
        %v418 = vmul.f32 %v283, %v325
        %v419 = vmul.f32 %v284, %v325
        %v420 = vmul.f32 %v285, %v325
        %v421 = vmul.f32 %v286, %v325
        %v422 = vmul.f32 %v287, %v325
        %v423 = vmul.f32 %v288, %v325
        %v424 = vmul.f32 %v289, %v325
        %v425 = vmul.f32 %v290, %v325
        %v426 = vmul.f32 %v291, %v325
        %v427 = vmul.f32 %v292, %v325
        %v428 = vmul.f32 %v293, %v325
        %v429 = vmul.f32 %v294, %v325
        %v430 = vmul.f32 %v295, %v325
        %v431 = vmul.f32 %v296, %v325
        %v432 = vmul.f32 %v297, %v325
        %v433 = vmul.f32 %v298, %v325
        %v434 = vmul.f32 %v299, %v325
        %v435 = vmul.f32 %v300, %v325
        %v436 = vmul.f32 %v301, %v325
        %v437 = vmul.f32 %v302, %v325
        %v438 = vmul.f32 %v303, %v325
        %v439 = vmul.f32 %v304, %v325
        %v440 = vmul.f32 %v305, %v325
        %v441 = vmul.f32 %v306, %v325
        %v442 = vmul.f32 %v307, %v325
        %v443 = vmul.f32 %v308, %v325
        %v444 = vmul.f32 %v309, %v325
        %v445 = vmul.f32 %v310, %v325
        %v446 = vmul.f32 %v311, %v325
        %v447 = vmul.f32 %v312, %v325
        %v448 = vmul.f32 %v313, %v325
        %v449 = vmul.f32 %v314, %v325
        %v450 = vmul.f32 %v315, %v325
        %v451 = vmul.f32 %v316, %v325
        %v452 = vmul.f32 %v317, %v325
        %v453 = vmul.f32 %v318, %v325
        %v454 = vmul.f32 %v319, %v325
        %v455 = vld [vmem:[%s2] sm:$0x1]
        %v457 = vlaneseq
        %v458 = vshrl.u32 %v457, 7
        %v459 = vsub.s32 0, %v458
        %v460 = vrot.slane %v455, %v459
        %v462 = vadd.f32 %v327, %v460
        %v463 = vadd.f32 %v328, %v460
        %v464 = vadd.f32 %v329, %v460
        %v465 = vadd.f32 %v330, %v460
        %v466 = vadd.f32 %v331, %v460
        %v467 = vadd.f32 %v332, %v460
        %v468 = vadd.f32 %v333, %v460
        %v469 = vadd.f32 %v334, %v460
        %v470 = vadd.f32 %v335, %v460
        %v471 = vadd.f32 %v336, %v460
        %v472 = vadd.f32 %v337, %v460
        %v473 = vadd.f32 %v338, %v460
        %v474 = vadd.f32 %v339, %v460
        %v475 = vadd.f32 %v340, %v460
        %v476 = vadd.f32 %v341, %v460
        %v477 = vadd.f32 %v342, %v460
        %v478 = vadd.f32 %v343, %v460
        %v479 = vadd.f32 %v344, %v460
        %v480 = vadd.f32 %v345, %v460
        %v481 = vadd.f32 %v346, %v460
        %v482 = vadd.f32 %v347, %v460
        %v483 = vadd.f32 %v348, %v460
        %v484 = vadd.f32 %v349, %v460
        %v485 = vadd.f32 %v350, %v460
        %v486 = vadd.f32 %v351, %v460
        %v487 = vadd.f32 %v352, %v460
        %v488 = vadd.f32 %v353, %v460
        %v489 = vadd.f32 %v354, %v460
        %v490 = vadd.f32 %v355, %v460
        %v491 = vadd.f32 %v356, %v460
        %v492 = vadd.f32 %v357, %v460
        %v493 = vadd.f32 %v358, %v460
        %v494 = vadd.f32 %v359, %v460
        %v495 = vadd.f32 %v360, %v460
        %v496 = vadd.f32 %v361, %v460
        %v497 = vadd.f32 %v362, %v460
        %v498 = vadd.f32 %v363, %v460
        %v499 = vadd.f32 %v364, %v460
        %v500 = vadd.f32 %v365, %v460
        %v501 = vadd.f32 %v366, %v460
        %v502 = vadd.f32 %v367, %v460
        %v503 = vadd.f32 %v368, %v460
        %v504 = vadd.f32 %v369, %v460
        %v505 = vadd.f32 %v370, %v460
        %v506 = vadd.f32 %v371, %v460
        %v507 = vadd.f32 %v372, %v460
        %v508 = vadd.f32 %v373, %v460
        %v509 = vadd.f32 %v374, %v460
        %v510 = vadd.f32 %v375, %v460
        %v511 = vadd.f32 %v376, %v460
        %v512 = vadd.f32 %v377, %v460
        %v513 = vadd.f32 %v378, %v460
        %v514 = vadd.f32 %v379, %v460
        %v515 = vadd.f32 %v380, %v460
        %v516 = vadd.f32 %v381, %v460
        %v517 = vadd.f32 %v382, %v460
        %v518 = vadd.f32 %v383, %v460
        %v519 = vadd.f32 %v384, %v460
        %v520 = vadd.f32 %v385, %v460
        %v521 = vadd.f32 %v386, %v460
        %v522 = vadd.f32 %v387, %v460
        %v523 = vadd.f32 %v388, %v460
        %v524 = vadd.f32 %v389, %v460
        %v525 = vadd.f32 %v390, %v460
        %v526 = vadd.f32 %v391, %v460
        %v527 = vadd.f32 %v392, %v460
        %v528 = vadd.f32 %v393, %v460
        %v529 = vadd.f32 %v394, %v460
        %v530 = vadd.f32 %v395, %v460
        %v531 = vadd.f32 %v396, %v460
        %v532 = vadd.f32 %v397, %v460
        %v533 = vadd.f32 %v398, %v460
        %v534 = vadd.f32 %v399, %v460
        %v535 = vadd.f32 %v400, %v460
        %v536 = vadd.f32 %v401, %v460
        %v537 = vadd.f32 %v402, %v460
        %v538 = vadd.f32 %v403, %v460
        %v539 = vadd.f32 %v404, %v460
        %v540 = vadd.f32 %v405, %v460
        %v541 = vadd.f32 %v406, %v460
        %v542 = vadd.f32 %v407, %v460
        %v543 = vadd.f32 %v408, %v460
        %v544 = vadd.f32 %v409, %v460
        %v545 = vadd.f32 %v410, %v460
        %v546 = vadd.f32 %v411, %v460
        %v547 = vadd.f32 %v412, %v460
        %v548 = vadd.f32 %v413, %v460
        %v549 = vadd.f32 %v414, %v460
        %v550 = vadd.f32 %v415, %v460
        %v551 = vadd.f32 %v416, %v460
        %v552 = vadd.f32 %v417, %v460
        %v553 = vadd.f32 %v418, %v460
        %v554 = vadd.f32 %v419, %v460
        %v555 = vadd.f32 %v420, %v460
        %v556 = vadd.f32 %v421, %v460
        %v557 = vadd.f32 %v422, %v460
        %v558 = vadd.f32 %v423, %v460
        %v559 = vadd.f32 %v424, %v460
        %v560 = vadd.f32 %v425, %v460
        %v561 = vadd.f32 %v426, %v460
        %v562 = vadd.f32 %v427, %v460
        %v563 = vadd.f32 %v428, %v460
        %v564 = vadd.f32 %v429, %v460
        %v565 = vadd.f32 %v430, %v460
        %v566 = vadd.f32 %v431, %v460
        %v567 = vadd.f32 %v432, %v460
        %v568 = vadd.f32 %v433, %v460
        %v569 = vadd.f32 %v434, %v460
        %v570 = vadd.f32 %v435, %v460
        %v571 = vadd.f32 %v436, %v460
        %v572 = vadd.f32 %v437, %v460
        %v573 = vadd.f32 %v438, %v460
        %v574 = vadd.f32 %v439, %v460
        %v575 = vadd.f32 %v440, %v460
        %v576 = vadd.f32 %v441, %v460
        %v577 = vadd.f32 %v442, %v460
        %v578 = vadd.f32 %v443, %v460
        %v579 = vadd.f32 %v444, %v460
        %v580 = vadd.f32 %v445, %v460
        %v581 = vadd.f32 %v446, %v460
        %v582 = vadd.f32 %v447, %v460
        %v583 = vadd.f32 %v448, %v460
        %v584 = vadd.f32 %v449, %v460
        %v585 = vadd.f32 %v450, %v460
        %v586 = vadd.f32 %v451, %v460
        %v587 = vadd.f32 %v452, %v460
        %v588 = vadd.f32 %v453, %v460
        %v589 = vadd.f32 %v454, %v460
        %vm590 = vcmp.gt.f32.partialorder %v462, 0.0
        %vm591 = vcmp.gt.f32.partialorder %v463, 0.0
        %vm592 = vcmp.gt.f32.partialorder %v464, 0.0
        %vm593 = vcmp.gt.f32.partialorder %v465, 0.0
        %vm594 = vcmp.gt.f32.partialorder %v466, 0.0
        %vm595 = vcmp.gt.f32.partialorder %v467, 0.0
        %vm596 = vcmp.gt.f32.partialorder %v468, 0.0
        %vm597 = vcmp.gt.f32.partialorder %v469, 0.0
        %vm598 = vcmp.gt.f32.partialorder %v470, 0.0
        %vm599 = vcmp.gt.f32.partialorder %v471, 0.0
        %vm600 = vcmp.gt.f32.partialorder %v472, 0.0
        %vm601 = vcmp.gt.f32.partialorder %v473, 0.0
        %vm602 = vcmp.gt.f32.partialorder %v474, 0.0
        %vm603 = vcmp.gt.f32.partialorder %v475, 0.0
        %vm604 = vcmp.gt.f32.partialorder %v476, 0.0
        %vm605 = vcmp.gt.f32.partialorder %v477, 0.0
        %vm606 = vcmp.gt.f32.partialorder %v478, 0.0
        %vm607 = vcmp.gt.f32.partialorder %v479, 0.0
        %vm608 = vcmp.gt.f32.partialorder %v480, 0.0
        %vm609 = vcmp.gt.f32.partialorder %v481, 0.0
        %vm610 = vcmp.gt.f32.partialorder %v482, 0.0
        %vm611 = vcmp.gt.f32.partialorder %v483, 0.0
        %vm612 = vcmp.gt.f32.partialorder %v484, 0.0
        %vm613 = vcmp.gt.f32.partialorder %v485, 0.0
        %vm614 = vcmp.gt.f32.partialorder %v486, 0.0
        %vm615 = vcmp.gt.f32.partialorder %v487, 0.0
        %vm616 = vcmp.gt.f32.partialorder %v488, 0.0
        %vm617 = vcmp.gt.f32.partialorder %v489, 0.0
        %vm618 = vcmp.gt.f32.partialorder %v490, 0.0
        %vm619 = vcmp.gt.f32.partialorder %v491, 0.0
        %vm620 = vcmp.gt.f32.partialorder %v492, 0.0
        %vm621 = vcmp.gt.f32.partialorder %v493, 0.0
        %vm622 = vcmp.gt.f32.partialorder %v494, 0.0
        %vm623 = vcmp.gt.f32.partialorder %v495, 0.0
        %vm624 = vcmp.gt.f32.partialorder %v496, 0.0
        %vm625 = vcmp.gt.f32.partialorder %v497, 0.0
        %vm626 = vcmp.gt.f32.partialorder %v498, 0.0
        %vm627 = vcmp.gt.f32.partialorder %v499, 0.0
        %vm628 = vcmp.gt.f32.partialorder %v500, 0.0
        %vm629 = vcmp.gt.f32.partialorder %v501, 0.0
        %vm630 = vcmp.gt.f32.partialorder %v502, 0.0
        %vm631 = vcmp.gt.f32.partialorder %v503, 0.0
        %vm632 = vcmp.gt.f32.partialorder %v504, 0.0
        %vm633 = vcmp.gt.f32.partialorder %v505, 0.0
        %vm634 = vcmp.gt.f32.partialorder %v506, 0.0
        %vm635 = vcmp.gt.f32.partialorder %v507, 0.0
        %vm636 = vcmp.gt.f32.partialorder %v508, 0.0
        %vm637 = vcmp.gt.f32.partialorder %v509, 0.0
        %vm638 = vcmp.gt.f32.partialorder %v510, 0.0
        %vm639 = vcmp.gt.f32.partialorder %v511, 0.0
        %vm640 = vcmp.gt.f32.partialorder %v512, 0.0
        %vm641 = vcmp.gt.f32.partialorder %v513, 0.0
        %vm642 = vcmp.gt.f32.partialorder %v514, 0.0
        %vm643 = vcmp.gt.f32.partialorder %v515, 0.0
        %vm644 = vcmp.gt.f32.partialorder %v516, 0.0
        %vm645 = vcmp.gt.f32.partialorder %v517, 0.0
        %vm646 = vcmp.gt.f32.partialorder %v518, 0.0
        %vm647 = vcmp.gt.f32.partialorder %v519, 0.0
        %vm648 = vcmp.gt.f32.partialorder %v520, 0.0
        %vm649 = vcmp.gt.f32.partialorder %v521, 0.0
        %vm650 = vcmp.gt.f32.partialorder %v522, 0.0
        %vm651 = vcmp.gt.f32.partialorder %v523, 0.0
        %vm652 = vcmp.gt.f32.partialorder %v524, 0.0
        %vm653 = vcmp.gt.f32.partialorder %v525, 0.0
        %vm654 = vcmp.gt.f32.partialorder %v526, 0.0
        %vm655 = vcmp.gt.f32.partialorder %v527, 0.0
        %vm656 = vcmp.gt.f32.partialorder %v528, 0.0
        %vm657 = vcmp.gt.f32.partialorder %v529, 0.0
        %vm658 = vcmp.gt.f32.partialorder %v530, 0.0
        %vm659 = vcmp.gt.f32.partialorder %v531, 0.0
        %vm660 = vcmp.gt.f32.partialorder %v532, 0.0
        %vm661 = vcmp.gt.f32.partialorder %v533, 0.0
        %vm662 = vcmp.gt.f32.partialorder %v534, 0.0
        %vm663 = vcmp.gt.f32.partialorder %v535, 0.0
        %vm664 = vcmp.gt.f32.partialorder %v536, 0.0
        %vm665 = vcmp.gt.f32.partialorder %v537, 0.0
        %vm666 = vcmp.gt.f32.partialorder %v538, 0.0
        %vm667 = vcmp.gt.f32.partialorder %v539, 0.0
        %vm668 = vcmp.gt.f32.partialorder %v540, 0.0
        %vm669 = vcmp.gt.f32.partialorder %v541, 0.0
        %vm670 = vcmp.gt.f32.partialorder %v542, 0.0
        %vm671 = vcmp.gt.f32.partialorder %v543, 0.0
        %vm672 = vcmp.gt.f32.partialorder %v544, 0.0
        %vm673 = vcmp.gt.f32.partialorder %v545, 0.0
        %vm674 = vcmp.gt.f32.partialorder %v546, 0.0
        %vm675 = vcmp.gt.f32.partialorder %v547, 0.0
        %vm676 = vcmp.gt.f32.partialorder %v548, 0.0
        %vm677 = vcmp.gt.f32.partialorder %v549, 0.0
        %vm678 = vcmp.gt.f32.partialorder %v550, 0.0
        %vm679 = vcmp.gt.f32.partialorder %v551, 0.0
        %vm680 = vcmp.gt.f32.partialorder %v552, 0.0
        %vm681 = vcmp.gt.f32.partialorder %v553, 0.0
        %vm682 = vcmp.gt.f32.partialorder %v554, 0.0
        %vm683 = vcmp.gt.f32.partialorder %v555, 0.0
        %vm684 = vcmp.gt.f32.partialorder %v556, 0.0
        %vm685 = vcmp.gt.f32.partialorder %v557, 0.0
        %vm686 = vcmp.gt.f32.partialorder %v558, 0.0
        %vm687 = vcmp.gt.f32.partialorder %v559, 0.0
        %vm688 = vcmp.gt.f32.partialorder %v560, 0.0
        %vm689 = vcmp.gt.f32.partialorder %v561, 0.0
        %vm690 = vcmp.gt.f32.partialorder %v562, 0.0
        %vm691 = vcmp.gt.f32.partialorder %v563, 0.0
        %vm692 = vcmp.gt.f32.partialorder %v564, 0.0
        %vm693 = vcmp.gt.f32.partialorder %v565, 0.0
        %vm694 = vcmp.gt.f32.partialorder %v566, 0.0
        %vm695 = vcmp.gt.f32.partialorder %v567, 0.0
        %vm696 = vcmp.gt.f32.partialorder %v568, 0.0
        %vm697 = vcmp.gt.f32.partialorder %v569, 0.0
        %vm698 = vcmp.gt.f32.partialorder %v570, 0.0
        %vm699 = vcmp.gt.f32.partialorder %v571, 0.0
        %vm700 = vcmp.gt.f32.partialorder %v572, 0.0
        %vm701 = vcmp.gt.f32.partialorder %v573, 0.0
        %vm702 = vcmp.gt.f32.partialorder %v574, 0.0
        %vm703 = vcmp.gt.f32.partialorder %v575, 0.0
        %vm704 = vcmp.gt.f32.partialorder %v576, 0.0
        %vm705 = vcmp.gt.f32.partialorder %v577, 0.0
        %vm706 = vcmp.gt.f32.partialorder %v578, 0.0
        %vm707 = vcmp.gt.f32.partialorder %v579, 0.0
        %vm708 = vcmp.gt.f32.partialorder %v580, 0.0
        %vm709 = vcmp.gt.f32.partialorder %v581, 0.0
        %vm710 = vcmp.gt.f32.partialorder %v582, 0.0
        %vm711 = vcmp.gt.f32.partialorder %v583, 0.0
        %vm712 = vcmp.gt.f32.partialorder %v584, 0.0
        %vm713 = vcmp.gt.f32.partialorder %v585, 0.0
        %vm714 = vcmp.gt.f32.partialorder %v586, 0.0
        %vm715 = vcmp.gt.f32.partialorder %v587, 0.0
        %vm716 = vcmp.gt.f32.partialorder %v588, 0.0
        %vm717 = vcmp.gt.f32.partialorder %v589, 0.0
        %v718 = vmul.f32 %v462, 0.2
        %v719 = vmul.f32 %v463, 0.2
        %v720 = vmul.f32 %v464, 0.2
        %v721 = vmul.f32 %v465, 0.2
        %v722 = vmul.f32 %v466, 0.2
        %v723 = vmul.f32 %v467, 0.2
        %v724 = vmul.f32 %v468, 0.2
        %v725 = vmul.f32 %v469, 0.2
        %v726 = vmul.f32 %v470, 0.2
        %v727 = vmul.f32 %v471, 0.2
        %v728 = vmul.f32 %v472, 0.2
        %v729 = vmul.f32 %v473, 0.2
        %v730 = vmul.f32 %v474, 0.2
        %v731 = vmul.f32 %v475, 0.2
        %v732 = vmul.f32 %v476, 0.2
        %v733 = vmul.f32 %v477, 0.2
        %v734 = vmul.f32 %v478, 0.2
        %v735 = vmul.f32 %v479, 0.2
        %v736 = vmul.f32 %v480, 0.2
        %v737 = vmul.f32 %v481, 0.2
        %v738 = vmul.f32 %v482, 0.2
        %v739 = vmul.f32 %v483, 0.2
        %v740 = vmul.f32 %v484, 0.2
        %v741 = vmul.f32 %v485, 0.2
        %v742 = vmul.f32 %v486, 0.2
        %v743 = vmul.f32 %v487, 0.2
        %v744 = vmul.f32 %v488, 0.2
        %v745 = vmul.f32 %v489, 0.2
        %v746 = vmul.f32 %v490, 0.2
        %v747 = vmul.f32 %v491, 0.2
        %v748 = vmul.f32 %v492, 0.2
        %v749 = vmul.f32 %v493, 0.2
        %v750 = vmul.f32 %v494, 0.2
        %v751 = vmul.f32 %v495, 0.2
        %v752 = vmul.f32 %v496, 0.2
        %v753 = vmul.f32 %v497, 0.2
        %v754 = vmul.f32 %v498, 0.2
        %v755 = vmul.f32 %v499, 0.2
        %v756 = vmul.f32 %v500, 0.2
        %v757 = vmul.f32 %v501, 0.2
        %v758 = vmul.f32 %v502, 0.2
        %v759 = vmul.f32 %v503, 0.2
        %v760 = vmul.f32 %v504, 0.2
        %v761 = vmul.f32 %v505, 0.2
        %v762 = vmul.f32 %v506, 0.2
        %v763 = vmul.f32 %v507, 0.2
        %v764 = vmul.f32 %v508, 0.2
        %v765 = vmul.f32 %v509, 0.2
        %v766 = vmul.f32 %v510, 0.2
        %v767 = vmul.f32 %v511, 0.2
        %v768 = vmul.f32 %v512, 0.2
        %v769 = vmul.f32 %v513, 0.2
        %v770 = vmul.f32 %v514, 0.2
        %v771 = vmul.f32 %v515, 0.2
        %v772 = vmul.f32 %v516, 0.2
        %v773 = vmul.f32 %v517, 0.2
        %v774 = vmul.f32 %v518, 0.2
        %v775 = vmul.f32 %v519, 0.2
        %v776 = vmul.f32 %v520, 0.2
        %v777 = vmul.f32 %v521, 0.2
        %v778 = vmul.f32 %v522, 0.2
        %v779 = vmul.f32 %v523, 0.2
        %v780 = vmul.f32 %v524, 0.2
        %v781 = vmul.f32 %v525, 0.2
        %v782 = vmul.f32 %v526, 0.2
        %v783 = vmul.f32 %v527, 0.2
        %v784 = vmul.f32 %v528, 0.2
        %v785 = vmul.f32 %v529, 0.2
        %v786 = vmul.f32 %v530, 0.2
        %v787 = vmul.f32 %v531, 0.2
        %v788 = vmul.f32 %v532, 0.2
        %v789 = vmul.f32 %v533, 0.2
        %v790 = vmul.f32 %v534, 0.2
        %v791 = vmul.f32 %v535, 0.2
        %v792 = vmul.f32 %v536, 0.2
        %v793 = vmul.f32 %v537, 0.2
        %v794 = vmul.f32 %v538, 0.2
        %v795 = vmul.f32 %v539, 0.2
        %v796 = vmul.f32 %v540, 0.2
        %v797 = vmul.f32 %v541, 0.2
        %v798 = vmul.f32 %v542, 0.2
        %v799 = vmul.f32 %v543, 0.2
        %v800 = vmul.f32 %v544, 0.2
        %v801 = vmul.f32 %v545, 0.2
        %v802 = vmul.f32 %v546, 0.2
        %v803 = vmul.f32 %v547, 0.2
        %v804 = vmul.f32 %v548, 0.2
        %v805 = vmul.f32 %v549, 0.2
        %v806 = vmul.f32 %v550, 0.2
        %v807 = vmul.f32 %v551, 0.2
        %v808 = vmul.f32 %v552, 0.2
        %v809 = vmul.f32 %v553, 0.2
        %v810 = vmul.f32 %v554, 0.2
        %v811 = vmul.f32 %v555, 0.2
        %v812 = vmul.f32 %v556, 0.2
        %v813 = vmul.f32 %v557, 0.2
        %v814 = vmul.f32 %v558, 0.2
        %v815 = vmul.f32 %v559, 0.2
        %v816 = vmul.f32 %v560, 0.2
        %v817 = vmul.f32 %v561, 0.2
        %v818 = vmul.f32 %v562, 0.2
        %v819 = vmul.f32 %v563, 0.2
        %v820 = vmul.f32 %v564, 0.2
        %v821 = vmul.f32 %v565, 0.2
        %v822 = vmul.f32 %v566, 0.2
        %v823 = vmul.f32 %v567, 0.2
        %v824 = vmul.f32 %v568, 0.2
        %v825 = vmul.f32 %v569, 0.2
        %v826 = vmul.f32 %v570, 0.2
        %v827 = vmul.f32 %v571, 0.2
        %v828 = vmul.f32 %v572, 0.2
        %v829 = vmul.f32 %v573, 0.2
        %v830 = vmul.f32 %v574, 0.2
        %v831 = vmul.f32 %v575, 0.2
        %v832 = vmul.f32 %v576, 0.2
        %v833 = vmul.f32 %v577, 0.2
        %v834 = vmul.f32 %v578, 0.2
        %v835 = vmul.f32 %v579, 0.2
        %v836 = vmul.f32 %v580, 0.2
        %v837 = vmul.f32 %v581, 0.2
        %v838 = vmul.f32 %v582, 0.2
        %v839 = vmul.f32 %v583, 0.2
        %v840 = vmul.f32 %v584, 0.2
        %v841 = vmul.f32 %v585, 0.2
        %v842 = vmul.f32 %v586, 0.2
        %v843 = vmul.f32 %v587, 0.2
        %v844 = vmul.f32 %v588, 0.2
        %v845 = vmul.f32 %v589, 0.2
        %v846 = vsel %vm590, %v462, %v718
        %v847 = vsel %vm591, %v463, %v719
        %v848 = vsel %vm592, %v464, %v720
        %v849 = vsel %vm593, %v465, %v721
        %v850 = vsel %vm594, %v466, %v722
        %v851 = vsel %vm595, %v467, %v723
        %v852 = vsel %vm596, %v468, %v724
        %v853 = vsel %vm597, %v469, %v725
        %v854 = vsel %vm598, %v470, %v726
        %v855 = vsel %vm599, %v471, %v727
        %v856 = vsel %vm600, %v472, %v728
        %v857 = vsel %vm601, %v473, %v729
        %v858 = vsel %vm602, %v474, %v730
        %v859 = vsel %vm603, %v475, %v731
        %v860 = vsel %vm604, %v476, %v732
        %v861 = vsel %vm605, %v477, %v733
        %v862 = vsel %vm606, %v478, %v734
        %v863 = vsel %vm607, %v479, %v735
        %v864 = vsel %vm608, %v480, %v736
        %v865 = vsel %vm609, %v481, %v737
        %v866 = vsel %vm610, %v482, %v738
        %v867 = vsel %vm611, %v483, %v739
        %v868 = vsel %vm612, %v484, %v740
        %v869 = vsel %vm613, %v485, %v741
        %v870 = vsel %vm614, %v486, %v742
        %v871 = vsel %vm615, %v487, %v743
        %v872 = vsel %vm616, %v488, %v744
        %v873 = vsel %vm617, %v489, %v745
        %v874 = vsel %vm618, %v490, %v746
        %v875 = vsel %vm619, %v491, %v747
        %v876 = vsel %vm620, %v492, %v748
        %v877 = vsel %vm621, %v493, %v749
        %v878 = vsel %vm622, %v494, %v750
        %v879 = vsel %vm623, %v495, %v751
        %v880 = vsel %vm624, %v496, %v752
        %v881 = vsel %vm625, %v497, %v753
        %v882 = vsel %vm626, %v498, %v754
        %v883 = vsel %vm627, %v499, %v755
        %v884 = vsel %vm628, %v500, %v756
        %v885 = vsel %vm629, %v501, %v757
        %v886 = vsel %vm630, %v502, %v758
        %v887 = vsel %vm631, %v503, %v759
        %v888 = vsel %vm632, %v504, %v760
        %v889 = vsel %vm633, %v505, %v761
        %v890 = vsel %vm634, %v506, %v762
        %v891 = vsel %vm635, %v507, %v763
        %v892 = vsel %vm636, %v508, %v764
        %v893 = vsel %vm637, %v509, %v765
        %v894 = vsel %vm638, %v510, %v766
        %v895 = vsel %vm639, %v511, %v767
        %v896 = vsel %vm640, %v512, %v768
        %v897 = vsel %vm641, %v513, %v769
        %v898 = vsel %vm642, %v514, %v770
        %v899 = vsel %vm643, %v515, %v771
        %v900 = vsel %vm644, %v516, %v772
        %v901 = vsel %vm645, %v517, %v773
        %v902 = vsel %vm646, %v518, %v774
        %v903 = vsel %vm647, %v519, %v775
        %v904 = vsel %vm648, %v520, %v776
        %v905 = vsel %vm649, %v521, %v777
        %v906 = vsel %vm650, %v522, %v778
        %v907 = vsel %vm651, %v523, %v779
        %v908 = vsel %vm652, %v524, %v780
        %v909 = vsel %vm653, %v525, %v781
        %v910 = vsel %vm654, %v526, %v782
        %v911 = vsel %vm655, %v527, %v783
        %v912 = vsel %vm656, %v528, %v784
        %v913 = vsel %vm657, %v529, %v785
        %v914 = vsel %vm658, %v530, %v786
        %v915 = vsel %vm659, %v531, %v787
        %v916 = vsel %vm660, %v532, %v788
        %v917 = vsel %vm661, %v533, %v789
        %v918 = vsel %vm662, %v534, %v790
        %v919 = vsel %vm663, %v535, %v791
        %v920 = vsel %vm664, %v536, %v792
        %v921 = vsel %vm665, %v537, %v793
        %v922 = vsel %vm666, %v538, %v794
        %v923 = vsel %vm667, %v539, %v795
        %v924 = vsel %vm668, %v540, %v796
        %v925 = vsel %vm669, %v541, %v797
        %v926 = vsel %vm670, %v542, %v798
        %v927 = vsel %vm671, %v543, %v799
        %v928 = vsel %vm672, %v544, %v800
        %v929 = vsel %vm673, %v545, %v801
        %v930 = vsel %vm674, %v546, %v802
        %v931 = vsel %vm675, %v547, %v803
        %v932 = vsel %vm676, %v548, %v804
        %v933 = vsel %vm677, %v549, %v805
        %v934 = vsel %vm678, %v550, %v806
        %v935 = vsel %vm679, %v551, %v807
        %v936 = vsel %vm680, %v552, %v808
        %v937 = vsel %vm681, %v553, %v809
        %v938 = vsel %vm682, %v554, %v810
        %v939 = vsel %vm683, %v555, %v811
        %v940 = vsel %vm684, %v556, %v812
        %v941 = vsel %vm685, %v557, %v813
        %v942 = vsel %vm686, %v558, %v814
        %v943 = vsel %vm687, %v559, %v815
        %v944 = vsel %vm688, %v560, %v816
        %v945 = vsel %vm689, %v561, %v817
        %v946 = vsel %vm690, %v562, %v818
        %v947 = vsel %vm691, %v563, %v819
        %v948 = vsel %vm692, %v564, %v820
        %v949 = vsel %vm693, %v565, %v821
        %v950 = vsel %vm694, %v566, %v822
        %v951 = vsel %vm695, %v567, %v823
        %v952 = vsel %vm696, %v568, %v824
        %v953 = vsel %vm697, %v569, %v825
        %v954 = vsel %vm698, %v570, %v826
        %v955 = vsel %vm699, %v571, %v827
        %v956 = vsel %vm700, %v572, %v828
        %v957 = vsel %vm701, %v573, %v829
        %v958 = vsel %vm702, %v574, %v830
        %v959 = vsel %vm703, %v575, %v831
        %v960 = vsel %vm704, %v576, %v832
        %v961 = vsel %vm705, %v577, %v833
        %v962 = vsel %vm706, %v578, %v834
        %v963 = vsel %vm707, %v579, %v835
        %v964 = vsel %vm708, %v580, %v836
        %v965 = vsel %vm709, %v581, %v837
        %v966 = vsel %vm710, %v582, %v838
        %v967 = vsel %vm711, %v583, %v839
        %v968 = vsel %vm712, %v584, %v840
        %v969 = vsel %vm713, %v585, %v841
        %v970 = vsel %vm714, %v586, %v842
        %v971 = vsel %vm715, %v587, %v843
        %v972 = vsel %vm716, %v588, %v844
        %v973 = vsel %vm717, %v589, %v845
        %v974 = vpack.c.bf16 %v847, %v846
        %v975 = vpack.c.bf16 %v849, %v848
        %v976 = vpack.c.bf16 %v851, %v850
        %v977 = vpack.c.bf16 %v853, %v852
        %v978 = vpack.c.bf16 %v855, %v854
        %v979 = vpack.c.bf16 %v857, %v856
        %v980 = vpack.c.bf16 %v859, %v858
        %v981 = vpack.c.bf16 %v861, %v860
        %v982 = vpack.c.bf16 %v863, %v862
        %v983 = vpack.c.bf16 %v865, %v864
        %v984 = vpack.c.bf16 %v867, %v866
        %v985 = vpack.c.bf16 %v869, %v868
        %v986 = vpack.c.bf16 %v871, %v870
        %v987 = vpack.c.bf16 %v873, %v872
        %v988 = vpack.c.bf16 %v875, %v874
        %v989 = vpack.c.bf16 %v877, %v876
        %v990 = vpack.c.bf16 %v879, %v878
        %v991 = vpack.c.bf16 %v881, %v880
        %v992 = vpack.c.bf16 %v883, %v882
        %v993 = vpack.c.bf16 %v885, %v884
        %v994 = vpack.c.bf16 %v887, %v886
        %v995 = vpack.c.bf16 %v889, %v888
        %v996 = vpack.c.bf16 %v891, %v890
        %v997 = vpack.c.bf16 %v893, %v892
        %v998 = vpack.c.bf16 %v895, %v894
        %v999 = vpack.c.bf16 %v897, %v896
        %v1000 = vpack.c.bf16 %v899, %v898
        %v1001 = vpack.c.bf16 %v901, %v900
        %v1002 = vpack.c.bf16 %v903, %v902
        %v1003 = vpack.c.bf16 %v905, %v904
        %v1004 = vpack.c.bf16 %v907, %v906
        %v1005 = vpack.c.bf16 %v909, %v908
        %v1006 = vpack.c.bf16 %v911, %v910
        %v1007 = vpack.c.bf16 %v913, %v912
        %v1008 = vpack.c.bf16 %v915, %v914
        %v1009 = vpack.c.bf16 %v917, %v916
        %v1010 = vpack.c.bf16 %v919, %v918
        %v1011 = vpack.c.bf16 %v921, %v920
        %v1012 = vpack.c.bf16 %v923, %v922
        %v1013 = vpack.c.bf16 %v925, %v924
        %v1014 = vpack.c.bf16 %v927, %v926
        %v1015 = vpack.c.bf16 %v929, %v928
        %v1016 = vpack.c.bf16 %v931, %v930
        %v1017 = vpack.c.bf16 %v933, %v932
        %v1018 = vpack.c.bf16 %v935, %v934
        %v1019 = vpack.c.bf16 %v937, %v936
        %v1020 = vpack.c.bf16 %v939, %v938
        %v1021 = vpack.c.bf16 %v941, %v940
        %v1022 = vpack.c.bf16 %v943, %v942
        %v1023 = vpack.c.bf16 %v945, %v944
        %v1024 = vpack.c.bf16 %v947, %v946
        %v1025 = vpack.c.bf16 %v949, %v948
        %v1026 = vpack.c.bf16 %v951, %v950
        %v1027 = vpack.c.bf16 %v953, %v952
        %v1028 = vpack.c.bf16 %v955, %v954
        %v1029 = vpack.c.bf16 %v957, %v956
        %v1030 = vpack.c.bf16 %v959, %v958
        %v1031 = vpack.c.bf16 %v961, %v960
        %v1032 = vpack.c.bf16 %v963, %v962
        %v1033 = vpack.c.bf16 %v965, %v964
        %v1034 = vpack.c.bf16 %v967, %v966
        %v1035 = vpack.c.bf16 %v969, %v968
        %v1036 = vpack.c.bf16 %v971, %v970
        %v1037 = vpack.c.bf16 %v973, %v972
        %v1102 = vunpack.c.l.b16 %v974
        %v1103 = vunpack.c.h.b16 %v974
        %v1104 = vunpack.c.l.b16 %v975
        %v1105 = vunpack.c.h.b16 %v975
        %v1106 = vunpack.c.l.b16 %v976
        %v1107 = vunpack.c.h.b16 %v976
        %v1108 = vunpack.c.l.b16 %v977
        %v1109 = vunpack.c.h.b16 %v977
        %v1110 = vunpack.c.l.b16 %v978
        %v1111 = vunpack.c.h.b16 %v978
        %v1112 = vunpack.c.l.b16 %v979
        %v1113 = vunpack.c.h.b16 %v979
        %v1114 = vunpack.c.l.b16 %v980
        %v1115 = vunpack.c.h.b16 %v980
        %v1116 = vunpack.c.l.b16 %v981
        %v1117 = vunpack.c.h.b16 %v981
        %v1118 = vunpack.c.l.b16 %v982
        %v1119 = vunpack.c.h.b16 %v982
        %v1120 = vunpack.c.l.b16 %v983
        %v1121 = vunpack.c.h.b16 %v983
        %v1122 = vunpack.c.l.b16 %v984
        %v1123 = vunpack.c.h.b16 %v984
        %v1124 = vunpack.c.l.b16 %v985
        %v1125 = vunpack.c.h.b16 %v985
        %v1126 = vunpack.c.l.b16 %v986
        %v1127 = vunpack.c.h.b16 %v986
        %v1128 = vunpack.c.l.b16 %v987
        %v1129 = vunpack.c.h.b16 %v987
        %v1130 = vunpack.c.l.b16 %v988
        %v1131 = vunpack.c.h.b16 %v988
        %v1132 = vunpack.c.l.b16 %v989
        %v1133 = vunpack.c.h.b16 %v989
        %v1134 = vunpack.c.l.b16 %v990
        %v1135 = vunpack.c.h.b16 %v990
        %v1136 = vunpack.c.l.b16 %v991
        %v1137 = vunpack.c.h.b16 %v991
        %v1138 = vunpack.c.l.b16 %v992
        %v1139 = vunpack.c.h.b16 %v992
        %v1140 = vunpack.c.l.b16 %v993
        %v1141 = vunpack.c.h.b16 %v993
        %v1142 = vunpack.c.l.b16 %v994
        %v1143 = vunpack.c.h.b16 %v994
        %v1144 = vunpack.c.l.b16 %v995
        %v1145 = vunpack.c.h.b16 %v995
        %v1146 = vunpack.c.l.b16 %v996
        %v1147 = vunpack.c.h.b16 %v996
        %v1148 = vunpack.c.l.b16 %v997
        %v1149 = vunpack.c.h.b16 %v997
        %v1150 = vunpack.c.l.b16 %v998
        %v1151 = vunpack.c.h.b16 %v998
        %v1152 = vunpack.c.l.b16 %v999
        %v1153 = vunpack.c.h.b16 %v999
        %v1154 = vunpack.c.l.b16 %v1000
        %v1155 = vunpack.c.h.b16 %v1000
        %v1156 = vunpack.c.l.b16 %v1001
        %v1157 = vunpack.c.h.b16 %v1001
        %v1158 = vunpack.c.l.b16 %v1002
        %v1159 = vunpack.c.h.b16 %v1002
        %v1160 = vunpack.c.l.b16 %v1003
        %v1161 = vunpack.c.h.b16 %v1003
        %v1162 = vunpack.c.l.b16 %v1004
        %v1163 = vunpack.c.h.b16 %v1004
        %v1164 = vunpack.c.l.b16 %v1005
        %v1165 = vunpack.c.h.b16 %v1005
        %v1166 = vunpack.c.l.b16 %v1006
        %v1167 = vunpack.c.h.b16 %v1006
        %v1168 = vunpack.c.l.b16 %v1007
        %v1169 = vunpack.c.h.b16 %v1007
        %v1170 = vunpack.c.l.b16 %v1008
        %v1171 = vunpack.c.h.b16 %v1008
        %v1172 = vunpack.c.l.b16 %v1009
        %v1173 = vunpack.c.h.b16 %v1009
        %v1174 = vunpack.c.l.b16 %v1010
        %v1175 = vunpack.c.h.b16 %v1010
        %v1176 = vunpack.c.l.b16 %v1011
        %v1177 = vunpack.c.h.b16 %v1011
        %v1178 = vunpack.c.l.b16 %v1012
        %v1179 = vunpack.c.h.b16 %v1012
        %v1180 = vunpack.c.l.b16 %v1013
        %v1181 = vunpack.c.h.b16 %v1013
        %v1182 = vunpack.c.l.b16 %v1014
        %v1183 = vunpack.c.h.b16 %v1014
        %v1184 = vunpack.c.l.b16 %v1015
        %v1185 = vunpack.c.h.b16 %v1015
        %v1186 = vunpack.c.l.b16 %v1016
        %v1187 = vunpack.c.h.b16 %v1016
        %v1188 = vunpack.c.l.b16 %v1017
        %v1189 = vunpack.c.h.b16 %v1017
        %v1190 = vunpack.c.l.b16 %v1018
        %v1191 = vunpack.c.h.b16 %v1018
        %v1192 = vunpack.c.l.b16 %v1019
        %v1193 = vunpack.c.h.b16 %v1019
        %v1194 = vunpack.c.l.b16 %v1020
        %v1195 = vunpack.c.h.b16 %v1020
        %v1196 = vunpack.c.l.b16 %v1021
        %v1197 = vunpack.c.h.b16 %v1021
        %v1198 = vunpack.c.l.b16 %v1022
        %v1199 = vunpack.c.h.b16 %v1022
        %v1200 = vunpack.c.l.b16 %v1023
        %v1201 = vunpack.c.h.b16 %v1023
        %v1202 = vunpack.c.l.b16 %v1024
        %v1203 = vunpack.c.h.b16 %v1024
        %v1204 = vunpack.c.l.b16 %v1025
        %v1205 = vunpack.c.h.b16 %v1025
        %v1206 = vunpack.c.l.b16 %v1026
        %v1207 = vunpack.c.h.b16 %v1026
        %v1208 = vunpack.c.l.b16 %v1027
        %v1209 = vunpack.c.h.b16 %v1027
        %v1210 = vunpack.c.l.b16 %v1028
        %v1211 = vunpack.c.h.b16 %v1028
        %v1212 = vunpack.c.l.b16 %v1029
        %v1213 = vunpack.c.h.b16 %v1029
        %v1214 = vunpack.c.l.b16 %v1030
        %v1215 = vunpack.c.h.b16 %v1030
        %v1216 = vunpack.c.l.b16 %v1031
        %v1217 = vunpack.c.h.b16 %v1031
        %v1218 = vunpack.c.l.b16 %v1032
        %v1219 = vunpack.c.h.b16 %v1032
        %v1220 = vunpack.c.l.b16 %v1033
        %v1221 = vunpack.c.h.b16 %v1033
        %v1222 = vunpack.c.l.b16 %v1034
        %v1223 = vunpack.c.h.b16 %v1034
        %v1224 = vunpack.c.l.b16 %v1035
        %v1225 = vunpack.c.h.b16 %v1035
        %v1226 = vunpack.c.l.b16 %v1036
        %v1227 = vunpack.c.h.b16 %v1036
        %v1228 = vunpack.c.l.b16 %v1037
        %v1229 = vunpack.c.h.b16 %v1037
        %v1230 = vpack.c.b16 %v1102, %v1102
        %v1231 = vpack.c.b16 %v1103, %v1103
        %v1232 = vpack.c.b16 %v1104, %v1104
        %v1233 = vpack.c.b16 %v1105, %v1105
        %v1234 = vpack.c.b16 %v1106, %v1106
        %v1235 = vpack.c.b16 %v1107, %v1107
        %v1236 = vpack.c.b16 %v1108, %v1108
        %v1237 = vpack.c.b16 %v1109, %v1109
        %v1238 = vpack.c.b16 %v1110, %v1110
        %v1239 = vpack.c.b16 %v1111, %v1111
        %v1240 = vpack.c.b16 %v1112, %v1112
        %v1241 = vpack.c.b16 %v1113, %v1113
        %v1242 = vpack.c.b16 %v1114, %v1114
        %v1243 = vpack.c.b16 %v1115, %v1115
        %v1244 = vpack.c.b16 %v1116, %v1116
        %v1245 = vpack.c.b16 %v1117, %v1117
        %v1246 = vpack.c.b16 %v1118, %v1118
        %v1247 = vpack.c.b16 %v1119, %v1119
        %v1248 = vpack.c.b16 %v1120, %v1120
        %v1249 = vpack.c.b16 %v1121, %v1121
        %v1250 = vpack.c.b16 %v1122, %v1122
        %v1251 = vpack.c.b16 %v1123, %v1123
        %v1252 = vpack.c.b16 %v1124, %v1124
        %v1253 = vpack.c.b16 %v1125, %v1125
        %v1254 = vpack.c.b16 %v1126, %v1126
        %v1255 = vpack.c.b16 %v1127, %v1127
        %v1256 = vpack.c.b16 %v1128, %v1128
        %v1257 = vpack.c.b16 %v1129, %v1129
        %v1258 = vpack.c.b16 %v1130, %v1130
        %v1259 = vpack.c.b16 %v1131, %v1131
        %v1260 = vpack.c.b16 %v1132, %v1132
        %v1261 = vpack.c.b16 %v1133, %v1133
        %v1262 = vpack.c.b16 %v1134, %v1134
        %v1263 = vpack.c.b16 %v1135, %v1135
        %v1264 = vpack.c.b16 %v1136, %v1136
        %v1265 = vpack.c.b16 %v1137, %v1137
        %v1266 = vpack.c.b16 %v1138, %v1138
        %v1267 = vpack.c.b16 %v1139, %v1139
        %v1268 = vpack.c.b16 %v1140, %v1140
        %v1269 = vpack.c.b16 %v1141, %v1141
        %v1270 = vpack.c.b16 %v1142, %v1142
        %v1271 = vpack.c.b16 %v1143, %v1143
        %v1272 = vpack.c.b16 %v1144, %v1144
        %v1273 = vpack.c.b16 %v1145, %v1145
        %v1274 = vpack.c.b16 %v1146, %v1146
        %v1275 = vpack.c.b16 %v1147, %v1147
        %v1276 = vpack.c.b16 %v1148, %v1148
        %v1277 = vpack.c.b16 %v1149, %v1149
        %v1278 = vpack.c.b16 %v1150, %v1150
        %v1279 = vpack.c.b16 %v1151, %v1151
        %v1280 = vpack.c.b16 %v1152, %v1152
        %v1281 = vpack.c.b16 %v1153, %v1153
        %v1282 = vpack.c.b16 %v1154, %v1154
        %v1283 = vpack.c.b16 %v1155, %v1155
        %v1284 = vpack.c.b16 %v1156, %v1156
        %v1285 = vpack.c.b16 %v1157, %v1157
        %v1286 = vpack.c.b16 %v1158, %v1158
        %v1287 = vpack.c.b16 %v1159, %v1159
        %v1288 = vpack.c.b16 %v1160, %v1160
        %v1289 = vpack.c.b16 %v1161, %v1161
        %v1290 = vpack.c.b16 %v1162, %v1162
        %v1291 = vpack.c.b16 %v1163, %v1163
        %v1292 = vpack.c.b16 %v1164, %v1164
        %v1293 = vpack.c.b16 %v1165, %v1165
        %v1294 = vpack.c.b16 %v1166, %v1166
        %v1295 = vpack.c.b16 %v1167, %v1167
        %v1296 = vpack.c.b16 %v1168, %v1168
        %v1297 = vpack.c.b16 %v1169, %v1169
        %v1298 = vpack.c.b16 %v1170, %v1170
        %v1299 = vpack.c.b16 %v1171, %v1171
        %v1300 = vpack.c.b16 %v1172, %v1172
        %v1301 = vpack.c.b16 %v1173, %v1173
        %v1302 = vpack.c.b16 %v1174, %v1174
        %v1303 = vpack.c.b16 %v1175, %v1175
        %v1304 = vpack.c.b16 %v1176, %v1176
        %v1305 = vpack.c.b16 %v1177, %v1177
        %v1306 = vpack.c.b16 %v1178, %v1178
        %v1307 = vpack.c.b16 %v1179, %v1179
        %v1308 = vpack.c.b16 %v1180, %v1180
        %v1309 = vpack.c.b16 %v1181, %v1181
        %v1310 = vpack.c.b16 %v1182, %v1182
        %v1311 = vpack.c.b16 %v1183, %v1183
        %v1312 = vpack.c.b16 %v1184, %v1184
        %v1313 = vpack.c.b16 %v1185, %v1185
        %v1314 = vpack.c.b16 %v1186, %v1186
        %v1315 = vpack.c.b16 %v1187, %v1187
        %v1316 = vpack.c.b16 %v1188, %v1188
        %v1317 = vpack.c.b16 %v1189, %v1189
        %v1318 = vpack.c.b16 %v1190, %v1190
        %v1319 = vpack.c.b16 %v1191, %v1191
        %v1320 = vpack.c.b16 %v1192, %v1192
        %v1321 = vpack.c.b16 %v1193, %v1193
        %v1322 = vpack.c.b16 %v1194, %v1194
        %v1323 = vpack.c.b16 %v1195, %v1195
        %v1324 = vpack.c.b16 %v1196, %v1196
        %v1325 = vpack.c.b16 %v1197, %v1197
        %v1326 = vpack.c.b16 %v1198, %v1198
        %v1327 = vpack.c.b16 %v1199, %v1199
        %v1328 = vpack.c.b16 %v1200, %v1200
        %v1329 = vpack.c.b16 %v1201, %v1201
        %v1330 = vpack.c.b16 %v1202, %v1202
        %v1331 = vpack.c.b16 %v1203, %v1203
        %v1332 = vpack.c.b16 %v1204, %v1204
        %v1333 = vpack.c.b16 %v1205, %v1205
        %v1334 = vpack.c.b16 %v1206, %v1206
        %v1335 = vpack.c.b16 %v1207, %v1207
        %v1336 = vpack.c.b16 %v1208, %v1208
        %v1337 = vpack.c.b16 %v1209, %v1209
        %v1338 = vpack.c.b16 %v1210, %v1210
        %v1339 = vpack.c.b16 %v1211, %v1211
        %v1340 = vpack.c.b16 %v1212, %v1212
        %v1341 = vpack.c.b16 %v1213, %v1213
        %v1342 = vpack.c.b16 %v1214, %v1214
        %v1343 = vpack.c.b16 %v1215, %v1215
        %v1344 = vpack.c.b16 %v1216, %v1216
        %v1345 = vpack.c.b16 %v1217, %v1217
        %v1346 = vpack.c.b16 %v1218, %v1218
        %v1347 = vpack.c.b16 %v1219, %v1219
        %v1348 = vpack.c.b16 %v1220, %v1220
        %v1349 = vpack.c.b16 %v1221, %v1221
        %v1350 = vpack.c.b16 %v1222, %v1222
        %v1351 = vpack.c.b16 %v1223, %v1223
        %v1352 = vpack.c.b16 %v1224, %v1224
        %v1353 = vpack.c.b16 %v1225, %v1225
        %v1354 = vpack.c.b16 %v1226, %v1226
        %v1355 = vpack.c.b16 %v1227, %v1227
        %v1356 = vpack.c.b16 %v1228, %v1228
        %v1357 = vpack.c.b16 %v1229, %v1229
        %vm1486 = vcmask 125952
        %1487 = vst.msk [vmem:[%s172] sm:$0xf] %vm1486, %v1230
        %1488 = vst.msk [vmem:[%s172 + $0x4] sm:$0xf] %vm1486, %v1231
        %1489 = vst.msk [vmem:[%s172 + $0x8] sm:$0xf] %vm1486, %v1232
        %1490 = vst.msk [vmem:[%s172 + $0xc] sm:$0xf] %vm1486, %v1233
        %1491 = vst.msk [vmem:[%s172 + $0x10] sm:$0xf] %vm1486, %v1234
        %1492 = vst.msk [vmem:[%s172 + $0x14] sm:$0xf] %vm1486, %v1235
        %1493 = vst.msk [vmem:[%s172 + $0x18] sm:$0xf] %vm1486, %v1236
        %1494 = vst.msk [vmem:[%s172 + $0x1c] sm:$0xf] %vm1486, %v1237
        %1495 = vst.msk [vmem:[%s172 + $0x20] sm:$0xf] %vm1486, %v1238
        %1496 = vst.msk [vmem:[%s172 + $0x24] sm:$0xf] %vm1486, %v1239
        %1497 = vst.msk [vmem:[%s172 + $0x28] sm:$0xf] %vm1486, %v1240
        %1498 = vst.msk [vmem:[%s172 + $0x2c] sm:$0xf] %vm1486, %v1241
        %1499 = vst.msk [vmem:[%s172 + $0x30] sm:$0xf] %vm1486, %v1242
        %1500 = vst.msk [vmem:[%s172 + $0x34] sm:$0xf] %vm1486, %v1243
        %1501 = vst.msk [vmem:[%s172 + $0x38] sm:$0xf] %vm1486, %v1244
        %1502 = vst.msk [vmem:[%s172 + $0x3c] sm:$0xf] %vm1486, %v1245
        %1503 = vst.msk [vmem:[%s172 + $0x40] sm:$0xf] %vm1486, %v1246
        %1504 = vst.msk [vmem:[%s172 + $0x44] sm:$0xf] %vm1486, %v1247
        %1505 = vst.msk [vmem:[%s172 + $0x48] sm:$0xf] %vm1486, %v1248
        %1506 = vst.msk [vmem:[%s172 + $0x4c] sm:$0xf] %vm1486, %v1249
        %1507 = vst.msk [vmem:[%s172 + $0x50] sm:$0xf] %vm1486, %v1250
        %1508 = vst.msk [vmem:[%s172 + $0x54] sm:$0xf] %vm1486, %v1251
        %1509 = vst.msk [vmem:[%s172 + $0x58] sm:$0xf] %vm1486, %v1252
        %1510 = vst.msk [vmem:[%s172 + $0x5c] sm:$0xf] %vm1486, %v1253
        %1511 = vst.msk [vmem:[%s172 + $0x60] sm:$0xf] %vm1486, %v1254
        %1512 = vst.msk [vmem:[%s172 + $0x64] sm:$0xf] %vm1486, %v1255
        %1513 = vst.msk [vmem:[%s172 + $0x68] sm:$0xf] %vm1486, %v1256
        %1514 = vst.msk [vmem:[%s172 + $0x6c] sm:$0xf] %vm1486, %v1257
        %1515 = vst.msk [vmem:[%s172 + $0x70] sm:$0xf] %vm1486, %v1258
        %1516 = vst.msk [vmem:[%s172 + $0x74] sm:$0xf] %vm1486, %v1259
        %1517 = vst.msk [vmem:[%s172 + $0x78] sm:$0xf] %vm1486, %v1260
        %1518 = vst.msk [vmem:[%s172 + $0x7c] sm:$0xf] %vm1486, %v1261
        %1519 = vst.msk [vmem:[%s172 + $0x80] sm:$0xf] %vm1486, %v1262
        %1520 = vst.msk [vmem:[%s172 + $0x84] sm:$0xf] %vm1486, %v1263
        %1521 = vst.msk [vmem:[%s172 + $0x88] sm:$0xf] %vm1486, %v1264
        %1522 = vst.msk [vmem:[%s172 + $0x8c] sm:$0xf] %vm1486, %v1265
        %1523 = vst.msk [vmem:[%s172 + $0x90] sm:$0xf] %vm1486, %v1266
        %1524 = vst.msk [vmem:[%s172 + $0x94] sm:$0xf] %vm1486, %v1267
        %1525 = vst.msk [vmem:[%s172 + $0x98] sm:$0xf] %vm1486, %v1268
        %1526 = vst.msk [vmem:[%s172 + $0x9c] sm:$0xf] %vm1486, %v1269
        %1527 = vst.msk [vmem:[%s172 + $0xa0] sm:$0xf] %vm1486, %v1270
        %1528 = vst.msk [vmem:[%s172 + $0xa4] sm:$0xf] %vm1486, %v1271
        %1529 = vst.msk [vmem:[%s172 + $0xa8] sm:$0xf] %vm1486, %v1272
        %1530 = vst.msk [vmem:[%s172 + $0xac] sm:$0xf] %vm1486, %v1273
        %1531 = vst.msk [vmem:[%s172 + $0xb0] sm:$0xf] %vm1486, %v1274
        %1532 = vst.msk [vmem:[%s172 + $0xb4] sm:$0xf] %vm1486, %v1275
        %1533 = vst.msk [vmem:[%s172 + $0xb8] sm:$0xf] %vm1486, %v1276
        %1534 = vst.msk [vmem:[%s172 + $0xbc] sm:$0xf] %vm1486, %v1277
        %1535 = vst.msk [vmem:[%s172 + $0xc0] sm:$0xf] %vm1486, %v1278
        %1536 = vst.msk [vmem:[%s172 + $0xc4] sm:$0xf] %vm1486, %v1279
        %1537 = vst.msk [vmem:[%s172 + $0xc8] sm:$0xf] %vm1486, %v1280
        %1538 = vst.msk [vmem:[%s172 + $0xcc] sm:$0xf] %vm1486, %v1281
        %1539 = vst.msk [vmem:[%s172 + $0xd0] sm:$0xf] %vm1486, %v1282
        %1540 = vst.msk [vmem:[%s172 + $0xd4] sm:$0xf] %vm1486, %v1283
        %1541 = vst.msk [vmem:[%s172 + $0xd8] sm:$0xf] %vm1486, %v1284
        %1542 = vst.msk [vmem:[%s172 + $0xdc] sm:$0xf] %vm1486, %v1285
        %1543 = vst.msk [vmem:[%s172 + $0xe0] sm:$0xf] %vm1486, %v1286
        %1544 = vst.msk [vmem:[%s172 + $0xe4] sm:$0xf] %vm1486, %v1287
        %1545 = vst.msk [vmem:[%s172 + $0xe8] sm:$0xf] %vm1486, %v1288
        %1546 = vst.msk [vmem:[%s172 + $0xec] sm:$0xf] %vm1486, %v1289
        %1547 = vst.msk [vmem:[%s172 + $0xf0] sm:$0xf] %vm1486, %v1290
        %1548 = vst.msk [vmem:[%s172 + $0xf4] sm:$0xf] %vm1486, %v1291
        %1549 = vst.msk [vmem:[%s172 + $0xf8] sm:$0xf] %vm1486, %v1292
        %1550 = vst.msk [vmem:[%s172 + $0xfc] sm:$0xf] %vm1486, %v1293
        %1551 = vst.msk [vmem:[%s172 + $0x100] sm:$0xf] %vm1486, %v1294
        %1552 = vst.msk [vmem:[%s172 + $0x104] sm:$0xf] %vm1486, %v1295
        %1553 = vst.msk [vmem:[%s172 + $0x108] sm:$0xf] %vm1486, %v1296
        %1554 = vst.msk [vmem:[%s172 + $0x10c] sm:$0xf] %vm1486, %v1297
        %1555 = vst.msk [vmem:[%s172 + $0x110] sm:$0xf] %vm1486, %v1298
        %1556 = vst.msk [vmem:[%s172 + $0x114] sm:$0xf] %vm1486, %v1299
        %1557 = vst.msk [vmem:[%s172 + $0x118] sm:$0xf] %vm1486, %v1300
        %1558 = vst.msk [vmem:[%s172 + $0x11c] sm:$0xf] %vm1486, %v1301
        %1559 = vst.msk [vmem:[%s172 + $0x120] sm:$0xf] %vm1486, %v1302
        %1560 = vst.msk [vmem:[%s172 + $0x124] sm:$0xf] %vm1486, %v1303
        %1561 = vst.msk [vmem:[%s172 + $0x128] sm:$0xf] %vm1486, %v1304
        %1562 = vst.msk [vmem:[%s172 + $0x12c] sm:$0xf] %vm1486, %v1305
        %1563 = vst.msk [vmem:[%s172 + $0x130] sm:$0xf] %vm1486, %v1306
        %1564 = vst.msk [vmem:[%s172 + $0x134] sm:$0xf] %vm1486, %v1307
        %1565 = vst.msk [vmem:[%s172 + $0x138] sm:$0xf] %vm1486, %v1308
        %1566 = vst.msk [vmem:[%s172 + $0x13c] sm:$0xf] %vm1486, %v1309
        %1567 = vst.msk [vmem:[%s172 + $0x140] sm:$0xf] %vm1486, %v1310
        %1568 = vst.msk [vmem:[%s172 + $0x144] sm:$0xf] %vm1486, %v1311
        %1569 = vst.msk [vmem:[%s172 + $0x148] sm:$0xf] %vm1486, %v1312
        %1570 = vst.msk [vmem:[%s172 + $0x14c] sm:$0xf] %vm1486, %v1313
        %1571 = vst.msk [vmem:[%s172 + $0x150] sm:$0xf] %vm1486, %v1314
        %1572 = vst.msk [vmem:[%s172 + $0x154] sm:$0xf] %vm1486, %v1315
        %1573 = vst.msk [vmem:[%s172 + $0x158] sm:$0xf] %vm1486, %v1316
        %1574 = vst.msk [vmem:[%s172 + $0x15c] sm:$0xf] %vm1486, %v1317
        %1575 = vst.msk [vmem:[%s172 + $0x160] sm:$0xf] %vm1486, %v1318
        %1576 = vst.msk [vmem:[%s172 + $0x164] sm:$0xf] %vm1486, %v1319
        %1577 = vst.msk [vmem:[%s172 + $0x168] sm:$0xf] %vm1486, %v1320
        %1578 = vst.msk [vmem:[%s172 + $0x16c] sm:$0xf] %vm1486, %v1321
        %1579 = vst.msk [vmem:[%s172 + $0x170] sm:$0xf] %vm1486, %v1322
        %1580 = vst.msk [vmem:[%s172 + $0x174] sm:$0xf] %vm1486, %v1323
        %1581 = vst.msk [vmem:[%s172 + $0x178] sm:$0xf] %vm1486, %v1324
        %1582 = vst.msk [vmem:[%s172 + $0x17c] sm:$0xf] %vm1486, %v1325
        %1583 = vst.msk [vmem:[%s172 + $0x180] sm:$0xf] %vm1486, %v1326
        %1584 = vst.msk [vmem:[%s172 + $0x184] sm:$0xf] %vm1486, %v1327
        %1585 = vst.msk [vmem:[%s172 + $0x188] sm:$0xf] %vm1486, %v1328
        %1586 = vst.msk [vmem:[%s172 + $0x18c] sm:$0xf] %vm1486, %v1329
        %1587 = vst.msk [vmem:[%s172 + $0x190] sm:$0xf] %vm1486, %v1330
        %1588 = vst.msk [vmem:[%s172 + $0x194] sm:$0xf] %vm1486, %v1331
        %1589 = vst.msk [vmem:[%s172 + $0x198] sm:$0xf] %vm1486, %v1332
        %1590 = vst.msk [vmem:[%s172 + $0x19c] sm:$0xf] %vm1486, %v1333
        %1591 = vst.msk [vmem:[%s172 + $0x1a0] sm:$0xf] %vm1486, %v1334
        %1592 = vst.msk [vmem:[%s172 + $0x1a4] sm:$0xf] %vm1486, %v1335
        %1593 = vst.msk [vmem:[%s172 + $0x1a8] sm:$0xf] %vm1486, %v1336
        %1594 = vst.msk [vmem:[%s172 + $0x1ac] sm:$0xf] %vm1486, %v1337
        %1595 = vst.msk [vmem:[%s172 + $0x1b0] sm:$0xf] %vm1486, %v1338
        %1596 = vst.msk [vmem:[%s172 + $0x1b4] sm:$0xf] %vm1486, %v1339
        %1597 = vst.msk [vmem:[%s172 + $0x1b8] sm:$0xf] %vm1486, %v1340
        %1598 = vst.msk [vmem:[%s172 + $0x1bc] sm:$0xf] %vm1486, %v1341
        %1599 = vst.msk [vmem:[%s172 + $0x1c0] sm:$0xf] %vm1486, %v1342
        %1600 = vst.msk [vmem:[%s172 + $0x1c4] sm:$0xf] %vm1486, %v1343
        %1601 = vst.msk [vmem:[%s172 + $0x1c8] sm:$0xf] %vm1486, %v1344
        %1602 = vst.msk [vmem:[%s172 + $0x1cc] sm:$0xf] %vm1486, %v1345
        %1603 = vst.msk [vmem:[%s172 + $0x1d0] sm:$0xf] %vm1486, %v1346
        %1604 = vst.msk [vmem:[%s172 + $0x1d4] sm:$0xf] %vm1486, %v1347
        %1605 = vst.msk [vmem:[%s172 + $0x1d8] sm:$0xf] %vm1486, %v1348
        %1606 = vst.msk [vmem:[%s172 + $0x1dc] sm:$0xf] %vm1486, %v1349
        %1607 = vst.msk [vmem:[%s172 + $0x1e0] sm:$0xf] %vm1486, %v1350
        %1608 = vst.msk [vmem:[%s172 + $0x1e4] sm:$0xf] %vm1486, %v1351
        %1609 = vst.msk [vmem:[%s172 + $0x1e8] sm:$0xf] %vm1486, %v1352
        %1610 = vst.msk [vmem:[%s172 + $0x1ec] sm:$0xf] %vm1486, %v1353
        %1611 = vst.msk [vmem:[%s172 + $0x1f0] sm:$0xf] %vm1486, %v1354
        %1612 = vst.msk [vmem:[%s172 + $0x1f4] sm:$0xf] %vm1486, %v1355
        %1613 = vst.msk [vmem:[%s172 + $0x1f8] sm:$0xf] %vm1486, %v1356
        %1614 = vst.msk [vmem:[%s172 + $0x1fc] sm:$0xf] %vm1486, %v1357
        %s1615 = sand.u32 %s90, 1
        %s1616 = sand.u32 %s90, 1
        %s1617 = smul.addr %s1616, 512
        %s1618 = scalar_lea.vmem [#allocation2], %s1617
        // Predicated region
        $region33: #{discriminator_forward.10} parent=31 // pred_check
          %p1619 = pneg %p100
        $region34: #{discriminator_forward.10} parent=31 // pred_check_branch
          %1621 = sbr.rel (%p1619) target = $region36
        $region35: #{discriminator_forward.10} parent=31 // pred_region
          %s1622 = smul.u32 128, %s14
          %s1623 = ssub.s32 144, %s1622
          %p1624 = scmp.lt.s32.totalorder %s1623, 128
          %s1625 = scalar_select %p1624, %s1623, 128
          %s1626 = smul.u32 64, %s1625
          %p1627 = scmp.ne.s32.totalorder 0, %s1626
          %s1628 = smul.addr %s1622, 4
          %s1629 = scalar_lea.vmem %s3, %s1628
          // Predicated region
          $region37: #{discriminator_forward.10} parent=35 // pred_check
            %p1630 = pneg %p1627
          $region38: #{discriminator_forward.10} parent=35 // pred_check_branch
            %1632 = sbr.rel (%p1630) target = $region40
          $region39: #{discriminator_forward.10} parent=35 // pred_region
            // Predicated region
            $region41: #{discriminator_forward.10} parent=39 // pred_check
              _
            $region42: #{discriminator_forward.10} parent=39 // pred_check_branch
              %1634 = sbr.rel target = $region44
            $region43: #{discriminator_forward.10} parent=39 // pred_region
              // Predicated region
              $region63: #{discriminator_forward.10} parent=43 // pred_check
                _
              $region64: #{discriminator_forward.10} parent=43 // pred_check_branch
                %1809 = sbr.rel (0) target = $region66
              $region65: #{discriminator_forward.10} parent=43 // pred_region
                %s1811 = sshrl.u32 %s1625, 6
                // While loop
                $region67: #{discriminator_forward.10} parent=65 // loop_pre_header
                  _
                $region68: #{discriminator_forward.10} parent=65 // loop_header
                  %s1813 = sphi 0, %s1815
                  %p1814 = scmp.ge.s32.totalorder %s1813, %s1811
                  %s1818 = sphi 0, %s1951
                  %s1819 = sphi %s1618, %s1954
                  %s1820 = sphi %s1629, %s1955
                $region69: #{discriminator_forward.10} parent=65 // loop_header_branch
                  %1817 = sbr.rel (%p1814) target = $region73
                $region70: #{discriminator_forward.10} parent=65 // loop_body
                  %v1821 = vld [vmem:[%s1819] sm:$0xf]
                  %1822 = vst [vmem:[%s1820] sm:$0xf] %v1821
                  %v1823 = vld [vmem:[%s1819 + $0x4] sm:$0xf]
                  %1824 = vst [vmem:[%s1820 + $0x4] sm:$0xf] %v1823
                  %v1825 = vld [vmem:[%s1819 + $0x8] sm:$0xf]
                  %1826 = vst [vmem:[%s1820 + $0x8] sm:$0xf] %v1825
                  %v1827 = vld [vmem:[%s1819 + $0xc] sm:$0xf]
                  %1828 = vst [vmem:[%s1820 + $0xc] sm:$0xf] %v1827
                  %v1829 = vld [vmem:[%s1819 + $0x10] sm:$0xf]
                  %1830 = vst [vmem:[%s1820 + $0x10] sm:$0xf] %v1829
                  %v1831 = vld [vmem:[%s1819 + $0x14] sm:$0xf]
                  %1832 = vst [vmem:[%s1820 + $0x14] sm:$0xf] %v1831
                  %v1833 = vld [vmem:[%s1819 + $0x18] sm:$0xf]
                  %1834 = vst [vmem:[%s1820 + $0x18] sm:$0xf] %v1833
                  %v1835 = vld [vmem:[%s1819 + $0x1c] sm:$0xf]
                  %1836 = vst [vmem:[%s1820 + $0x1c] sm:$0xf] %v1835
                  %v1837 = vld [vmem:[%s1819 + $0x20] sm:$0xf]
                  %1838 = vst [vmem:[%s1820 + $0x20] sm:$0xf] %v1837
                  %v1839 = vld [vmem:[%s1819 + $0x24] sm:$0xf]
                  %1840 = vst [vmem:[%s1820 + $0x24] sm:$0xf] %v1839
                  %v1841 = vld [vmem:[%s1819 + $0x28] sm:$0xf]
                  %1842 = vst [vmem:[%s1820 + $0x28] sm:$0xf] %v1841
                  %v1843 = vld [vmem:[%s1819 + $0x2c] sm:$0xf]
                  %1844 = vst [vmem:[%s1820 + $0x2c] sm:$0xf] %v1843
                  %v1845 = vld [vmem:[%s1819 + $0x30] sm:$0xf]
                  %1846 = vst [vmem:[%s1820 + $0x30] sm:$0xf] %v1845
                  %v1847 = vld [vmem:[%s1819 + $0x34] sm:$0xf]
                  %1848 = vst [vmem:[%s1820 + $0x34] sm:$0xf] %v1847
                  %v1849 = vld [vmem:[%s1819 + $0x38] sm:$0xf]
                  %1850 = vst [vmem:[%s1820 + $0x38] sm:$0xf] %v1849
                  %v1851 = vld [vmem:[%s1819 + $0x3c] sm:$0xf]
                  %1852 = vst [vmem:[%s1820 + $0x3c] sm:$0xf] %v1851
                  %v1853 = vld [vmem:[%s1819 + $0x40] sm:$0xf]
                  %1854 = vst [vmem:[%s1820 + $0x40] sm:$0xf] %v1853
                  %v1855 = vld [vmem:[%s1819 + $0x44] sm:$0xf]
                  %1856 = vst [vmem:[%s1820 + $0x44] sm:$0xf] %v1855
                  %v1857 = vld [vmem:[%s1819 + $0x48] sm:$0xf]
                  %1858 = vst [vmem:[%s1820 + $0x48] sm:$0xf] %v1857
                  %v1859 = vld [vmem:[%s1819 + $0x4c] sm:$0xf]
                  %1860 = vst [vmem:[%s1820 + $0x4c] sm:$0xf] %v1859
                  %v1861 = vld [vmem:[%s1819 + $0x50] sm:$0xf]
                  %1862 = vst [vmem:[%s1820 + $0x50] sm:$0xf] %v1861
                  %v1863 = vld [vmem:[%s1819 + $0x54] sm:$0xf]
                  %1864 = vst [vmem:[%s1820 + $0x54] sm:$0xf] %v1863
                  %v1865 = vld [vmem:[%s1819 + $0x58] sm:$0xf]
                  %1866 = vst [vmem:[%s1820 + $0x58] sm:$0xf] %v1865
                  %v1867 = vld [vmem:[%s1819 + $0x5c] sm:$0xf]
                  %1868 = vst [vmem:[%s1820 + $0x5c] sm:$0xf] %v1867
                  %v1869 = vld [vmem:[%s1819 + $0x60] sm:$0xf]
                  %1870 = vst [vmem:[%s1820 + $0x60] sm:$0xf] %v1869
                  %v1871 = vld [vmem:[%s1819 + $0x64] sm:$0xf]
                  %1872 = vst [vmem:[%s1820 + $0x64] sm:$0xf] %v1871
                  %v1873 = vld [vmem:[%s1819 + $0x68] sm:$0xf]
                  %1874 = vst [vmem:[%s1820 + $0x68] sm:$0xf] %v1873
                  %v1875 = vld [vmem:[%s1819 + $0x6c] sm:$0xf]
                  %1876 = vst [vmem:[%s1820 + $0x6c] sm:$0xf] %v1875
                  %v1877 = vld [vmem:[%s1819 + $0x70] sm:$0xf]
                  %1878 = vst [vmem:[%s1820 + $0x70] sm:$0xf] %v1877
                  %v1879 = vld [vmem:[%s1819 + $0x74] sm:$0xf]
                  %1880 = vst [vmem:[%s1820 + $0x74] sm:$0xf] %v1879
                  %v1881 = vld [vmem:[%s1819 + $0x78] sm:$0xf]
                  %1882 = vst [vmem:[%s1820 + $0x78] sm:$0xf] %v1881
                  %v1883 = vld [vmem:[%s1819 + $0x7c] sm:$0xf]
                  %1884 = vst [vmem:[%s1820 + $0x7c] sm:$0xf] %v1883
                  %v1885 = vld [vmem:[%s1819 + $0x80] sm:$0xf]
                  %1886 = vst [vmem:[%s1820 + $0x80] sm:$0xf] %v1885
                  %v1887 = vld [vmem:[%s1819 + $0x84] sm:$0xf]
                  %1888 = vst [vmem:[%s1820 + $0x84] sm:$0xf] %v1887
                  %v1889 = vld [vmem:[%s1819 + $0x88] sm:$0xf]
                  %1890 = vst [vmem:[%s1820 + $0x88] sm:$0xf] %v1889
                  %v1891 = vld [vmem:[%s1819 + $0x8c] sm:$0xf]
                  %1892 = vst [vmem:[%s1820 + $0x8c] sm:$0xf] %v1891
                  %v1893 = vld [vmem:[%s1819 + $0x90] sm:$0xf]
                  %1894 = vst [vmem:[%s1820 + $0x90] sm:$0xf] %v1893
                  %v1895 = vld [vmem:[%s1819 + $0x94] sm:$0xf]
                  %1896 = vst [vmem:[%s1820 + $0x94] sm:$0xf] %v1895
                  %v1897 = vld [vmem:[%s1819 + $0x98] sm:$0xf]
                  %1898 = vst [vmem:[%s1820 + $0x98] sm:$0xf] %v1897
                  %v1899 = vld [vmem:[%s1819 + $0x9c] sm:$0xf]
                  %1900 = vst [vmem:[%s1820 + $0x9c] sm:$0xf] %v1899
                  %v1901 = vld [vmem:[%s1819 + $0xa0] sm:$0xf]
                  %1902 = vst [vmem:[%s1820 + $0xa0] sm:$0xf] %v1901
                  %v1903 = vld [vmem:[%s1819 + $0xa4] sm:$0xf]
                  %1904 = vst [vmem:[%s1820 + $0xa4] sm:$0xf] %v1903
                  %v1905 = vld [vmem:[%s1819 + $0xa8] sm:$0xf]
                  %1906 = vst [vmem:[%s1820 + $0xa8] sm:$0xf] %v1905
                  %v1907 = vld [vmem:[%s1819 + $0xac] sm:$0xf]
                  %1908 = vst [vmem:[%s1820 + $0xac] sm:$0xf] %v1907
                  %v1909 = vld [vmem:[%s1819 + $0xb0] sm:$0xf]
                  %1910 = vst [vmem:[%s1820 + $0xb0] sm:$0xf] %v1909
                  %v1911 = vld [vmem:[%s1819 + $0xb4] sm:$0xf]
                  %1912 = vst [vmem:[%s1820 + $0xb4] sm:$0xf] %v1911
                  %v1913 = vld [vmem:[%s1819 + $0xb8] sm:$0xf]
                  %1914 = vst [vmem:[%s1820 + $0xb8] sm:$0xf] %v1913
                  %v1915 = vld [vmem:[%s1819 + $0xbc] sm:$0xf]
                  %1916 = vst [vmem:[%s1820 + $0xbc] sm:$0xf] %v1915
                  %v1917 = vld [vmem:[%s1819 + $0xc0] sm:$0xf]
                  %1918 = vst [vmem:[%s1820 + $0xc0] sm:$0xf] %v1917
                  %v1919 = vld [vmem:[%s1819 + $0xc4] sm:$0xf]
                  %1920 = vst [vmem:[%s1820 + $0xc4] sm:$0xf] %v1919
                  %v1921 = vld [vmem:[%s1819 + $0xc8] sm:$0xf]
                  %1922 = vst [vmem:[%s1820 + $0xc8] sm:$0xf] %v1921
                  %v1923 = vld [vmem:[%s1819 + $0xcc] sm:$0xf]
                  %1924 = vst [vmem:[%s1820 + $0xcc] sm:$0xf] %v1923
                  %v1925 = vld [vmem:[%s1819 + $0xd0] sm:$0xf]
                  %1926 = vst [vmem:[%s1820 + $0xd0] sm:$0xf] %v1925
                  %v1927 = vld [vmem:[%s1819 + $0xd4] sm:$0xf]
                  %1928 = vst [vmem:[%s1820 + $0xd4] sm:$0xf] %v1927
                  %v1929 = vld [vmem:[%s1819 + $0xd8] sm:$0xf]
                  %1930 = vst [vmem:[%s1820 + $0xd8] sm:$0xf] %v1929
                  %v1931 = vld [vmem:[%s1819 + $0xdc] sm:$0xf]
                  %1932 = vst [vmem:[%s1820 + $0xdc] sm:$0xf] %v1931
                  %v1933 = vld [vmem:[%s1819 + $0xe0] sm:$0xf]
                  %1934 = vst [vmem:[%s1820 + $0xe0] sm:$0xf] %v1933
                  %v1935 = vld [vmem:[%s1819 + $0xe4] sm:$0xf]
                  %1936 = vst [vmem:[%s1820 + $0xe4] sm:$0xf] %v1935
                  %v1937 = vld [vmem:[%s1819 + $0xe8] sm:$0xf]
                  %1938 = vst [vmem:[%s1820 + $0xe8] sm:$0xf] %v1937
                  %v1939 = vld [vmem:[%s1819 + $0xec] sm:$0xf]
                  %1940 = vst [vmem:[%s1820 + $0xec] sm:$0xf] %v1939
                  %v1941 = vld [vmem:[%s1819 + $0xf0] sm:$0xf]
                  %1942 = vst [vmem:[%s1820 + $0xf0] sm:$0xf] %v1941
                  %v1943 = vld [vmem:[%s1819 + $0xf4] sm:$0xf]
                  %1944 = vst [vmem:[%s1820 + $0xf4] sm:$0xf] %v1943
                  %v1945 = vld [vmem:[%s1819 + $0xf8] sm:$0xf]
                  %1946 = vst [vmem:[%s1820 + $0xf8] sm:$0xf] %v1945
                  %v1947 = vld [vmem:[%s1819 + $0xfc] sm:$0xf]
                  %1948 = vst [vmem:[%s1820 + $0xfc] sm:$0xf] %v1947
                  %s1949 = sadd.s32 1, %s1818
                  %p1950 = scmp.ge.s32.totalorder %s1949, %s1811
                  %s1951 = scalar_select %p1950, 0, %s1949
                  %s1952 = smul.u32 %s1951, 256
                  %s1953 = smul.u32 %s1951, 256
                  %s1954 = scalar_lea.vmem %s1618, %s1952 [#allocation2]
                  %s1955 = scalar_lea.vmem %s1629, %s1953
                $region71: #{discriminator_forward.10} parent=65 // loop_footer
                  %s1815 = sadd.s32 %s1813, 1
                $region72: #{discriminator_forward.10} parent=65 // loop_footer_branch
                  %1812 = sbr.rel target = $region68
                $region73: #{discriminator_forward.10} parent=65 // loop_exit
                  _
                %s1956 = sshrl.u32 %s1625, 6
                %s1957 = sand.u32 %s1625, 63
                %s1958 = smul.u32 %s1956, 64
                %s1959 = smul.u32 4, %s1958
                %s1960 = scalar_lea.vmem %s1618, %s1959 [#allocation2]
                %s1961 = smul.u32 4, %s1958
                %s1962 = scalar_lea.vmem %s1629, %s1961
                // While loop
                $region74: #{discriminator_forward.10} parent=65 // loop_pre_header
                  _
                $region75: #{discriminator_forward.10} parent=65 // loop_header
                  %s1964 = sphi 0, %s1966
                  %p1965 = scmp.ge.s32.totalorder %s1964, %s1957
                  %s1969 = sphi 0, %s1976
                  %s1970 = sphi %s1960, %s1979
                  %s1971 = sphi %s1962, %s1980
                $region76: #{discriminator_forward.10} parent=65 // loop_header_branch
                  %1968 = sbr.rel (%p1965) target = $region80
                $region77: #{discriminator_forward.10} parent=65 // loop_body
                  %v1972 = vld [vmem:[%s1970] sm:$0xf]
                  %1973 = vst [vmem:[%s1971] sm:$0xf] %v1972
                  %s1974 = sadd.s32 1, %s1969
                  %p1975 = scmp.ge.s32.totalorder %s1974, %s1957
                  %s1976 = scalar_select %p1975, 0, %s1974
                  %s1977 = smul.u32 %s1976, 4
                  %s1978 = smul.u32 %s1976, 4
                  %s1979 = scalar_lea.vmem %s1960, %s1977 [#allocation2]
                  %s1980 = scalar_lea.vmem %s1962, %s1978
                $region78: #{discriminator_forward.10} parent=65 // loop_footer
                  %s1966 = sadd.s32 %s1964, 1
                $region79: #{discriminator_forward.10} parent=65 // loop_footer_branch
                  %1963 = sbr.rel target = $region75
                $region80: #{discriminator_forward.10} parent=65 // loop_exit
                  _
              $region66: #{discriminator_forward.10} parent=43 // pred_fallthru
                _
            $region44: #{discriminator_forward.10} parent=39 // pred_fallthru
              _
            // Predicated region
            $region45: #{discriminator_forward.10} parent=39 // pred_check
              _
            $region46: #{discriminator_forward.10} parent=39 // pred_check_branch
              %1636 = sbr.rel (0) target = $region48
            $region47: #{discriminator_forward.10} parent=39 // pred_region
              %s1638 = sshrl.u32 %s1625, 6
              // While loop
              $region49: #{discriminator_forward.10} parent=47 // loop_pre_header
                _
              $region50: #{discriminator_forward.10} parent=47 // loop_header
                %s1640 = sphi 0, %s1642
                %p1641 = scmp.ge.s32.totalorder %s1640, %s1638
                %s1645 = sphi 0, %s1778
                %s1646 = sphi %s1618, %s1781
                %s1647 = sphi %s1629, %s1782
              $region51: #{discriminator_forward.10} parent=47 // loop_header_branch
                %1644 = sbr.rel (%p1641) target = $region55
              $region52: #{discriminator_forward.10} parent=47 // loop_body
                %v1648 = vld [vmem:[%s1646] sm:$0xf]
                %1649 = vst [vmem:[%s1647] sm:$0xf] %v1648
                %v1650 = vld [vmem:[%s1646 + $0x4] sm:$0xf]
                %1651 = vst [vmem:[%s1647 + $0x4] sm:$0xf] %v1650
                %v1652 = vld [vmem:[%s1646 + $0x8] sm:$0xf]
                %1653 = vst [vmem:[%s1647 + $0x8] sm:$0xf] %v1652
                %v1654 = vld [vmem:[%s1646 + $0xc] sm:$0xf]
                %1655 = vst [vmem:[%s1647 + $0xc] sm:$0xf] %v1654
                %v1656 = vld [vmem:[%s1646 + $0x10] sm:$0xf]
                %1657 = vst [vmem:[%s1647 + $0x10] sm:$0xf] %v1656
                %v1658 = vld [vmem:[%s1646 + $0x14] sm:$0xf]
                %1659 = vst [vmem:[%s1647 + $0x14] sm:$0xf] %v1658
                %v1660 = vld [vmem:[%s1646 + $0x18] sm:$0xf]
                %1661 = vst [vmem:[%s1647 + $0x18] sm:$0xf] %v1660
                %v1662 = vld [vmem:[%s1646 + $0x1c] sm:$0xf]
                %1663 = vst [vmem:[%s1647 + $0x1c] sm:$0xf] %v1662
                %v1664 = vld [vmem:[%s1646 + $0x20] sm:$0xf]
                %1665 = vst [vmem:[%s1647 + $0x20] sm:$0xf] %v1664
                %v1666 = vld [vmem:[%s1646 + $0x24] sm:$0xf]
                %1667 = vst [vmem:[%s1647 + $0x24] sm:$0xf] %v1666
                %v1668 = vld [vmem:[%s1646 + $0x28] sm:$0xf]
                %1669 = vst [vmem:[%s1647 + $0x28] sm:$0xf] %v1668
                %v1670 = vld [vmem:[%s1646 + $0x2c] sm:$0xf]
                %1671 = vst [vmem:[%s1647 + $0x2c] sm:$0xf] %v1670
                %v1672 = vld [vmem:[%s1646 + $0x30] sm:$0xf]
                %1673 = vst [vmem:[%s1647 + $0x30] sm:$0xf] %v1672
                %v1674 = vld [vmem:[%s1646 + $0x34] sm:$0xf]
                %1675 = vst [vmem:[%s1647 + $0x34] sm:$0xf] %v1674
                %v1676 = vld [vmem:[%s1646 + $0x38] sm:$0xf]
                %1677 = vst [vmem:[%s1647 + $0x38] sm:$0xf] %v1676
                %v1678 = vld [vmem:[%s1646 + $0x3c] sm:$0xf]
                %1679 = vst [vmem:[%s1647 + $0x3c] sm:$0xf] %v1678
                %v1680 = vld [vmem:[%s1646 + $0x40] sm:$0xf]
                %1681 = vst [vmem:[%s1647 + $0x40] sm:$0xf] %v1680
                %v1682 = vld [vmem:[%s1646 + $0x44] sm:$0xf]
                %1683 = vst [vmem:[%s1647 + $0x44] sm:$0xf] %v1682
                %v1684 = vld [vmem:[%s1646 + $0x48] sm:$0xf]
                %1685 = vst [vmem:[%s1647 + $0x48] sm:$0xf] %v1684
                %v1686 = vld [vmem:[%s1646 + $0x4c] sm:$0xf]
                %1687 = vst [vmem:[%s1647 + $0x4c] sm:$0xf] %v1686
                %v1688 = vld [vmem:[%s1646 + $0x50] sm:$0xf]
                %1689 = vst [vmem:[%s1647 + $0x50] sm:$0xf] %v1688
                %v1690 = vld [vmem:[%s1646 + $0x54] sm:$0xf]
                %1691 = vst [vmem:[%s1647 + $0x54] sm:$0xf] %v1690
                %v1692 = vld [vmem:[%s1646 + $0x58] sm:$0xf]
                %1693 = vst [vmem:[%s1647 + $0x58] sm:$0xf] %v1692
                %v1694 = vld [vmem:[%s1646 + $0x5c] sm:$0xf]
                %1695 = vst [vmem:[%s1647 + $0x5c] sm:$0xf] %v1694
                %v1696 = vld [vmem:[%s1646 + $0x60] sm:$0xf]
                %1697 = vst [vmem:[%s1647 + $0x60] sm:$0xf] %v1696
                %v1698 = vld [vmem:[%s1646 + $0x64] sm:$0xf]
                %1699 = vst [vmem:[%s1647 + $0x64] sm:$0xf] %v1698
                %v1700 = vld [vmem:[%s1646 + $0x68] sm:$0xf]
                %1701 = vst [vmem:[%s1647 + $0x68] sm:$0xf] %v1700
                %v1702 = vld [vmem:[%s1646 + $0x6c] sm:$0xf]
                %1703 = vst [vmem:[%s1647 + $0x6c] sm:$0xf] %v1702
                %v1704 = vld [vmem:[%s1646 + $0x70] sm:$0xf]
                %1705 = vst [vmem:[%s1647 + $0x70] sm:$0xf] %v1704
                %v1706 = vld [vmem:[%s1646 + $0x74] sm:$0xf]
                %1707 = vst [vmem:[%s1647 + $0x74] sm:$0xf] %v1706
                %v1708 = vld [vmem:[%s1646 + $0x78] sm:$0xf]
                %1709 = vst [vmem:[%s1647 + $0x78] sm:$0xf] %v1708
                %v1710 = vld [vmem:[%s1646 + $0x7c] sm:$0xf]
                %1711 = vst [vmem:[%s1647 + $0x7c] sm:$0xf] %v1710
                %v1712 = vld [vmem:[%s1646 + $0x80] sm:$0xf]
                %1713 = vst [vmem:[%s1647 + $0x80] sm:$0xf] %v1712
                %v1714 = vld [vmem:[%s1646 + $0x84] sm:$0xf]
                %1715 = vst [vmem:[%s1647 + $0x84] sm:$0xf] %v1714
                %v1716 = vld [vmem:[%s1646 + $0x88] sm:$0xf]
                %1717 = vst [vmem:[%s1647 + $0x88] sm:$0xf] %v1716
                %v1718 = vld [vmem:[%s1646 + $0x8c] sm:$0xf]
                %1719 = vst [vmem:[%s1647 + $0x8c] sm:$0xf] %v1718
                %v1720 = vld [vmem:[%s1646 + $0x90] sm:$0xf]
                %1721 = vst [vmem:[%s1647 + $0x90] sm:$0xf] %v1720
                %v1722 = vld [vmem:[%s1646 + $0x94] sm:$0xf]
                %1723 = vst [vmem:[%s1647 + $0x94] sm:$0xf] %v1722
                %v1724 = vld [vmem:[%s1646 + $0x98] sm:$0xf]
                %1725 = vst [vmem:[%s1647 + $0x98] sm:$0xf] %v1724
                %v1726 = vld [vmem:[%s1646 + $0x9c] sm:$0xf]
                %1727 = vst [vmem:[%s1647 + $0x9c] sm:$0xf] %v1726
                %v1728 = vld [vmem:[%s1646 + $0xa0] sm:$0xf]
                %1729 = vst [vmem:[%s1647 + $0xa0] sm:$0xf] %v1728
                %v1730 = vld [vmem:[%s1646 + $0xa4] sm:$0xf]
                %1731 = vst [vmem:[%s1647 + $0xa4] sm:$0xf] %v1730
                %v1732 = vld [vmem:[%s1646 + $0xa8] sm:$0xf]
                %1733 = vst [vmem:[%s1647 + $0xa8] sm:$0xf] %v1732
                %v1734 = vld [vmem:[%s1646 + $0xac] sm:$0xf]
                %1735 = vst [vmem:[%s1647 + $0xac] sm:$0xf] %v1734
                %v1736 = vld [vmem:[%s1646 + $0xb0] sm:$0xf]
                %1737 = vst [vmem:[%s1647 + $0xb0] sm:$0xf] %v1736
                %v1738 = vld [vmem:[%s1646 + $0xb4] sm:$0xf]
                %1739 = vst [vmem:[%s1647 + $0xb4] sm:$0xf] %v1738
                %v1740 = vld [vmem:[%s1646 + $0xb8] sm:$0xf]
                %1741 = vst [vmem:[%s1647 + $0xb8] sm:$0xf] %v1740
                %v1742 = vld [vmem:[%s1646 + $0xbc] sm:$0xf]
                %1743 = vst [vmem:[%s1647 + $0xbc] sm:$0xf] %v1742
                %v1744 = vld [vmem:[%s1646 + $0xc0] sm:$0xf]
                %1745 = vst [vmem:[%s1647 + $0xc0] sm:$0xf] %v1744
                %v1746 = vld [vmem:[%s1646 + $0xc4] sm:$0xf]
                %1747 = vst [vmem:[%s1647 + $0xc4] sm:$0xf] %v1746
                %v1748 = vld [vmem:[%s1646 + $0xc8] sm:$0xf]
                %1749 = vst [vmem:[%s1647 + $0xc8] sm:$0xf] %v1748
                %v1750 = vld [vmem:[%s1646 + $0xcc] sm:$0xf]
                %1751 = vst [vmem:[%s1647 + $0xcc] sm:$0xf] %v1750
                %v1752 = vld [vmem:[%s1646 + $0xd0] sm:$0xf]
                %1753 = vst [vmem:[%s1647 + $0xd0] sm:$0xf] %v1752
                %v1754 = vld [vmem:[%s1646 + $0xd4] sm:$0xf]
                %1755 = vst [vmem:[%s1647 + $0xd4] sm:$0xf] %v1754
                %v1756 = vld [vmem:[%s1646 + $0xd8] sm:$0xf]
                %1757 = vst [vmem:[%s1647 + $0xd8] sm:$0xf] %v1756
                %v1758 = vld [vmem:[%s1646 + $0xdc] sm:$0xf]
                %1759 = vst [vmem:[%s1647 + $0xdc] sm:$0xf] %v1758
                %v1760 = vld [vmem:[%s1646 + $0xe0] sm:$0xf]
                %1761 = vst [vmem:[%s1647 + $0xe0] sm:$0xf] %v1760
                %v1762 = vld [vmem:[%s1646 + $0xe4] sm:$0xf]
                %1763 = vst [vmem:[%s1647 + $0xe4] sm:$0xf] %v1762
                %v1764 = vld [vmem:[%s1646 + $0xe8] sm:$0xf]
                %1765 = vst [vmem:[%s1647 + $0xe8] sm:$0xf] %v1764
                %v1766 = vld [vmem:[%s1646 + $0xec] sm:$0xf]
                %1767 = vst [vmem:[%s1647 + $0xec] sm:$0xf] %v1766
                %v1768 = vld [vmem:[%s1646 + $0xf0] sm:$0xf]
                %1769 = vst [vmem:[%s1647 + $0xf0] sm:$0xf] %v1768
                %v1770 = vld [vmem:[%s1646 + $0xf4] sm:$0xf]
                %1771 = vst [vmem:[%s1647 + $0xf4] sm:$0xf] %v1770
                %v1772 = vld [vmem:[%s1646 + $0xf8] sm:$0xf]
                %1773 = vst [vmem:[%s1647 + $0xf8] sm:$0xf] %v1772
                %v1774 = vld [vmem:[%s1646 + $0xfc] sm:$0xf]
                %1775 = vst [vmem:[%s1647 + $0xfc] sm:$0xf] %v1774
                %s1776 = sadd.s32 1, %s1645
                %p1777 = scmp.ge.s32.totalorder %s1776, %s1638
                %s1778 = scalar_select %p1777, 0, %s1776
                %s1779 = smul.u32 %s1778, 256
                %s1780 = smul.u32 %s1778, 256
                %s1781 = scalar_lea.vmem %s1618, %s1779 [#allocation2]
                %s1782 = scalar_lea.vmem %s1629, %s1780
              $region53: #{discriminator_forward.10} parent=47 // loop_footer
                %s1642 = sadd.s32 %s1640, 1
              $region54: #{discriminator_forward.10} parent=47 // loop_footer_branch
                %1639 = sbr.rel target = $region50
              $region55: #{discriminator_forward.10} parent=47 // loop_exit
                _
              %s1783 = sshrl.u32 %s1625, 6
              %s1784 = sand.u32 %s1625, 63
              %s1785 = smul.u32 %s1783, 64
              %s1786 = smul.u32 4, %s1785
              %s1787 = scalar_lea.vmem %s1618, %s1786 [#allocation2]
              %s1788 = smul.u32 4, %s1785
              %s1789 = scalar_lea.vmem %s1629, %s1788
              // While loop
              $region56: #{discriminator_forward.10} parent=47 // loop_pre_header
                _
              $region57: #{discriminator_forward.10} parent=47 // loop_header
                %s1791 = sphi 0, %s1793
                %p1792 = scmp.ge.s32.totalorder %s1791, %s1784
                %s1796 = sphi 0, %s1803
                %s1797 = sphi %s1787, %s1806
                %s1798 = sphi %s1789, %s1807
              $region58: #{discriminator_forward.10} parent=47 // loop_header_branch
                %1795 = sbr.rel (%p1792) target = $region62
              $region59: #{discriminator_forward.10} parent=47 // loop_body
                %v1799 = vld [vmem:[%s1797] sm:$0xf]
                %1800 = vst [vmem:[%s1798] sm:$0xf] %v1799
                %s1801 = sadd.s32 1, %s1796
                %p1802 = scmp.ge.s32.totalorder %s1801, %s1784
                %s1803 = scalar_select %p1802, 0, %s1801
                %s1804 = smul.u32 %s1803, 4
                %s1805 = smul.u32 %s1803, 4
                %s1806 = scalar_lea.vmem %s1787, %s1804 [#allocation2]
                %s1807 = scalar_lea.vmem %s1789, %s1805
              $region60: #{discriminator_forward.10} parent=47 // loop_footer
                %s1793 = sadd.s32 %s1791, 1
              $region61: #{discriminator_forward.10} parent=47 // loop_footer_branch
                %1790 = sbr.rel target = $region57
              $region62: #{discriminator_forward.10} parent=47 // loop_exit
                _
            $region48: #{discriminator_forward.10} parent=39 // pred_fallthru
              _
          $region40: #{discriminator_forward.10} parent=35 // pred_fallthru
            _
          %1981 = vnop
        $region36: #{discriminator_forward.10} parent=31 // pred_fallthru
          _
      $region32: #{discriminator_forward.10} parent=5 // pred_fallthru
        _
      %p1982 = scmp.le.s32.totalorder 2, %s9
      // Predicated region
      $region81: #{discriminator_forward.10} parent=5 // pred_check
        %p1983 = pneg %p1982
      $region82: #{discriminator_forward.10} parent=5 // pred_check_branch
        %1985 = sbr.rel (%p1983) target = $region84
      $region83: #{discriminator_forward.10} parent=5 // pred_region
        %s1986 = ssub.s32 %s9, 2
        // Predicated region
        $region85: #{discriminator_forward.10} parent=83 // pred_check
          %p1987 = pneg %p106
        $region86: #{discriminator_forward.10} parent=83 // pred_check_branch
          %1989 = sbr.rel (%p1987) target = $region88
        $region87: #{discriminator_forward.10} parent=83 // pred_region
          %s1990 = sand.u32 %s91, 1
          %s1991 = sand.u32 %s91, 1
          %s1992 = smul.addr %s1991, 512
          %s1993 = scalar_lea.vmem [#allocation2], %s1992
        $region88: #{discriminator_forward.10} parent=83 // pred_fallthru
          _
      $region84: #{discriminator_forward.10} parent=5 // pred_fallthru
        _
    $region6: #{discriminator_forward.10} parent=1 // loop_footer
      %s13 = sadd.s32 1, %s9
    $region7: #{discriminator_forward.10} parent=1 // loop_footer_branch
      %8 = sbr.rel target = $region3
    $region8: #{discriminator_forward.10} parent=1 // loop_exit
      _

// kernel: discriminator_forward.11
$region0: #{discriminator_forward.11}
  #allocation0 [shape = 'u32[]', space=smem, size = 0x4, offset = 0x4, fixed_abs, tag = 'smem constant byte address 0x4 - core index']
  #allocation1 [shape = 'u32[144,128]{1,0:T(1,128)}', space=vmem, size = 0x12000, scoped, tag = 'internal scratch']
  %s0 = inlined_call_operand.vmem [shape: bf16[288,256], index: 0, kind: input, shape index: {}]
  %s1 = inlined_call_operand.vmem [shape: bf16[256,32], index: 1, kind: input, shape index: {}]
  %s2 = inlined_call_operand.vmem [shape: f32[288,32], index: 2, kind: output, shape index: {}]
  %s3 = sld [smem:[#allocation0]]
  $region18: #{discriminator_forward.11} parent=0
    _
  %s5 = ssub.s32 1, %s3
  %s6 = scalar_select 0, %s5, %s3
  // Predicated region
  $region2: #{discriminator_forward.11} parent=0 // pred_check
    _
  $region3: #{discriminator_forward.11} parent=0 // pred_check_branch
    %8 = sbr.rel (0) target = $region5
  $region4: #{discriminator_forward.11} parent=0 // pred_region
    _
  $region5: #{discriminator_forward.11} parent=0 // pred_fallthru
    _
  // Predicated region
  $region6: #{discriminator_forward.11} parent=0 // pred_check
    _
  $region7: #{discriminator_forward.11} parent=0 // pred_check_branch
    %10 = sbr.rel (0) target = $region9
  $region8: #{discriminator_forward.11} parent=0 // pred_region
    _
  $region9: #{discriminator_forward.11} parent=0 // pred_fallthru
    _
  %v12 = vld [vmem:[%s0] sm:$0xff]
  %v13 = vld [vmem:[%s0 + $0x8] sm:$0xff]
  %v14 = vld [vmem:[%s0 + $0x10] sm:$0xff]
  %v15 = vld [vmem:[%s0 + $0x18] sm:$0xff]
  %v16 = vld [vmem:[%s0 + $0x20] sm:$0xff]
  %v17 = vld [vmem:[%s0 + $0x28] sm:$0xff]
  %v18 = vld [vmem:[%s0 + $0x30] sm:$0xff]
  %v19 = vld [vmem:[%s0 + $0x38] sm:$0xff]
  %v20 = vld [vmem:[%s0 + $0x40] sm:$0xff]
  %v21 = vld [vmem:[%s0 + $0x48] sm:$0xff]
  %v22 = vld [vmem:[%s0 + $0x50] sm:$0xff]
  %v23 = vld [vmem:[%s0 + $0x58] sm:$0xff]
  %v24 = vld [vmem:[%s0 + $0x60] sm:$0xff]
  %v25 = vld [vmem:[%s0 + $0x68] sm:$0xff]
  %v26 = vld [vmem:[%s0 + $0x70] sm:$0xff]
  %v27 = vld [vmem:[%s0 + $0x78] sm:$0xff]
  %v28 = vld [vmem:[%s0 + $0x80] sm:$0xff]
  %v29 = vld [vmem:[%s0 + $0x88] sm:$0xff]
  %v30 = vld [vmem:[%s0 + $0x90] sm:$0xff]
  %v31 = vld [vmem:[%s0 + $0x98] sm:$0xff]
  %v32 = vld [vmem:[%s0 + $0xa0] sm:$0xff]
  %v33 = vld [vmem:[%s0 + $0xa8] sm:$0xff]
  %v34 = vld [vmem:[%s0 + $0xb0] sm:$0xff]
  %v35 = vld [vmem:[%s0 + $0xb8] sm:$0xff]
  %v36 = vld [vmem:[%s0 + $0xc0] sm:$0xff]
  %v37 = vld [vmem:[%s0 + $0xc8] sm:$0xff]
  %v38 = vld [vmem:[%s0 + $0xd0] sm:$0xff]
  %v39 = vld [vmem:[%s0 + $0xd8] sm:$0xff]
  %v40 = vld [vmem:[%s0 + $0xe0] sm:$0xff]
  %v41 = vld [vmem:[%s0 + $0xe8] sm:$0xff]
  %v42 = vld [vmem:[%s0 + $0xf0] sm:$0xff]
  %v43 = vld [vmem:[%s0 + $0xf8] sm:$0xff]
  %v44 = vld [vmem:[%s0 + $0x100] sm:$0xff]
  %v45 = vld [vmem:[%s0 + $0x108] sm:$0xff]
  %v46 = vld [vmem:[%s0 + $0x110] sm:$0xff]
  %v47 = vld [vmem:[%s0 + $0x118] sm:$0xff]
  %v48 = vld [vmem:[%s1] sm:$0xf]
  %v49 = vld [vmem:[%s1 + $0x4] sm:$0xf]
  %v50 = vld [vmem:[%s1 + $0x8] sm:$0xf]
  %v51 = vld [vmem:[%s1 + $0xc] sm:$0xf]
  %v52 = vld [vmem:[%s1 + $0x10] sm:$0xf]
  %v53 = vld [vmem:[%s1 + $0x14] sm:$0xf]
  %v54 = vld [vmem:[%s1 + $0x18] sm:$0xf]
  %v55 = vld [vmem:[%s1 + $0x1c] sm:$0xf]
  %v56 = vld [vmem:[%s1 + $0x20] sm:$0xf]
  %v57 = vld [vmem:[%s1 + $0x24] sm:$0xf]
  %v58 = vld [vmem:[%s1 + $0x28] sm:$0xf]
  %v59 = vld [vmem:[%s1 + $0x2c] sm:$0xf]
  %v60 = vld [vmem:[%s1 + $0x30] sm:$0xf]
  %v61 = vld [vmem:[%s1 + $0x34] sm:$0xf]
  %v62 = vld [vmem:[%s1 + $0x38] sm:$0xf]
  %v63 = vld [vmem:[%s1 + $0x3c] sm:$0xf]
  %v64 = vld [vmem:[%s1 + $0x40] sm:$0xf]
  %v65 = vld [vmem:[%s1 + $0x44] sm:$0xf]
  %v66 = vld [vmem:[%s1 + $0x48] sm:$0xf]
  %v67 = vld [vmem:[%s1 + $0x4c] sm:$0xf]
  %v68 = vld [vmem:[%s1 + $0x50] sm:$0xf]
  %v69 = vld [vmem:[%s1 + $0x54] sm:$0xf]
  %v70 = vld [vmem:[%s1 + $0x58] sm:$0xf]
  %v71 = vld [vmem:[%s1 + $0x5c] sm:$0xf]
  %v72 = vld [vmem:[%s1 + $0x60] sm:$0xf]
  %v73 = vld [vmem:[%s1 + $0x64] sm:$0xf]
  %v74 = vld [vmem:[%s1 + $0x68] sm:$0xf]
  %v75 = vld [vmem:[%s1 + $0x6c] sm:$0xf]
  %v76 = vld [vmem:[%s1 + $0x70] sm:$0xf]
  %v77 = vld [vmem:[%s1 + $0x74] sm:$0xf]
  %v78 = vld [vmem:[%s1 + $0x78] sm:$0xf]
  %v79 = vld [vmem:[%s1 + $0x7c] sm:$0xf]
  %v116 = vunpack.c.l.b16 %v12
  %v117 = vunpack.c.h.b16 %v12
  %v118 = vunpack.c.l.b16 %v13
  %v119 = vunpack.c.h.b16 %v13
  %v120 = vunpack.c.l.b16 %v14
  %v121 = vunpack.c.h.b16 %v14
  %v122 = vunpack.c.l.b16 %v15
  %v123 = vunpack.c.h.b16 %v15
  %v124 = vunpack.c.l.b16 %v16
  %v125 = vunpack.c.h.b16 %v16
  %v126 = vunpack.c.l.b16 %v17
  %v127 = vunpack.c.h.b16 %v17
  %v128 = vunpack.c.l.b16 %v18
  %v129 = vunpack.c.h.b16 %v18
  %v130 = vunpack.c.l.b16 %v19
  %v131 = vunpack.c.h.b16 %v19
  %v132 = vunpack.c.l.b16 %v20
  %v133 = vunpack.c.h.b16 %v20
  %v134 = vunpack.c.l.b16 %v21
  %v135 = vunpack.c.h.b16 %v21
  %v136 = vunpack.c.l.b16 %v22
  %v137 = vunpack.c.h.b16 %v22
  %v138 = vunpack.c.l.b16 %v23
  %v139 = vunpack.c.h.b16 %v23
  %v140 = vunpack.c.l.b16 %v24
  %v141 = vunpack.c.h.b16 %v24
  %v142 = vunpack.c.l.b16 %v25
  %v143 = vunpack.c.h.b16 %v25
  %v144 = vunpack.c.l.b16 %v26
  %v145 = vunpack.c.h.b16 %v26
  %v146 = vunpack.c.l.b16 %v27
  %v147 = vunpack.c.h.b16 %v27
  %v148 = vunpack.c.l.b16 %v28
  %v149 = vunpack.c.h.b16 %v28
  %v150 = vunpack.c.l.b16 %v29
  %v151 = vunpack.c.h.b16 %v29
  %v152 = vunpack.c.l.b16 %v30
  %v153 = vunpack.c.h.b16 %v30
  %v154 = vunpack.c.l.b16 %v31
  %v155 = vunpack.c.h.b16 %v31
  %v156 = vunpack.c.l.b16 %v32
  %v157 = vunpack.c.h.b16 %v32
  %v158 = vunpack.c.l.b16 %v33
  %v159 = vunpack.c.h.b16 %v33
  %v160 = vunpack.c.l.b16 %v34
  %v161 = vunpack.c.h.b16 %v34
  %v162 = vunpack.c.l.b16 %v35
  %v163 = vunpack.c.h.b16 %v35
  %v164 = vunpack.c.l.b16 %v36
  %v165 = vunpack.c.h.b16 %v36
  %v166 = vunpack.c.l.b16 %v37
  %v167 = vunpack.c.h.b16 %v37
  %v168 = vunpack.c.l.b16 %v38
  %v169 = vunpack.c.h.b16 %v38
  %v170 = vunpack.c.l.b16 %v39
  %v171 = vunpack.c.h.b16 %v39
  %v172 = vunpack.c.l.b16 %v40
  %v173 = vunpack.c.h.b16 %v40
  %v174 = vunpack.c.l.b16 %v41
  %v175 = vunpack.c.h.b16 %v41
  %v176 = vunpack.c.l.b16 %v42
  %v177 = vunpack.c.h.b16 %v42
  %v178 = vunpack.c.l.b16 %v43
  %v179 = vunpack.c.h.b16 %v43
  %v180 = vunpack.c.l.b16 %v44
  %v181 = vunpack.c.h.b16 %v44
  %v182 = vunpack.c.l.b16 %v45
  %v183 = vunpack.c.h.b16 %v45
  %v184 = vunpack.c.l.b16 %v46
  %v185 = vunpack.c.h.b16 %v46
  %v186 = vunpack.c.l.b16 %v47
  %v187 = vunpack.c.h.b16 %v47
  %v188 = vpack.c.b16 %v118, %v116
  %v189 = vpack.c.b16 %v119, %v117
  %v190 = vpack.c.b16 %v122, %v120
  %v191 = vpack.c.b16 %v123, %v121
  %v192 = vpack.c.b16 %v126, %v124
  %v193 = vpack.c.b16 %v127, %v125
  %v194 = vpack.c.b16 %v130, %v128
  %v195 = vpack.c.b16 %v131, %v129
  %v196 = vpack.c.b16 %v134, %v132
  %v197 = vpack.c.b16 %v135, %v133
  %v198 = vpack.c.b16 %v138, %v136
  %v199 = vpack.c.b16 %v139, %v137
  %v200 = vpack.c.b16 %v142, %v140
  %v201 = vpack.c.b16 %v143, %v141
  %v202 = vpack.c.b16 %v146, %v144
  %v203 = vpack.c.b16 %v147, %v145
  %v204 = vpack.c.b16 %v150, %v148
  %v205 = vpack.c.b16 %v151, %v149
  %v206 = vpack.c.b16 %v154, %v152
  %v207 = vpack.c.b16 %v155, %v153
  %v208 = vpack.c.b16 %v158, %v156
  %v209 = vpack.c.b16 %v159, %v157
  %v210 = vpack.c.b16 %v162, %v160
  %v211 = vpack.c.b16 %v163, %v161
  %v212 = vpack.c.b16 %v166, %v164
  %v213 = vpack.c.b16 %v167, %v165
  %v214 = vpack.c.b16 %v170, %v168
  %v215 = vpack.c.b16 %v171, %v169
  %v216 = vpack.c.b16 %v174, %v172
  %v217 = vpack.c.b16 %v175, %v173
  %v218 = vpack.c.b16 %v178, %v176
  %v219 = vpack.c.b16 %v179, %v177
  %v220 = vpack.c.b16 %v182, %v180
  %v221 = vpack.c.b16 %v183, %v181
  %v222 = vpack.c.b16 %v186, %v184
  %v223 = vpack.c.b16 %v187, %v185
  %v292 = vunpack.c.l.b16 %v48
  %v293 = vunpack.c.l.b16 %v49
  %v294 = vunpack.c.l.b16 %v50
  %v295 = vunpack.c.l.b16 %v51
  %v296 = vunpack.c.l.b16 %v52
  %v297 = vunpack.c.l.b16 %v53
  %v298 = vunpack.c.l.b16 %v54
  %v299 = vunpack.c.l.b16 %v55
  %v300 = vunpack.c.l.b16 %v56
  %v301 = vunpack.c.l.b16 %v57
  %v302 = vunpack.c.l.b16 %v58
  %v303 = vunpack.c.l.b16 %v59
  %v304 = vunpack.c.l.b16 %v60
  %v305 = vunpack.c.l.b16 %v61
  %v306 = vunpack.c.l.b16 %v62
  %v307 = vunpack.c.l.b16 %v63
  %v308 = vunpack.c.l.b16 %v64
  %v309 = vunpack.c.l.b16 %v65
  %v310 = vunpack.c.l.b16 %v66
  %v311 = vunpack.c.l.b16 %v67
  %v312 = vunpack.c.l.b16 %v68
  %v313 = vunpack.c.l.b16 %v69
  %v314 = vunpack.c.l.b16 %v70
  %v315 = vunpack.c.l.b16 %v71
  %v316 = vunpack.c.l.b16 %v72
  %v317 = vunpack.c.l.b16 %v73
  %v318 = vunpack.c.l.b16 %v74
  %v319 = vunpack.c.l.b16 %v75
  %v320 = vunpack.c.l.b16 %v76
  %v321 = vunpack.c.l.b16 %v77
  %v322 = vunpack.c.l.b16 %v78
  %v323 = vunpack.c.l.b16 %v79
  %v324 = vpack.c.b16 %v293, %v292
  %v325 = vpack.c.b16 %v295, %v294
  %v326 = vpack.c.b16 %v297, %v296
  %v327 = vpack.c.b16 %v299, %v298
  %v328 = vpack.c.b16 %v301, %v300
  %v329 = vpack.c.b16 %v303, %v302
  %v330 = vpack.c.b16 %v305, %v304
  %v331 = vpack.c.b16 %v307, %v306
  %v332 = vpack.c.b16 %v309, %v308
  %v333 = vpack.c.b16 %v311, %v310
  %v334 = vpack.c.b16 %v313, %v312
  %v335 = vpack.c.b16 %v315, %v314
  %v336 = vpack.c.b16 %v317, %v316
  %v337 = vpack.c.b16 %v319, %v318
  %v338 = vpack.c.b16 %v321, %v320
  %v339 = vpack.c.b16 %v323, %v322
  %356 = vmatprep.subr.bf16.mxu0 0
  %357 = vmatpush1.bf16.msra.mxu0 %v324
  %358 = vmatprep.subr.bf16.mxu0 0
  %359 = vmatpush1.bf16.msra.mxu0 %v325
  %360 = vmatprep.subr.bf16.mxu0 0
  %361 = vmatpush1.bf16.msra.mxu0 %v326
  %362 = vmatprep.subr.bf16.mxu0 0
  %363 = vmatpush1.bf16.msra.mxu0 %v327
  %364 = vmatprep.subr.bf16.mxu0 0
  %365 = vmatpush1.bf16.msra.mxu0 %v328
  %366 = vmatprep.subr.bf16.mxu0 0
  %367 = vmatpush1.bf16.msra.mxu0 %v329
  %368 = vmatprep.subr.bf16.mxu0 0
  %369 = vmatpush1.bf16.msra.mxu0 %v330
  %370 = vmatprep.subr.bf16.mxu0 0
  %371 = vmatpush1.bf16.msra.mxu0 %v331
  %372 = vmatprep.subr.bf16.mxu0 0
  %373 = vmatpush1.bf16.msra.mxu0 %v332
  %374 = vmatprep.subr.bf16.mxu0 0
  %375 = vmatpush1.bf16.msra.mxu0 %v333
  %376 = vmatprep.subr.bf16.mxu0 0
  %377 = vmatpush1.bf16.msra.mxu0 %v334
  %378 = vmatprep.subr.bf16.mxu0 0
  %379 = vmatpush1.bf16.msra.mxu0 %v335
  %380 = vmatprep.subr.bf16.mxu0 0
  %381 = vmatpush1.bf16.msra.mxu0 %v336
  %382 = vmatprep.subr.bf16.mxu0 0
  %383 = vmatpush1.bf16.msra.mxu0 %v337
  %384 = vmatprep.subr.bf16.mxu0 0
  %385 = vmatpush1.bf16.msra.mxu0 %v338
  %386 = vmatprep.subr.bf16.mxu0 0
  %387 = vmatpush1.bf16.msra.mxu0 %v339
  %388 = vmatprep.mubr.bf16.mxu0 %v189
  %389 = vmatmul.mubr.bf16.gmra.mrb[0].mxu0 %v188
  %v390 = vpop.f32.mrb[0].mxu0
  %v391 = vadd.f32 0.0, %v390
  %v392 = vpop.f32.mrb[0].mxu0
  %v393 = vpop.f32.mrb[0].mxu0
  %v394 = vadd.f32 0.0, %v393
  %v395 = vpop.f32.mrb[0].mxu0
  %396 = vmatprep.mubr.bf16.mxu0 %v191
  %397 = vmatmul.mubr.bf16.gmra.mrb[0].mxu0 %v190
  %v398 = vpop.f32.mrb[0].mxu0
  %v399 = vadd.f32 0.0, %v398
  %v400 = vpop.f32.mrb[0].mxu0
  %v401 = vpop.f32.mrb[0].mxu0
  %v402 = vadd.f32 0.0, %v401
  %v403 = vpop.f32.mrb[0].mxu0
  %404 = vmatprep.mubr.bf16.mxu0 %v193
  %405 = vmatmul.mubr.bf16.gmra.mrb[0].mxu0 %v192
  %v406 = vpop.f32.mrb[0].mxu0
  %v407 = vadd.f32 0.0, %v406
  %v408 = vpop.f32.mrb[0].mxu0
  %v409 = vpop.f32.mrb[0].mxu0
  %v410 = vadd.f32 0.0, %v409
  %v411 = vpop.f32.mrb[0].mxu0
  %412 = vmatprep.mubr.bf16.mxu0 %v195
  %413 = vmatmul.mubr.bf16.gmra.mrb[0].mxu0 %v194
  %v414 = vpop.f32.mrb[0].mxu0
  %v415 = vadd.f32 0.0, %v414
  %v416 = vpop.f32.mrb[0].mxu0
  %v417 = vpop.f32.mrb[0].mxu0
  %v418 = vadd.f32 0.0, %v417
  %v419 = vpop.f32.mrb[0].mxu0
  %420 = vmatprep.mubr.bf16.mxu0 %v197
  %421 = vmatmul.mubr.bf16.gmra.mrb[0].mxu0 %v196
  %v422 = vpop.f32.mrb[0].mxu0
  %v423 = vadd.f32 0.0, %v422
  %v424 = vpop.f32.mrb[0].mxu0
  %v425 = vpop.f32.mrb[0].mxu0
  %v426 = vadd.f32 0.0, %v425
  %v427 = vpop.f32.mrb[0].mxu0
  %428 = vmatprep.mubr.bf16.mxu0 %v199
  %429 = vmatmul.mubr.bf16.gmra.mrb[0].mxu0 %v198
  %v430 = vpop.f32.mrb[0].mxu0
  %v431 = vadd.f32 0.0, %v430
  %v432 = vpop.f32.mrb[0].mxu0
  %v433 = vpop.f32.mrb[0].mxu0
  %v434 = vadd.f32 0.0, %v433
  %v435 = vpop.f32.mrb[0].mxu0
  %436 = vmatprep.mubr.bf16.mxu0 %v201
  %437 = vmatmul.mubr.bf16.gmra.mrb[0].mxu0 %v200
  %v438 = vpop.f32.mrb[0].mxu0
  %v439 = vadd.f32 0.0, %v438
  %v440 = vpop.f32.mrb[0].mxu0
  %v441 = vpop.f32.mrb[0].mxu0
  %v442 = vadd.f32 0.0, %v441
  %v443 = vpop.f32.mrb[0].mxu0
  %444 = vmatprep.mubr.bf16.mxu0 %v203
  %445 = vmatmul.mubr.bf16.gmra.mrb[0].mxu0 %v202
  %v446 = vpop.f32.mrb[0].mxu0
  %v447 = vadd.f32 0.0, %v446
  %v448 = vpop.f32.mrb[0].mxu0
  %v449 = vpop.f32.mrb[0].mxu0
  %v450 = vadd.f32 0.0, %v449
  %v451 = vpop.f32.mrb[0].mxu0
  %452 = vmatprep.mubr.bf16.mxu0 %v205
  %453 = vmatmul.mubr.bf16.gmra.mrb[0].mxu0 %v204
  %v454 = vpop.f32.mrb[0].mxu0
  %v455 = vadd.f32 0.0, %v454
  %v456 = vpop.f32.mrb[0].mxu0
  %v457 = vpop.f32.mrb[0].mxu0
  %v458 = vadd.f32 0.0, %v457
  %v459 = vpop.f32.mrb[0].mxu0
  %460 = vmatprep.mubr.bf16.mxu0 %v207
  %461 = vmatmul.mubr.bf16.gmra.mrb[0].mxu0 %v206
  %v462 = vpop.f32.mrb[0].mxu0
  %v463 = vadd.f32 0.0, %v462
  %v464 = vpop.f32.mrb[0].mxu0
  %v465 = vpop.f32.mrb[0].mxu0
  %v466 = vadd.f32 0.0, %v465
  %v467 = vpop.f32.mrb[0].mxu0
  %468 = vmatprep.mubr.bf16.mxu0 %v209
  %469 = vmatmul.mubr.bf16.gmra.mrb[0].mxu0 %v208
  %v470 = vpop.f32.mrb[0].mxu0
  %v471 = vadd.f32 0.0, %v470
  %v472 = vpop.f32.mrb[0].mxu0
  %v473 = vpop.f32.mrb[0].mxu0
  %v474 = vadd.f32 0.0, %v473
  %v475 = vpop.f32.mrb[0].mxu0
  %476 = vmatprep.mubr.bf16.mxu0 %v211
  %477 = vmatmul.mubr.bf16.gmra.mrb[0].mxu0 %v210
  %v478 = vpop.f32.mrb[0].mxu0
  %v479 = vadd.f32 0.0, %v478
  %v480 = vpop.f32.mrb[0].mxu0
  %v481 = vpop.f32.mrb[0].mxu0
  %v482 = vadd.f32 0.0, %v481
  %v483 = vpop.f32.mrb[0].mxu0
  %484 = vmatprep.mubr.bf16.mxu0 %v213
  %485 = vmatmul.mubr.bf16.gmra.mrb[0].mxu0 %v212
  %v486 = vpop.f32.mrb[0].mxu0
  %v487 = vadd.f32 0.0, %v486
  %v488 = vpop.f32.mrb[0].mxu0
  %v489 = vpop.f32.mrb[0].mxu0
  %v490 = vadd.f32 0.0, %v489
  %v491 = vpop.f32.mrb[0].mxu0
  %492 = vmatprep.mubr.bf16.mxu0 %v215
  %493 = vmatmul.mubr.bf16.gmra.mrb[0].mxu0 %v214
  %v494 = vpop.f32.mrb[0].mxu0
  %v495 = vadd.f32 0.0, %v494
  %v496 = vpop.f32.mrb[0].mxu0
  %v497 = vpop.f32.mrb[0].mxu0
  %v498 = vadd.f32 0.0, %v497
  %v499 = vpop.f32.mrb[0].mxu0
  %500 = vmatprep.mubr.bf16.mxu0 %v217
  %501 = vmatmul.mubr.bf16.gmra.mrb[0].mxu0 %v216
  %v502 = vpop.f32.mrb[0].mxu0
  %v503 = vadd.f32 0.0, %v502
  %v504 = vpop.f32.mrb[0].mxu0
  %v505 = vpop.f32.mrb[0].mxu0
  %v506 = vadd.f32 0.0, %v505
  %v507 = vpop.f32.mrb[0].mxu0
  %508 = vmatprep.mubr.bf16.mxu0 %v219
  %509 = vmatmul.mubr.bf16.gmra.mrb[0].mxu0 %v218
  %v510 = vpop.f32.mrb[0].mxu0
  %v511 = vadd.f32 0.0, %v510
  %v512 = vpop.f32.mrb[0].mxu0
  %v513 = vpop.f32.mrb[0].mxu0
  %v514 = vadd.f32 0.0, %v513
  %v515 = vpop.f32.mrb[0].mxu0
  %516 = vmatprep.mubr.bf16.mxu0 %v221
  %517 = vmatmul.mubr.bf16.gmra.mrb[0].mxu0 %v220
  %v518 = vpop.f32.mrb[0].mxu0
  %v519 = vadd.f32 0.0, %v518
  %v520 = vpop.f32.mrb[0].mxu0
  %v521 = vpop.f32.mrb[0].mxu0
  %v522 = vadd.f32 0.0, %v521
  %v523 = vpop.f32.mrb[0].mxu0
  %524 = vmatprep.mubr.bf16.mxu0 %v223
  %525 = vmatmul.mubr.bf16.gmra.mrb[0].mxu0 %v222
  %v526 = vpop.f32.mrb[0].mxu0
  %v527 = vadd.f32 0.0, %v526
  %v528 = vpop.f32.mrb[0].mxu0
  %v529 = vpop.f32.mrb[0].mxu0
  %v530 = vadd.f32 0.0, %v529
  %v531 = vpop.f32.mrb[0].mxu0
  %532 = vdwg.mxu0
  %vm533 = vcmask 261120
  %534 = vst.msk [vmem:[%s2] sm:$0xff] %vm533, %v391
  %535 = vst.msk [vmem:[%s2 + $0x8] sm:$0xff] %vm533, %v394
  %536 = vst.msk [vmem:[%s2 + $0x10] sm:$0xff] %vm533, %v399
  %537 = vst.msk [vmem:[%s2 + $0x18] sm:$0xff] %vm533, %v402
  %538 = vst.msk [vmem:[%s2 + $0x20] sm:$0xff] %vm533, %v407
  %539 = vst.msk [vmem:[%s2 + $0x28] sm:$0xff] %vm533, %v410
  %540 = vst.msk [vmem:[%s2 + $0x30] sm:$0xff] %vm533, %v415
  %541 = vst.msk [vmem:[%s2 + $0x38] sm:$0xff] %vm533, %v418
  %542 = vst.msk [vmem:[%s2 + $0x40] sm:$0xff] %vm533, %v423
  %543 = vst.msk [vmem:[%s2 + $0x48] sm:$0xff] %vm533, %v426
  %544 = vst.msk [vmem:[%s2 + $0x50] sm:$0xff] %vm533, %v431
  %545 = vst.msk [vmem:[%s2 + $0x58] sm:$0xff] %vm533, %v434
  %546 = vst.msk [vmem:[%s2 + $0x60] sm:$0xff] %vm533, %v439
  %547 = vst.msk [vmem:[%s2 + $0x68] sm:$0xff] %vm533, %v442
  %548 = vst.msk [vmem:[%s2 + $0x70] sm:$0xff] %vm533, %v447
  %549 = vst.msk [vmem:[%s2 + $0x78] sm:$0xff] %vm533, %v450
  %550 = vst.msk [vmem:[%s2 + $0x80] sm:$0xff] %vm533, %v455
  %551 = vst.msk [vmem:[%s2 + $0x88] sm:$0xff] %vm533, %v458
  %552 = vst.msk [vmem:[%s2 + $0x90] sm:$0xff] %vm533, %v463
  %553 = vst.msk [vmem:[%s2 + $0x98] sm:$0xff] %vm533, %v466
  %554 = vst.msk [vmem:[%s2 + $0xa0] sm:$0xff] %vm533, %v471
  %555 = vst.msk [vmem:[%s2 + $0xa8] sm:$0xff] %vm533, %v474
  %556 = vst.msk [vmem:[%s2 + $0xb0] sm:$0xff] %vm533, %v479
  %557 = vst.msk [vmem:[%s2 + $0xb8] sm:$0xff] %vm533, %v482
  %558 = vst.msk [vmem:[%s2 + $0xc0] sm:$0xff] %vm533, %v487
  %559 = vst.msk [vmem:[%s2 + $0xc8] sm:$0xff] %vm533, %v490
  %560 = vst.msk [vmem:[%s2 + $0xd0] sm:$0xff] %vm533, %v495
  %561 = vst.msk [vmem:[%s2 + $0xd8] sm:$0xff] %vm533, %v498
  %562 = vst.msk [vmem:[%s2 + $0xe0] sm:$0xff] %vm533, %v503
  %563 = vst.msk [vmem:[%s2 + $0xe8] sm:$0xff] %vm533, %v506
  %564 = vst.msk [vmem:[%s2 + $0xf0] sm:$0xff] %vm533, %v511
  %565 = vst.msk [vmem:[%s2 + $0xf8] sm:$0xff] %vm533, %v514
  %566 = vst.msk [vmem:[%s2 + $0x100] sm:$0xff] %vm533, %v519
  %567 = vst.msk [vmem:[%s2 + $0x108] sm:$0xff] %vm533, %v522
  %568 = vst.msk [vmem:[%s2 + $0x110] sm:$0xff] %vm533, %v527
  %569 = vst.msk [vmem:[%s2 + $0x118] sm:$0xff] %vm533, %v530
  // Predicated region
  $region10: #{discriminator_forward.11} parent=0 // pred_check
    _
  $region11: #{discriminator_forward.11} parent=0 // pred_check_branch
    %571 = sbr.rel (0) target = $region13
  $region12: #{discriminator_forward.11} parent=0 // pred_region
    _
  $region13: #{discriminator_forward.11} parent=0 // pred_fallthru
    _
  // Predicated region
  $region14: #{discriminator_forward.11} parent=0 // pred_check
    _
  $region15: #{discriminator_forward.11} parent=0 // pred_check_branch
    %573 = sbr.rel (0) target = $region17
  $region16: #{discriminator_forward.11} parent=0 // pred_region
    _
  $region17: #{discriminator_forward.11} parent=0 // pred_fallthru
    _

// kernel: discriminator_forward.12
$region0: #{discriminator_forward.12}
  #allocation0 [shape = 'u32[]', space=smem, size = 0x4, offset = 0x4, fixed_abs, tag = 'smem constant byte address 0x4 - core index']
  #allocation1 [shape = 'u32[144,128]{1,0:T(1,128)}', space=vmem, size = 0x12000, scoped, tag = 'internal scratch']
  %s0 = inlined_call_operand.vmem [shape: f32[288,32], index: 0, kind: input, shape index: {}]
  %s1 = inlined_call_operand.vmem [shape: f32[1,32], index: 1, kind: input, shape index: {}]
  %s2 = inlined_call_operand.vmem [shape: f32[1,32], index: 2, kind: input, shape index: {}]
  %s3 = inlined_call_operand.vmem [shape: bf16[288,32], index: 3, kind: output, shape index: {}]
  %s4 = sld [smem:[#allocation0]]
  $region22: #{discriminator_forward.12} parent=0
    _
  %s6 = ssub.s32 1, %s4
  %s7 = scalar_select 0, %s6, %s4
  // Predicated region
  $region2: #{discriminator_forward.12} parent=0 // pred_check
    _
  $region3: #{discriminator_forward.12} parent=0 // pred_check_branch
    %9 = sbr.rel (0) target = $region5
  $region4: #{discriminator_forward.12} parent=0 // pred_region
    _
  $region5: #{discriminator_forward.12} parent=0 // pred_fallthru
    _
  // Predicated region
  $region6: #{discriminator_forward.12} parent=0 // pred_check
    _
  $region7: #{discriminator_forward.12} parent=0 // pred_check_branch
    %11 = sbr.rel (0) target = $region9
  $region8: #{discriminator_forward.12} parent=0 // pred_region
    _
  $region9: #{discriminator_forward.12} parent=0 // pred_fallthru
    _
  // Predicated region
  $region10: #{discriminator_forward.12} parent=0 // pred_check
    _
  $region11: #{discriminator_forward.12} parent=0 // pred_check_branch
    %13 = sbr.rel (0) target = $region13
  $region12: #{discriminator_forward.12} parent=0 // pred_region
    _
  $region13: #{discriminator_forward.12} parent=0 // pred_fallthru
    _
  %v14 = vld [vmem:[%s0] sm:$0xff]
  %v15 = vld [vmem:[%s0 + $0x8] sm:$0xff]
  %v16 = vld [vmem:[%s0 + $0x10] sm:$0xff]
  %v17 = vld [vmem:[%s0 + $0x18] sm:$0xff]
  %v18 = vld [vmem:[%s0 + $0x20] sm:$0xff]
  %v19 = vld [vmem:[%s0 + $0x28] sm:$0xff]
  %v20 = vld [vmem:[%s0 + $0x30] sm:$0xff]
  %v21 = vld [vmem:[%s0 + $0x38] sm:$0xff]
  %v22 = vld [vmem:[%s0 + $0x40] sm:$0xff]
  %v23 = vld [vmem:[%s0 + $0x48] sm:$0xff]
  %v24 = vld [vmem:[%s0 + $0x50] sm:$0xff]
  %v25 = vld [vmem:[%s0 + $0x58] sm:$0xff]
  %v26 = vld [vmem:[%s0 + $0x60] sm:$0xff]
  %v27 = vld [vmem:[%s0 + $0x68] sm:$0xff]
  %v28 = vld [vmem:[%s0 + $0x70] sm:$0xff]
  %v29 = vld [vmem:[%s0 + $0x78] sm:$0xff]
  %v30 = vld [vmem:[%s0 + $0x80] sm:$0xff]
  %v31 = vld [vmem:[%s0 + $0x88] sm:$0xff]
  %v32 = vld [vmem:[%s0 + $0x90] sm:$0xff]
  %v33 = vld [vmem:[%s0 + $0x98] sm:$0xff]
  %v34 = vld [vmem:[%s0 + $0xa0] sm:$0xff]
  %v35 = vld [vmem:[%s0 + $0xa8] sm:$0xff]
  %v36 = vld [vmem:[%s0 + $0xb0] sm:$0xff]
  %v37 = vld [vmem:[%s0 + $0xb8] sm:$0xff]
  %v38 = vld [vmem:[%s0 + $0xc0] sm:$0xff]
  %v39 = vld [vmem:[%s0 + $0xc8] sm:$0xff]
  %v40 = vld [vmem:[%s0 + $0xd0] sm:$0xff]
  %v41 = vld [vmem:[%s0 + $0xd8] sm:$0xff]
  %v42 = vld [vmem:[%s0 + $0xe0] sm:$0xff]
  %v43 = vld [vmem:[%s0 + $0xe8] sm:$0xff]
  %v44 = vld [vmem:[%s0 + $0xf0] sm:$0xff]
  %v45 = vld [vmem:[%s0 + $0xf8] sm:$0xff]
  %v46 = vld [vmem:[%s0 + $0x100] sm:$0xff]
  %v47 = vld [vmem:[%s0 + $0x108] sm:$0xff]
  %v48 = vld [vmem:[%s0 + $0x110] sm:$0xff]
  %v49 = vld [vmem:[%s0 + $0x118] sm:$0xff]
  %v50 = vld [vmem:[%s1] sm:$0x1]
  %v52 = vlaneseq
  %v53 = vshrl.u32 %v52, 7
  %v54 = vsub.s32 0, %v53
  %v55 = vrot.slane %v50, %v54
  %v57 = vmul.f32 %v14, %v55
  %v58 = vmul.f32 %v15, %v55
  %v59 = vmul.f32 %v16, %v55
  %v60 = vmul.f32 %v17, %v55
  %v61 = vmul.f32 %v18, %v55
  %v62 = vmul.f32 %v19, %v55
  %v63 = vmul.f32 %v20, %v55
  %v64 = vmul.f32 %v21, %v55
  %v65 = vmul.f32 %v22, %v55
  %v66 = vmul.f32 %v23, %v55
  %v67 = vmul.f32 %v24, %v55
  %v68 = vmul.f32 %v25, %v55
  %v69 = vmul.f32 %v26, %v55
  %v70 = vmul.f32 %v27, %v55
  %v71 = vmul.f32 %v28, %v55
  %v72 = vmul.f32 %v29, %v55
  %v73 = vmul.f32 %v30, %v55
  %v74 = vmul.f32 %v31, %v55
  %v75 = vmul.f32 %v32, %v55
  %v76 = vmul.f32 %v33, %v55
  %v77 = vmul.f32 %v34, %v55
  %v78 = vmul.f32 %v35, %v55
  %v79 = vmul.f32 %v36, %v55
  %v80 = vmul.f32 %v37, %v55
  %v81 = vmul.f32 %v38, %v55
  %v82 = vmul.f32 %v39, %v55
  %v83 = vmul.f32 %v40, %v55
  %v84 = vmul.f32 %v41, %v55
  %v85 = vmul.f32 %v42, %v55
  %v86 = vmul.f32 %v43, %v55
  %v87 = vmul.f32 %v44, %v55
  %v88 = vmul.f32 %v45, %v55
  %v89 = vmul.f32 %v46, %v55
  %v90 = vmul.f32 %v47, %v55
  %v91 = vmul.f32 %v48, %v55
  %v92 = vmul.f32 %v49, %v55
  %v93 = vld [vmem:[%s2] sm:$0x1]
  %v95 = vlaneseq
  %v96 = vshrl.u32 %v95, 7
  %v97 = vsub.s32 0, %v96
  %v98 = vrot.slane %v93, %v97
  %v100 = vadd.f32 %v57, %v98
  %v101 = vadd.f32 %v58, %v98
  %v102 = vadd.f32 %v59, %v98
  %v103 = vadd.f32 %v60, %v98
  %v104 = vadd.f32 %v61, %v98
  %v105 = vadd.f32 %v62, %v98
  %v106 = vadd.f32 %v63, %v98
  %v107 = vadd.f32 %v64, %v98
  %v108 = vadd.f32 %v65, %v98
  %v109 = vadd.f32 %v66, %v98
  %v110 = vadd.f32 %v67, %v98
  %v111 = vadd.f32 %v68, %v98
  %v112 = vadd.f32 %v69, %v98
  %v113 = vadd.f32 %v70, %v98
  %v114 = vadd.f32 %v71, %v98
  %v115 = vadd.f32 %v72, %v98
  %v116 = vadd.f32 %v73, %v98
  %v117 = vadd.f32 %v74, %v98
  %v118 = vadd.f32 %v75, %v98
  %v119 = vadd.f32 %v76, %v98
  %v120 = vadd.f32 %v77, %v98
  %v121 = vadd.f32 %v78, %v98
  %v122 = vadd.f32 %v79, %v98
  %v123 = vadd.f32 %v80, %v98
  %v124 = vadd.f32 %v81, %v98
  %v125 = vadd.f32 %v82, %v98
  %v126 = vadd.f32 %v83, %v98
  %v127 = vadd.f32 %v84, %v98
  %v128 = vadd.f32 %v85, %v98
  %v129 = vadd.f32 %v86, %v98
  %v130 = vadd.f32 %v87, %v98
  %v131 = vadd.f32 %v88, %v98
  %v132 = vadd.f32 %v89, %v98
  %v133 = vadd.f32 %v90, %v98
  %v134 = vadd.f32 %v91, %v98
  %v135 = vadd.f32 %v92, %v98
  %vm136 = vcmp.gt.f32.partialorder %v100, 0.0
  %vm137 = vcmp.gt.f32.partialorder %v101, 0.0
  %vm138 = vcmp.gt.f32.partialorder %v102, 0.0
  %vm139 = vcmp.gt.f32.partialorder %v103, 0.0
  %vm140 = vcmp.gt.f32.partialorder %v104, 0.0
  %vm141 = vcmp.gt.f32.partialorder %v105, 0.0
  %vm142 = vcmp.gt.f32.partialorder %v106, 0.0
  %vm143 = vcmp.gt.f32.partialorder %v107, 0.0
  %vm144 = vcmp.gt.f32.partialorder %v108, 0.0
  %vm145 = vcmp.gt.f32.partialorder %v109, 0.0
  %vm146 = vcmp.gt.f32.partialorder %v110, 0.0
  %vm147 = vcmp.gt.f32.partialorder %v111, 0.0
  %vm148 = vcmp.gt.f32.partialorder %v112, 0.0
  %vm149 = vcmp.gt.f32.partialorder %v113, 0.0
  %vm150 = vcmp.gt.f32.partialorder %v114, 0.0
  %vm151 = vcmp.gt.f32.partialorder %v115, 0.0
  %vm152 = vcmp.gt.f32.partialorder %v116, 0.0
  %vm153 = vcmp.gt.f32.partialorder %v117, 0.0
  %vm154 = vcmp.gt.f32.partialorder %v118, 0.0
  %vm155 = vcmp.gt.f32.partialorder %v119, 0.0
  %vm156 = vcmp.gt.f32.partialorder %v120, 0.0
  %vm157 = vcmp.gt.f32.partialorder %v121, 0.0
  %vm158 = vcmp.gt.f32.partialorder %v122, 0.0
  %vm159 = vcmp.gt.f32.partialorder %v123, 0.0
  %vm160 = vcmp.gt.f32.partialorder %v124, 0.0
  %vm161 = vcmp.gt.f32.partialorder %v125, 0.0
  %vm162 = vcmp.gt.f32.partialorder %v126, 0.0
  %vm163 = vcmp.gt.f32.partialorder %v127, 0.0
  %vm164 = vcmp.gt.f32.partialorder %v128, 0.0
  %vm165 = vcmp.gt.f32.partialorder %v129, 0.0
  %vm166 = vcmp.gt.f32.partialorder %v130, 0.0
  %vm167 = vcmp.gt.f32.partialorder %v131, 0.0
  %vm168 = vcmp.gt.f32.partialorder %v132, 0.0
  %vm169 = vcmp.gt.f32.partialorder %v133, 0.0
  %vm170 = vcmp.gt.f32.partialorder %v134, 0.0
  %vm171 = vcmp.gt.f32.partialorder %v135, 0.0
  %v172 = vmul.f32 %v100, 0.2
  %v173 = vmul.f32 %v101, 0.2
  %v174 = vmul.f32 %v102, 0.2
  %v175 = vmul.f32 %v103, 0.2
  %v176 = vmul.f32 %v104, 0.2
  %v177 = vmul.f32 %v105, 0.2
  %v178 = vmul.f32 %v106, 0.2
  %v179 = vmul.f32 %v107, 0.2
  %v180 = vmul.f32 %v108, 0.2
  %v181 = vmul.f32 %v109, 0.2
  %v182 = vmul.f32 %v110, 0.2
  %v183 = vmul.f32 %v111, 0.2
  %v184 = vmul.f32 %v112, 0.2
  %v185 = vmul.f32 %v113, 0.2
  %v186 = vmul.f32 %v114, 0.2
  %v187 = vmul.f32 %v115, 0.2
  %v188 = vmul.f32 %v116, 0.2
  %v189 = vmul.f32 %v117, 0.2
  %v190 = vmul.f32 %v118, 0.2
  %v191 = vmul.f32 %v119, 0.2
  %v192 = vmul.f32 %v120, 0.2
  %v193 = vmul.f32 %v121, 0.2
  %v194 = vmul.f32 %v122, 0.2
  %v195 = vmul.f32 %v123, 0.2
  %v196 = vmul.f32 %v124, 0.2
  %v197 = vmul.f32 %v125, 0.2
  %v198 = vmul.f32 %v126, 0.2
  %v199 = vmul.f32 %v127, 0.2
  %v200 = vmul.f32 %v128, 0.2
  %v201 = vmul.f32 %v129, 0.2
  %v202 = vmul.f32 %v130, 0.2
  %v203 = vmul.f32 %v131, 0.2
  %v204 = vmul.f32 %v132, 0.2
  %v205 = vmul.f32 %v133, 0.2
  %v206 = vmul.f32 %v134, 0.2
  %v207 = vmul.f32 %v135, 0.2
  %v208 = vsel %vm136, %v100, %v172
  %v209 = vsel %vm137, %v101, %v173
  %v210 = vsel %vm138, %v102, %v174
  %v211 = vsel %vm139, %v103, %v175
  %v212 = vsel %vm140, %v104, %v176
  %v213 = vsel %vm141, %v105, %v177
  %v214 = vsel %vm142, %v106, %v178
  %v215 = vsel %vm143, %v107, %v179
  %v216 = vsel %vm144, %v108, %v180
  %v217 = vsel %vm145, %v109, %v181
  %v218 = vsel %vm146, %v110, %v182
  %v219 = vsel %vm147, %v111, %v183
  %v220 = vsel %vm148, %v112, %v184
  %v221 = vsel %vm149, %v113, %v185
  %v222 = vsel %vm150, %v114, %v186
  %v223 = vsel %vm151, %v115, %v187
  %v224 = vsel %vm152, %v116, %v188
  %v225 = vsel %vm153, %v117, %v189
  %v226 = vsel %vm154, %v118, %v190
  %v227 = vsel %vm155, %v119, %v191
  %v228 = vsel %vm156, %v120, %v192
  %v229 = vsel %vm157, %v121, %v193
  %v230 = vsel %vm158, %v122, %v194
  %v231 = vsel %vm159, %v123, %v195
  %v232 = vsel %vm160, %v124, %v196
  %v233 = vsel %vm161, %v125, %v197
  %v234 = vsel %vm162, %v126, %v198
  %v235 = vsel %vm163, %v127, %v199
  %v236 = vsel %vm164, %v128, %v200
  %v237 = vsel %vm165, %v129, %v201
  %v238 = vsel %vm166, %v130, %v202
  %v239 = vsel %vm167, %v131, %v203
  %v240 = vsel %vm168, %v132, %v204
  %v241 = vsel %vm169, %v133, %v205
  %v242 = vsel %vm170, %v134, %v206
  %v243 = vsel %vm171, %v135, %v207
  %v244 = vpack.c.bf16 %v209, %v208
  %v245 = vpack.c.bf16 %v211, %v210
  %v246 = vpack.c.bf16 %v213, %v212
  %v247 = vpack.c.bf16 %v215, %v214
  %v248 = vpack.c.bf16 %v217, %v216
  %v249 = vpack.c.bf16 %v219, %v218
  %v250 = vpack.c.bf16 %v221, %v220
  %v251 = vpack.c.bf16 %v223, %v222
  %v252 = vpack.c.bf16 %v225, %v224
  %v253 = vpack.c.bf16 %v227, %v226
  %v254 = vpack.c.bf16 %v229, %v228
  %v255 = vpack.c.bf16 %v231, %v230
  %v256 = vpack.c.bf16 %v233, %v232
  %v257 = vpack.c.bf16 %v235, %v234
  %v258 = vpack.c.bf16 %v237, %v236
  %v259 = vpack.c.bf16 %v239, %v238
  %v260 = vpack.c.bf16 %v241, %v240
  %v261 = vpack.c.bf16 %v243, %v242
  %v280 = vunpack.c.l.b16 %v244
  %v281 = vunpack.c.h.b16 %v244
  %v282 = vunpack.c.l.b16 %v245
  %v283 = vunpack.c.h.b16 %v245
  %v284 = vunpack.c.l.b16 %v246
  %v285 = vunpack.c.h.b16 %v246
  %v286 = vunpack.c.l.b16 %v247
  %v287 = vunpack.c.h.b16 %v247
  %v288 = vunpack.c.l.b16 %v248
  %v289 = vunpack.c.h.b16 %v248
  %v290 = vunpack.c.l.b16 %v249
  %v291 = vunpack.c.h.b16 %v249
  %v292 = vunpack.c.l.b16 %v250
  %v293 = vunpack.c.h.b16 %v250
  %v294 = vunpack.c.l.b16 %v251
  %v295 = vunpack.c.h.b16 %v251
  %v296 = vunpack.c.l.b16 %v252
  %v297 = vunpack.c.h.b16 %v252
  %v298 = vunpack.c.l.b16 %v253
  %v299 = vunpack.c.h.b16 %v253
  %v300 = vunpack.c.l.b16 %v254
  %v301 = vunpack.c.h.b16 %v254
  %v302 = vunpack.c.l.b16 %v255
  %v303 = vunpack.c.h.b16 %v255
  %v304 = vunpack.c.l.b16 %v256
  %v305 = vunpack.c.h.b16 %v256
  %v306 = vunpack.c.l.b16 %v257
  %v307 = vunpack.c.h.b16 %v257
  %v308 = vunpack.c.l.b16 %v258
  %v309 = vunpack.c.h.b16 %v258
  %v310 = vunpack.c.l.b16 %v259
  %v311 = vunpack.c.h.b16 %v259
  %v312 = vunpack.c.l.b16 %v260
  %v313 = vunpack.c.h.b16 %v260
  %v314 = vunpack.c.l.b16 %v261
  %v315 = vunpack.c.h.b16 %v261
  %v316 = vpack.c.b16 %v280, %v280
  %v317 = vpack.c.b16 %v281, %v281
  %v318 = vpack.c.b16 %v282, %v282
  %v319 = vpack.c.b16 %v283, %v283
  %v320 = vpack.c.b16 %v284, %v284
  %v321 = vpack.c.b16 %v285, %v285
  %v322 = vpack.c.b16 %v286, %v286
  %v323 = vpack.c.b16 %v287, %v287
  %v324 = vpack.c.b16 %v288, %v288
  %v325 = vpack.c.b16 %v289, %v289
  %v326 = vpack.c.b16 %v290, %v290
  %v327 = vpack.c.b16 %v291, %v291
  %v328 = vpack.c.b16 %v292, %v292
  %v329 = vpack.c.b16 %v293, %v293
  %v330 = vpack.c.b16 %v294, %v294
  %v331 = vpack.c.b16 %v295, %v295
  %v332 = vpack.c.b16 %v296, %v296
  %v333 = vpack.c.b16 %v297, %v297
  %v334 = vpack.c.b16 %v298, %v298
  %v335 = vpack.c.b16 %v299, %v299
  %v336 = vpack.c.b16 %v300, %v300
  %v337 = vpack.c.b16 %v301, %v301
  %v338 = vpack.c.b16 %v302, %v302
  %v339 = vpack.c.b16 %v303, %v303
  %v340 = vpack.c.b16 %v304, %v304
  %v341 = vpack.c.b16 %v305, %v305
  %v342 = vpack.c.b16 %v306, %v306
  %v343 = vpack.c.b16 %v307, %v307
  %v344 = vpack.c.b16 %v308, %v308
  %v345 = vpack.c.b16 %v309, %v309
  %v346 = vpack.c.b16 %v310, %v310
  %v347 = vpack.c.b16 %v311, %v311
  %v348 = vpack.c.b16 %v312, %v312
  %v349 = vpack.c.b16 %v313, %v313
  %v350 = vpack.c.b16 %v314, %v314
  %v351 = vpack.c.b16 %v315, %v315
  %vm388 = vcmask 257024
  %389 = vst.msk [vmem:[%s3] sm:$0xf] %vm388, %v316
  %390 = vst.msk [vmem:[%s3 + $0x4] sm:$0xf] %vm388, %v317
  %391 = vst.msk [vmem:[%s3 + $0x8] sm:$0xf] %vm388, %v318
  %392 = vst.msk [vmem:[%s3 + $0xc] sm:$0xf] %vm388, %v319
  %393 = vst.msk [vmem:[%s3 + $0x10] sm:$0xf] %vm388, %v320
  %394 = vst.msk [vmem:[%s3 + $0x14] sm:$0xf] %vm388, %v321
  %395 = vst.msk [vmem:[%s3 + $0x18] sm:$0xf] %vm388, %v322
  %396 = vst.msk [vmem:[%s3 + $0x1c] sm:$0xf] %vm388, %v323
  %397 = vst.msk [vmem:[%s3 + $0x20] sm:$0xf] %vm388, %v324
  %398 = vst.msk [vmem:[%s3 + $0x24] sm:$0xf] %vm388, %v325
  %399 = vst.msk [vmem:[%s3 + $0x28] sm:$0xf] %vm388, %v326
  %400 = vst.msk [vmem:[%s3 + $0x2c] sm:$0xf] %vm388, %v327
  %401 = vst.msk [vmem:[%s3 + $0x30] sm:$0xf] %vm388, %v328
  %402 = vst.msk [vmem:[%s3 + $0x34] sm:$0xf] %vm388, %v329
  %403 = vst.msk [vmem:[%s3 + $0x38] sm:$0xf] %vm388, %v330
  %404 = vst.msk [vmem:[%s3 + $0x3c] sm:$0xf] %vm388, %v331
  %405 = vst.msk [vmem:[%s3 + $0x40] sm:$0xf] %vm388, %v332
  %406 = vst.msk [vmem:[%s3 + $0x44] sm:$0xf] %vm388, %v333
  %407 = vst.msk [vmem:[%s3 + $0x48] sm:$0xf] %vm388, %v334
  %408 = vst.msk [vmem:[%s3 + $0x4c] sm:$0xf] %vm388, %v335
  %409 = vst.msk [vmem:[%s3 + $0x50] sm:$0xf] %vm388, %v336
  %410 = vst.msk [vmem:[%s3 + $0x54] sm:$0xf] %vm388, %v337
  %411 = vst.msk [vmem:[%s3 + $0x58] sm:$0xf] %vm388, %v338
  %412 = vst.msk [vmem:[%s3 + $0x5c] sm:$0xf] %vm388, %v339
  %413 = vst.msk [vmem:[%s3 + $0x60] sm:$0xf] %vm388, %v340
  %414 = vst.msk [vmem:[%s3 + $0x64] sm:$0xf] %vm388, %v341
  %415 = vst.msk [vmem:[%s3 + $0x68] sm:$0xf] %vm388, %v342
  %416 = vst.msk [vmem:[%s3 + $0x6c] sm:$0xf] %vm388, %v343
  %417 = vst.msk [vmem:[%s3 + $0x70] sm:$0xf] %vm388, %v344
  %418 = vst.msk [vmem:[%s3 + $0x74] sm:$0xf] %vm388, %v345
  %419 = vst.msk [vmem:[%s3 + $0x78] sm:$0xf] %vm388, %v346
  %420 = vst.msk [vmem:[%s3 + $0x7c] sm:$0xf] %vm388, %v347
  %421 = vst.msk [vmem:[%s3 + $0x80] sm:$0xf] %vm388, %v348
  %422 = vst.msk [vmem:[%s3 + $0x84] sm:$0xf] %vm388, %v349
  %423 = vst.msk [vmem:[%s3 + $0x88] sm:$0xf] %vm388, %v350
  %424 = vst.msk [vmem:[%s3 + $0x8c] sm:$0xf] %vm388, %v351
  // Predicated region
  $region14: #{discriminator_forward.12} parent=0 // pred_check
    _
  $region15: #{discriminator_forward.12} parent=0 // pred_check_branch
    %426 = sbr.rel (0) target = $region17
  $region16: #{discriminator_forward.12} parent=0 // pred_region
    _
  $region17: #{discriminator_forward.12} parent=0 // pred_fallthru
    _
  // Predicated region
  $region18: #{discriminator_forward.12} parent=0 // pred_check
    _
  $region19: #{discriminator_forward.12} parent=0 // pred_check_branch
    %428 = sbr.rel (0) target = $region21
  $region20: #{discriminator_forward.12} parent=0 // pred_region
    _
  $region21: #{discriminator_forward.12} parent=0 // pred_fallthru
    _

// kernel: discriminator_forward.13
$region0: #{discriminator_forward.13}
  #allocation0 [shape = 'u32[]', space=smem, size = 0x4, offset = 0x4, fixed_abs, tag = 'smem constant byte address 0x4 - core index']
  #allocation1 [shape = 'u32[144,128]{1,0:T(1,128)}', space=vmem, size = 0x12000, scoped, tag = 'internal scratch']
  %s0 = inlined_call_operand.vmem [shape: bf16[32,2048], index: 0, kind: input, shape index: {}]
  %s1 = inlined_call_operand.vmem [shape: bf16[2048,64], index: 1, kind: input, shape index: {}]
  %s2 = inlined_call_operand.vmem [shape: f32[32,64], index: 2, kind: output, shape index: {}]
  %s3 = sld [smem:[#allocation0]]
  $region18: #{discriminator_forward.13} parent=0
    _
  %s5 = ssub.s32 1, %s3
  %s6 = scalar_select 0, %s5, %s3
  // Predicated region
  $region2: #{discriminator_forward.13} parent=0 // pred_check
    _
  $region3: #{discriminator_forward.13} parent=0 // pred_check_branch
    %8 = sbr.rel (0) target = $region5
  $region4: #{discriminator_forward.13} parent=0 // pred_region
    _
  $region5: #{discriminator_forward.13} parent=0 // pred_fallthru
    _
  // Predicated region
  $region6: #{discriminator_forward.13} parent=0 // pred_check
    _
  $region7: #{discriminator_forward.13} parent=0 // pred_check_branch
    %10 = sbr.rel (0) target = $region9
  $region8: #{discriminator_forward.13} parent=0 // pred_region
    _
  $region9: #{discriminator_forward.13} parent=0 // pred_fallthru
    _
  %v12 = vld [vmem:[%s0] sm:$0xff]
  %v13 = vld [vmem:[%s0 + $0x8] sm:$0xff]
  %v14 = vld [vmem:[%s0 + $0x10] sm:$0xff]
  %v15 = vld [vmem:[%s0 + $0x18] sm:$0xff]
  %v16 = vld [vmem:[%s0 + $0x20] sm:$0xff]
  %v17 = vld [vmem:[%s0 + $0x28] sm:$0xff]
  %v18 = vld [vmem:[%s0 + $0x30] sm:$0xff]
  %v19 = vld [vmem:[%s0 + $0x38] sm:$0xff]
  %v20 = vld [vmem:[%s0 + $0x40] sm:$0xff]
  %v21 = vld [vmem:[%s0 + $0x48] sm:$0xff]
  %v22 = vld [vmem:[%s0 + $0x50] sm:$0xff]
  %v23 = vld [vmem:[%s0 + $0x58] sm:$0xff]
  %v24 = vld [vmem:[%s0 + $0x60] sm:$0xff]
  %v25 = vld [vmem:[%s0 + $0x68] sm:$0xff]
  %v26 = vld [vmem:[%s0 + $0x70] sm:$0xff]
  %v27 = vld [vmem:[%s0 + $0x78] sm:$0xff]
  %v28 = vld [vmem:[%s0 + $0x80] sm:$0xff]
  %v29 = vld [vmem:[%s0 + $0x88] sm:$0xff]
  %v30 = vld [vmem:[%s0 + $0x90] sm:$0xff]
  %v31 = vld [vmem:[%s0 + $0x98] sm:$0xff]
  %v32 = vld [vmem:[%s0 + $0xa0] sm:$0xff]
  %v33 = vld [vmem:[%s0 + $0xa8] sm:$0xff]
  %v34 = vld [vmem:[%s0 + $0xb0] sm:$0xff]
  %v35 = vld [vmem:[%s0 + $0xb8] sm:$0xff]
  %v36 = vld [vmem:[%s0 + $0xc0] sm:$0xff]
  %v37 = vld [vmem:[%s0 + $0xc8] sm:$0xff]
  %v38 = vld [vmem:[%s0 + $0xd0] sm:$0xff]
  %v39 = vld [vmem:[%s0 + $0xd8] sm:$0xff]
  %v40 = vld [vmem:[%s0 + $0xe0] sm:$0xff]
  %v41 = vld [vmem:[%s0 + $0xe8] sm:$0xff]
  %v42 = vld [vmem:[%s0 + $0xf0] sm:$0xff]
  %v43 = vld [vmem:[%s0 + $0xf8] sm:$0xff]
  %v44 = vld [vmem:[%s1] sm:$0xf]
  %v45 = vld [vmem:[%s1 + $0x4] sm:$0xf]
  %v46 = vld [vmem:[%s1 + $0x8] sm:$0xf]
  %v47 = vld [vmem:[%s1 + $0xc] sm:$0xf]
  %v48 = vld [vmem:[%s1 + $0x10] sm:$0xf]
  %v49 = vld [vmem:[%s1 + $0x14] sm:$0xf]
  %v50 = vld [vmem:[%s1 + $0x18] sm:$0xf]
  %v51 = vld [vmem:[%s1 + $0x1c] sm:$0xf]
  %v52 = vld [vmem:[%s1 + $0x20] sm:$0xf]
  %v53 = vld [vmem:[%s1 + $0x24] sm:$0xf]
  %v54 = vld [vmem:[%s1 + $0x28] sm:$0xf]
  %v55 = vld [vmem:[%s1 + $0x2c] sm:$0xf]
  %v56 = vld [vmem:[%s1 + $0x30] sm:$0xf]
  %v57 = vld [vmem:[%s1 + $0x34] sm:$0xf]
  %v58 = vld [vmem:[%s1 + $0x38] sm:$0xf]
  %v59 = vld [vmem:[%s1 + $0x3c] sm:$0xf]
  %v60 = vld [vmem:[%s1 + $0x40] sm:$0xf]
  %v61 = vld [vmem:[%s1 + $0x44] sm:$0xf]
  %v62 = vld [vmem:[%s1 + $0x48] sm:$0xf]
  %v63 = vld [vmem:[%s1 + $0x4c] sm:$0xf]
  %v64 = vld [vmem:[%s1 + $0x50] sm:$0xf]
  %v65 = vld [vmem:[%s1 + $0x54] sm:$0xf]
  %v66 = vld [vmem:[%s1 + $0x58] sm:$0xf]
  %v67 = vld [vmem:[%s1 + $0x5c] sm:$0xf]
  %v68 = vld [vmem:[%s1 + $0x60] sm:$0xf]
  %v69 = vld [vmem:[%s1 + $0x64] sm:$0xf]
  %v70 = vld [vmem:[%s1 + $0x68] sm:$0xf]
  %v71 = vld [vmem:[%s1 + $0x6c] sm:$0xf]
  %v72 = vld [vmem:[%s1 + $0x70] sm:$0xf]
  %v73 = vld [vmem:[%s1 + $0x74] sm:$0xf]
  %v74 = vld [vmem:[%s1 + $0x78] sm:$0xf]
  %v75 = vld [vmem:[%s1 + $0x7c] sm:$0xf]
  %v76 = vld [vmem:[%s1 + $0x80] sm:$0xf]
  %v77 = vld [vmem:[%s1 + $0x84] sm:$0xf]
  %v78 = vld [vmem:[%s1 + $0x88] sm:$0xf]
  %v79 = vld [vmem:[%s1 + $0x8c] sm:$0xf]
  %v80 = vld [vmem:[%s1 + $0x90] sm:$0xf]
  %v81 = vld [vmem:[%s1 + $0x94] sm:$0xf]
  %v82 = vld [vmem:[%s1 + $0x98] sm:$0xf]
  %v83 = vld [vmem:[%s1 + $0x9c] sm:$0xf]
  %v84 = vld [vmem:[%s1 + $0xa0] sm:$0xf]
  %v85 = vld [vmem:[%s1 + $0xa4] sm:$0xf]
  %v86 = vld [vmem:[%s1 + $0xa8] sm:$0xf]
  %v87 = vld [vmem:[%s1 + $0xac] sm:$0xf]
  %v88 = vld [vmem:[%s1 + $0xb0] sm:$0xf]
  %v89 = vld [vmem:[%s1 + $0xb4] sm:$0xf]
  %v90 = vld [vmem:[%s1 + $0xb8] sm:$0xf]
  %v91 = vld [vmem:[%s1 + $0xbc] sm:$0xf]
  %v92 = vld [vmem:[%s1 + $0xc0] sm:$0xf]
  %v93 = vld [vmem:[%s1 + $0xc4] sm:$0xf]
  %v94 = vld [vmem:[%s1 + $0xc8] sm:$0xf]
  %v95 = vld [vmem:[%s1 + $0xcc] sm:$0xf]
  %v96 = vld [vmem:[%s1 + $0xd0] sm:$0xf]
  %v97 = vld [vmem:[%s1 + $0xd4] sm:$0xf]
  %v98 = vld [vmem:[%s1 + $0xd8] sm:$0xf]
  %v99 = vld [vmem:[%s1 + $0xdc] sm:$0xf]
  %v100 = vld [vmem:[%s1 + $0xe0] sm:$0xf]
  %v101 = vld [vmem:[%s1 + $0xe4] sm:$0xf]
  %v102 = vld [vmem:[%s1 + $0xe8] sm:$0xf]
  %v103 = vld [vmem:[%s1 + $0xec] sm:$0xf]
  %v104 = vld [vmem:[%s1 + $0xf0] sm:$0xf]
  %v105 = vld [vmem:[%s1 + $0xf4] sm:$0xf]
  %v106 = vld [vmem:[%s1 + $0xf8] sm:$0xf]
  %v107 = vld [vmem:[%s1 + $0xfc] sm:$0xf]
  %v108 = vld [vmem:[%s1 + $0x100] sm:$0xf]
  %v109 = vld [vmem:[%s1 + $0x104] sm:$0xf]
  %v110 = vld [vmem:[%s1 + $0x108] sm:$0xf]
  %v111 = vld [vmem:[%s1 + $0x10c] sm:$0xf]
  %v112 = vld [vmem:[%s1 + $0x110] sm:$0xf]
  %v113 = vld [vmem:[%s1 + $0x114] sm:$0xf]
  %v114 = vld [vmem:[%s1 + $0x118] sm:$0xf]
  %v115 = vld [vmem:[%s1 + $0x11c] sm:$0xf]
  %v116 = vld [vmem:[%s1 + $0x120] sm:$0xf]
  %v117 = vld [vmem:[%s1 + $0x124] sm:$0xf]
  %v118 = vld [vmem:[%s1 + $0x128] sm:$0xf]
  %v119 = vld [vmem:[%s1 + $0x12c] sm:$0xf]
  %v120 = vld [vmem:[%s1 + $0x130] sm:$0xf]
  %v121 = vld [vmem:[%s1 + $0x134] sm:$0xf]
  %v122 = vld [vmem:[%s1 + $0x138] sm:$0xf]
  %v123 = vld [vmem:[%s1 + $0x13c] sm:$0xf]
  %v124 = vld [vmem:[%s1 + $0x140] sm:$0xf]
  %v125 = vld [vmem:[%s1 + $0x144] sm:$0xf]
  %v126 = vld [vmem:[%s1 + $0x148] sm:$0xf]
  %v127 = vld [vmem:[%s1 + $0x14c] sm:$0xf]
  %v128 = vld [vmem:[%s1 + $0x150] sm:$0xf]
  %v129 = vld [vmem:[%s1 + $0x154] sm:$0xf]
  %v130 = vld [vmem:[%s1 + $0x158] sm:$0xf]
  %v131 = vld [vmem:[%s1 + $0x15c] sm:$0xf]
  %v132 = vld [vmem:[%s1 + $0x160] sm:$0xf]
  %v133 = vld [vmem:[%s1 + $0x164] sm:$0xf]
  %v134 = vld [vmem:[%s1 + $0x168] sm:$0xf]
  %v135 = vld [vmem:[%s1 + $0x16c] sm:$0xf]
  %v136 = vld [vmem:[%s1 + $0x170] sm:$0xf]
  %v137 = vld [vmem:[%s1 + $0x174] sm:$0xf]
  %v138 = vld [vmem:[%s1 + $0x178] sm:$0xf]
  %v139 = vld [vmem:[%s1 + $0x17c] sm:$0xf]
  %v140 = vld [vmem:[%s1 + $0x180] sm:$0xf]
  %v141 = vld [vmem:[%s1 + $0x184] sm:$0xf]
  %v142 = vld [vmem:[%s1 + $0x188] sm:$0xf]
  %v143 = vld [vmem:[%s1 + $0x18c] sm:$0xf]
  %v144 = vld [vmem:[%s1 + $0x190] sm:$0xf]
  %v145 = vld [vmem:[%s1 + $0x194] sm:$0xf]
  %v146 = vld [vmem:[%s1 + $0x198] sm:$0xf]
  %v147 = vld [vmem:[%s1 + $0x19c] sm:$0xf]
  %v148 = vld [vmem:[%s1 + $0x1a0] sm:$0xf]
  %v149 = vld [vmem:[%s1 + $0x1a4] sm:$0xf]
  %v150 = vld [vmem:[%s1 + $0x1a8] sm:$0xf]
  %v151 = vld [vmem:[%s1 + $0x1ac] sm:$0xf]
  %v152 = vld [vmem:[%s1 + $0x1b0] sm:$0xf]
  %v153 = vld [vmem:[%s1 + $0x1b4] sm:$0xf]
  %v154 = vld [vmem:[%s1 + $0x1b8] sm:$0xf]
  %v155 = vld [vmem:[%s1 + $0x1bc] sm:$0xf]
  %v156 = vld [vmem:[%s1 + $0x1c0] sm:$0xf]
  %v157 = vld [vmem:[%s1 + $0x1c4] sm:$0xf]
  %v158 = vld [vmem:[%s1 + $0x1c8] sm:$0xf]
  %v159 = vld [vmem:[%s1 + $0x1cc] sm:$0xf]
  %v160 = vld [vmem:[%s1 + $0x1d0] sm:$0xf]
  %v161 = vld [vmem:[%s1 + $0x1d4] sm:$0xf]
  %v162 = vld [vmem:[%s1 + $0x1d8] sm:$0xf]
  %v163 = vld [vmem:[%s1 + $0x1dc] sm:$0xf]
  %v164 = vld [vmem:[%s1 + $0x1e0] sm:$0xf]
  %v165 = vld [vmem:[%s1 + $0x1e4] sm:$0xf]
  %v166 = vld [vmem:[%s1 + $0x1e8] sm:$0xf]
  %v167 = vld [vmem:[%s1 + $0x1ec] sm:$0xf]
  %v168 = vld [vmem:[%s1 + $0x1f0] sm:$0xf]
  %v169 = vld [vmem:[%s1 + $0x1f4] sm:$0xf]
  %v170 = vld [vmem:[%s1 + $0x1f8] sm:$0xf]
  %v171 = vld [vmem:[%s1 + $0x1fc] sm:$0xf]
  %v172 = vld [vmem:[%s1 + $0x200] sm:$0xf]
  %v173 = vld [vmem:[%s1 + $0x204] sm:$0xf]
  %v174 = vld [vmem:[%s1 + $0x208] sm:$0xf]
  %v175 = vld [vmem:[%s1 + $0x20c] sm:$0xf]
  %v176 = vld [vmem:[%s1 + $0x210] sm:$0xf]
  %v177 = vld [vmem:[%s1 + $0x214] sm:$0xf]
  %v178 = vld [vmem:[%s1 + $0x218] sm:$0xf]
  %v179 = vld [vmem:[%s1 + $0x21c] sm:$0xf]
  %v180 = vld [vmem:[%s1 + $0x220] sm:$0xf]
  %v181 = vld [vmem:[%s1 + $0x224] sm:$0xf]
  %v182 = vld [vmem:[%s1 + $0x228] sm:$0xf]
  %v183 = vld [vmem:[%s1 + $0x22c] sm:$0xf]
  %v184 = vld [vmem:[%s1 + $0x230] sm:$0xf]
  %v185 = vld [vmem:[%s1 + $0x234] sm:$0xf]
  %v186 = vld [vmem:[%s1 + $0x238] sm:$0xf]
  %v187 = vld [vmem:[%s1 + $0x23c] sm:$0xf]
  %v188 = vld [vmem:[%s1 + $0x240] sm:$0xf]
  %v189 = vld [vmem:[%s1 + $0x244] sm:$0xf]
  %v190 = vld [vmem:[%s1 + $0x248] sm:$0xf]
  %v191 = vld [vmem:[%s1 + $0x24c] sm:$0xf]
  %v192 = vld [vmem:[%s1 + $0x250] sm:$0xf]
  %v193 = vld [vmem:[%s1 + $0x254] sm:$0xf]
  %v194 = vld [vmem:[%s1 + $0x258] sm:$0xf]
  %v195 = vld [vmem:[%s1 + $0x25c] sm:$0xf]
  %v196 = vld [vmem:[%s1 + $0x260] sm:$0xf]
  %v197 = vld [vmem:[%s1 + $0x264] sm:$0xf]
  %v198 = vld [vmem:[%s1 + $0x268] sm:$0xf]
  %v199 = vld [vmem:[%s1 + $0x26c] sm:$0xf]
  %v200 = vld [vmem:[%s1 + $0x270] sm:$0xf]
  %v201 = vld [vmem:[%s1 + $0x274] sm:$0xf]
  %v202 = vld [vmem:[%s1 + $0x278] sm:$0xf]
  %v203 = vld [vmem:[%s1 + $0x27c] sm:$0xf]
  %v204 = vld [vmem:[%s1 + $0x280] sm:$0xf]
  %v205 = vld [vmem:[%s1 + $0x284] sm:$0xf]
  %v206 = vld [vmem:[%s1 + $0x288] sm:$0xf]
  %v207 = vld [vmem:[%s1 + $0x28c] sm:$0xf]
  %v208 = vld [vmem:[%s1 + $0x290] sm:$0xf]
  %v209 = vld [vmem:[%s1 + $0x294] sm:$0xf]
  %v210 = vld [vmem:[%s1 + $0x298] sm:$0xf]
  %v211 = vld [vmem:[%s1 + $0x29c] sm:$0xf]
  %v212 = vld [vmem:[%s1 + $0x2a0] sm:$0xf]
  %v213 = vld [vmem:[%s1 + $0x2a4] sm:$0xf]
  %v214 = vld [vmem:[%s1 + $0x2a8] sm:$0xf]
  %v215 = vld [vmem:[%s1 + $0x2ac] sm:$0xf]
  %v216 = vld [vmem:[%s1 + $0x2b0] sm:$0xf]
  %v217 = vld [vmem:[%s1 + $0x2b4] sm:$0xf]
  %v218 = vld [vmem:[%s1 + $0x2b8] sm:$0xf]
  %v219 = vld [vmem:[%s1 + $0x2bc] sm:$0xf]
  %v220 = vld [vmem:[%s1 + $0x2c0] sm:$0xf]
  %v221 = vld [vmem:[%s1 + $0x2c4] sm:$0xf]
  %v222 = vld [vmem:[%s1 + $0x2c8] sm:$0xf]
  %v223 = vld [vmem:[%s1 + $0x2cc] sm:$0xf]
  %v224 = vld [vmem:[%s1 + $0x2d0] sm:$0xf]
  %v225 = vld [vmem:[%s1 + $0x2d4] sm:$0xf]
  %v226 = vld [vmem:[%s1 + $0x2d8] sm:$0xf]
  %v227 = vld [vmem:[%s1 + $0x2dc] sm:$0xf]
  %v228 = vld [vmem:[%s1 + $0x2e0] sm:$0xf]
  %v229 = vld [vmem:[%s1 + $0x2e4] sm:$0xf]
  %v230 = vld [vmem:[%s1 + $0x2e8] sm:$0xf]
  %v231 = vld [vmem:[%s1 + $0x2ec] sm:$0xf]
  %v232 = vld [vmem:[%s1 + $0x2f0] sm:$0xf]
  %v233 = vld [vmem:[%s1 + $0x2f4] sm:$0xf]
  %v234 = vld [vmem:[%s1 + $0x2f8] sm:$0xf]
  %v235 = vld [vmem:[%s1 + $0x2fc] sm:$0xf]
  %v236 = vld [vmem:[%s1 + $0x300] sm:$0xf]
  %v237 = vld [vmem:[%s1 + $0x304] sm:$0xf]
  %v238 = vld [vmem:[%s1 + $0x308] sm:$0xf]
  %v239 = vld [vmem:[%s1 + $0x30c] sm:$0xf]
  %v240 = vld [vmem:[%s1 + $0x310] sm:$0xf]
  %v241 = vld [vmem:[%s1 + $0x314] sm:$0xf]
  %v242 = vld [vmem:[%s1 + $0x318] sm:$0xf]
  %v243 = vld [vmem:[%s1 + $0x31c] sm:$0xf]
  %v244 = vld [vmem:[%s1 + $0x320] sm:$0xf]
  %v245 = vld [vmem:[%s1 + $0x324] sm:$0xf]
  %v246 = vld [vmem:[%s1 + $0x328] sm:$0xf]
  %v247 = vld [vmem:[%s1 + $0x32c] sm:$0xf]
  %v248 = vld [vmem:[%s1 + $0x330] sm:$0xf]
  %v249 = vld [vmem:[%s1 + $0x334] sm:$0xf]
  %v250 = vld [vmem:[%s1 + $0x338] sm:$0xf]
  %v251 = vld [vmem:[%s1 + $0x33c] sm:$0xf]
  %v252 = vld [vmem:[%s1 + $0x340] sm:$0xf]
  %v253 = vld [vmem:[%s1 + $0x344] sm:$0xf]
  %v254 = vld [vmem:[%s1 + $0x348] sm:$0xf]
  %v255 = vld [vmem:[%s1 + $0x34c] sm:$0xf]
  %v256 = vld [vmem:[%s1 + $0x350] sm:$0xf]
  %v257 = vld [vmem:[%s1 + $0x354] sm:$0xf]
  %v258 = vld [vmem:[%s1 + $0x358] sm:$0xf]
  %v259 = vld [vmem:[%s1 + $0x35c] sm:$0xf]
  %v260 = vld [vmem:[%s1 + $0x360] sm:$0xf]
  %v261 = vld [vmem:[%s1 + $0x364] sm:$0xf]
  %v262 = vld [vmem:[%s1 + $0x368] sm:$0xf]
  %v263 = vld [vmem:[%s1 + $0x36c] sm:$0xf]
  %v264 = vld [vmem:[%s1 + $0x370] sm:$0xf]
  %v265 = vld [vmem:[%s1 + $0x374] sm:$0xf]
  %v266 = vld [vmem:[%s1 + $0x378] sm:$0xf]
  %v267 = vld [vmem:[%s1 + $0x37c] sm:$0xf]
  %v268 = vld [vmem:[%s1 + $0x380] sm:$0xf]
  %v269 = vld [vmem:[%s1 + $0x384] sm:$0xf]
  %v270 = vld [vmem:[%s1 + $0x388] sm:$0xf]
  %v271 = vld [vmem:[%s1 + $0x38c] sm:$0xf]
  %v272 = vld [vmem:[%s1 + $0x390] sm:$0xf]
  %v273 = vld [vmem:[%s1 + $0x394] sm:$0xf]
  %v274 = vld [vmem:[%s1 + $0x398] sm:$0xf]
  %v275 = vld [vmem:[%s1 + $0x39c] sm:$0xf]
  %v276 = vld [vmem:[%s1 + $0x3a0] sm:$0xf]
  %v277 = vld [vmem:[%s1 + $0x3a4] sm:$0xf]
  %v278 = vld [vmem:[%s1 + $0x3a8] sm:$0xf]
  %v279 = vld [vmem:[%s1 + $0x3ac] sm:$0xf]
  %v280 = vld [vmem:[%s1 + $0x3b0] sm:$0xf]
  %v281 = vld [vmem:[%s1 + $0x3b4] sm:$0xf]
  %v282 = vld [vmem:[%s1 + $0x3b8] sm:$0xf]
  %v283 = vld [vmem:[%s1 + $0x3bc] sm:$0xf]
  %v284 = vld [vmem:[%s1 + $0x3c0] sm:$0xf]
  %v285 = vld [vmem:[%s1 + $0x3c4] sm:$0xf]
  %v286 = vld [vmem:[%s1 + $0x3c8] sm:$0xf]
  %v287 = vld [vmem:[%s1 + $0x3cc] sm:$0xf]
  %v288 = vld [vmem:[%s1 + $0x3d0] sm:$0xf]
  %v289 = vld [vmem:[%s1 + $0x3d4] sm:$0xf]
  %v290 = vld [vmem:[%s1 + $0x3d8] sm:$0xf]
  %v291 = vld [vmem:[%s1 + $0x3dc] sm:$0xf]
  %v292 = vld [vmem:[%s1 + $0x3e0] sm:$0xf]
  %v293 = vld [vmem:[%s1 + $0x3e4] sm:$0xf]
  %v294 = vld [vmem:[%s1 + $0x3e8] sm:$0xf]
  %v295 = vld [vmem:[%s1 + $0x3ec] sm:$0xf]
  %v296 = vld [vmem:[%s1 + $0x3f0] sm:$0xf]
  %v297 = vld [vmem:[%s1 + $0x3f4] sm:$0xf]
  %v298 = vld [vmem:[%s1 + $0x3f8] sm:$0xf]
  %v299 = vld [vmem:[%s1 + $0x3fc] sm:$0xf]
  %v332 = vunpack.c.l.b16 %v12
  %v333 = vunpack.c.h.b16 %v12
  %v334 = vunpack.c.l.b16 %v13
  %v335 = vunpack.c.h.b16 %v13
  %v336 = vunpack.c.l.b16 %v14
  %v337 = vunpack.c.h.b16 %v14
  %v338 = vunpack.c.l.b16 %v15
  %v339 = vunpack.c.h.b16 %v15
  %v340 = vunpack.c.l.b16 %v16
  %v341 = vunpack.c.h.b16 %v16
  %v342 = vunpack.c.l.b16 %v17
  %v343 = vunpack.c.h.b16 %v17
  %v344 = vunpack.c.l.b16 %v18
  %v345 = vunpack.c.h.b16 %v18
  %v346 = vunpack.c.l.b16 %v19
  %v347 = vunpack.c.h.b16 %v19
  %v348 = vunpack.c.l.b16 %v20
  %v349 = vunpack.c.h.b16 %v20
  %v350 = vunpack.c.l.b16 %v21
  %v351 = vunpack.c.h.b16 %v21
  %v352 = vunpack.c.l.b16 %v22
  %v353 = vunpack.c.h.b16 %v22
  %v354 = vunpack.c.l.b16 %v23
  %v355 = vunpack.c.h.b16 %v23
  %v356 = vunpack.c.l.b16 %v24
  %v357 = vunpack.c.h.b16 %v24
  %v358 = vunpack.c.l.b16 %v25
  %v359 = vunpack.c.h.b16 %v25
  %v360 = vunpack.c.l.b16 %v26
  %v361 = vunpack.c.h.b16 %v26
  %v362 = vunpack.c.l.b16 %v27
  %v363 = vunpack.c.h.b16 %v27
  %v364 = vunpack.c.l.b16 %v28
  %v365 = vunpack.c.h.b16 %v28
  %v366 = vunpack.c.l.b16 %v29
  %v367 = vunpack.c.h.b16 %v29
  %v368 = vunpack.c.l.b16 %v30
  %v369 = vunpack.c.h.b16 %v30
  %v370 = vunpack.c.l.b16 %v31
  %v371 = vunpack.c.h.b16 %v31
  %v372 = vunpack.c.l.b16 %v32
  %v373 = vunpack.c.h.b16 %v32
  %v374 = vunpack.c.l.b16 %v33
  %v375 = vunpack.c.h.b16 %v33
  %v376 = vunpack.c.l.b16 %v34
  %v377 = vunpack.c.h.b16 %v34
  %v378 = vunpack.c.l.b16 %v35
  %v379 = vunpack.c.h.b16 %v35
  %v380 = vunpack.c.l.b16 %v36
  %v381 = vunpack.c.h.b16 %v36
  %v382 = vunpack.c.l.b16 %v37
  %v383 = vunpack.c.h.b16 %v37
  %v384 = vunpack.c.l.b16 %v38
  %v385 = vunpack.c.h.b16 %v38
  %v386 = vunpack.c.l.b16 %v39
  %v387 = vunpack.c.h.b16 %v39
  %v388 = vunpack.c.l.b16 %v40
  %v389 = vunpack.c.h.b16 %v40
  %v390 = vunpack.c.l.b16 %v41
  %v391 = vunpack.c.h.b16 %v41
  %v392 = vunpack.c.l.b16 %v42
  %v393 = vunpack.c.h.b16 %v42
  %v394 = vunpack.c.l.b16 %v43
  %v395 = vunpack.c.h.b16 %v43
  %v396 = vpack.c.b16 %v348, %v332
  %v397 = vpack.c.b16 %v349, %v333
  %v398 = vpack.c.b16 %v350, %v334
  %v399 = vpack.c.b16 %v351, %v335
  %v400 = vpack.c.b16 %v352, %v336
  %v401 = vpack.c.b16 %v353, %v337
  %v402 = vpack.c.b16 %v354, %v338
  %v403 = vpack.c.b16 %v355, %v339
  %v404 = vpack.c.b16 %v356, %v340
  %v405 = vpack.c.b16 %v357, %v341
  %v406 = vpack.c.b16 %v358, %v342
  %v407 = vpack.c.b16 %v359, %v343
  %v408 = vpack.c.b16 %v360, %v344
  %v409 = vpack.c.b16 %v361, %v345
  %v410 = vpack.c.b16 %v362, %v346
  %v411 = vpack.c.b16 %v363, %v347
  %v412 = vpack.c.b16 %v380, %v364
  %v413 = vpack.c.b16 %v381, %v365
  %v414 = vpack.c.b16 %v382, %v366
  %v415 = vpack.c.b16 %v383, %v367
  %v416 = vpack.c.b16 %v384, %v368
  %v417 = vpack.c.b16 %v385, %v369
  %v418 = vpack.c.b16 %v386, %v370
  %v419 = vpack.c.b16 %v387, %v371
  %v420 = vpack.c.b16 %v388, %v372
  %v421 = vpack.c.b16 %v389, %v373
  %v422 = vpack.c.b16 %v390, %v374
  %v423 = vpack.c.b16 %v391, %v375
  %v424 = vpack.c.b16 %v392, %v376
  %v425 = vpack.c.b16 %v393, %v377
  %v426 = vpack.c.b16 %v394, %v378
  %v427 = vpack.c.b16 %v395, %v379
  %v716 = vunpack.c.l.b16 %v44
  %v717 = vunpack.c.l.b16 %v45
  %v718 = vunpack.c.l.b16 %v46
  %v719 = vunpack.c.l.b16 %v47
  %v720 = vunpack.c.l.b16 %v48
  %v721 = vunpack.c.l.b16 %v49
  %v722 = vunpack.c.l.b16 %v50
  %v723 = vunpack.c.l.b16 %v51
  %v724 = vunpack.c.l.b16 %v52
  %v725 = vunpack.c.l.b16 %v53
  %v726 = vunpack.c.l.b16 %v54
  %v727 = vunpack.c.l.b16 %v55
  %v728 = vunpack.c.l.b16 %v56
  %v729 = vunpack.c.l.b16 %v57
  %v730 = vunpack.c.l.b16 %v58
  %v731 = vunpack.c.l.b16 %v59
  %v732 = vunpack.c.l.b16 %v60
  %v733 = vunpack.c.l.b16 %v61
  %v734 = vunpack.c.l.b16 %v62
  %v735 = vunpack.c.l.b16 %v63
  %v736 = vunpack.c.l.b16 %v64
  %v737 = vunpack.c.l.b16 %v65
  %v738 = vunpack.c.l.b16 %v66
  %v739 = vunpack.c.l.b16 %v67
  %v740 = vunpack.c.l.b16 %v68
  %v741 = vunpack.c.l.b16 %v69
  %v742 = vunpack.c.l.b16 %v70
  %v743 = vunpack.c.l.b16 %v71
  %v744 = vunpack.c.l.b16 %v72
  %v745 = vunpack.c.l.b16 %v73
  %v746 = vunpack.c.l.b16 %v74
  %v747 = vunpack.c.l.b16 %v75
  %v748 = vunpack.c.l.b16 %v76
  %v749 = vunpack.c.l.b16 %v77
  %v750 = vunpack.c.l.b16 %v78
  %v751 = vunpack.c.l.b16 %v79
  %v752 = vunpack.c.l.b16 %v80
  %v753 = vunpack.c.l.b16 %v81
  %v754 = vunpack.c.l.b16 %v82
  %v755 = vunpack.c.l.b16 %v83
  %v756 = vunpack.c.l.b16 %v84
  %v757 = vunpack.c.l.b16 %v85
  %v758 = vunpack.c.l.b16 %v86
  %v759 = vunpack.c.l.b16 %v87
  %v760 = vunpack.c.l.b16 %v88
  %v761 = vunpack.c.l.b16 %v89
  %v762 = vunpack.c.l.b16 %v90
  %v763 = vunpack.c.l.b16 %v91
  %v764 = vunpack.c.l.b16 %v92
  %v765 = vunpack.c.l.b16 %v93
  %v766 = vunpack.c.l.b16 %v94
  %v767 = vunpack.c.l.b16 %v95
  %v768 = vunpack.c.l.b16 %v96
  %v769 = vunpack.c.l.b16 %v97
  %v770 = vunpack.c.l.b16 %v98
  %v771 = vunpack.c.l.b16 %v99
  %v772 = vunpack.c.l.b16 %v100
  %v773 = vunpack.c.l.b16 %v101
  %v774 = vunpack.c.l.b16 %v102
  %v775 = vunpack.c.l.b16 %v103
  %v776 = vunpack.c.l.b16 %v104
  %v777 = vunpack.c.l.b16 %v105
  %v778 = vunpack.c.l.b16 %v106
  %v779 = vunpack.c.l.b16 %v107
  %v780 = vunpack.c.l.b16 %v108
  %v781 = vunpack.c.l.b16 %v109
  %v782 = vunpack.c.l.b16 %v110
  %v783 = vunpack.c.l.b16 %v111
  %v784 = vunpack.c.l.b16 %v112
  %v785 = vunpack.c.l.b16 %v113
  %v786 = vunpack.c.l.b16 %v114
  %v787 = vunpack.c.l.b16 %v115
  %v788 = vunpack.c.l.b16 %v116
  %v789 = vunpack.c.l.b16 %v117
  %v790 = vunpack.c.l.b16 %v118
  %v791 = vunpack.c.l.b16 %v119
  %v792 = vunpack.c.l.b16 %v120
  %v793 = vunpack.c.l.b16 %v121
  %v794 = vunpack.c.l.b16 %v122
  %v795 = vunpack.c.l.b16 %v123
  %v796 = vunpack.c.l.b16 %v124
  %v797 = vunpack.c.l.b16 %v125
  %v798 = vunpack.c.l.b16 %v126
  %v799 = vunpack.c.l.b16 %v127
  %v800 = vunpack.c.l.b16 %v128
  %v801 = vunpack.c.l.b16 %v129
  %v802 = vunpack.c.l.b16 %v130
  %v803 = vunpack.c.l.b16 %v131
  %v804 = vunpack.c.l.b16 %v132
  %v805 = vunpack.c.l.b16 %v133
  %v806 = vunpack.c.l.b16 %v134
  %v807 = vunpack.c.l.b16 %v135
  %v808 = vunpack.c.l.b16 %v136
  %v809 = vunpack.c.l.b16 %v137
  %v810 = vunpack.c.l.b16 %v138
  %v811 = vunpack.c.l.b16 %v139
  %v812 = vunpack.c.l.b16 %v140
  %v813 = vunpack.c.l.b16 %v141
  %v814 = vunpack.c.l.b16 %v142
  %v815 = vunpack.c.l.b16 %v143
  %v816 = vunpack.c.l.b16 %v144
  %v817 = vunpack.c.l.b16 %v145
  %v818 = vunpack.c.l.b16 %v146
  %v819 = vunpack.c.l.b16 %v147
  %v820 = vunpack.c.l.b16 %v148
  %v821 = vunpack.c.l.b16 %v149
  %v822 = vunpack.c.l.b16 %v150
  %v823 = vunpack.c.l.b16 %v151
  %v824 = vunpack.c.l.b16 %v152
  %v825 = vunpack.c.l.b16 %v153
  %v826 = vunpack.c.l.b16 %v154
  %v827 = vunpack.c.l.b16 %v155
  %v828 = vunpack.c.l.b16 %v156
  %v829 = vunpack.c.l.b16 %v157
  %v830 = vunpack.c.l.b16 %v158
  %v831 = vunpack.c.l.b16 %v159
  %v832 = vunpack.c.l.b16 %v160
  %v833 = vunpack.c.l.b16 %v161
  %v834 = vunpack.c.l.b16 %v162
  %v835 = vunpack.c.l.b16 %v163
  %v836 = vunpack.c.l.b16 %v164
  %v837 = vunpack.c.l.b16 %v165
  %v838 = vunpack.c.l.b16 %v166
  %v839 = vunpack.c.l.b16 %v167
  %v840 = vunpack.c.l.b16 %v168
  %v841 = vunpack.c.l.b16 %v169
  %v842 = vunpack.c.l.b16 %v170
  %v843 = vunpack.c.l.b16 %v171
  %v844 = vunpack.c.l.b16 %v172
  %v845 = vunpack.c.l.b16 %v173
  %v846 = vunpack.c.l.b16 %v174
  %v847 = vunpack.c.l.b16 %v175
  %v848 = vunpack.c.l.b16 %v176
  %v849 = vunpack.c.l.b16 %v177
  %v850 = vunpack.c.l.b16 %v178
  %v851 = vunpack.c.l.b16 %v179
  %v852 = vunpack.c.l.b16 %v180
  %v853 = vunpack.c.l.b16 %v181
  %v854 = vunpack.c.l.b16 %v182
  %v855 = vunpack.c.l.b16 %v183
  %v856 = vunpack.c.l.b16 %v184
  %v857 = vunpack.c.l.b16 %v185
  %v858 = vunpack.c.l.b16 %v186
  %v859 = vunpack.c.l.b16 %v187
  %v860 = vunpack.c.l.b16 %v188
  %v861 = vunpack.c.l.b16 %v189
  %v862 = vunpack.c.l.b16 %v190
  %v863 = vunpack.c.l.b16 %v191
  %v864 = vunpack.c.l.b16 %v192
  %v865 = vunpack.c.l.b16 %v193
  %v866 = vunpack.c.l.b16 %v194
  %v867 = vunpack.c.l.b16 %v195
  %v868 = vunpack.c.l.b16 %v196
  %v869 = vunpack.c.l.b16 %v197
  %v870 = vunpack.c.l.b16 %v198
  %v871 = vunpack.c.l.b16 %v199
  %v872 = vunpack.c.l.b16 %v200
  %v873 = vunpack.c.l.b16 %v201
  %v874 = vunpack.c.l.b16 %v202
  %v875 = vunpack.c.l.b16 %v203
  %v876 = vunpack.c.l.b16 %v204
  %v877 = vunpack.c.l.b16 %v205
  %v878 = vunpack.c.l.b16 %v206
  %v879 = vunpack.c.l.b16 %v207
  %v880 = vunpack.c.l.b16 %v208
  %v881 = vunpack.c.l.b16 %v209
  %v882 = vunpack.c.l.b16 %v210
  %v883 = vunpack.c.l.b16 %v211
  %v884 = vunpack.c.l.b16 %v212
  %v885 = vunpack.c.l.b16 %v213
  %v886 = vunpack.c.l.b16 %v214
  %v887 = vunpack.c.l.b16 %v215
  %v888 = vunpack.c.l.b16 %v216
  %v889 = vunpack.c.l.b16 %v217
  %v890 = vunpack.c.l.b16 %v218
  %v891 = vunpack.c.l.b16 %v219
  %v892 = vunpack.c.l.b16 %v220
  %v893 = vunpack.c.l.b16 %v221
  %v894 = vunpack.c.l.b16 %v222
  %v895 = vunpack.c.l.b16 %v223
  %v896 = vunpack.c.l.b16 %v224
  %v897 = vunpack.c.l.b16 %v225
  %v898 = vunpack.c.l.b16 %v226
  %v899 = vunpack.c.l.b16 %v227
  %v900 = vunpack.c.l.b16 %v228
  %v901 = vunpack.c.l.b16 %v229
  %v902 = vunpack.c.l.b16 %v230
  %v903 = vunpack.c.l.b16 %v231
  %v904 = vunpack.c.l.b16 %v232
  %v905 = vunpack.c.l.b16 %v233
  %v906 = vunpack.c.l.b16 %v234
  %v907 = vunpack.c.l.b16 %v235
  %v908 = vunpack.c.l.b16 %v236
  %v909 = vunpack.c.l.b16 %v237
  %v910 = vunpack.c.l.b16 %v238
  %v911 = vunpack.c.l.b16 %v239
  %v912 = vunpack.c.l.b16 %v240
  %v913 = vunpack.c.l.b16 %v241
  %v914 = vunpack.c.l.b16 %v242
  %v915 = vunpack.c.l.b16 %v243
  %v916 = vunpack.c.l.b16 %v244
  %v917 = vunpack.c.l.b16 %v245
  %v918 = vunpack.c.l.b16 %v246
  %v919 = vunpack.c.l.b16 %v247
  %v920 = vunpack.c.l.b16 %v248
  %v921 = vunpack.c.l.b16 %v249
  %v922 = vunpack.c.l.b16 %v250
  %v923 = vunpack.c.l.b16 %v251
  %v924 = vunpack.c.l.b16 %v252
  %v925 = vunpack.c.l.b16 %v253
  %v926 = vunpack.c.l.b16 %v254
  %v927 = vunpack.c.l.b16 %v255
  %v928 = vunpack.c.l.b16 %v256
  %v929 = vunpack.c.l.b16 %v257
  %v930 = vunpack.c.l.b16 %v258
  %v931 = vunpack.c.l.b16 %v259
  %v932 = vunpack.c.l.b16 %v260
  %v933 = vunpack.c.l.b16 %v261
  %v934 = vunpack.c.l.b16 %v262
  %v935 = vunpack.c.l.b16 %v263
  %v936 = vunpack.c.l.b16 %v264
  %v937 = vunpack.c.l.b16 %v265
  %v938 = vunpack.c.l.b16 %v266
  %v939 = vunpack.c.l.b16 %v267
  %v940 = vunpack.c.l.b16 %v268
  %v941 = vunpack.c.l.b16 %v269
  %v942 = vunpack.c.l.b16 %v270
  %v943 = vunpack.c.l.b16 %v271
  %v944 = vunpack.c.l.b16 %v272
  %v945 = vunpack.c.l.b16 %v273
  %v946 = vunpack.c.l.b16 %v274
  %v947 = vunpack.c.l.b16 %v275
  %v948 = vunpack.c.l.b16 %v276
  %v949 = vunpack.c.l.b16 %v277
  %v950 = vunpack.c.l.b16 %v278
  %v951 = vunpack.c.l.b16 %v279
  %v952 = vunpack.c.l.b16 %v280
  %v953 = vunpack.c.l.b16 %v281
  %v954 = vunpack.c.l.b16 %v282
  %v955 = vunpack.c.l.b16 %v283
  %v956 = vunpack.c.l.b16 %v284
  %v957 = vunpack.c.l.b16 %v285
  %v958 = vunpack.c.l.b16 %v286
  %v959 = vunpack.c.l.b16 %v287
  %v960 = vunpack.c.l.b16 %v288
  %v961 = vunpack.c.l.b16 %v289
  %v962 = vunpack.c.l.b16 %v290
  %v963 = vunpack.c.l.b16 %v291
  %v964 = vunpack.c.l.b16 %v292
  %v965 = vunpack.c.l.b16 %v293
  %v966 = vunpack.c.l.b16 %v294
  %v967 = vunpack.c.l.b16 %v295
  %v968 = vunpack.c.l.b16 %v296
  %v969 = vunpack.c.l.b16 %v297
  %v970 = vunpack.c.l.b16 %v298
  %v971 = vunpack.c.l.b16 %v299
  %v972 = vpack.c.b16 %v717, %v716
  %v973 = vpack.c.b16 %v719, %v718
  %v974 = vpack.c.b16 %v721, %v720
  %v975 = vpack.c.b16 %v723, %v722
  %v976 = vpack.c.b16 %v725, %v724
  %v977 = vpack.c.b16 %v727, %v726
  %v978 = vpack.c.b16 %v729, %v728
  %v979 = vpack.c.b16 %v731, %v730
  %v980 = vpack.c.b16 %v733, %v732
  %v981 = vpack.c.b16 %v735, %v734
  %v982 = vpack.c.b16 %v737, %v736
  %v983 = vpack.c.b16 %v739, %v738
  %v984 = vpack.c.b16 %v741, %v740
  %v985 = vpack.c.b16 %v743, %v742
  %v986 = vpack.c.b16 %v745, %v744
  %v987 = vpack.c.b16 %v747, %v746
  %v988 = vpack.c.b16 %v749, %v748
  %v989 = vpack.c.b16 %v751, %v750
  %v990 = vpack.c.b16 %v753, %v752
  %v991 = vpack.c.b16 %v755, %v754
  %v992 = vpack.c.b16 %v757, %v756
  %v993 = vpack.c.b16 %v759, %v758
  %v994 = vpack.c.b16 %v761, %v760
  %v995 = vpack.c.b16 %v763, %v762
  %v996 = vpack.c.b16 %v765, %v764
  %v997 = vpack.c.b16 %v767, %v766
  %v998 = vpack.c.b16 %v769, %v768
  %v999 = vpack.c.b16 %v771, %v770
  %v1000 = vpack.c.b16 %v773, %v772
  %v1001 = vpack.c.b16 %v775, %v774
  %v1002 = vpack.c.b16 %v777, %v776
  %v1003 = vpack.c.b16 %v779, %v778
  %v1004 = vpack.c.b16 %v781, %v780
  %v1005 = vpack.c.b16 %v783, %v782
  %v1006 = vpack.c.b16 %v785, %v784
  %v1007 = vpack.c.b16 %v787, %v786
  %v1008 = vpack.c.b16 %v789, %v788
  %v1009 = vpack.c.b16 %v791, %v790
  %v1010 = vpack.c.b16 %v793, %v792
  %v1011 = vpack.c.b16 %v795, %v794
  %v1012 = vpack.c.b16 %v797, %v796
  %v1013 = vpack.c.b16 %v799, %v798
  %v1014 = vpack.c.b16 %v801, %v800
  %v1015 = vpack.c.b16 %v803, %v802
  %v1016 = vpack.c.b16 %v805, %v804
  %v1017 = vpack.c.b16 %v807, %v806
  %v1018 = vpack.c.b16 %v809, %v808
  %v1019 = vpack.c.b16 %v811, %v810
  %v1020 = vpack.c.b16 %v813, %v812
  %v1021 = vpack.c.b16 %v815, %v814
  %v1022 = vpack.c.b16 %v817, %v816
  %v1023 = vpack.c.b16 %v819, %v818
  %v1024 = vpack.c.b16 %v821, %v820
  %v1025 = vpack.c.b16 %v823, %v822
  %v1026 = vpack.c.b16 %v825, %v824
  %v1027 = vpack.c.b16 %v827, %v826
  %v1028 = vpack.c.b16 %v829, %v828
  %v1029 = vpack.c.b16 %v831, %v830
  %v1030 = vpack.c.b16 %v833, %v832
  %v1031 = vpack.c.b16 %v835, %v834
  %v1032 = vpack.c.b16 %v837, %v836
  %v1033 = vpack.c.b16 %v839, %v838
  %v1034 = vpack.c.b16 %v841, %v840
  %v1035 = vpack.c.b16 %v843, %v842
  %v1036 = vpack.c.b16 %v845, %v844
  %v1037 = vpack.c.b16 %v847, %v846
  %v1038 = vpack.c.b16 %v849, %v848
  %v1039 = vpack.c.b16 %v851, %v850
  %v1040 = vpack.c.b16 %v853, %v852
  %v1041 = vpack.c.b16 %v855, %v854
  %v1042 = vpack.c.b16 %v857, %v856
  %v1043 = vpack.c.b16 %v859, %v858
  %v1044 = vpack.c.b16 %v861, %v860
  %v1045 = vpack.c.b16 %v863, %v862
  %v1046 = vpack.c.b16 %v865, %v864
  %v1047 = vpack.c.b16 %v867, %v866
  %v1048 = vpack.c.b16 %v869, %v868
  %v1049 = vpack.c.b16 %v871, %v870
  %v1050 = vpack.c.b16 %v873, %v872
  %v1051 = vpack.c.b16 %v875, %v874
  %v1052 = vpack.c.b16 %v877, %v876
  %v1053 = vpack.c.b16 %v879, %v878
  %v1054 = vpack.c.b16 %v881, %v880
  %v1055 = vpack.c.b16 %v883, %v882
  %v1056 = vpack.c.b16 %v885, %v884
  %v1057 = vpack.c.b16 %v887, %v886
  %v1058 = vpack.c.b16 %v889, %v888
  %v1059 = vpack.c.b16 %v891, %v890
  %v1060 = vpack.c.b16 %v893, %v892
  %v1061 = vpack.c.b16 %v895, %v894
  %v1062 = vpack.c.b16 %v897, %v896
  %v1063 = vpack.c.b16 %v899, %v898
  %v1064 = vpack.c.b16 %v901, %v900
  %v1065 = vpack.c.b16 %v903, %v902
  %v1066 = vpack.c.b16 %v905, %v904
  %v1067 = vpack.c.b16 %v907, %v906
  %v1068 = vpack.c.b16 %v909, %v908
  %v1069 = vpack.c.b16 %v911, %v910
  %v1070 = vpack.c.b16 %v913, %v912
  %v1071 = vpack.c.b16 %v915, %v914
  %v1072 = vpack.c.b16 %v917, %v916
  %v1073 = vpack.c.b16 %v919, %v918
  %v1074 = vpack.c.b16 %v921, %v920
  %v1075 = vpack.c.b16 %v923, %v922
  %v1076 = vpack.c.b16 %v925, %v924
  %v1077 = vpack.c.b16 %v927, %v926
  %v1078 = vpack.c.b16 %v929, %v928
  %v1079 = vpack.c.b16 %v931, %v930
  %v1080 = vpack.c.b16 %v933, %v932
  %v1081 = vpack.c.b16 %v935, %v934
  %v1082 = vpack.c.b16 %v937, %v936
  %v1083 = vpack.c.b16 %v939, %v938
  %v1084 = vpack.c.b16 %v941, %v940
  %v1085 = vpack.c.b16 %v943, %v942
  %v1086 = vpack.c.b16 %v945, %v944
  %v1087 = vpack.c.b16 %v947, %v946
  %v1088 = vpack.c.b16 %v949, %v948
  %v1089 = vpack.c.b16 %v951, %v950
  %v1090 = vpack.c.b16 %v953, %v952
  %v1091 = vpack.c.b16 %v955, %v954
  %v1092 = vpack.c.b16 %v957, %v956
  %v1093 = vpack.c.b16 %v959, %v958
  %v1094 = vpack.c.b16 %v961, %v960
  %v1095 = vpack.c.b16 %v963, %v962
  %v1096 = vpack.c.b16 %v965, %v964
  %v1097 = vpack.c.b16 %v967, %v966
  %v1098 = vpack.c.b16 %v969, %v968
  %v1099 = vpack.c.b16 %v971, %v970
  %1228 = vmatprep.subr.bf16.mxu0 0
  %1229 = vmatpush1.bf16.msra.mxu0 %v972
  %1230 = vmatprep.subr.bf16.mxu0 0
  %1231 = vmatpush1.bf16.msra.mxu0 %v973
  %1232 = vmatprep.subr.bf16.mxu0 0
  %1233 = vmatpush1.bf16.msra.mxu0 %v974
  %1234 = vmatprep.subr.bf16.mxu0 0
  %1235 = vmatpush1.bf16.msra.mxu0 %v975
  %1236 = vmatprep.subr.bf16.mxu0 0
  %1237 = vmatpush1.bf16.msra.mxu0 %v976
  %1238 = vmatprep.subr.bf16.mxu0 0
  %1239 = vmatpush1.bf16.msra.mxu0 %v977
  %1240 = vmatprep.subr.bf16.mxu0 0
  %1241 = vmatpush1.bf16.msra.mxu0 %v978
  %1242 = vmatprep.subr.bf16.mxu0 0
  %1243 = vmatpush1.bf16.msra.mxu0 %v979
  %1244 = vmatprep.subr.bf16.mxu0 0
  %1245 = vmatpush1.bf16.msra.mxu0 %v980
  %1246 = vmatprep.subr.bf16.mxu0 0
  %1247 = vmatpush1.bf16.msra.mxu0 %v981
  %1248 = vmatprep.subr.bf16.mxu0 0
  %1249 = vmatpush1.bf16.msra.mxu0 %v982
  %1250 = vmatprep.subr.bf16.mxu0 0
  %1251 = vmatpush1.bf16.msra.mxu0 %v983
  %1252 = vmatprep.subr.bf16.mxu0 0
  %1253 = vmatpush1.bf16.msra.mxu0 %v984
  %1254 = vmatprep.subr.bf16.mxu0 0
  %1255 = vmatpush1.bf16.msra.mxu0 %v985
  %1256 = vmatprep.subr.bf16.mxu0 0
  %1257 = vmatpush1.bf16.msra.mxu0 %v986
  %1258 = vmatprep.subr.bf16.mxu0 0
  %1259 = vmatpush1.bf16.msra.mxu0 %v987
  %1260 = vmatprep.mubr.bf16.mxu0 %v397
  %1261 = vmatmul.mubr.bf16.gmra.mrb[0].mxu0 %v396
  %v1262 = vpop.f32.mrb[0].mxu0
  %v1263 = vadd.f32 0.0, %v1262
  %v1264 = vpop.f32.mrb[0].mxu0
  %v1265 = vpop.f32.mrb[0].mxu0
  %v1266 = vadd.f32 0.0, %v1265
  %v1267 = vpop.f32.mrb[0].mxu0
  %1268 = vmatprep.mubr.bf16.mxu0 %v413
  %1269 = vmatmul.mubr.bf16.gmra.mrb[0].mxu0 %v412
  %v1270 = vpop.f32.mrb[0].mxu0
  %v1271 = vadd.f32 0.0, %v1270
  %v1272 = vpop.f32.mrb[0].mxu0
  %v1273 = vpop.f32.mrb[0].mxu0
  %v1274 = vadd.f32 0.0, %v1273
  %v1275 = vpop.f32.mrb[0].mxu0
  %1276 = vdwg.mxu0
  %1277 = vmatprep.subr.bf16.mxu0 0
  %1278 = vmatpush1.bf16.msra.mxu0 %v988
  %1279 = vmatprep.subr.bf16.mxu0 0
  %1280 = vmatpush1.bf16.msra.mxu0 %v989
  %1281 = vmatprep.subr.bf16.mxu0 0
  %1282 = vmatpush1.bf16.msra.mxu0 %v990
  %1283 = vmatprep.subr.bf16.mxu0 0
  %1284 = vmatpush1.bf16.msra.mxu0 %v991
  %1285 = vmatprep.subr.bf16.mxu0 0
  %1286 = vmatpush1.bf16.msra.mxu0 %v992
  %1287 = vmatprep.subr.bf16.mxu0 0
  %1288 = vmatpush1.bf16.msra.mxu0 %v993
  %1289 = vmatprep.subr.bf16.mxu0 0
  %1290 = vmatpush1.bf16.msra.mxu0 %v994
  %1291 = vmatprep.subr.bf16.mxu0 0
  %1292 = vmatpush1.bf16.msra.mxu0 %v995
  %1293 = vmatprep.subr.bf16.mxu0 0
  %1294 = vmatpush1.bf16.msra.mxu0 %v996
  %1295 = vmatprep.subr.bf16.mxu0 0
  %1296 = vmatpush1.bf16.msra.mxu0 %v997
  %1297 = vmatprep.subr.bf16.mxu0 0
  %1298 = vmatpush1.bf16.msra.mxu0 %v998
  %1299 = vmatprep.subr.bf16.mxu0 0
  %1300 = vmatpush1.bf16.msra.mxu0 %v999
  %1301 = vmatprep.subr.bf16.mxu0 0
  %1302 = vmatpush1.bf16.msra.mxu0 %v1000
  %1303 = vmatprep.subr.bf16.mxu0 0
  %1304 = vmatpush1.bf16.msra.mxu0 %v1001
  %1305 = vmatprep.subr.bf16.mxu0 0
  %1306 = vmatpush1.bf16.msra.mxu0 %v1002
  %1307 = vmatprep.subr.bf16.mxu0 0
  %1308 = vmatpush1.bf16.msra.mxu0 %v1003
  %1309 = vmatprep.mubr.bf16.mxu0 %v399
  %1310 = vmatmul.mubr.bf16.gmra.mrb[0].mxu0 %v398
  %v1311 = vpop.f32.mrb[0].mxu0
  %v1312 = vadd.f32 %v1263, %v1311
  %v1313 = vpop.f32.mrb[0].mxu0
  %v1314 = vpop.f32.mrb[0].mxu0
  %v1315 = vadd.f32 %v1266, %v1314
  %v1316 = vpop.f32.mrb[0].mxu0
  %1317 = vmatprep.mubr.bf16.mxu0 %v415
  %1318 = vmatmul.mubr.bf16.gmra.mrb[0].mxu0 %v414
  %v1319 = vpop.f32.mrb[0].mxu0
  %v1320 = vadd.f32 %v1271, %v1319
  %v1321 = vpop.f32.mrb[0].mxu0
  %v1322 = vpop.f32.mrb[0].mxu0
  %v1323 = vadd.f32 %v1274, %v1322
  %v1324 = vpop.f32.mrb[0].mxu0
  %1325 = vdwg.mxu0
  %1326 = vmatprep.subr.bf16.mxu0 0
  %1327 = vmatpush1.bf16.msra.mxu0 %v1004
  %1328 = vmatprep.subr.bf16.mxu0 0
  %1329 = vmatpush1.bf16.msra.mxu0 %v1005
  %1330 = vmatprep.subr.bf16.mxu0 0
  %1331 = vmatpush1.bf16.msra.mxu0 %v1006
  %1332 = vmatprep.subr.bf16.mxu0 0
  %1333 = vmatpush1.bf16.msra.mxu0 %v1007
  %1334 = vmatprep.subr.bf16.mxu0 0
  %1335 = vmatpush1.bf16.msra.mxu0 %v1008
  %1336 = vmatprep.subr.bf16.mxu0 0
  %1337 = vmatpush1.bf16.msra.mxu0 %v1009
  %1338 = vmatprep.subr.bf16.mxu0 0
  %1339 = vmatpush1.bf16.msra.mxu0 %v1010
  %1340 = vmatprep.subr.bf16.mxu0 0
  %1341 = vmatpush1.bf16.msra.mxu0 %v1011
  %1342 = vmatprep.subr.bf16.mxu0 0
  %1343 = vmatpush1.bf16.msra.mxu0 %v1012
  %1344 = vmatprep.subr.bf16.mxu0 0
  %1345 = vmatpush1.bf16.msra.mxu0 %v1013
  %1346 = vmatprep.subr.bf16.mxu0 0
  %1347 = vmatpush1.bf16.msra.mxu0 %v1014
  %1348 = vmatprep.subr.bf16.mxu0 0
  %1349 = vmatpush1.bf16.msra.mxu0 %v1015
  %1350 = vmatprep.subr.bf16.mxu0 0
  %1351 = vmatpush1.bf16.msra.mxu0 %v1016
  %1352 = vmatprep.subr.bf16.mxu0 0
  %1353 = vmatpush1.bf16.msra.mxu0 %v1017
  %1354 = vmatprep.subr.bf16.mxu0 0
  %1355 = vmatpush1.bf16.msra.mxu0 %v1018
  %1356 = vmatprep.subr.bf16.mxu0 0
  %1357 = vmatpush1.bf16.msra.mxu0 %v1019
  %1358 = vmatprep.mubr.bf16.mxu0 %v401
  %1359 = vmatmul.mubr.bf16.gmra.mrb[0].mxu0 %v400
  %v1360 = vpop.f32.mrb[0].mxu0
  %v1361 = vadd.f32 %v1312, %v1360
  %v1362 = vpop.f32.mrb[0].mxu0
  %v1363 = vpop.f32.mrb[0].mxu0
  %v1364 = vadd.f32 %v1315, %v1363
  %v1365 = vpop.f32.mrb[0].mxu0
  %1366 = vmatprep.mubr.bf16.mxu0 %v417
  %1367 = vmatmul.mubr.bf16.gmra.mrb[0].mxu0 %v416
  %v1368 = vpop.f32.mrb[0].mxu0
  %v1369 = vadd.f32 %v1320, %v1368
  %v1370 = vpop.f32.mrb[0].mxu0
  %v1371 = vpop.f32.mrb[0].mxu0
  %v1372 = vadd.f32 %v1323, %v1371
  %v1373 = vpop.f32.mrb[0].mxu0
  %1374 = vdwg.mxu0
  %1375 = vmatprep.subr.bf16.mxu0 0
  %1376 = vmatpush1.bf16.msra.mxu0 %v1020
  %1377 = vmatprep.subr.bf16.mxu0 0
  %1378 = vmatpush1.bf16.msra.mxu0 %v1021
  %1379 = vmatprep.subr.bf16.mxu0 0
  %1380 = vmatpush1.bf16.msra.mxu0 %v1022
  %1381 = vmatprep.subr.bf16.mxu0 0
  %1382 = vmatpush1.bf16.msra.mxu0 %v1023
  %1383 = vmatprep.subr.bf16.mxu0 0
  %1384 = vmatpush1.bf16.msra.mxu0 %v1024
  %1385 = vmatprep.subr.bf16.mxu0 0
  %1386 = vmatpush1.bf16.msra.mxu0 %v1025
  %1387 = vmatprep.subr.bf16.mxu0 0
  %1388 = vmatpush1.bf16.msra.mxu0 %v1026
  %1389 = vmatprep.subr.bf16.mxu0 0
  %1390 = vmatpush1.bf16.msra.mxu0 %v1027
  %1391 = vmatprep.subr.bf16.mxu0 0
  %1392 = vmatpush1.bf16.msra.mxu0 %v1028
  %1393 = vmatprep.subr.bf16.mxu0 0
  %1394 = vmatpush1.bf16.msra.mxu0 %v1029
  %1395 = vmatprep.subr.bf16.mxu0 0
  %1396 = vmatpush1.bf16.msra.mxu0 %v1030
  %1397 = vmatprep.subr.bf16.mxu0 0
  %1398 = vmatpush1.bf16.msra.mxu0 %v1031
  %1399 = vmatprep.subr.bf16.mxu0 0
  %1400 = vmatpush1.bf16.msra.mxu0 %v1032
  %1401 = vmatprep.subr.bf16.mxu0 0
  %1402 = vmatpush1.bf16.msra.mxu0 %v1033
  %1403 = vmatprep.subr.bf16.mxu0 0
  %1404 = vmatpush1.bf16.msra.mxu0 %v1034
  %1405 = vmatprep.subr.bf16.mxu0 0
  %1406 = vmatpush1.bf16.msra.mxu0 %v1035
  %1407 = vmatprep.mubr.bf16.mxu0 %v403
  %1408 = vmatmul.mubr.bf16.gmra.mrb[0].mxu0 %v402
  %v1409 = vpop.f32.mrb[0].mxu0
  %v1410 = vadd.f32 %v1361, %v1409
  %v1411 = vpop.f32.mrb[0].mxu0
  %v1412 = vpop.f32.mrb[0].mxu0
  %v1413 = vadd.f32 %v1364, %v1412
  %v1414 = vpop.f32.mrb[0].mxu0
  %1415 = vmatprep.mubr.bf16.mxu0 %v419
  %1416 = vmatmul.mubr.bf16.gmra.mrb[0].mxu0 %v418
  %v1417 = vpop.f32.mrb[0].mxu0
  %v1418 = vadd.f32 %v1369, %v1417
  %v1419 = vpop.f32.mrb[0].mxu0
  %v1420 = vpop.f32.mrb[0].mxu0
  %v1421 = vadd.f32 %v1372, %v1420
  %v1422 = vpop.f32.mrb[0].mxu0
  %1423 = vdwg.mxu0
  %1424 = vmatprep.subr.bf16.mxu0 0
  %1425 = vmatpush1.bf16.msra.mxu0 %v1036
  %1426 = vmatprep.subr.bf16.mxu0 0
  %1427 = vmatpush1.bf16.msra.mxu0 %v1037
  %1428 = vmatprep.subr.bf16.mxu0 0
  %1429 = vmatpush1.bf16.msra.mxu0 %v1038
  %1430 = vmatprep.subr.bf16.mxu0 0
  %1431 = vmatpush1.bf16.msra.mxu0 %v1039
  %1432 = vmatprep.subr.bf16.mxu0 0
  %1433 = vmatpush1.bf16.msra.mxu0 %v1040
  %1434 = vmatprep.subr.bf16.mxu0 0
  %1435 = vmatpush1.bf16.msra.mxu0 %v1041
  %1436 = vmatprep.subr.bf16.mxu0 0
  %1437 = vmatpush1.bf16.msra.mxu0 %v1042
  %1438 = vmatprep.subr.bf16.mxu0 0
  %1439 = vmatpush1.bf16.msra.mxu0 %v1043
  %1440 = vmatprep.subr.bf16.mxu0 0
  %1441 = vmatpush1.bf16.msra.mxu0 %v1044
  %1442 = vmatprep.subr.bf16.mxu0 0
  %1443 = vmatpush1.bf16.msra.mxu0 %v1045
  %1444 = vmatprep.subr.bf16.mxu0 0
  %1445 = vmatpush1.bf16.msra.mxu0 %v1046
  %1446 = vmatprep.subr.bf16.mxu0 0
  %1447 = vmatpush1.bf16.msra.mxu0 %v1047
  %1448 = vmatprep.subr.bf16.mxu0 0
  %1449 = vmatpush1.bf16.msra.mxu0 %v1048
  %1450 = vmatprep.subr.bf16.mxu0 0
  %1451 = vmatpush1.bf16.msra.mxu0 %v1049
  %1452 = vmatprep.subr.bf16.mxu0 0
  %1453 = vmatpush1.bf16.msra.mxu0 %v1050
  %1454 = vmatprep.subr.bf16.mxu0 0
  %1455 = vmatpush1.bf16.msra.mxu0 %v1051
  %1456 = vmatprep.mubr.bf16.mxu0 %v405
  %1457 = vmatmul.mubr.bf16.gmra.mrb[0].mxu0 %v404
  %v1458 = vpop.f32.mrb[0].mxu0
  %v1459 = vadd.f32 %v1410, %v1458
  %v1460 = vpop.f32.mrb[0].mxu0
  %v1461 = vpop.f32.mrb[0].mxu0
  %v1462 = vadd.f32 %v1413, %v1461
  %v1463 = vpop.f32.mrb[0].mxu0
  %1464 = vmatprep.mubr.bf16.mxu0 %v421
  %1465 = vmatmul.mubr.bf16.gmra.mrb[0].mxu0 %v420
  %v1466 = vpop.f32.mrb[0].mxu0
  %v1467 = vadd.f32 %v1418, %v1466
  %v1468 = vpop.f32.mrb[0].mxu0
  %v1469 = vpop.f32.mrb[0].mxu0
  %v1470 = vadd.f32 %v1421, %v1469
  %v1471 = vpop.f32.mrb[0].mxu0
  %1472 = vdwg.mxu0
  %1473 = vmatprep.subr.bf16.mxu0 0
  %1474 = vmatpush1.bf16.msra.mxu0 %v1052
  %1475 = vmatprep.subr.bf16.mxu0 0
  %1476 = vmatpush1.bf16.msra.mxu0 %v1053
  %1477 = vmatprep.subr.bf16.mxu0 0
  %1478 = vmatpush1.bf16.msra.mxu0 %v1054
  %1479 = vmatprep.subr.bf16.mxu0 0
  %1480 = vmatpush1.bf16.msra.mxu0 %v1055
  %1481 = vmatprep.subr.bf16.mxu0 0
  %1482 = vmatpush1.bf16.msra.mxu0 %v1056
  %1483 = vmatprep.subr.bf16.mxu0 0
  %1484 = vmatpush1.bf16.msra.mxu0 %v1057
  %1485 = vmatprep.subr.bf16.mxu0 0
  %1486 = vmatpush1.bf16.msra.mxu0 %v1058
  %1487 = vmatprep.subr.bf16.mxu0 0
  %1488 = vmatpush1.bf16.msra.mxu0 %v1059
  %1489 = vmatprep.subr.bf16.mxu0 0
  %1490 = vmatpush1.bf16.msra.mxu0 %v1060
  %1491 = vmatprep.subr.bf16.mxu0 0
  %1492 = vmatpush1.bf16.msra.mxu0 %v1061
  %1493 = vmatprep.subr.bf16.mxu0 0
  %1494 = vmatpush1.bf16.msra.mxu0 %v1062
  %1495 = vmatprep.subr.bf16.mxu0 0
  %1496 = vmatpush1.bf16.msra.mxu0 %v1063
  %1497 = vmatprep.subr.bf16.mxu0 0
  %1498 = vmatpush1.bf16.msra.mxu0 %v1064
  %1499 = vmatprep.subr.bf16.mxu0 0
  %1500 = vmatpush1.bf16.msra.mxu0 %v1065
  %1501 = vmatprep.subr.bf16.mxu0 0
  %1502 = vmatpush1.bf16.msra.mxu0 %v1066
  %1503 = vmatprep.subr.bf16.mxu0 0
  %1504 = vmatpush1.bf16.msra.mxu0 %v1067
  %1505 = vmatprep.mubr.bf16.mxu0 %v407
  %1506 = vmatmul.mubr.bf16.gmra.mrb[0].mxu0 %v406
  %v1507 = vpop.f32.mrb[0].mxu0
  %v1508 = vadd.f32 %v1459, %v1507
  %v1509 = vpop.f32.mrb[0].mxu0
  %v1510 = vpop.f32.mrb[0].mxu0
  %v1511 = vadd.f32 %v1462, %v1510
  %v1512 = vpop.f32.mrb[0].mxu0
  %1513 = vmatprep.mubr.bf16.mxu0 %v423
  %1514 = vmatmul.mubr.bf16.gmra.mrb[0].mxu0 %v422
  %v1515 = vpop.f32.mrb[0].mxu0
  %v1516 = vadd.f32 %v1467, %v1515
  %v1517 = vpop.f32.mrb[0].mxu0
  %v1518 = vpop.f32.mrb[0].mxu0
  %v1519 = vadd.f32 %v1470, %v1518
  %v1520 = vpop.f32.mrb[0].mxu0
  %1521 = vdwg.mxu0
  %1522 = vmatprep.subr.bf16.mxu0 0
  %1523 = vmatpush1.bf16.msra.mxu0 %v1068
  %1524 = vmatprep.subr.bf16.mxu0 0
  %1525 = vmatpush1.bf16.msra.mxu0 %v1069
  %1526 = vmatprep.subr.bf16.mxu0 0
  %1527 = vmatpush1.bf16.msra.mxu0 %v1070
  %1528 = vmatprep.subr.bf16.mxu0 0
  %1529 = vmatpush1.bf16.msra.mxu0 %v1071
  %1530 = vmatprep.subr.bf16.mxu0 0
  %1531 = vmatpush1.bf16.msra.mxu0 %v1072
  %1532 = vmatprep.subr.bf16.mxu0 0
  %1533 = vmatpush1.bf16.msra.mxu0 %v1073
  %1534 = vmatprep.subr.bf16.mxu0 0
  %1535 = vmatpush1.bf16.msra.mxu0 %v1074
  %1536 = vmatprep.subr.bf16.mxu0 0
  %1537 = vmatpush1.bf16.msra.mxu0 %v1075
  %1538 = vmatprep.subr.bf16.mxu0 0
  %1539 = vmatpush1.bf16.msra.mxu0 %v1076
  %1540 = vmatprep.subr.bf16.mxu0 0
  %1541 = vmatpush1.bf16.msra.mxu0 %v1077
  %1542 = vmatprep.subr.bf16.mxu0 0
  %1543 = vmatpush1.bf16.msra.mxu0 %v1078
  %1544 = vmatprep.subr.bf16.mxu0 0
  %1545 = vmatpush1.bf16.msra.mxu0 %v1079
  %1546 = vmatprep.subr.bf16.mxu0 0
  %1547 = vmatpush1.bf16.msra.mxu0 %v1080
  %1548 = vmatprep.subr.bf16.mxu0 0
  %1549 = vmatpush1.bf16.msra.mxu0 %v1081
  %1550 = vmatprep.subr.bf16.mxu0 0
  %1551 = vmatpush1.bf16.msra.mxu0 %v1082
  %1552 = vmatprep.subr.bf16.mxu0 0
  %1553 = vmatpush1.bf16.msra.mxu0 %v1083
  %1554 = vmatprep.mubr.bf16.mxu0 %v409
  %1555 = vmatmul.mubr.bf16.gmra.mrb[0].mxu0 %v408
  %v1556 = vpop.f32.mrb[0].mxu0
  %v1557 = vadd.f32 %v1508, %v1556
  %v1558 = vpop.f32.mrb[0].mxu0
  %v1559 = vpop.f32.mrb[0].mxu0
  %v1560 = vadd.f32 %v1511, %v1559
  %v1561 = vpop.f32.mrb[0].mxu0
  %1562 = vmatprep.mubr.bf16.mxu0 %v425
  %1563 = vmatmul.mubr.bf16.gmra.mrb[0].mxu0 %v424
  %v1564 = vpop.f32.mrb[0].mxu0
  %v1565 = vadd.f32 %v1516, %v1564
  %v1566 = vpop.f32.mrb[0].mxu0
  %v1567 = vpop.f32.mrb[0].mxu0
  %v1568 = vadd.f32 %v1519, %v1567
  %v1569 = vpop.f32.mrb[0].mxu0
  %1570 = vdwg.mxu0
  %1571 = vmatprep.subr.bf16.mxu0 0
  %1572 = vmatpush1.bf16.msra.mxu0 %v1084
  %1573 = vmatprep.subr.bf16.mxu0 0
  %1574 = vmatpush1.bf16.msra.mxu0 %v1085
  %1575 = vmatprep.subr.bf16.mxu0 0
  %1576 = vmatpush1.bf16.msra.mxu0 %v1086
  %1577 = vmatprep.subr.bf16.mxu0 0
  %1578 = vmatpush1.bf16.msra.mxu0 %v1087
  %1579 = vmatprep.subr.bf16.mxu0 0
  %1580 = vmatpush1.bf16.msra.mxu0 %v1088
  %1581 = vmatprep.subr.bf16.mxu0 0
  %1582 = vmatpush1.bf16.msra.mxu0 %v1089
  %1583 = vmatprep.subr.bf16.mxu0 0
  %1584 = vmatpush1.bf16.msra.mxu0 %v1090
  %1585 = vmatprep.subr.bf16.mxu0 0
  %1586 = vmatpush1.bf16.msra.mxu0 %v1091
  %1587 = vmatprep.subr.bf16.mxu0 0
  %1588 = vmatpush1.bf16.msra.mxu0 %v1092
  %1589 = vmatprep.subr.bf16.mxu0 0
  %1590 = vmatpush1.bf16.msra.mxu0 %v1093
  %1591 = vmatprep.subr.bf16.mxu0 0
  %1592 = vmatpush1.bf16.msra.mxu0 %v1094
  %1593 = vmatprep.subr.bf16.mxu0 0
  %1594 = vmatpush1.bf16.msra.mxu0 %v1095
  %1595 = vmatprep.subr.bf16.mxu0 0
  %1596 = vmatpush1.bf16.msra.mxu0 %v1096
  %1597 = vmatprep.subr.bf16.mxu0 0
  %1598 = vmatpush1.bf16.msra.mxu0 %v1097
  %1599 = vmatprep.subr.bf16.mxu0 0
  %1600 = vmatpush1.bf16.msra.mxu0 %v1098
  %1601 = vmatprep.subr.bf16.mxu0 0
  %1602 = vmatpush1.bf16.msra.mxu0 %v1099
  %1603 = vmatprep.mubr.bf16.mxu0 %v411
  %1604 = vmatmul.mubr.bf16.gmra.mrb[0].mxu0 %v410
  %v1605 = vpop.f32.mrb[0].mxu0
  %v1606 = vadd.f32 %v1557, %v1605
  %v1607 = vpop.f32.mrb[0].mxu0
  %v1608 = vpop.f32.mrb[0].mxu0
  %v1609 = vadd.f32 %v1560, %v1608
  %v1610 = vpop.f32.mrb[0].mxu0
  %1611 = vmatprep.mubr.bf16.mxu0 %v427
  %1612 = vmatmul.mubr.bf16.gmra.mrb[0].mxu0 %v426
  %v1613 = vpop.f32.mrb[0].mxu0
  %v1614 = vadd.f32 %v1565, %v1613
  %v1615 = vpop.f32.mrb[0].mxu0
  %v1616 = vpop.f32.mrb[0].mxu0
  %v1617 = vadd.f32 %v1568, %v1616
  %v1618 = vpop.f32.mrb[0].mxu0
  %1619 = vdwg.mxu0
  %vm1620 = vcmask 523264
  %1621 = vst.msk [vmem:[%s2] sm:$0xff] %vm1620, %v1606
  %1622 = vst.msk [vmem:[%s2 + $0x8] sm:$0xff] %vm1620, %v1609
  %1623 = vst.msk [vmem:[%s2 + $0x10] sm:$0xff] %vm1620, %v1614
  %1624 = vst.msk [vmem:[%s2 + $0x18] sm:$0xff] %vm1620, %v1617
  // Predicated region
  $region10: #{discriminator_forward.13} parent=0 // pred_check
    _
  $region11: #{discriminator_forward.13} parent=0 // pred_check_branch
    %1626 = sbr.rel (0) target = $region13
  $region12: #{discriminator_forward.13} parent=0 // pred_region
    _
  $region13: #{discriminator_forward.13} parent=0 // pred_fallthru
    _
  // Predicated region
  $region14: #{discriminator_forward.13} parent=0 // pred_check
    _
  $region15: #{discriminator_forward.13} parent=0 // pred_check_branch
    %1628 = sbr.rel (0) target = $region17
  $region16: #{discriminator_forward.13} parent=0 // pred_region
    _
  $region17: #{discriminator_forward.13} parent=0 // pred_fallthru
    _

// kernel: discriminator_forward.14
$region0: #{discriminator_forward.14}
  #allocation0 [shape = 'u32[]', space=smem, size = 0x4, offset = 0x4, fixed_abs, tag = 'smem constant byte address 0x4 - core index']
  #allocation1 [shape = 'u32[144,128]{1,0:T(1,128)}', space=vmem, size = 0x12000, scoped, tag = 'internal scratch']
  %s0 = inlined_call_operand.vmem [shape: f32[32,64], index: 0, kind: input, shape index: {}]
  %s1 = inlined_call_operand.vmem [shape: f32[1,64], index: 1, kind: input, shape index: {}]
  %s2 = inlined_call_operand.vmem [shape: f32[1,64], index: 2, kind: input, shape index: {}]
  %s3 = inlined_call_operand.vmem [shape: bf16[32,64], index: 3, kind: output, shape index: {}]
  %s4 = sld [smem:[#allocation0]]
  $region22: #{discriminator_forward.14} parent=0
    _
  %s6 = ssub.s32 1, %s4
  %s7 = scalar_select 0, %s6, %s4
  // Predicated region
  $region2: #{discriminator_forward.14} parent=0 // pred_check
    _
  $region3: #{discriminator_forward.14} parent=0 // pred_check_branch
    %9 = sbr.rel (0) target = $region5
  $region4: #{discriminator_forward.14} parent=0 // pred_region
    _
  $region5: #{discriminator_forward.14} parent=0 // pred_fallthru
    _
  // Predicated region
  $region6: #{discriminator_forward.14} parent=0 // pred_check
    _
  $region7: #{discriminator_forward.14} parent=0 // pred_check_branch
    %11 = sbr.rel (0) target = $region9
  $region8: #{discriminator_forward.14} parent=0 // pred_region
    _
  $region9: #{discriminator_forward.14} parent=0 // pred_fallthru
    _
  // Predicated region
  $region10: #{discriminator_forward.14} parent=0 // pred_check
    _
  $region11: #{discriminator_forward.14} parent=0 // pred_check_branch
    %13 = sbr.rel (0) target = $region13
  $region12: #{discriminator_forward.14} parent=0 // pred_region
    _
  $region13: #{discriminator_forward.14} parent=0 // pred_fallthru
    _
  %v14 = vld [vmem:[%s0] sm:$0xff]
  %v15 = vld [vmem:[%s0 + $0x8] sm:$0xff]
  %v16 = vld [vmem:[%s0 + $0x10] sm:$0xff]
  %v17 = vld [vmem:[%s0 + $0x18] sm:$0xff]
  %v18 = vld [vmem:[%s1] sm:$0x1]
  %v20 = vlaneseq
  %v21 = vshrl.u32 %v20, 7
  %v22 = vsub.s32 0, %v21
  %v23 = vrot.slane %v18, %v22
  %v25 = vmul.f32 %v14, %v23
  %v26 = vmul.f32 %v15, %v23
  %v27 = vmul.f32 %v16, %v23
  %v28 = vmul.f32 %v17, %v23
  %v29 = vld [vmem:[%s2] sm:$0x1]
  %v31 = vlaneseq
  %v32 = vshrl.u32 %v31, 7
  %v33 = vsub.s32 0, %v32
  %v34 = vrot.slane %v29, %v33
  %v36 = vadd.f32 %v25, %v34
  %v37 = vadd.f32 %v26, %v34
  %v38 = vadd.f32 %v27, %v34
  %v39 = vadd.f32 %v28, %v34
  %vm40 = vcmp.gt.f32.partialorder %v36, 0.0
  %vm41 = vcmp.gt.f32.partialorder %v37, 0.0
  %vm42 = vcmp.gt.f32.partialorder %v38, 0.0
  %vm43 = vcmp.gt.f32.partialorder %v39, 0.0
  %v44 = vmul.f32 %v36, 0.2
  %v45 = vmul.f32 %v37, 0.2
  %v46 = vmul.f32 %v38, 0.2
  %v47 = vmul.f32 %v39, 0.2
  %v48 = vsel %vm40, %v36, %v44
  %v49 = vsel %vm41, %v37, %v45
  %v50 = vsel %vm42, %v38, %v46
  %v51 = vsel %vm43, %v39, %v47
  %v52 = vpack.c.bf16 %v49, %v48
  %v53 = vpack.c.bf16 %v51, %v50
  %v56 = vunpack.c.l.b16 %v52
  %v57 = vunpack.c.h.b16 %v52
  %v58 = vunpack.c.l.b16 %v53
  %v59 = vunpack.c.h.b16 %v53
  %v60 = vpack.c.b16 %v56, %v56
  %v61 = vpack.c.b16 %v57, %v57
  %v62 = vpack.c.b16 %v58, %v58
  %v63 = vpack.c.b16 %v59, %v59
  %vm68 = vcmask 519168
  %69 = vst.msk [vmem:[%s3] sm:$0xf] %vm68, %v60
  %70 = vst.msk [vmem:[%s3 + $0x4] sm:$0xf] %vm68, %v61
  %71 = vst.msk [vmem:[%s3 + $0x8] sm:$0xf] %vm68, %v62
  %72 = vst.msk [vmem:[%s3 + $0xc] sm:$0xf] %vm68, %v63
  // Predicated region
  $region14: #{discriminator_forward.14} parent=0 // pred_check
    _
  $region15: #{discriminator_forward.14} parent=0 // pred_check_branch
    %74 = sbr.rel (0) target = $region17
  $region16: #{discriminator_forward.14} parent=0 // pred_region
    _
  $region17: #{discriminator_forward.14} parent=0 // pred_fallthru
    _
  // Predicated region
  $region18: #{discriminator_forward.14} parent=0 // pred_check
    _
  $region19: #{discriminator_forward.14} parent=0 // pred_check_branch
    %76 = sbr.rel (0) target = $region21
  $region20: #{discriminator_forward.14} parent=0 // pred_region
    _
  $region21: #{discriminator_forward.14} parent=0 // pred_fallthru
    _

// kernel: discriminator_forward.15
$region0: #{discriminator_forward.15}
  #allocation0 [shape = 'u32[]', space=smem, size = 0x4, offset = 0x4, fixed_abs, tag = 'smem constant byte address 0x4 - core index']
  #allocation1 [shape = 'u32[144,128]{1,0:T(1,128)}', space=vmem, size = 0x12000, scoped, tag = 'internal scratch']
  %s0 = inlined_call_operand.vmem [shape: bf16[2,1024], index: 0, kind: input, shape index: {}]
  %s1 = inlined_call_operand.vmem [shape: bf16[1,1024], index: 1, kind: input, shape index: {}]
  %s2 = inlined_call_operand.vmem [shape: f32[2,1], index: 2, kind: output, shape index: {}]
  %s3 = sld [smem:[#allocation0]]
  $region18: #{discriminator_forward.15} parent=0
    _
  %s5 = ssub.s32 1, %s3
  %s6 = scalar_select 0, %s5, %s3
  // Predicated region
  $region2: #{discriminator_forward.15} parent=0 // pred_check
    _
  $region3: #{discriminator_forward.15} parent=0 // pred_check_branch
    %8 = sbr.rel (0) target = $region5
  $region4: #{discriminator_forward.15} parent=0 // pred_region
    _
  $region5: #{discriminator_forward.15} parent=0 // pred_fallthru
    _
  // Predicated region
  $region6: #{discriminator_forward.15} parent=0 // pred_check
    _
  $region7: #{discriminator_forward.15} parent=0 // pred_check_branch
    %10 = sbr.rel (0) target = $region9
  $region8: #{discriminator_forward.15} parent=0 // pred_region
    _
  $region9: #{discriminator_forward.15} parent=0 // pred_fallthru
    _
  %v11 = vld [vmem:[%s0] sm:$0xff]
  %v12 = vunpack.c.l.bf16 %v11
  %v13 = vunpack.c.h.bf16 %v11
  %v14 = vld [vmem:[%s1] sm:$0xff]
  %v15 = vunpack.c.l.bf16 %v14
  %v16 = vunpack.c.h.bf16 %v14
  %v19 = vlaneseq
  %v20 = vshrl.u32 %v19, 7
  %v21 = vsub.s32 0, %v20
  %v22 = vrot.slane %v15, %v21
  %v23 = vlaneseq
  %v24 = vshrl.u32 %v23, 7
  %v25 = vsub.s32 2, %v24
  %v26 = vrot.slane %v15, %v25
  %v27 = vlaneseq
  %v28 = vshrl.u32 %v27, 7
  %v29 = vsub.s32 4, %v28
  %v30 = vrot.slane %v15, %v29
  %v31 = vlaneseq
  %v32 = vshrl.u32 %v31, 7
  %v33 = vsub.s32 6, %v32
  %v34 = vrot.slane %v15, %v33
  %v35 = vlaneseq
  %v36 = vshrl.u32 %v35, 7
  %v37 = vsub.s32 0, %v36
  %v38 = vrot.slane %v16, %v37
  %v39 = vlaneseq
  %v40 = vshrl.u32 %v39, 7
  %v41 = vsub.s32 2, %v40
  %v42 = vrot.slane %v16, %v41
  %v43 = vlaneseq
  %v44 = vshrl.u32 %v43, 7
  %v45 = vsub.s32 4, %v44
  %v46 = vrot.slane %v16, %v45
  %v47 = vlaneseq
  %v48 = vshrl.u32 %v47, 7
  %v49 = vsub.s32 6, %v48
  %v50 = vrot.slane %v16, %v49
  %v59 = vlaneseq
  %v60 = vshrl.u32 %v59, 7
  %v61 = vsub.s32 0, %v60
  %v62 = vrot.slane %v22, %v61
  %v63 = vlaneseq
  %v64 = vshrl.u32 %v63, 7
  %v65 = vsub.s32 0, %v64
  %v66 = vrot.slane %v26, %v65
  %v67 = vlaneseq
  %v68 = vshrl.u32 %v67, 7
  %v69 = vsub.s32 0, %v68
  %v70 = vrot.slane %v30, %v69
  %v71 = vlaneseq
  %v72 = vshrl.u32 %v71, 7
  %v73 = vsub.s32 0, %v72
  %v74 = vrot.slane %v34, %v73
  %v75 = vlaneseq
  %v76 = vshrl.u32 %v75, 7
  %v77 = vsub.s32 0, %v76
  %v78 = vrot.slane %v38, %v77
  %v79 = vlaneseq
  %v80 = vshrl.u32 %v79, 7
  %v81 = vsub.s32 0, %v80
  %v82 = vrot.slane %v42, %v81
  %v83 = vlaneseq
  %v84 = vshrl.u32 %v83, 7
  %v85 = vsub.s32 0, %v84
  %v86 = vrot.slane %v46, %v85
  %v87 = vlaneseq
  %v88 = vshrl.u32 %v87, 7
  %v89 = vsub.s32 0, %v88
  %v90 = vrot.slane %v50, %v89
  %v99 = vcombine.low %v62, %v66
  %v100 = vcombine.low %v70, %v74
  %v102 = vunpack.c.l.s4 1983009808
  %v103 = vunpack.c.0.s8 %v102
  %v104 = vlaneseq
  %v105 = vshrl.u32 %v104, 7
  %v106 = vsub.s32 %v103, %v105
  %v107 = vrot.slane %v99, %v106
  %v109 = vunpack.c.l.s4 1983009808
  %v110 = vunpack.c.0.s8 %v109
  %v111 = vlaneseq
  %v112 = vshrl.u32 %v111, 7
  %v113 = vsub.s32 %v110, %v112
  %v114 = vrot.slane %v100, %v113
  %v115 = vcombine.low %v107, %v114
  %v116 = vcombine.low %v78, %v82
  %v117 = vcombine.low %v86, %v90
  %v119 = vunpack.c.l.s4 1983009808
  %v120 = vunpack.c.0.s8 %v119
  %v121 = vlaneseq
  %v122 = vshrl.u32 %v121, 7
  %v123 = vsub.s32 %v120, %v122
  %v124 = vrot.slane %v116, %v123
  %v126 = vunpack.c.l.s4 1983009808
  %v127 = vunpack.c.0.s8 %v126
  %v128 = vlaneseq
  %v129 = vshrl.u32 %v128, 7
  %v130 = vsub.s32 %v127, %v129
  %v131 = vrot.slane %v117, %v130
  %v132 = vcombine.low %v124, %v131
  %v135 = vmul.f32 %v12, %v115
  %v136 = vmul.f32 %v13, %v132
  %v139 = vcombine.high %v135, %v135
  %v141 = vunpack.c.l.s4 1983009808
  %v142 = vunpack.c.0.s8 %v141
  %v143 = vlaneseq
  %v144 = vshrl.u32 %v143, 7
  %v145 = vsub.s32 %v142, %v144
  %v146 = vrot.slane %v135, %v145
  %v148 = vunpack.c.l.s4 1983009808
  %v149 = vunpack.c.0.s8 %v148
  %v150 = vlaneseq
  %v151 = vshrl.u32 %v150, 7
  %v152 = vsub.s32 %v149, %v151
  %v153 = vrot.slane %v139, %v152
  %v154 = vcombine.high %v146, %v146
  %v155 = vcombine.high %v153, %v153
  %v156 = vcombine.high %v136, %v136
  %v158 = vunpack.c.l.s4 1983009808
  %v159 = vunpack.c.0.s8 %v158
  %v160 = vlaneseq
  %v161 = vshrl.u32 %v160, 7
  %v162 = vsub.s32 %v159, %v161
  %v163 = vrot.slane %v136, %v162
  %v165 = vunpack.c.l.s4 1983009808
  %v166 = vunpack.c.0.s8 %v165
  %v167 = vlaneseq
  %v168 = vshrl.u32 %v167, 7
  %v169 = vsub.s32 %v166, %v168
  %v170 = vrot.slane %v156, %v169
  %v171 = vcombine.high %v163, %v163
  %v172 = vcombine.high %v170, %v170
  %vm181 = vcmask 1041408
  %v182 = vsel %vm181, %v146, 0.0
  %v183 = vsel %vm181, %v154, 0.0
  %v184 = vadd.f32 %v182, %v183
  %v185 = vsel %vm181, %v153, 0.0
  %v186 = vadd.f32 %v184, %v185
  %v187 = vsel %vm181, %v155, 0.0
  %v188 = vadd.f32 %v186, %v187
  %v189 = vsel %vm181, %v163, 0.0
  %v190 = vadd.f32 %v188, %v189
  %v191 = vsel %vm181, %v171, 0.0
  %v192 = vadd.f32 %v190, %v191
  %v193 = vsel %vm181, %v170, 0.0
  %v194 = vadd.f32 %v192, %v193
  %v195 = vsel %vm181, %v172, 0.0
  %v196 = vadd.f32 %v194, %v195
  %197 = vadd.xlane.f32.xlu0 %v196
  %v198 = vpop.xlane.xlu0 %197
  %v199 = vsub.f32 0.0, %v198
  %v200 = vmul.f32 %v199, 1.442695
  %v201 = vpow.pop %v200
  %v202 = vadd.f32 %v201, 1.0
  %v203 = vrcp.pop %v202
  %v204 = vmul.f32 1.0, %v203
  %vm205 = vcmask 1024
  %206 = vst.msk [vmem:[%s2] sm:$0x3] %vm205, %v204
  // Predicated region
  $region10: #{discriminator_forward.15} parent=0 // pred_check
    _
  $region11: #{discriminator_forward.15} parent=0 // pred_check_branch
    %208 = sbr.rel (0) target = $region13
  $region12: #{discriminator_forward.15} parent=0 // pred_region
    _
  $region13: #{discriminator_forward.15} parent=0 // pred_fallthru
    _
  // Predicated region
  $region14: #{discriminator_forward.15} parent=0 // pred_check
    _
  $region15: #{discriminator_forward.15} parent=0 // pred_check_branch
    %210 = sbr.rel (0) target = $region17
  $region16: #{discriminator_forward.15} parent=0 // pred_region
    _
  $region17: #{discriminator_forward.15} parent=0 // pred_fallthru
    _

</llo_original>
